<compile_context>
chip_gen: v7x
topology: tpu7x:2x2x1
jax: 0.10.0
libtpu: 0.0.40
codegen_flags: <defaults>
</compile_context>

<pallas_src>
import functools

import jax
import jax.numpy as jnp
import numpy as np
from jax import lax
from jax.experimental import pallas as pl
from jax.experimental.pallas import tpu as pltpu

# Older JAX releases named this TPUCompilerParams.
_CompilerParams = getattr(pltpu, "CompilerParams", None) or getattr(
    pltpu, "TPUCompilerParams")


# ----------------------------------------------------------------------------
# Kernel
# ----------------------------------------------------------------------------
def _make_resblock_kernel(H, W, C, RC, compute_dtype, unroll):
    """Kernel specialized to static shapes. RC = row-chunk size (divides H)."""
    NCH = H // RC

    def _lrelu(v):
        return jnp.where(v > 0, v, 0.2 * v)

    def kernel(x_ref, w1_ref, b1_ref, w2_ref, b2_ref, o_ref, xpad_ref, midpad_ref):
        # x_ref     : (1, H, W, C)      input block (conv1 input + residual source)
        # w*_ref    : (9*C, C)          im2col weights, pre-cast to compute_dtype
        # b*_ref    : (1, C)            biases (f32)
        # o_ref     : (1, H, W, C)      output block
        # *pad_ref  : (H+2, W+2, C)     compute_dtype scratch; zero border,
        #                               interior = x / lrelu(conv1)

        # Re-zero only the 1-px border strips every grid step (interiors are
        # fully overwritten below).  Cheap (O((H+W)*C) vs O(H*W*C)) and stays
        # correct when the batch grid axis is sharded across v7x's two
        # TensorCores (so we cannot gate this on program_id == 0).
        zrow = jnp.zeros((1, W + 2, C), compute_dtype)
        zcol = jnp.zeros((H + 2, 1, C), compute_dtype)
        for pad in (xpad_ref, midpad_ref):
            pad[0:1, :, :] = zrow
            pad[H + 1:H + 2, :, :] = zrow
            pad[:, 0:1, :] = zcol
            pad[:, W + 1:W + 2, :] = zcol

        # In-kernel padding: the input is shipped to the kernel once and copied
        # into the interior of the zero-bordered scratch (no wrapper-side pad).
        xpad_ref[1:H + 1, 1:W + 1, :] = x_ref[0].astype(compute_dtype)

        # Bias loads hoisted out of the row-chunk loops (JAX does not CSE them).
        b1v = b1_ref[...].astype(jnp.float32)
        b2v = b2_ref[...].astype(jnp.float32)

        def conv_chunk(src_ref, w_ref, bias, r0):
            """3x3 same-conv producing output rows [r0, r0+RC) from padded src."""
            acc = jnp.zeros((RC * W, C), jnp.float32)
            for dy in range(3):
                # One slab load per kernel row; dx shifts are value slices.
                # TODO(synk): derive the dx=1,2 shifts with pltpu.roll on the
                #   sublane axis to push the shift work onto the idle XLU.
                slab = src_ref[pl.ds(r0 + dy, RC), :, :]          # (RC, W+2, C)
                shifted = [slab[:, dx:dx + W, :].reshape(RC * W, C)
                           for dx in range(3)]
                if C % 128 == 0:
                    # Split-K im2col: K = 3C per dot (vs 9C) keeps the live LHS
                    # ~3x smaller so it does not spill the vreg file.  Weights
                    # were pre-cast in the wrapper -> no per-chunk cast here.
                    lhs = jnp.concatenate(shifted, axis=-1).astype(compute_dtype)
                    acc = acc + jnp.dot(
                        lhs, w_ref[dy * 3 * C:(dy + 1) * 3 * C, :],
                        preferred_element_type=jnp.float32)
                else:
                    # Tiny / lane-unaligned C (test-only): a wide concat is pure
                    # lane relayout; accumulate the 3 taps of this row instead.
                    # TODO(synk): pad C to 128 in the wrapper if a production
                    #   path ever hits this branch.
                    for dx in range(3):
                        t = dy * 3 + dx
                        acc = acc + jnp.dot(
                            shifted[dx].astype(compute_dtype),
                            w_ref[t * C:(t + 1) * C, :],
                            preferred_element_type=jnp.float32)
            return acc + bias

        # ---- conv1 + LeakyReLU -> midpad interior (row-chunked) ----
        def body1(i, carry):
            r0 = pl.multiple_of(i * RC, RC)
            act = _lrelu(conv_chunk(xpad_ref, w1_ref, b1v, r0))
            midpad_ref[pl.ds(r0 + 1, RC), 1:W + 1, :] = (
                act.reshape(RC, W, C).astype(compute_dtype))
            return carry

        lax.fori_loop(0, NCH, body1, 0, unroll=unroll)

        # ---- conv2 + residual + LeakyReLU -> output (row-chunked) ----
        def body2(i, carry):
            r0 = pl.multiple_of(i * RC, RC)
            acc = conv_chunk(midpad_ref, w2_ref, b2v, r0)
            resid = x_ref[:, pl.ds(r0, RC), :, :].astype(jnp.float32)
            out = _lrelu(acc + resid.reshape(RC * W, C))
            o_ref[:, pl.ds(r0, RC), :, :] = (
                out.reshape(1, RC, W, C).astype(o_ref.dtype))
            return carry

        lax.fori_loop(0, NCH, body2, 0, unroll=unroll)

    return kernel


# ----------------------------------------------------------------------------
# Sizing helpers
# ----------------------------------------------------------------------------
def _round_up(v, m):
    return ((v + m - 1) // m) * m


def _is_v5_or_older():
    try:
        kind = jax.devices()[0].device_kind.lower()
    except Exception:
        return True  # conservative
    return any(t in kind for t in ("v2", "v3", "v4", "v5"))


def _chip_vmem_bytes():
    """Physical per-core VMEM; conservative 64 MiB (v7x) if unknown."""
    try:
        info = pltpu.get_tpu_info()
        for attr in ("vmem_capacity_bytes", "vmem_bytes", "vmem_size_bytes"):
            v = getattr(info, attr, None)
            if v:
                return int(v)
    except Exception:
        pass
    return 64 * 2 ** 20


def _pick_row_chunk(H, W, C):
    # Keep each chunk's matmul M (= RC*W) around the MXU width so the live
    # accumulator / split-K LHS stay bounded; RC must divide H.  v6e/v7x MXUs
    # are 256 wide -> M=256 halves matmul-issue overhead there; v5e (128x128
    # MXU) gains nothing from the larger live LHS.
    target_m = 256 if (C % 128 == 0 and not _is_v5_or_older()) else 128
    cap = max(1, target_m // max(W, 1))
    rc = 1
    for d in range(1, H + 1):
        if H % d == 0 and d <= cap:
            rc = d
    return rc


def _vmem_limit_bytes(H, W, C, RC, in_itemsize, compute_itemsize):
    # Conservative estimate with (8,128) layout padding, clamped to the chip.
    c_pad = _round_up(C, 128)
    blk = H * _round_up(W, 8) * c_pad * max(in_itemsize, 4)             # one image block
    scratch = 2 * (H + 2) * _round_up(W + 2, 8) * c_pad * max(compute_itemsize, 2)
    weights = 2 * _round_up(9 * C, 8) * c_pad * max(compute_itemsize, 2)
    lhs = RC * W * _round_up(3 * C, 128) * 4                            # live split-K LHS
    est = 4 * blk + scratch + 2 * weights + 2 * lhs                     # in+out double-buffered
    cap = _chip_vmem_bytes()
    return int(min(int(0.80 * cap), max(32 * 2 ** 20, 2 * est)))


# ----------------------------------------------------------------------------
# Wrapper
# ----------------------------------------------------------------------------
@functools.partial(jax.jit, static_argnames=("use_bf16_matmul",))
def residual_block(x_nchw, w1, b1, w2, b2, *, use_bf16_matmul=None):
    """x_nchw: (N, C, H, W); w*: (C, C, 3, 3) PyTorch OIHW; b*: (C,). -> (N, C, H, W).

    use_bf16_matmul: None -> auto (bf16 MXU operands when C % 128 == 0, the
    compute-bound production case; accumulation stays f32).  Pass False for
    f32-operand numerics matching the PyTorch module bit-closely (testing).
    """
    N, C, H, W = x_nchw.shape
    if use_bf16_matmul is None:
        use_bf16_matmul = (C % 128 == 0)
    compute_dtype = jnp.bfloat16 if use_bf16_matmul else jnp.float32
    compute_itemsize = 2 if use_bf16_matmul else 4

    # NCHW -> NHWC once at the block boundary (see TODO at top of file).
    x = jnp.transpose(x_nchw, (0, 2, 3, 1))                      # (N, H, W, C)

    # (Cout, Cin, kh, kw) -> (kh, kw, Cin, Cout) -> (9*Cin, Cout)  [im2col layout]
    # Pre-cast to the MXU operand dtype so no per-chunk cast happens in-kernel.
    w1_f = jnp.transpose(w1, (2, 3, 1, 0)).reshape(9 * C, C).astype(compute_dtype)
    w2_f = jnp.transpose(w2, (2, 3, 1, 0)).reshape(9 * C, C).astype(compute_dtype)
    b1_f = b1.reshape(1, C).astype(jnp.float32)
    b2_f = b2.reshape(1, C).astype(jnp.float32)

    RC = _pick_row_chunk(H, W, C)
    NCH = H // RC
    unroll = NCH if NCH <= 8 else 4      # never fully unroll large H
    kernel = _make_resblock_kernel(H, W, C, RC, compute_dtype, unroll)

    out_nhwc = pl.pallas_call(
        kernel,
        out_shape=jax.ShapeDtypeStruct((N, H, W, C), x.dtype),
        grid_spec=pltpu.PrefetchScalarGridSpec(
            num_scalar_prefetch=0,
            grid=(N,),
            in_specs=[
                pl.BlockSpec((1, H, W, C), lambda n: (n, 0, 0, 0)),
                # Weight/bias block indices never change across the grid, so
                # the pipeline skips re-fetching them after the first step.
                pl.BlockSpec((9 * C, C), lambda n: (0, 0)),
                pl.BlockSpec((1, C), lambda n: (0, 0)),
                pl.BlockSpec((9 * C, C), lambda n: (0, 0)),
                pl.BlockSpec((1, C), lambda n: (0, 0)),
            ],
            out_specs=pl.BlockSpec((1, H, W, C), lambda n: (n, 0, 0, 0)),
            scratch_shapes=[
                pltpu.VMEM((H + 2, W + 2, C), compute_dtype),
                pltpu.VMEM((H + 2, W + 2, C), compute_dtype),
            ],
        ),
        compiler_params=_CompilerParams(
            dimension_semantics=("parallel",),
            vmem_limit_bytes=_vmem_limit_bytes(
                H, W, C, RC, x.dtype.itemsize, compute_itemsize),
        ),
    )(x, w1_f, b1_f, w2_f, b2_f)

    # NHWC -> NCHW for the PyTorch-facing interface.
    return jnp.transpose(out_nhwc, (0, 3, 1, 2))


# ----------------------------------------------------------------------------
# Reference + tests
# ----------------------------------------------------------------------------
def _reference(x_nchw, w1, b1, w2, b2):
    """Pure-JAX reference matching the PyTorch module (NCHW conv, f32)."""
    def conv(x, w, b):
        y = lax.conv_general_dilated(
            x, w, window_strides=(1, 1), padding=((1, 1), (1, 1)),
            dimension_numbers=("NCHW", "OIHW", "NCHW"),
            precision=lax.Precision.HIGHEST)
        return y + b.reshape(1, -1, 1, 1)

    def lrelu(v):
        return jnp.where(v > 0, v, 0.2 * v)

    out = lrelu(conv(x_nchw, w1, b1))
    out = conv(out, w2, b2)
    return lrelu(out + x_nchw)


def _run_case(key, N, C, H, W, rtol, atol, use_bf16_matmul=None):
    kx, k1, k2, k3, k4 = jax.random.split(key, 5)
    x = jax.random.normal(kx, (N, C, H, W), dtype=jnp.float32)
    scale = 1.0 / np.sqrt(C * 9)
    w1 = scale * jax.random.normal(k1, (C, C, 3, 3), dtype=jnp.float32)
    b1 = scale * jax.random.normal(k2, (C,), dtype=jnp.float32)
    w2 = scale * jax.random.normal(k3, (C, C, 3, 3), dtype=jnp.float32)
    b2 = scale * jax.random.normal(k4, (C,), dtype=jnp.float32)

    out = jax.block_until_ready(
        residual_block(x, w1, b1, w2, b2, use_bf16_matmul=use_bf16_matmul))
    ref = jax.block_until_ready(_reference(x, w1, b1, w2, b2))
    np.testing.assert_allclose(np.asarray(out), np.asarray(ref), rtol=rtol, atol=atol)


if __name__ == "__main__":
    root = jax.random.PRNGKey(0)
    k_a, k_b, k_c = jax.random.split(root, 3)

    # Small demo shape (C=4 -> lane-unaligned tap-accumulation fallback, f32).
    _run_case(k_a, N=2, C=4, H=16, W=16, rtol=1e-3, atol=1e-3,
              use_bf16_matmul=False)
    # Lane-aligned channels, f32 MXU operands: faithful check of the split-K
    # im2col path.
    _run_case(k_b, N=2, C=128, H=8, W=8, rtol=1e-3, atol=1e-3,
              use_bf16_matmul=False)
    # Production default for aligned C: bf16 MXU operands, f32 accumulation.
    _run_case(k_c, N=2, C=128, H=8, W=8, rtol=3e-2, atol=3e-2)

    print("KERNEL_OK")
</pallas_src>

<mosaic_0001>
module attributes {stable_mosaic.version = 11 : i64} {
  func.func @kernel(%arg0: i32, %arg1: memref<1x16x16x4xf32, #tpu.memory_space<vmem>>, %arg2: memref<36x4xf32, #tpu.memory_space<vmem>>, %arg3: memref<1x4xf32, #tpu.memory_space<vmem>>, %arg4: memref<36x4xf32, #tpu.memory_space<vmem>>, %arg5: memref<1x4xf32, #tpu.memory_space<vmem>>, %arg6: memref<1x16x16x4xf32, #tpu.memory_space<vmem>>, %arg7: memref<18x18x4xf32, #tpu.memory_space<vmem>>, %arg8: memref<18x18x4xf32, #tpu.memory_space<vmem>>) attributes {dimension_semantics = [#tpu.dimension_semantics<parallel>], iteration_bounds = array<i64: 2>, scalar_prefetch = 0 : i64, scratch_operands = 2 : i64, tpu.core_type = #tpu.core_type<tc>, window_params = [{transform_indices = @transform_0, window_bounds = array<i64: 1, 16, 16, 4>}, {pipeline_mode = #tpu.pipeline_mode<synchronous>, transform_indices = @transform_1, window_bounds = array<i64: 36, 4>}, {pipeline_mode = #tpu.pipeline_mode<synchronous>, transform_indices = @transform_2, window_bounds = array<i64: 1, 4>}, {pipeline_mode = #tpu.pipeline_mode<synchronous>, transform_indices = @transform_3, window_bounds = array<i64: 36, 4>}, {pipeline_mode = #tpu.pipeline_mode<synchronous>, transform_indices = @transform_4, window_bounds = array<i64: 1, 4>}, {transform_indices = @transform_5, window_bounds = array<i64: 1, 16, 16, 4>}]} {
    %cst = arith.constant 0.000000e+00 : f32
    %0 = vector.broadcast %cst : f32 to vector<1x18x4xf32>
    %cst_0 = arith.constant 0.000000e+00 : f32
    %1 = vector.broadcast %cst_0 : f32 to vector<18x1x4xf32>
    %c0 = arith.constant 0 : index
    %c0_1 = arith.constant 0 : index
    %c0_2 = arith.constant 0 : index
    %2 = vector.load %arg7[%c0, %c0_1, %c0_2] : memref<18x18x4xf32, #tpu.memory_space<vmem>>, vector<1x18x4xf32>
    tpu.vector_store %arg7[%c0, %c0_1, %c0_2], %0 {strides = array<i32>} : memref<18x18x4xf32, #tpu.memory_space<vmem>>, vector<1x18x4xf32>,
    %c17 = arith.constant 17 : index
    %c0_3 = arith.constant 0 : index
    %c0_4 = arith.constant 0 : index
    %3 = vector.load %arg7[%c17, %c0_3, %c0_4] : memref<18x18x4xf32, #tpu.memory_space<vmem>>, vector<1x18x4xf32>
    tpu.vector_store %arg7[%c17, %c0_3, %c0_4], %0 {strides = array<i32>} : memref<18x18x4xf32, #tpu.memory_space<vmem>>, vector<1x18x4xf32>,
    %c0_5 = arith.constant 0 : index
    %c0_6 = arith.constant 0 : index
    %c0_7 = arith.constant 0 : index
    %4 = vector.load %arg7[%c0_5, %c0_6, %c0_7] : memref<18x18x4xf32, #tpu.memory_space<vmem>>, vector<18x1x4xf32>
    tpu.vector_store %arg7[%c0_5, %c0_6, %c0_7], %1 {strides = array<i32>} : memref<18x18x4xf32, #tpu.memory_space<vmem>>, vector<18x1x4xf32>,
    %c0_8 = arith.constant 0 : index
    %c17_9 = arith.constant 17 : index
    %c0_10 = arith.constant 0 : index
    %5 = vector.load %arg7[%c0_8, %c17_9, %c0_10] : memref<18x18x4xf32, #tpu.memory_space<vmem>>, vector<18x1x4xf32>
    tpu.vector_store %arg7[%c0_8, %c17_9, %c0_10], %1 {strides = array<i32>} : memref<18x18x4xf32, #tpu.memory_space<vmem>>, vector<18x1x4xf32>,
    %c0_11 = arith.constant 0 : index
    %c0_12 = arith.constant 0 : index
    %c0_13 = arith.constant 0 : index
    %6 = vector.load %arg8[%c0_11, %c0_12, %c0_13] : memref<18x18x4xf32, #tpu.memory_space<vmem>>, vector<1x18x4xf32>
    tpu.vector_store %arg8[%c0_11, %c0_12, %c0_13], %0 {strides = array<i32>} : memref<18x18x4xf32, #tpu.memory_space<vmem>>, vector<1x18x4xf32>,
    %c17_14 = arith.constant 17 : index
    %c0_15 = arith.constant 0 : index
    %c0_16 = arith.constant 0 : index
    %7 = vector.load %arg8[%c17_14, %c0_15, %c0_16] : memref<18x18x4xf32, #tpu.memory_space<vmem>>, vector<1x18x4xf32>
    tpu.vector_store %arg8[%c17_14, %c0_15, %c0_16], %0 {strides = array<i32>} : memref<18x18x4xf32, #tpu.memory_space<vmem>>, vector<1x18x4xf32>,
    %c0_17 = arith.constant 0 : index
    %c0_18 = arith.constant 0 : index
    %c0_19 = arith.constant 0 : index
    %8 = vector.load %arg8[%c0_17, %c0_18, %c0_19] : memref<18x18x4xf32, #tpu.memory_space<vmem>>, vector<18x1x4xf32>
    tpu.vector_store %arg8[%c0_17, %c0_18, %c0_19], %1 {strides = array<i32>} : memref<18x18x4xf32, #tpu.memory_space<vmem>>, vector<18x1x4xf32>,
    %c0_20 = arith.constant 0 : index
    %c17_21 = arith.constant 17 : index
    %c0_22 = arith.constant 0 : index
    %9 = vector.load %arg8[%c0_20, %c17_21, %c0_22] : memref<18x18x4xf32, #tpu.memory_space<vmem>>, vector<18x1x4xf32>
    tpu.vector_store %arg8[%c0_20, %c17_21, %c0_22], %1 {strides = array<i32>} : memref<18x18x4xf32, #tpu.memory_space<vmem>>, vector<18x1x4xf32>,
    %c0_23 = arith.constant 0 : index
    %c0_24 = arith.constant 0 : index
    %c0_25 = arith.constant 0 : index
    %c0_26 = arith.constant 0 : index
    %10 = vector.load %arg1[%c0_23, %c0_24, %c0_25, %c0_26] : memref<1x16x16x4xf32, #tpu.memory_space<vmem>>, vector<1x16x16x4xf32>
    %11 = vector.shape_cast %10 : vector<1x16x16x4xf32> to vector<16x16x4xf32>
    %c1 = arith.constant 1 : index
    %c1_27 = arith.constant 1 : index
    %c0_28 = arith.constant 0 : index
    %12 = vector.load %arg7[%c1, %c1_27, %c0_28] : memref<18x18x4xf32, #tpu.memory_space<vmem>>, vector<16x16x4xf32>
    tpu.vector_store %arg7[%c1, %c1_27, %c0_28], %11 {strides = array<i32>} : memref<18x18x4xf32, #tpu.memory_space<vmem>>, vector<16x16x4xf32>,
    %c0_29 = arith.constant 0 : index
    %c0_30 = arith.constant 0 : index
    %13 = vector.load %arg3[%c0_29, %c0_30] : memref<1x4xf32, #tpu.memory_space<vmem>>, vector<1x4xf32>
    %c0_31 = arith.constant 0 : index
    %c0_32 = arith.constant 0 : index
    %14 = vector.load %arg5[%c0_31, %c0_32] : memref<1x4xf32, #tpu.memory_space<vmem>>, vector<1x4xf32>
    %c0_i32 = arith.constant 0 : i32
    %c8_i32 = arith.constant 8 : i32
    %15 = arith.muli %c0_i32, %c8_i32 : i32
    %16 = tpu.assume_multiple %15, 8 : i32
    %cst_33 = arith.constant 0.000000e+00 : f32
    %17 = vector.broadcast %cst_33 : f32 to vector<128x4xf32>
    %c0_i32_34 = arith.constant 0 : i32
    %18 = arith.addi %16, %c0_i32_34 : i32
    %19 = arith.index_cast %18 : i32 to index
    %c0_35 = arith.constant 0 : index
    %c0_36 = arith.constant 0 : index
    %20 = vector.load %arg7[%19, %c0_35, %c0_36] : memref<18x18x4xf32, #tpu.memory_space<vmem>>, vector<8x18x4xf32>
    %21 = vector.extract_strided_slice %20 {offsets = [0, 0, 0], sizes = [8, 16, 4], strides = [1, 1, 1]} : vector<8x18x4xf32> to vector<8x16x4xf32>
    %22 = vector.shape_cast %21 : vector<8x16x4xf32> to vector<128x4xf32>
    %23 = vector.extract_strided_slice %20 {offsets = [0, 1, 0], sizes = [8, 16, 4], strides = [1, 1, 1]} : vector<8x18x4xf32> to vector<8x16x4xf32>
    %24 = vector.shape_cast %23 : vector<8x16x4xf32> to vector<128x4xf32>
    %25 = vector.extract_strided_slice %20 {offsets = [0, 2, 0], sizes = [8, 16, 4], strides = [1, 1, 1]} : vector<8x18x4xf32> to vector<8x16x4xf32>
    %26 = vector.shape_cast %25 : vector<8x16x4xf32> to vector<128x4xf32>
    %c0_37 = arith.constant 0 : index
    %c0_38 = arith.constant 0 : index
    %27 = vector.load %arg2[%c0_37, %c0_38] : memref<36x4xf32, #tpu.memory_space<vmem>>, vector<4x4xf32>
    %cst_39 = arith.constant dense<0.000000e+00> : vector<128x4xf32>
    %28 = tpu.matmul %22, %27, %cst_39 {dimension_numbers = #tpu.dot_dimension_numbers<[1], [0], [0], [1], [0, 0, 1, 1], [], []>} : vector<128x4xf32>, vector<4x4xf32>, vector<128x4xf32> -> vector<128x4xf32>
    %29 = arith.addf %17, %28 : vector<128x4xf32>
    %c4 = arith.constant 4 : index
    %c0_40 = arith.constant 0 : index
    %30 = vector.load %arg2[%c4, %c0_40] : memref<36x4xf32, #tpu.memory_space<vmem>>, vector<4x4xf32>
    %cst_41 = arith.constant dense<0.000000e+00> : vector<128x4xf32>
    %31 = tpu.matmul %24, %30, %cst_41 {dimension_numbers = #tpu.dot_dimension_numbers<[1], [0], [0], [1], [0, 0, 1, 1], [], []>} : vector<128x4xf32>, vector<4x4xf32>, vector<128x4xf32> -> vector<128x4xf32>
    %32 = arith.addf %29, %31 : vector<128x4xf32>
    %c8 = arith.constant 8 : index
    %c0_42 = arith.constant 0 : index
    %33 = vector.load %arg2[%c8, %c0_42] : memref<36x4xf32, #tpu.memory_space<vmem>>, vector<4x4xf32>
    %cst_43 = arith.constant dense<0.000000e+00> : vector<128x4xf32>
    %34 = tpu.matmul %26, %33, %cst_43 {dimension_numbers = #tpu.dot_dimension_numbers<[1], [0], [0], [1], [0, 0, 1, 1], [], []>} : vector<128x4xf32>, vector<4x4xf32>, vector<128x4xf32> -> vector<128x4xf32>
    %35 = arith.addf %32, %34 : vector<128x4xf32>
    %c1_i32 = arith.constant 1 : i32
    %36 = arith.addi %16, %c1_i32 : i32
    %37 = arith.index_cast %36 : i32 to index
    %c0_44 = arith.constant 0 : index
    %c0_45 = arith.constant 0 : index
    %38 = vector.load %arg7[%37, %c0_44, %c0_45] : memref<18x18x4xf32, #tpu.memory_space<vmem>>, vector<8x18x4xf32>
    %39 = vector.extract_strided_slice %38 {offsets = [0, 0, 0], sizes = [8, 16, 4], strides = [1, 1, 1]} : vector<8x18x4xf32> to vector<8x16x4xf32>
    %40 = vector.shape_cast %39 : vector<8x16x4xf32> to vector<128x4xf32>
    %41 = vector.extract_strided_slice %38 {offsets = [0, 1, 0], sizes = [8, 16, 4], strides = [1, 1, 1]} : vector<8x18x4xf32> to vector<8x16x4xf32>
    %42 = vector.shape_cast %41 : vector<8x16x4xf32> to vector<128x4xf32>
    %43 = vector.extract_strided_slice %38 {offsets = [0, 2, 0], sizes = [8, 16, 4], strides = [1, 1, 1]} : vector<8x18x4xf32> to vector<8x16x4xf32>
    %44 = vector.shape_cast %43 : vector<8x16x4xf32> to vector<128x4xf32>
    %c12 = arith.constant 12 : index
    %c0_46 = arith.constant 0 : index
    %45 = vector.load %arg2[%c12, %c0_46] : memref<36x4xf32, #tpu.memory_space<vmem>>, vector<4x4xf32>
    %cst_47 = arith.constant dense<0.000000e+00> : vector<128x4xf32>
    %46 = tpu.matmul %40, %45, %cst_47 {dimension_numbers = #tpu.dot_dimension_numbers<[1], [0], [0], [1], [0, 0, 1, 1], [], []>} : vector<128x4xf32>, vector<4x4xf32>, vector<128x4xf32> -> vector<128x4xf32>
    %47 = arith.addf %35, %46 : vector<128x4xf32>
    %c16 = arith.constant 16 : index
    %c0_48 = arith.constant 0 : index
    %48 = vector.load %arg2[%c16, %c0_48] : memref<36x4xf32, #tpu.memory_space<vmem>>, vector<4x4xf32>
    %cst_49 = arith.constant dense<0.000000e+00> : vector<128x4xf32>
    %49 = tpu.matmul %42, %48, %cst_49 {dimension_numbers = #tpu.dot_dimension_numbers<[1], [0], [0], [1], [0, 0, 1, 1], [], []>} : vector<128x4xf32>, vector<4x4xf32>, vector<128x4xf32> -> vector<128x4xf32>
    %50 = arith.addf %47, %49 : vector<128x4xf32>
    %c20 = arith.constant 20 : index
    %c0_50 = arith.constant 0 : index
    %51 = vector.load %arg2[%c20, %c0_50] : memref<36x4xf32, #tpu.memory_space<vmem>>, vector<4x4xf32>
    %cst_51 = arith.constant dense<0.000000e+00> : vector<128x4xf32>
    %52 = tpu.matmul %44, %51, %cst_51 {dimension_numbers = #tpu.dot_dimension_numbers<[1], [0], [0], [1], [0, 0, 1, 1], [], []>} : vector<128x4xf32>, vector<4x4xf32>, vector<128x4xf32> -> vector<128x4xf32>
    %53 = arith.addf %50, %52 : vector<128x4xf32>
    %c2_i32 = arith.constant 2 : i32
    %54 = arith.addi %16, %c2_i32 : i32
    %55 = arith.index_cast %54 : i32 to index
    %c0_52 = arith.constant 0 : index
    %c0_53 = arith.constant 0 : index
    %56 = vector.load %arg7[%55, %c0_52, %c0_53] : memref<18x18x4xf32, #tpu.memory_space<vmem>>, vector<8x18x4xf32>
    %57 = vector.extract_strided_slice %56 {offsets = [0, 0, 0], sizes = [8, 16, 4], strides = [1, 1, 1]} : vector<8x18x4xf32> to vector<8x16x4xf32>
    %58 = vector.shape_cast %57 : vector<8x16x4xf32> to vector<128x4xf32>
    %59 = vector.extract_strided_slice %56 {offsets = [0, 1, 0], sizes = [8, 16, 4], strides = [1, 1, 1]} : vector<8x18x4xf32> to vector<8x16x4xf32>
    %60 = vector.shape_cast %59 : vector<8x16x4xf32> to vector<128x4xf32>
    %61 = vector.extract_strided_slice %56 {offsets = [0, 2, 0], sizes = [8, 16, 4], strides = [1, 1, 1]} : vector<8x18x4xf32> to vector<8x16x4xf32>
    %62 = vector.shape_cast %61 : vector<8x16x4xf32> to vector<128x4xf32>
    %c24 = arith.constant 24 : index
    %c0_54 = arith.constant 0 : index
    %63 = vector.load %arg2[%c24, %c0_54] : memref<36x4xf32, #tpu.memory_space<vmem>>, vector<4x4xf32>
    %cst_55 = arith.constant dense<0.000000e+00> : vector<128x4xf32>
    %64 = tpu.matmul %58, %63, %cst_55 {dimension_numbers = #tpu.dot_dimension_numbers<[1], [0], [0], [1], [0, 0, 1, 1], [], []>} : vector<128x4xf32>, vector<4x4xf32>, vector<128x4xf32> -> vector<128x4xf32>
    %65 = arith.addf %53, %64 : vector<128x4xf32>
    %c28 = arith.constant 28 : index
    %c0_56 = arith.constant 0 : index
    %66 = vector.load %arg2[%c28, %c0_56] : memref<36x4xf32, #tpu.memory_space<vmem>>, vector<4x4xf32>
    %cst_57 = arith.constant dense<0.000000e+00> : vector<128x4xf32>
    %67 = tpu.matmul %60, %66, %cst_57 {dimension_numbers = #tpu.dot_dimension_numbers<[1], [0], [0], [1], [0, 0, 1, 1], [], []>} : vector<128x4xf32>, vector<4x4xf32>, vector<128x4xf32> -> vector<128x4xf32>
    %68 = arith.addf %65, %67 : vector<128x4xf32>
    %c32 = arith.constant 32 : index
    %c0_58 = arith.constant 0 : index
    %69 = vector.load %arg2[%c32, %c0_58] : memref<36x4xf32, #tpu.memory_space<vmem>>, vector<4x4xf32>
    %cst_59 = arith.constant dense<0.000000e+00> : vector<128x4xf32>
    %70 = tpu.matmul %62, %69, %cst_59 {dimension_numbers = #tpu.dot_dimension_numbers<[1], [0], [0], [1], [0, 0, 1, 1], [], []>} : vector<128x4xf32>, vector<4x4xf32>, vector<128x4xf32> -> vector<128x4xf32>
    %71 = arith.addf %68, %70 : vector<128x4xf32>
    %72 = vector.broadcast %13 : vector<1x4xf32> to vector<128x4xf32>
    %73 = arith.addf %71, %72 : vector<128x4xf32>
    %cst_60 = arith.constant 0.000000e+00 : f32
    %74 = vector.broadcast %cst_60 : f32 to vector<128x4xf32>
    %75 = arith.cmpf ogt, %73, %74 : vector<128x4xf32>
    %cst_61 = arith.constant 2.000000e-01 : f32
    %76 = vector.broadcast %cst_61 : f32 to vector<128x4xf32>
    %77 = arith.mulf %76, %73 : vector<128x4xf32>
    %78 = arith.select %75, %73, %77 : vector<128x4xi1>, vector<128x4xf32>
    %79 = vector.shape_cast %78 : vector<128x4xf32> to vector<8x16x4xf32>
    %c1_i32_62 = arith.constant 1 : i32
    %80 = arith.addi %16, %c1_i32_62 : i32
    %81 = arith.index_cast %80 : i32 to index
    %c1_63 = arith.constant 1 : index
    %c0_64 = arith.constant 0 : index
    %82 = vector.load %arg8[%81, %c1_63, %c0_64] : memref<18x18x4xf32, #tpu.memory_space<vmem>>, vector<8x16x4xf32>
    tpu.vector_store %arg8[%81, %c1_63, %c0_64], %79 {strides = array<i32>} : memref<18x18x4xf32, #tpu.memory_space<vmem>>, vector<8x16x4xf32>,
    %c1_i32_65 = arith.constant 1 : i32
    %c8_i32_66 = arith.constant 8 : i32
    %83 = arith.muli %c1_i32_65, %c8_i32_66 : i32
    %84 = tpu.assume_multiple %83, 8 : i32
    %cst_67 = arith.constant 0.000000e+00 : f32
    %85 = vector.broadcast %cst_67 : f32 to vector<128x4xf32>
    %c0_i32_68 = arith.constant 0 : i32
    %86 = arith.addi %84, %c0_i32_68 : i32
    %87 = arith.index_cast %86 : i32 to index
    %c0_69 = arith.constant 0 : index
    %c0_70 = arith.constant 0 : index
    %88 = vector.load %arg7[%87, %c0_69, %c0_70] : memref<18x18x4xf32, #tpu.memory_space<vmem>>, vector<8x18x4xf32>
    %89 = vector.extract_strided_slice %88 {offsets = [0, 0, 0], sizes = [8, 16, 4], strides = [1, 1, 1]} : vector<8x18x4xf32> to vector<8x16x4xf32>
    %90 = vector.shape_cast %89 : vector<8x16x4xf32> to vector<128x4xf32>
    %91 = vector.extract_strided_slice %88 {offsets = [0, 1, 0], sizes = [8, 16, 4], strides = [1, 1, 1]} : vector<8x18x4xf32> to vector<8x16x4xf32>
    %92 = vector.shape_cast %91 : vector<8x16x4xf32> to vector<128x4xf32>
    %93 = vector.extract_strided_slice %88 {offsets = [0, 2, 0], sizes = [8, 16, 4], strides = [1, 1, 1]} : vector<8x18x4xf32> to vector<8x16x4xf32>
    %94 = vector.shape_cast %93 : vector<8x16x4xf32> to vector<128x4xf32>
    %c0_71 = arith.constant 0 : index
    %c0_72 = arith.constant 0 : index
    %95 = vector.load %arg2[%c0_71, %c0_72] : memref<36x4xf32, #tpu.memory_space<vmem>>, vector<4x4xf32>
    %cst_73 = arith.constant dense<0.000000e+00> : vector<128x4xf32>
    %96 = tpu.matmul %90, %95, %cst_73 {dimension_numbers = #tpu.dot_dimension_numbers<[1], [0], [0], [1], [0, 0, 1, 1], [], []>} : vector<128x4xf32>, vector<4x4xf32>, vector<128x4xf32> -> vector<128x4xf32>
    %97 = arith.addf %85, %96 : vector<128x4xf32>
    %c4_74 = arith.constant 4 : index
    %c0_75 = arith.constant 0 : index
    %98 = vector.load %arg2[%c4_74, %c0_75] : memref<36x4xf32, #tpu.memory_space<vmem>>, vector<4x4xf32>
    %cst_76 = arith.constant dense<0.000000e+00> : vector<128x4xf32>
    %99 = tpu.matmul %92, %98, %cst_76 {dimension_numbers = #tpu.dot_dimension_numbers<[1], [0], [0], [1], [0, 0, 1, 1], [], []>} : vector<128x4xf32>, vector<4x4xf32>, vector<128x4xf32> -> vector<128x4xf32>
    %100 = arith.addf %97, %99 : vector<128x4xf32>
    %c8_77 = arith.constant 8 : index
    %c0_78 = arith.constant 0 : index
    %101 = vector.load %arg2[%c8_77, %c0_78] : memref<36x4xf32, #tpu.memory_space<vmem>>, vector<4x4xf32>
    %cst_79 = arith.constant dense<0.000000e+00> : vector<128x4xf32>
    %102 = tpu.matmul %94, %101, %cst_79 {dimension_numbers = #tpu.dot_dimension_numbers<[1], [0], [0], [1], [0, 0, 1, 1], [], []>} : vector<128x4xf32>, vector<4x4xf32>, vector<128x4xf32> -> vector<128x4xf32>
    %103 = arith.addf %100, %102 : vector<128x4xf32>
    %c1_i32_80 = arith.constant 1 : i32
    %104 = arith.addi %84, %c1_i32_80 : i32
    %105 = arith.index_cast %104 : i32 to index
    %c0_81 = arith.constant 0 : index
    %c0_82 = arith.constant 0 : index
    %106 = vector.load %arg7[%105, %c0_81, %c0_82] : memref<18x18x4xf32, #tpu.memory_space<vmem>>, vector<8x18x4xf32>
    %107 = vector.extract_strided_slice %106 {offsets = [0, 0, 0], sizes = [8, 16, 4], strides = [1, 1, 1]} : vector<8x18x4xf32> to vector<8x16x4xf32>
    %108 = vector.shape_cast %107 : vector<8x16x4xf32> to vector<128x4xf32>
    %109 = vector.extract_strided_slice %106 {offsets = [0, 1, 0], sizes = [8, 16, 4], strides = [1, 1, 1]} : vector<8x18x4xf32> to vector<8x16x4xf32>
    %110 = vector.shape_cast %109 : vector<8x16x4xf32> to vector<128x4xf32>
    %111 = vector.extract_strided_slice %106 {offsets = [0, 2, 0], sizes = [8, 16, 4], strides = [1, 1, 1]} : vector<8x18x4xf32> to vector<8x16x4xf32>
    %112 = vector.shape_cast %111 : vector<8x16x4xf32> to vector<128x4xf32>
    %c12_83 = arith.constant 12 : index
    %c0_84 = arith.constant 0 : index
    %113 = vector.load %arg2[%c12_83, %c0_84] : memref<36x4xf32, #tpu.memory_space<vmem>>, vector<4x4xf32>
    %cst_85 = arith.constant dense<0.000000e+00> : vector<128x4xf32>
    %114 = tpu.matmul %108, %113, %cst_85 {dimension_numbers = #tpu.dot_dimension_numbers<[1], [0], [0], [1], [0, 0, 1, 1], [], []>} : vector<128x4xf32>, vector<4x4xf32>, vector<128x4xf32> -> vector<128x4xf32>
    %115 = arith.addf %103, %114 : vector<128x4xf32>
    %c16_86 = arith.constant 16 : index
    %c0_87 = arith.constant 0 : index
    %116 = vector.load %arg2[%c16_86, %c0_87] : memref<36x4xf32, #tpu.memory_space<vmem>>, vector<4x4xf32>
    %cst_88 = arith.constant dense<0.000000e+00> : vector<128x4xf32>
    %117 = tpu.matmul %110, %116, %cst_88 {dimension_numbers = #tpu.dot_dimension_numbers<[1], [0], [0], [1], [0, 0, 1, 1], [], []>} : vector<128x4xf32>, vector<4x4xf32>, vector<128x4xf32> -> vector<128x4xf32>
    %118 = arith.addf %115, %117 : vector<128x4xf32>
    %c20_89 = arith.constant 20 : index
    %c0_90 = arith.constant 0 : index
    %119 = vector.load %arg2[%c20_89, %c0_90] : memref<36x4xf32, #tpu.memory_space<vmem>>, vector<4x4xf32>
    %cst_91 = arith.constant dense<0.000000e+00> : vector<128x4xf32>
    %120 = tpu.matmul %112, %119, %cst_91 {dimension_numbers = #tpu.dot_dimension_numbers<[1], [0], [0], [1], [0, 0, 1, 1], [], []>} : vector<128x4xf32>, vector<4x4xf32>, vector<128x4xf32> -> vector<128x4xf32>
    %121 = arith.addf %118, %120 : vector<128x4xf32>
    %c2_i32_92 = arith.constant 2 : i32
    %122 = arith.addi %84, %c2_i32_92 : i32
    %123 = arith.index_cast %122 : i32 to index
    %c0_93 = arith.constant 0 : index
    %c0_94 = arith.constant 0 : index
    %124 = vector.load %arg7[%123, %c0_93, %c0_94] : memref<18x18x4xf32, #tpu.memory_space<vmem>>, vector<8x18x4xf32>
    %125 = vector.extract_strided_slice %124 {offsets = [0, 0, 0], sizes = [8, 16, 4], strides = [1, 1, 1]} : vector<8x18x4xf32> to vector<8x16x4xf32>
    %126 = vector.shape_cast %125 : vector<8x16x4xf32> to vector<128x4xf32>
    %127 = vector.extract_strided_slice %124 {offsets = [0, 1, 0], sizes = [8, 16, 4], strides = [1, 1, 1]} : vector<8x18x4xf32> to vector<8x16x4xf32>
    %128 = vector.shape_cast %127 : vector<8x16x4xf32> to vector<128x4xf32>
    %129 = vector.extract_strided_slice %124 {offsets = [0, 2, 0], sizes = [8, 16, 4], strides = [1, 1, 1]} : vector<8x18x4xf32> to vector<8x16x4xf32>
    %130 = vector.shape_cast %129 : vector<8x16x4xf32> to vector<128x4xf32>
    %c24_95 = arith.constant 24 : index
    %c0_96 = arith.constant 0 : index
    %131 = vector.load %arg2[%c24_95, %c0_96] : memref<36x4xf32, #tpu.memory_space<vmem>>, vector<4x4xf32>
    %cst_97 = arith.constant dense<0.000000e+00> : vector<128x4xf32>
    %132 = tpu.matmul %126, %131, %cst_97 {dimension_numbers = #tpu.dot_dimension_numbers<[1], [0], [0], [1], [0, 0, 1, 1], [], []>} : vector<128x4xf32>, vector<4x4xf32>, vector<128x4xf32> -> vector<128x4xf32>
    %133 = arith.addf %121, %132 : vector<128x4xf32>
    %c28_98 = arith.constant 28 : index
    %c0_99 = arith.constant 0 : index
    %134 = vector.load %arg2[%c28_98, %c0_99] : memref<36x4xf32, #tpu.memory_space<vmem>>, vector<4x4xf32>
    %cst_100 = arith.constant dense<0.000000e+00> : vector<128x4xf32>
    %135 = tpu.matmul %128, %134, %cst_100 {dimension_numbers = #tpu.dot_dimension_numbers<[1], [0], [0], [1], [0, 0, 1, 1], [], []>} : vector<128x4xf32>, vector<4x4xf32>, vector<128x4xf32> -> vector<128x4xf32>
    %136 = arith.addf %133, %135 : vector<128x4xf32>
    %c32_101 = arith.constant 32 : index
    %c0_102 = arith.constant 0 : index
    %137 = vector.load %arg2[%c32_101, %c0_102] : memref<36x4xf32, #tpu.memory_space<vmem>>, vector<4x4xf32>
    %cst_103 = arith.constant dense<0.000000e+00> : vector<128x4xf32>
    %138 = tpu.matmul %130, %137, %cst_103 {dimension_numbers = #tpu.dot_dimension_numbers<[1], [0], [0], [1], [0, 0, 1, 1], [], []>} : vector<128x4xf32>, vector<4x4xf32>, vector<128x4xf32> -> vector<128x4xf32>
    %139 = arith.addf %136, %138 : vector<128x4xf32>
    %140 = vector.broadcast %13 : vector<1x4xf32> to vector<128x4xf32>
    %141 = arith.addf %139, %140 : vector<128x4xf32>
    %cst_104 = arith.constant 0.000000e+00 : f32
    %142 = vector.broadcast %cst_104 : f32 to vector<128x4xf32>
    %143 = arith.cmpf ogt, %141, %142 : vector<128x4xf32>
    %cst_105 = arith.constant 2.000000e-01 : f32
    %144 = vector.broadcast %cst_105 : f32 to vector<128x4xf32>
    %145 = arith.mulf %144, %141 : vector<128x4xf32>
    %146 = arith.select %143, %141, %145 : vector<128x4xi1>, vector<128x4xf32>
    %147 = vector.shape_cast %146 : vector<128x4xf32> to vector<8x16x4xf32>
    %c1_i32_106 = arith.constant 1 : i32
    %148 = arith.addi %84, %c1_i32_106 : i32
    %149 = arith.index_cast %148 : i32 to index
    %c1_107 = arith.constant 1 : index
    %c0_108 = arith.constant 0 : index
    %150 = vector.load %arg8[%149, %c1_107, %c0_108] : memref<18x18x4xf32, #tpu.memory_space<vmem>>, vector<8x16x4xf32>
    tpu.vector_store %arg8[%149, %c1_107, %c0_108], %147 {strides = array<i32>} : memref<18x18x4xf32, #tpu.memory_space<vmem>>, vector<8x16x4xf32>,
    %c2_i32_109 = arith.constant 2 : i32
    %c0_i32_110 = arith.constant 0 : i32
    %c8_i32_111 = arith.constant 8 : i32
    %151 = arith.muli %c0_i32_110, %c8_i32_111 : i32
    %152 = tpu.assume_multiple %151, 8 : i32
    %cst_112 = arith.constant 0.000000e+00 : f32
    %153 = vector.broadcast %cst_112 : f32 to vector<128x4xf32>
    %c0_i32_113 = arith.constant 0 : i32
    %154 = arith.addi %152, %c0_i32_113 : i32
    %155 = arith.index_cast %154 : i32 to index
    %c0_114 = arith.constant 0 : index
    %c0_115 = arith.constant 0 : index
    %156 = vector.load %arg8[%155, %c0_114, %c0_115] : memref<18x18x4xf32, #tpu.memory_space<vmem>>, vector<8x18x4xf32>
    %157 = vector.extract_strided_slice %156 {offsets = [0, 0, 0], sizes = [8, 16, 4], strides = [1, 1, 1]} : vector<8x18x4xf32> to vector<8x16x4xf32>
    %158 = vector.shape_cast %157 : vector<8x16x4xf32> to vector<128x4xf32>
    %159 = vector.extract_strided_slice %156 {offsets = [0, 1, 0], sizes = [8, 16, 4], strides = [1, 1, 1]} : vector<8x18x4xf32> to vector<8x16x4xf32>
    %160 = vector.shape_cast %159 : vector<8x16x4xf32> to vector<128x4xf32>
    %161 = vector.extract_strided_slice %156 {offsets = [0, 2, 0], sizes = [8, 16, 4], strides = [1, 1, 1]} : vector<8x18x4xf32> to vector<8x16x4xf32>
    %162 = vector.shape_cast %161 : vector<8x16x4xf32> to vector<128x4xf32>
    %c0_116 = arith.constant 0 : index
    %c0_117 = arith.constant 0 : index
    %163 = vector.load %arg4[%c0_116, %c0_117] : memref<36x4xf32, #tpu.memory_space<vmem>>, vector<4x4xf32>
    %cst_118 = arith.constant dense<0.000000e+00> : vector<128x4xf32>
    %164 = tpu.matmul %158, %163, %cst_118 {dimension_numbers = #tpu.dot_dimension_numbers<[1], [0], [0], [1], [0, 0, 1, 1], [], []>} : vector<128x4xf32>, vector<4x4xf32>, vector<128x4xf32> -> vector<128x4xf32>
    %165 = arith.addf %153, %164 : vector<128x4xf32>
    %c4_119 = arith.constant 4 : index
    %c0_120 = arith.constant 0 : index
    %166 = vector.load %arg4[%c4_119, %c0_120] : memref<36x4xf32, #tpu.memory_space<vmem>>, vector<4x4xf32>
    %cst_121 = arith.constant dense<0.000000e+00> : vector<128x4xf32>
    %167 = tpu.matmul %160, %166, %cst_121 {dimension_numbers = #tpu.dot_dimension_numbers<[1], [0], [0], [1], [0, 0, 1, 1], [], []>} : vector<128x4xf32>, vector<4x4xf32>, vector<128x4xf32> -> vector<128x4xf32>
    %168 = arith.addf %165, %167 : vector<128x4xf32>
    %c8_122 = arith.constant 8 : index
    %c0_123 = arith.constant 0 : index
    %169 = vector.load %arg4[%c8_122, %c0_123] : memref<36x4xf32, #tpu.memory_space<vmem>>, vector<4x4xf32>
    %cst_124 = arith.constant dense<0.000000e+00> : vector<128x4xf32>
    %170 = tpu.matmul %162, %169, %cst_124 {dimension_numbers = #tpu.dot_dimension_numbers<[1], [0], [0], [1], [0, 0, 1, 1], [], []>} : vector<128x4xf32>, vector<4x4xf32>, vector<128x4xf32> -> vector<128x4xf32>
    %171 = arith.addf %168, %170 : vector<128x4xf32>
    %c1_i32_125 = arith.constant 1 : i32
    %172 = arith.addi %152, %c1_i32_125 : i32
    %173 = arith.index_cast %172 : i32 to index
    %c0_126 = arith.constant 0 : index
    %c0_127 = arith.constant 0 : index
    %174 = vector.load %arg8[%173, %c0_126, %c0_127] : memref<18x18x4xf32, #tpu.memory_space<vmem>>, vector<8x18x4xf32>
    %175 = vector.extract_strided_slice %174 {offsets = [0, 0, 0], sizes = [8, 16, 4], strides = [1, 1, 1]} : vector<8x18x4xf32> to vector<8x16x4xf32>
    %176 = vector.shape_cast %175 : vector<8x16x4xf32> to vector<128x4xf32>
    %177 = vector.extract_strided_slice %174 {offsets = [0, 1, 0], sizes = [8, 16, 4], strides = [1, 1, 1]} : vector<8x18x4xf32> to vector<8x16x4xf32>
    %178 = vector.shape_cast %177 : vector<8x16x4xf32> to vector<128x4xf32>
    %179 = vector.extract_strided_slice %174 {offsets = [0, 2, 0], sizes = [8, 16, 4], strides = [1, 1, 1]} : vector<8x18x4xf32> to vector<8x16x4xf32>
    %180 = vector.shape_cast %179 : vector<8x16x4xf32> to vector<128x4xf32>
    %c12_128 = arith.constant 12 : index
    %c0_129 = arith.constant 0 : index
    %181 = vector.load %arg4[%c12_128, %c0_129] : memref<36x4xf32, #tpu.memory_space<vmem>>, vector<4x4xf32>
    %cst_130 = arith.constant dense<0.000000e+00> : vector<128x4xf32>
    %182 = tpu.matmul %176, %181, %cst_130 {dimension_numbers = #tpu.dot_dimension_numbers<[1], [0], [0], [1], [0, 0, 1, 1], [], []>} : vector<128x4xf32>, vector<4x4xf32>, vector<128x4xf32> -> vector<128x4xf32>
    %183 = arith.addf %171, %182 : vector<128x4xf32>
    %c16_131 = arith.constant 16 : index
    %c0_132 = arith.constant 0 : index
    %184 = vector.load %arg4[%c16_131, %c0_132] : memref<36x4xf32, #tpu.memory_space<vmem>>, vector<4x4xf32>
    %cst_133 = arith.constant dense<0.000000e+00> : vector<128x4xf32>
    %185 = tpu.matmul %178, %184, %cst_133 {dimension_numbers = #tpu.dot_dimension_numbers<[1], [0], [0], [1], [0, 0, 1, 1], [], []>} : vector<128x4xf32>, vector<4x4xf32>, vector<128x4xf32> -> vector<128x4xf32>
    %186 = arith.addf %183, %185 : vector<128x4xf32>
    %c20_134 = arith.constant 20 : index
    %c0_135 = arith.constant 0 : index
    %187 = vector.load %arg4[%c20_134, %c0_135] : memref<36x4xf32, #tpu.memory_space<vmem>>, vector<4x4xf32>
    %cst_136 = arith.constant dense<0.000000e+00> : vector<128x4xf32>
    %188 = tpu.matmul %180, %187, %cst_136 {dimension_numbers = #tpu.dot_dimension_numbers<[1], [0], [0], [1], [0, 0, 1, 1], [], []>} : vector<128x4xf32>, vector<4x4xf32>, vector<128x4xf32> -> vector<128x4xf32>
    %189 = arith.addf %186, %188 : vector<128x4xf32>
    %c2_i32_137 = arith.constant 2 : i32
    %190 = arith.addi %152, %c2_i32_137 : i32
    %191 = arith.index_cast %190 : i32 to index
    %c0_138 = arith.constant 0 : index
    %c0_139 = arith.constant 0 : index
    %192 = vector.load %arg8[%191, %c0_138, %c0_139] : memref<18x18x4xf32, #tpu.memory_space<vmem>>, vector<8x18x4xf32>
    %193 = vector.extract_strided_slice %192 {offsets = [0, 0, 0], sizes = [8, 16, 4], strides = [1, 1, 1]} : vector<8x18x4xf32> to vector<8x16x4xf32>
    %194 = vector.shape_cast %193 : vector<8x16x4xf32> to vector<128x4xf32>
    %195 = vector.extract_strided_slice %192 {offsets = [0, 1, 0], sizes = [8, 16, 4], strides = [1, 1, 1]} : vector<8x18x4xf32> to vector<8x16x4xf32>
    %196 = vector.shape_cast %195 : vector<8x16x4xf32> to vector<128x4xf32>
    %197 = vector.extract_strided_slice %192 {offsets = [0, 2, 0], sizes = [8, 16, 4], strides = [1, 1, 1]} : vector<8x18x4xf32> to vector<8x16x4xf32>
    %198 = vector.shape_cast %197 : vector<8x16x4xf32> to vector<128x4xf32>
    %c24_140 = arith.constant 24 : index
    %c0_141 = arith.constant 0 : index
    %199 = vector.load %arg4[%c24_140, %c0_141] : memref<36x4xf32, #tpu.memory_space<vmem>>, vector<4x4xf32>
    %cst_142 = arith.constant dense<0.000000e+00> : vector<128x4xf32>
    %200 = tpu.matmul %194, %199, %cst_142 {dimension_numbers = #tpu.dot_dimension_numbers<[1], [0], [0], [1], [0, 0, 1, 1], [], []>} : vector<128x4xf32>, vector<4x4xf32>, vector<128x4xf32> -> vector<128x4xf32>
    %201 = arith.addf %189, %200 : vector<128x4xf32>
    %c28_143 = arith.constant 28 : index
    %c0_144 = arith.constant 0 : index
    %202 = vector.load %arg4[%c28_143, %c0_144] : memref<36x4xf32, #tpu.memory_space<vmem>>, vector<4x4xf32>
    %cst_145 = arith.constant dense<0.000000e+00> : vector<128x4xf32>
    %203 = tpu.matmul %196, %202, %cst_145 {dimension_numbers = #tpu.dot_dimension_numbers<[1], [0], [0], [1], [0, 0, 1, 1], [], []>} : vector<128x4xf32>, vector<4x4xf32>, vector<128x4xf32> -> vector<128x4xf32>
    %204 = arith.addf %201, %203 : vector<128x4xf32>
    %c32_146 = arith.constant 32 : index
    %c0_147 = arith.constant 0 : index
    %205 = vector.load %arg4[%c32_146, %c0_147] : memref<36x4xf32, #tpu.memory_space<vmem>>, vector<4x4xf32>
    %cst_148 = arith.constant dense<0.000000e+00> : vector<128x4xf32>
    %206 = tpu.matmul %198, %205, %cst_148 {dimension_numbers = #tpu.dot_dimension_numbers<[1], [0], [0], [1], [0, 0, 1, 1], [], []>} : vector<128x4xf32>, vector<4x4xf32>, vector<128x4xf32> -> vector<128x4xf32>
    %207 = arith.addf %204, %206 : vector<128x4xf32>
    %208 = vector.broadcast %14 : vector<1x4xf32> to vector<128x4xf32>
    %209 = arith.addf %207, %208 : vector<128x4xf32>
    %c0_149 = arith.constant 0 : index
    %210 = arith.index_cast %152 : i32 to index
    %c0_150 = arith.constant 0 : index
    %c0_151 = arith.constant 0 : index
    %211 = vector.load %arg1[%c0_149, %210, %c0_150, %c0_151] : memref<1x16x16x4xf32, #tpu.memory_space<vmem>>, vector<1x8x16x4xf32>
    %212 = vector.shape_cast %211 : vector<1x8x16x4xf32> to vector<128x4xf32>
    %213 = arith.addf %209, %212 : vector<128x4xf32>
    %cst_152 = arith.constant 0.000000e+00 : f32
    %214 = vector.broadcast %cst_152 : f32 to vector<128x4xf32>
    %215 = arith.cmpf ogt, %213, %214 : vector<128x4xf32>
    %cst_153 = arith.constant 2.000000e-01 : f32
    %216 = vector.broadcast %cst_153 : f32 to vector<128x4xf32>
    %217 = arith.mulf %216, %213 : vector<128x4xf32>
    %218 = arith.select %215, %213, %217 : vector<128x4xi1>, vector<128x4xf32>
    %219 = vector.shape_cast %218 : vector<128x4xf32> to vector<1x8x16x4xf32>
    %c0_154 = arith.constant 0 : index
    %220 = arith.index_cast %152 : i32 to index
    %c0_155 = arith.constant 0 : index
    %c0_156 = arith.constant 0 : index
    %221 = vector.load %arg6[%c0_154, %220, %c0_155, %c0_156] : memref<1x16x16x4xf32, #tpu.memory_space<vmem>>, vector<1x8x16x4xf32>
    tpu.vector_store %arg6[%c0_154, %220, %c0_155, %c0_156], %219 {strides = array<i32>} : memref<1x16x16x4xf32, #tpu.memory_space<vmem>>, vector<1x8x16x4xf32>,
    %c1_i32_157 = arith.constant 1 : i32
    %c8_i32_158 = arith.constant 8 : i32
    %222 = arith.muli %c1_i32_157, %c8_i32_158 : i32
    %223 = tpu.assume_multiple %222, 8 : i32
    %cst_159 = arith.constant 0.000000e+00 : f32
    %224 = vector.broadcast %cst_159 : f32 to vector<128x4xf32>
    %c0_i32_160 = arith.constant 0 : i32
    %225 = arith.addi %223, %c0_i32_160 : i32
    %226 = arith.index_cast %225 : i32 to index
    %c0_161 = arith.constant 0 : index
    %c0_162 = arith.constant 0 : index
    %227 = vector.load %arg8[%226, %c0_161, %c0_162] : memref<18x18x4xf32, #tpu.memory_space<vmem>>, vector<8x18x4xf32>
    %228 = vector.extract_strided_slice %227 {offsets = [0, 0, 0], sizes = [8, 16, 4], strides = [1, 1, 1]} : vector<8x18x4xf32> to vector<8x16x4xf32>
    %229 = vector.shape_cast %228 : vector<8x16x4xf32> to vector<128x4xf32>
    %230 = vector.extract_strided_slice %227 {offsets = [0, 1, 0], sizes = [8, 16, 4], strides = [1, 1, 1]} : vector<8x18x4xf32> to vector<8x16x4xf32>
    %231 = vector.shape_cast %230 : vector<8x16x4xf32> to vector<128x4xf32>
    %232 = vector.extract_strided_slice %227 {offsets = [0, 2, 0], sizes = [8, 16, 4], strides = [1, 1, 1]} : vector<8x18x4xf32> to vector<8x16x4xf32>
    %233 = vector.shape_cast %232 : vector<8x16x4xf32> to vector<128x4xf32>
    %c0_163 = arith.constant 0 : index
    %c0_164 = arith.constant 0 : index
    %234 = vector.load %arg4[%c0_163, %c0_164] : memref<36x4xf32, #tpu.memory_space<vmem>>, vector<4x4xf32>
    %cst_165 = arith.constant dense<0.000000e+00> : vector<128x4xf32>
    %235 = tpu.matmul %229, %234, %cst_165 {dimension_numbers = #tpu.dot_dimension_numbers<[1], [0], [0], [1], [0, 0, 1, 1], [], []>} : vector<128x4xf32>, vector<4x4xf32>, vector<128x4xf32> -> vector<128x4xf32>
    %236 = arith.addf %224, %235 : vector<128x4xf32>
    %c4_166 = arith.constant 4 : index
    %c0_167 = arith.constant 0 : index
    %237 = vector.load %arg4[%c4_166, %c0_167] : memref<36x4xf32, #tpu.memory_space<vmem>>, vector<4x4xf32>
    %cst_168 = arith.constant dense<0.000000e+00> : vector<128x4xf32>
    %238 = tpu.matmul %231, %237, %cst_168 {dimension_numbers = #tpu.dot_dimension_numbers<[1], [0], [0], [1], [0, 0, 1, 1], [], []>} : vector<128x4xf32>, vector<4x4xf32>, vector<128x4xf32> -> vector<128x4xf32>
    %239 = arith.addf %236, %238 : vector<128x4xf32>
    %c8_169 = arith.constant 8 : index
    %c0_170 = arith.constant 0 : index
    %240 = vector.load %arg4[%c8_169, %c0_170] : memref<36x4xf32, #tpu.memory_space<vmem>>, vector<4x4xf32>
    %cst_171 = arith.constant dense<0.000000e+00> : vector<128x4xf32>
    %241 = tpu.matmul %233, %240, %cst_171 {dimension_numbers = #tpu.dot_dimension_numbers<[1], [0], [0], [1], [0, 0, 1, 1], [], []>} : vector<128x4xf32>, vector<4x4xf32>, vector<128x4xf32> -> vector<128x4xf32>
    %242 = arith.addf %239, %241 : vector<128x4xf32>
    %c1_i32_172 = arith.constant 1 : i32
    %243 = arith.addi %223, %c1_i32_172 : i32
    %244 = arith.index_cast %243 : i32 to index
    %c0_173 = arith.constant 0 : index
    %c0_174 = arith.constant 0 : index
    %245 = vector.load %arg8[%244, %c0_173, %c0_174] : memref<18x18x4xf32, #tpu.memory_space<vmem>>, vector<8x18x4xf32>
    %246 = vector.extract_strided_slice %245 {offsets = [0, 0, 0], sizes = [8, 16, 4], strides = [1, 1, 1]} : vector<8x18x4xf32> to vector<8x16x4xf32>
    %247 = vector.shape_cast %246 : vector<8x16x4xf32> to vector<128x4xf32>
    %248 = vector.extract_strided_slice %245 {offsets = [0, 1, 0], sizes = [8, 16, 4], strides = [1, 1, 1]} : vector<8x18x4xf32> to vector<8x16x4xf32>
    %249 = vector.shape_cast %248 : vector<8x16x4xf32> to vector<128x4xf32>
    %250 = vector.extract_strided_slice %245 {offsets = [0, 2, 0], sizes = [8, 16, 4], strides = [1, 1, 1]} : vector<8x18x4xf32> to vector<8x16x4xf32>
    %251 = vector.shape_cast %250 : vector<8x16x4xf32> to vector<128x4xf32>
    %c12_175 = arith.constant 12 : index
    %c0_176 = arith.constant 0 : index
    %252 = vector.load %arg4[%c12_175, %c0_176] : memref<36x4xf32, #tpu.memory_space<vmem>>, vector<4x4xf32>
    %cst_177 = arith.constant dense<0.000000e+00> : vector<128x4xf32>
    %253 = tpu.matmul %247, %252, %cst_177 {dimension_numbers = #tpu.dot_dimension_numbers<[1], [0], [0], [1], [0, 0, 1, 1], [], []>} : vector<128x4xf32>, vector<4x4xf32>, vector<128x4xf32> -> vector<128x4xf32>
    %254 = arith.addf %242, %253 : vector<128x4xf32>
    %c16_178 = arith.constant 16 : index
    %c0_179 = arith.constant 0 : index
    %255 = vector.load %arg4[%c16_178, %c0_179] : memref<36x4xf32, #tpu.memory_space<vmem>>, vector<4x4xf32>
    %cst_180 = arith.constant dense<0.000000e+00> : vector<128x4xf32>
    %256 = tpu.matmul %249, %255, %cst_180 {dimension_numbers = #tpu.dot_dimension_numbers<[1], [0], [0], [1], [0, 0, 1, 1], [], []>} : vector<128x4xf32>, vector<4x4xf32>, vector<128x4xf32> -> vector<128x4xf32>
    %257 = arith.addf %254, %256 : vector<128x4xf32>
    %c20_181 = arith.constant 20 : index
    %c0_182 = arith.constant 0 : index
    %258 = vector.load %arg4[%c20_181, %c0_182] : memref<36x4xf32, #tpu.memory_space<vmem>>, vector<4x4xf32>
    %cst_183 = arith.constant dense<0.000000e+00> : vector<128x4xf32>
    %259 = tpu.matmul %251, %258, %cst_183 {dimension_numbers = #tpu.dot_dimension_numbers<[1], [0], [0], [1], [0, 0, 1, 1], [], []>} : vector<128x4xf32>, vector<4x4xf32>, vector<128x4xf32> -> vector<128x4xf32>
    %260 = arith.addf %257, %259 : vector<128x4xf32>
    %c2_i32_184 = arith.constant 2 : i32
    %261 = arith.addi %223, %c2_i32_184 : i32
    %262 = arith.index_cast %261 : i32 to index
    %c0_185 = arith.constant 0 : index
    %c0_186 = arith.constant 0 : index
    %263 = vector.load %arg8[%262, %c0_185, %c0_186] : memref<18x18x4xf32, #tpu.memory_space<vmem>>, vector<8x18x4xf32>
    %264 = vector.extract_strided_slice %263 {offsets = [0, 0, 0], sizes = [8, 16, 4], strides = [1, 1, 1]} : vector<8x18x4xf32> to vector<8x16x4xf32>
    %265 = vector.shape_cast %264 : vector<8x16x4xf32> to vector<128x4xf32>
    %266 = vector.extract_strided_slice %263 {offsets = [0, 1, 0], sizes = [8, 16, 4], strides = [1, 1, 1]} : vector<8x18x4xf32> to vector<8x16x4xf32>
    %267 = vector.shape_cast %266 : vector<8x16x4xf32> to vector<128x4xf32>
    %268 = vector.extract_strided_slice %263 {offsets = [0, 2, 0], sizes = [8, 16, 4], strides = [1, 1, 1]} : vector<8x18x4xf32> to vector<8x16x4xf32>
    %269 = vector.shape_cast %268 : vector<8x16x4xf32> to vector<128x4xf32>
    %c24_187 = arith.constant 24 : index
    %c0_188 = arith.constant 0 : index
    %270 = vector.load %arg4[%c24_187, %c0_188] : memref<36x4xf32, #tpu.memory_space<vmem>>, vector<4x4xf32>
    %cst_189 = arith.constant dense<0.000000e+00> : vector<128x4xf32>
    %271 = tpu.matmul %265, %270, %cst_189 {dimension_numbers = #tpu.dot_dimension_numbers<[1], [0], [0], [1], [0, 0, 1, 1], [], []>} : vector<128x4xf32>, vector<4x4xf32>, vector<128x4xf32> -> vector<128x4xf32>
    %272 = arith.addf %260, %271 : vector<128x4xf32>
    %c28_190 = arith.constant 28 : index
    %c0_191 = arith.constant 0 : index
    %273 = vector.load %arg4[%c28_190, %c0_191] : memref<36x4xf32, #tpu.memory_space<vmem>>, vector<4x4xf32>
    %cst_192 = arith.constant dense<0.000000e+00> : vector<128x4xf32>
    %274 = tpu.matmul %267, %273, %cst_192 {dimension_numbers = #tpu.dot_dimension_numbers<[1], [0], [0], [1], [0, 0, 1, 1], [], []>} : vector<128x4xf32>, vector<4x4xf32>, vector<128x4xf32> -> vector<128x4xf32>
    %275 = arith.addf %272, %274 : vector<128x4xf32>
    %c32_193 = arith.constant 32 : index
    %c0_194 = arith.constant 0 : index
    %276 = vector.load %arg4[%c32_193, %c0_194] : memref<36x4xf32, #tpu.memory_space<vmem>>, vector<4x4xf32>
    %cst_195 = arith.constant dense<0.000000e+00> : vector<128x4xf32>
    %277 = tpu.matmul %269, %276, %cst_195 {dimension_numbers = #tpu.dot_dimension_numbers<[1], [0], [0], [1], [0, 0, 1, 1], [], []>} : vector<128x4xf32>, vector<4x4xf32>, vector<128x4xf32> -> vector<128x4xf32>
    %278 = arith.addf %275, %277 : vector<128x4xf32>
    %279 = vector.broadcast %14 : vector<1x4xf32> to vector<128x4xf32>
    %280 = arith.addf %278, %279 : vector<128x4xf32>
    %c0_196 = arith.constant 0 : index
    %281 = arith.index_cast %223 : i32 to index
    %c0_197 = arith.constant 0 : index
    %c0_198 = arith.constant 0 : index
    %282 = vector.load %arg1[%c0_196, %281, %c0_197, %c0_198] : memref<1x16x16x4xf32, #tpu.memory_space<vmem>>, vector<1x8x16x4xf32>
    %283 = vector.shape_cast %282 : vector<1x8x16x4xf32> to vector<128x4xf32>
    %284 = arith.addf %280, %283 : vector<128x4xf32>
    %cst_199 = arith.constant 0.000000e+00 : f32
    %285 = vector.broadcast %cst_199 : f32 to vector<128x4xf32>
    %286 = arith.cmpf ogt, %284, %285 : vector<128x4xf32>
    %cst_200 = arith.constant 2.000000e-01 : f32
    %287 = vector.broadcast %cst_200 : f32 to vector<128x4xf32>
    %288 = arith.mulf %287, %284 : vector<128x4xf32>
    %289 = arith.select %286, %284, %288 : vector<128x4xi1>, vector<128x4xf32>
    %290 = vector.shape_cast %289 : vector<128x4xf32> to vector<1x8x16x4xf32>
    %c0_201 = arith.constant 0 : index
    %291 = arith.index_cast %223 : i32 to index
    %c0_202 = arith.constant 0 : index
    %c0_203 = arith.constant 0 : index
    %292 = vector.load %arg6[%c0_201, %291, %c0_202, %c0_203] : memref<1x16x16x4xf32, #tpu.memory_space<vmem>>, vector<1x8x16x4xf32>
    tpu.vector_store %arg6[%c0_201, %291, %c0_202, %c0_203], %290 {strides = array<i32>} : memref<1x16x16x4xf32, #tpu.memory_space<vmem>>, vector<1x8x16x4xf32>,
    %c2_i32_204 = arith.constant 2 : i32
    return
  }
  func.func @transform_0(%arg0: i32) -> (i32, i32, i32, i32) {
    %c0_i32 = arith.constant 0 : i32
    %c0_i32_0 = arith.constant 0 : i32
    %c0_i32_1 = arith.constant 0 : i32
    %c0_i32_2 = arith.constant 0 : i32
    return %arg0, %c0_i32, %c0_i32_0, %c0_i32_1 : i32, i32, i32, i32
  }
  func.func @transform_1(%arg0: i32) -> (i32, i32) {
    %c0_i32 = arith.constant 0 : i32
    %c0_i32_0 = arith.constant 0 : i32
    %c0_i32_1 = arith.constant 0 : i32
    return %c0_i32, %c0_i32_0 : i32, i32
  }
  func.func @transform_2(%arg0: i32) -> (i32, i32) {
    %c0_i32 = arith.constant 0 : i32
    %c0_i32_0 = arith.constant 0 : i32
    %c0_i32_1 = arith.constant 0 : i32
    return %c0_i32, %c0_i32_0 : i32, i32
  }
  func.func @transform_3(%arg0: i32) -> (i32, i32) {
    %c0_i32 = arith.constant 0 : i32
    %c0_i32_0 = arith.constant 0 : i32
    %c0_i32_1 = arith.constant 0 : i32
    return %c0_i32, %c0_i32_0 : i32, i32
  }
  func.func @transform_4(%arg0: i32) -> (i32, i32) {
    %c0_i32 = arith.constant 0 : i32
    %c0_i32_0 = arith.constant 0 : i32
    %c0_i32_1 = arith.constant 0 : i32
    return %c0_i32, %c0_i32_0 : i32, i32
  }
  func.func @transform_5(%arg0: i32) -> (i32, i32, i32, i32) {
    %c0_i32 = arith.constant 0 : i32
    %c0_i32_0 = arith.constant 0 : i32
    %c0_i32_1 = arith.constant 0 : i32
    %c0_i32_2 = arith.constant 0 : i32
    return %arg0, %c0_i32, %c0_i32_0, %c0_i32_1 : i32, i32, i32, i32
  }
}

</mosaic_0001>

<llo_original>
// kernel: residual_block.1
$region0: #{residual_block.1}
  #allocation0 [shape = 'u32[]', space=smem, size = 0x4, offset = 0x4, fixed_abs, tag = 'smem constant byte address 0x4 - core index']
  #allocation1 [shape = 'u32[144,128]{1,0:T(1,128)}', space=vmem, size = 0x12000, scoped, tag = 'internal scratch']
  #allocation2 [shape = 'f32[18,18,4]{2,1,0:T(8,128)}', space=vmem, size = 0x36000, scoped, tag = 'scratch operand']
  #allocation3 [shape = 'f32[18,18,4]{2,1,0:T(8,128)}', space=vmem, size = 0x36000, scoped, tag = 'scratch operand']
  %s0 = inlined_call_operand.vmem [shape: f32[2,16,16,4], index: 0, kind: input, shape index: {}]
  %s1 = inlined_call_operand.vmem [shape: f32[36,4], index: 1, kind: input, shape index: {}]
  %s2 = inlined_call_operand.vmem [shape: f32[1,4], index: 2, kind: input, shape index: {}]
  %s3 = inlined_call_operand.vmem [shape: f32[36,4], index: 3, kind: input, shape index: {}]
  %s4 = inlined_call_operand.vmem [shape: f32[1,4], index: 4, kind: input, shape index: {}]
  %s5 = inlined_call_operand.vmem [shape: f32[2,16,16,4], index: 5, kind: output, shape index: {}]
  %s6 = sld [smem:[#allocation0]]
  $region53: #{residual_block.1} parent=0
    _
  %s8 = ssub.s32 1, %s6
  %s9 = scalar_select 0, %s8, %s6
  loop: start=0, step=1, limit=4
  $region2: #{residual_block.1} parent=0 // loop_pre_header
    _
  $region3: #{residual_block.1} parent=0 // loop_header
    %s11 = sphi 0, %s15
    %p12 = scmp.ge.s32.totalorder %s11, 4
    %s21 = sphi 0, %s23
    %s24 = sphi 0, %s21
    %s25 = sphi 0, %s24
    %s41 = sphi 0, %s25
    %s45 = sphi 0, %s45
    %s47 = sphi 0, %s45
    %s48 = sphi 0, %s47
    %s62 = sphi 0, %s48
    %s66 = sphi 0, %s66
    %s68 = sphi 0, %s66
    %s69 = sphi 0, %s68
    %s83 = sphi 0, %s69
    %s87 = sphi 0, %s87
    %s89 = sphi 0, %s87
    %s90 = sphi 0, %s89
    %s104 = sphi 0, %s90
    %s108 = sphi 0, %s108
    %s110 = sphi 0, %s108
    %s111 = sphi 0, %s110
    %s125 = sphi 0, %s111
    %s131 = sphi 0, %s133
    %s134 = sphi 0, %s131
    %s135 = sphi 0, %s134
    %s151 = sphi 0, %s135
  $region4: #{residual_block.1} parent=0 // loop_header_branch
    %14 = sbr.rel (%p12) target = $region8
  $region5: #{residual_block.1} parent=0 // loop_body
    %s16 = ssub.s32 %s11, 1
    %s17 = ssub.s32 %s11, 2
    %s18 = sadd.s32 %s11, 1
    %s19 = ssub.s32 %s11, %s18
    %p20 = scmp.eq.s32.totalorder %s19, 0
    %s22 = sadd.s32 %s21, 1
    %s23 = scalar_select %p20, %s21, %s22
    %p26 = pneg %p20
    %p27 = scmp.eq.s32.totalorder %s11, 1
    %p28 = por %p26, %p27
    %p29 = scmp.ne.s32.totalorder %s21, %s24
    %p30 = scmp.eq.s32.totalorder %s11, 0
    %p31 = por %p29, %p30
    %p32 = scmp.ne.s32.totalorder %s21, %s24
    %p33 = scmp.eq.s32.totalorder %s16, 1
    %p34 = por %p32, %p33
    %p35 = scmp.ne.s32.totalorder %s24, %s25
    %p36 = scmp.eq.s32.totalorder %s16, 0
    %p37 = por %p35, %p36
    %p38 = scmp.ne.s32.totalorder %s24, %s25
    %p39 = scmp.eq.s32.totalorder %s17, 1
    %p40 = por %p38, %p39
    %p42 = scmp.ne.s32.totalorder %s25, %s41
    %p43 = scmp.eq.s32.totalorder %s17, 0
    %p44 = por %p42, %p43
    %s46 = sadd.s32 %s45, 1
    %p49 = scmp.eq.s32.totalorder %s11, 1
    %p50 = scmp.ne.s32.totalorder %s45, %s47
    %p51 = scmp.eq.s32.totalorder %s11, 0
    %p52 = por %p50, %p51
    %p53 = scmp.ne.s32.totalorder %s45, %s47
    %p54 = scmp.eq.s32.totalorder %s16, 1
    %p55 = por %p53, %p54
    %p56 = scmp.ne.s32.totalorder %s47, %s48
    %p57 = scmp.eq.s32.totalorder %s16, 0
    %p58 = por %p56, %p57
    %p59 = scmp.ne.s32.totalorder %s47, %s48
    %p60 = scmp.eq.s32.totalorder %s17, 1
    %p61 = por %p59, %p60
    %p63 = scmp.ne.s32.totalorder %s48, %s62
    %p64 = scmp.eq.s32.totalorder %s17, 0
    %p65 = por %p63, %p64
    %s67 = sadd.s32 %s66, 1
    %p70 = scmp.eq.s32.totalorder %s11, 1
    %p71 = scmp.ne.s32.totalorder %s66, %s68
    %p72 = scmp.eq.s32.totalorder %s11, 0
    %p73 = por %p71, %p72
    %p74 = scmp.ne.s32.totalorder %s66, %s68
    %p75 = scmp.eq.s32.totalorder %s16, 1
    %p76 = por %p74, %p75
    %p77 = scmp.ne.s32.totalorder %s68, %s69
    %p78 = scmp.eq.s32.totalorder %s16, 0
    %p79 = por %p77, %p78
    %p80 = scmp.ne.s32.totalorder %s68, %s69
    %p81 = scmp.eq.s32.totalorder %s17, 1
    %p82 = por %p80, %p81
    %p84 = scmp.ne.s32.totalorder %s69, %s83
    %p85 = scmp.eq.s32.totalorder %s17, 0
    %p86 = por %p84, %p85
    %s88 = sadd.s32 %s87, 1
    %p91 = scmp.eq.s32.totalorder %s11, 1
    %p92 = scmp.ne.s32.totalorder %s87, %s89
    %p93 = scmp.eq.s32.totalorder %s11, 0
    %p94 = por %p92, %p93
    %p95 = scmp.ne.s32.totalorder %s87, %s89
    %p96 = scmp.eq.s32.totalorder %s16, 1
    %p97 = por %p95, %p96
    %p98 = scmp.ne.s32.totalorder %s89, %s90
    %p99 = scmp.eq.s32.totalorder %s16, 0
    %p100 = por %p98, %p99
    %p101 = scmp.ne.s32.totalorder %s89, %s90
    %p102 = scmp.eq.s32.totalorder %s17, 1
    %p103 = por %p101, %p102
    %p105 = scmp.ne.s32.totalorder %s90, %s104
    %p106 = scmp.eq.s32.totalorder %s17, 0
    %p107 = por %p105, %p106
    %s109 = sadd.s32 %s108, 1
    %p112 = scmp.eq.s32.totalorder %s11, 1
    %p113 = scmp.ne.s32.totalorder %s108, %s110
    %p114 = scmp.eq.s32.totalorder %s11, 0
    %p115 = por %p113, %p114
    %p116 = scmp.ne.s32.totalorder %s108, %s110
    %p117 = scmp.eq.s32.totalorder %s16, 1
    %p118 = por %p116, %p117
    %p119 = scmp.ne.s32.totalorder %s110, %s111
    %p120 = scmp.eq.s32.totalorder %s16, 0
    %p121 = por %p119, %p120
    %p122 = scmp.ne.s32.totalorder %s110, %s111
    %p123 = scmp.eq.s32.totalorder %s17, 1
    %p124 = por %p122, %p123
    %p126 = scmp.ne.s32.totalorder %s111, %s125
    %p127 = scmp.eq.s32.totalorder %s17, 0
    %p128 = por %p126, %p127
    %s129 = ssub.s32 %s11, %s18
    %p130 = scmp.eq.s32.totalorder %s129, 0
    %s132 = sadd.s32 %s131, 1
    %s133 = scalar_select %p130, %s131, %s132
    %p136 = pneg %p130
    %p137 = scmp.eq.s32.totalorder %s11, 1
    %p138 = por %p136, %p137
    %p139 = scmp.ne.s32.totalorder %s131, %s134
    %p140 = scmp.eq.s32.totalorder %s11, 0
    %p141 = por %p139, %p140
    %p142 = scmp.ne.s32.totalorder %s131, %s134
    %p143 = scmp.eq.s32.totalorder %s16, 1
    %p144 = por %p142, %p143
    %p145 = scmp.ne.s32.totalorder %s134, %s135
    %p146 = scmp.eq.s32.totalorder %s16, 0
    %p147 = por %p145, %p146
    %p148 = scmp.ne.s32.totalorder %s134, %s135
    %p149 = scmp.eq.s32.totalorder %s17, 1
    %p150 = por %p148, %p149
    %p152 = scmp.ne.s32.totalorder %s135, %s151
    %p153 = scmp.eq.s32.totalorder %s17, 0
    %p154 = por %p152, %p153
    %p155 = scmp.le.s32.totalorder 1, %s11
    %p156 = scmp.lt.s32.totalorder %s11, 3
    %p157 = pnand %p155, %p156
    %p158 = pneg %p157
    // Predicated region
    $region9: #{residual_block.1} parent=5 // pred_check
      _
    $region10: #{residual_block.1} parent=5 // pred_check_branch
      %160 = sbr.rel (%p157) target = $region12
    $region11: #{residual_block.1} parent=5 // pred_region
      %s161 = ssub.s32 %s11, 1
      // Predicated region
      $region13: #{residual_block.1} parent=11 // pred_check
        %p162 = pneg %p58
      $region14: #{residual_block.1} parent=11 // pred_check_branch
        %164 = sbr.rel (%p162) target = $region16
      $region15: #{residual_block.1} parent=11 // pred_region
        _
      $region16: #{residual_block.1} parent=11 // pred_fallthru
        _
      // Predicated region
      $region17: #{residual_block.1} parent=11 // pred_check
        %p165 = pneg %p79
      $region18: #{residual_block.1} parent=11 // pred_check_branch
        %167 = sbr.rel (%p165) target = $region20
      $region19: #{residual_block.1} parent=11 // pred_region
        _
      $region20: #{residual_block.1} parent=11 // pred_fallthru
        _
      // Predicated region
      $region21: #{residual_block.1} parent=11 // pred_check
        %p168 = pneg %p100
      $region22: #{residual_block.1} parent=11 // pred_check_branch
        %170 = sbr.rel (%p168) target = $region24
      $region23: #{residual_block.1} parent=11 // pred_region
        _
      $region24: #{residual_block.1} parent=11 // pred_fallthru
        _
      // Predicated region
      $region25: #{residual_block.1} parent=11 // pred_check
        %p171 = pneg %p121
      $region26: #{residual_block.1} parent=11 // pred_check_branch
        %173 = sbr.rel (%p171) target = $region28
      $region27: #{residual_block.1} parent=11 // pred_region
        _
      $region28: #{residual_block.1} parent=11 // pred_fallthru
        _
    $region12: #{residual_block.1} parent=5 // pred_fallthru
      _
    %p174 = scmp.lt.s32.totalorder %s11, 2
    // Predicated region
    $region29: #{residual_block.1} parent=5 // pred_check
      %p175 = pneg %p174
    $region30: #{residual_block.1} parent=5 // pred_check_branch
      %177 = sbr.rel (%p175) target = $region32
    $region31: #{residual_block.1} parent=5 // pred_region
      // Predicated region
      $region33: #{residual_block.1} parent=31 // pred_check
        %p178 = pneg %p31
      $region34: #{residual_block.1} parent=31 // pred_check_branch
        %180 = sbr.rel (%p178) target = $region36
      $region35: #{residual_block.1} parent=31 // pred_region
        %p181 = scmp.lt.s32.totalorder %s11, 1
        %s182 = scalar_select %p181, %s11, 1
        %s183 = smul.addr %s182, 32
        %s184 = smul.addr %s183, 8
        %s185 = scalar_lea.vmem %s0, %s184
      $region36: #{residual_block.1} parent=31 // pred_fallthru
        _
    $region32: #{residual_block.1} parent=5 // pred_fallthru
      _
    %p186 = scmp.le.s32.totalorder 1, %s11
    %p187 = scmp.lt.s32.totalorder %s11, 3
    %p188 = pnand %p186, %p187
    %p189 = pneg %p188
    // Predicated region
    $region37: #{residual_block.1} parent=5 // pred_check
      _
    $region38: #{residual_block.1} parent=5 // pred_check_branch
      %191 = sbr.rel (%p188) target = $region40
    $region39: #{residual_block.1} parent=5 // pred_region
      %s192 = ssub.s32 %s11, 1
      %p193 = scmp.lt.s32.totalorder %s16, 1
      %s194 = scalar_select %p193, %s16, 1
      %s195 = smul.addr %s194, 32
      %s196 = smul.addr %s195, 8
      %s197 = scalar_lea.vmem %s0, %s196
      %p198 = pneg %p37
      %p199 = pneg %p34
      %p200 = pneg %p58
      %p201 = pneg %p55
      %p202 = pneg %p79
      %p203 = pneg %p76
      %p204 = pneg %p100
      %p205 = pneg %p97
      %p206 = pneg %p121
      %p207 = pneg %p118
      %p208 = pneg %p147
      %p209 = pneg %p144
      %p210 = scmp.lt.s32.totalorder %s16, 1
      %s211 = scalar_select %p210, %s16, 1
      %s212 = smul.addr %s211, 32
      %s213 = smul.addr %s212, 8
      %s214 = scalar_lea.vmem %s5, %s213
      %p215 = scmp.lt.s32.totalorder %s16, 1
      %s216 = scalar_select %p215, %s16, 1
      %s217 = smul.addr %s216, 32
      %s218 = smul.addr %s217, 8
      %s219 = scalar_lea.vmem %s0, %s218
      %p220 = scmp.lt.s32.totalorder %s16, 1
      %s221 = scalar_select %p220, %s16, 1
      %s222 = smul.addr %s221, 32
      %s223 = smul.addr %s222, 8
      %s224 = scalar_lea.vmem %s5, %s223
      %vm225 = vcmask 31744
      %226 = vst.msk [vmem:[#allocation2] sm:$0xff] %vm225, 0.0
      %227 = vst.msk [vmem:[#allocation2 + $0x8] sm:$0xff] %vm225, 0.0
      %vm228 = vcmask 25600
      %229 = vst.msk [vmem:[#allocation2 + $0x10] sm:$0x3] %vm228, 0.0
      %s230 = scalar_lea.vmem [#allocation2], 408
      %231 = vst.msk [vmem:[%s230] sm:$0xff] %vm225, 0.0
      %232 = vst.msk [vmem:[%s230 + $0x8] sm:$0xff] %vm225, 0.0
      %233 = vst.msk [vmem:[%s230 + $0x10] sm:$0x3] %vm228, 0.0
      %vm234 = vcmask 24576
      %235 = vst.msk [vmem:[#allocation2] sm:$0x1] %vm234, 0.0
      %236 = vst.msk [vmem:[#allocation2 + $0x18] sm:$0x1] %vm234, 0.0
      %237 = vst.msk [vmem:[#allocation2 + $0x30] sm:$0x1] %vm234, 0.0
      %238 = vst.msk [vmem:[#allocation2 + $0x48] sm:$0x1] %vm234, 0.0
      %239 = vst.msk [vmem:[#allocation2 + $0x60] sm:$0x1] %vm234, 0.0
      %240 = vst.msk [vmem:[#allocation2 + $0x78] sm:$0x1] %vm234, 0.0
      %241 = vst.msk [vmem:[#allocation2 + $0x90] sm:$0x1] %vm234, 0.0
      %242 = vst.msk [vmem:[#allocation2 + $0xa8] sm:$0x1] %vm234, 0.0
      %243 = vst.msk [vmem:[#allocation2 + $0xc0] sm:$0x1] %vm234, 0.0
      %244 = vst.msk [vmem:[#allocation2 + $0xd8] sm:$0x1] %vm234, 0.0
      %245 = vst.msk [vmem:[#allocation2 + $0xf0] sm:$0x1] %vm234, 0.0
      %246 = vst.msk [vmem:[#allocation2 + $0x108] sm:$0x1] %vm234, 0.0
      %247 = vst.msk [vmem:[#allocation2 + $0x120] sm:$0x1] %vm234, 0.0
      %248 = vst.msk [vmem:[#allocation2 + $0x138] sm:$0x1] %vm234, 0.0
      %249 = vst.msk [vmem:[#allocation2 + $0x150] sm:$0x1] %vm234, 0.0
      %250 = vst.msk [vmem:[#allocation2 + $0x168] sm:$0x1] %vm234, 0.0
      %251 = vst.msk [vmem:[#allocation2 + $0x180] sm:$0x1] %vm234, 0.0
      %252 = vst.msk [vmem:[#allocation2 + $0x198] sm:$0x1] %vm234, 0.0
      %253 = vst.msk [vmem:[#allocation2 + $0x11] sm:$0x1] %vm234, 0.0
      %254 = vst.msk [vmem:[#allocation2 + $0x29] sm:$0x1] %vm234, 0.0
      %255 = vst.msk [vmem:[#allocation2 + $0x41] sm:$0x1] %vm234, 0.0
      %256 = vst.msk [vmem:[#allocation2 + $0x59] sm:$0x1] %vm234, 0.0
      %257 = vst.msk [vmem:[#allocation2 + $0x71] sm:$0x1] %vm234, 0.0
      %258 = vst.msk [vmem:[#allocation2 + $0x89] sm:$0x1] %vm234, 0.0
      %259 = vst.msk [vmem:[#allocation2 + $0xa1] sm:$0x1] %vm234, 0.0
      %260 = vst.msk [vmem:[#allocation2 + $0xb9] sm:$0x1] %vm234, 0.0
      %261 = vst.msk [vmem:[#allocation2 + $0xd1] sm:$0x1] %vm234, 0.0
      %262 = vst.msk [vmem:[#allocation2 + $0xe9] sm:$0x1] %vm234, 0.0
      %263 = vst.msk [vmem:[#allocation2 + $0x101] sm:$0x1] %vm234, 0.0
      %264 = vst.msk [vmem:[#allocation2 + $0x119] sm:$0x1] %vm234, 0.0
      %265 = vst.msk [vmem:[#allocation2 + $0x131] sm:$0x1] %vm234, 0.0
      %266 = vst.msk [vmem:[#allocation2 + $0x149] sm:$0x1] %vm234, 0.0
      %267 = vst.msk [vmem:[#allocation2 + $0x161] sm:$0x1] %vm234, 0.0
      %268 = vst.msk [vmem:[#allocation2 + $0x179] sm:$0x1] %vm234, 0.0
      %269 = vst.msk [vmem:[#allocation2 + $0x191] sm:$0x1] %vm234, 0.0
      %270 = vst.msk [vmem:[#allocation2 + $0x1a9] sm:$0x1] %vm234, 0.0
      %271 = vst.msk [vmem:[#allocation3] sm:$0xff] %vm225, 0.0
      %272 = vst.msk [vmem:[#allocation3 + $0x8] sm:$0xff] %vm225, 0.0
      %273 = vst.msk [vmem:[#allocation3 + $0x10] sm:$0x3] %vm228, 0.0
      %s274 = scalar_lea.vmem [#allocation3], 408
      %275 = vst.msk [vmem:[%s274] sm:$0xff] %vm225, 0.0
      %276 = vst.msk [vmem:[%s274 + $0x8] sm:$0xff] %vm225, 0.0
      %277 = vst.msk [vmem:[%s274 + $0x10] sm:$0x3] %vm228, 0.0
      %278 = vst.msk [vmem:[#allocation3] sm:$0x1] %vm234, 0.0
      %279 = vst.msk [vmem:[#allocation3 + $0x18] sm:$0x1] %vm234, 0.0
      %280 = vst.msk [vmem:[#allocation3 + $0x30] sm:$0x1] %vm234, 0.0
      %281 = vst.msk [vmem:[#allocation3 + $0x48] sm:$0x1] %vm234, 0.0
      %282 = vst.msk [vmem:[#allocation3 + $0x60] sm:$0x1] %vm234, 0.0
      %283 = vst.msk [vmem:[#allocation3 + $0x78] sm:$0x1] %vm234, 0.0
      %284 = vst.msk [vmem:[#allocation3 + $0x90] sm:$0x1] %vm234, 0.0
      %285 = vst.msk [vmem:[#allocation3 + $0xa8] sm:$0x1] %vm234, 0.0
      %286 = vst.msk [vmem:[#allocation3 + $0xc0] sm:$0x1] %vm234, 0.0
      %287 = vst.msk [vmem:[#allocation3 + $0xd8] sm:$0x1] %vm234, 0.0
      %288 = vst.msk [vmem:[#allocation3 + $0xf0] sm:$0x1] %vm234, 0.0
      %289 = vst.msk [vmem:[#allocation3 + $0x108] sm:$0x1] %vm234, 0.0
      %290 = vst.msk [vmem:[#allocation3 + $0x120] sm:$0x1] %vm234, 0.0
      %291 = vst.msk [vmem:[#allocation3 + $0x138] sm:$0x1] %vm234, 0.0
      %292 = vst.msk [vmem:[#allocation3 + $0x150] sm:$0x1] %vm234, 0.0
      %293 = vst.msk [vmem:[#allocation3 + $0x168] sm:$0x1] %vm234, 0.0
      %294 = vst.msk [vmem:[#allocation3 + $0x180] sm:$0x1] %vm234, 0.0
      %295 = vst.msk [vmem:[#allocation3 + $0x198] sm:$0x1] %vm234, 0.0
      %296 = vst.msk [vmem:[#allocation3 + $0x11] sm:$0x1] %vm234, 0.0
      %297 = vst.msk [vmem:[#allocation3 + $0x29] sm:$0x1] %vm234, 0.0
      %298 = vst.msk [vmem:[#allocation3 + $0x41] sm:$0x1] %vm234, 0.0
      %299 = vst.msk [vmem:[#allocation3 + $0x59] sm:$0x1] %vm234, 0.0
      %300 = vst.msk [vmem:[#allocation3 + $0x71] sm:$0x1] %vm234, 0.0
      %301 = vst.msk [vmem:[#allocation3 + $0x89] sm:$0x1] %vm234, 0.0
      %302 = vst.msk [vmem:[#allocation3 + $0xa1] sm:$0x1] %vm234, 0.0
      %303 = vst.msk [vmem:[#allocation3 + $0xb9] sm:$0x1] %vm234, 0.0
      %304 = vst.msk [vmem:[#allocation3 + $0xd1] sm:$0x1] %vm234, 0.0
      %305 = vst.msk [vmem:[#allocation3 + $0xe9] sm:$0x1] %vm234, 0.0
      %306 = vst.msk [vmem:[#allocation3 + $0x101] sm:$0x1] %vm234, 0.0
      %307 = vst.msk [vmem:[#allocation3 + $0x119] sm:$0x1] %vm234, 0.0
      %308 = vst.msk [vmem:[#allocation3 + $0x131] sm:$0x1] %vm234, 0.0
      %309 = vst.msk [vmem:[#allocation3 + $0x149] sm:$0x1] %vm234, 0.0
      %310 = vst.msk [vmem:[#allocation3 + $0x161] sm:$0x1] %vm234, 0.0
      %311 = vst.msk [vmem:[#allocation3 + $0x179] sm:$0x1] %vm234, 0.0
      %312 = vst.msk [vmem:[#allocation3 + $0x191] sm:$0x1] %vm234, 0.0
      %313 = vst.msk [vmem:[#allocation3 + $0x1a9] sm:$0x1] %vm234, 0.0
      %v314 = vld [vmem:[%s219] sm:$0xff]
      %v315 = vld [vmem:[%s219 + $0x8] sm:$0xff]
      %v316 = vld [vmem:[%s219 + $0x10] sm:$0xff]
      %v317 = vld [vmem:[%s219 + $0x18] sm:$0xff]
      %v318 = vld [vmem:[%s219 + $0x20] sm:$0xff]
      %v319 = vld [vmem:[%s219 + $0x28] sm:$0xff]
      %v320 = vld [vmem:[%s219 + $0x30] sm:$0xff]
      %v321 = vld [vmem:[%s219 + $0x38] sm:$0xff]
      %v322 = vld [vmem:[%s219 + $0x40] sm:$0xff]
      %v323 = vld [vmem:[%s219 + $0x48] sm:$0xff]
      %v324 = vld [vmem:[%s219 + $0x50] sm:$0xff]
      %v325 = vld [vmem:[%s219 + $0x58] sm:$0xff]
      %v326 = vld [vmem:[%s219 + $0x60] sm:$0xff]
      %v327 = vld [vmem:[%s219 + $0x68] sm:$0xff]
      %v328 = vld [vmem:[%s219 + $0x70] sm:$0xff]
      %v329 = vld [vmem:[%s219 + $0x78] sm:$0xff]
      %v330 = vld [vmem:[%s219 + $0x80] sm:$0xff]
      %v331 = vld [vmem:[%s219 + $0x88] sm:$0xff]
      %v332 = vld [vmem:[%s219 + $0x90] sm:$0xff]
      %v333 = vld [vmem:[%s219 + $0x98] sm:$0xff]
      %v334 = vld [vmem:[%s219 + $0xa0] sm:$0xff]
      %v335 = vld [vmem:[%s219 + $0xa8] sm:$0xff]
      %v336 = vld [vmem:[%s219 + $0xb0] sm:$0xff]
      %v337 = vld [vmem:[%s219 + $0xb8] sm:$0xff]
      %v338 = vld [vmem:[%s219 + $0xc0] sm:$0xff]
      %v339 = vld [vmem:[%s219 + $0xc8] sm:$0xff]
      %v340 = vld [vmem:[%s219 + $0xd0] sm:$0xff]
      %v341 = vld [vmem:[%s219 + $0xd8] sm:$0xff]
      %v342 = vld [vmem:[%s219 + $0xe0] sm:$0xff]
      %v343 = vld [vmem:[%s219 + $0xe8] sm:$0xff]
      %v344 = vld [vmem:[%s219 + $0xf0] sm:$0xff]
      %v345 = vld [vmem:[%s219 + $0xf8] sm:$0xff]
      %s346 = scalar_lea.vmem [#allocation2], 24
      %347 = vst.msk [vmem:[%s346 + $0x1] sm:$0xff] %vm225, %v314
      %348 = vst.msk [vmem:[%s346 + $0x9] sm:$0xff] %vm225, %v315
      %349 = vst.msk [vmem:[%s346 + $0x19] sm:$0xff] %vm225, %v316
      %350 = vst.msk [vmem:[%s346 + $0x21] sm:$0xff] %vm225, %v317
      %351 = vst.msk [vmem:[%s346 + $0x31] sm:$0xff] %vm225, %v318
      %352 = vst.msk [vmem:[%s346 + $0x39] sm:$0xff] %vm225, %v319
      %353 = vst.msk [vmem:[%s346 + $0x49] sm:$0xff] %vm225, %v320
      %354 = vst.msk [vmem:[%s346 + $0x51] sm:$0xff] %vm225, %v321
      %355 = vst.msk [vmem:[%s346 + $0x61] sm:$0xff] %vm225, %v322
      %356 = vst.msk [vmem:[%s346 + $0x69] sm:$0xff] %vm225, %v323
      %357 = vst.msk [vmem:[%s346 + $0x79] sm:$0xff] %vm225, %v324
      %358 = vst.msk [vmem:[%s346 + $0x81] sm:$0xff] %vm225, %v325
      %359 = vst.msk [vmem:[%s346 + $0x91] sm:$0xff] %vm225, %v326
      %360 = vst.msk [vmem:[%s346 + $0x99] sm:$0xff] %vm225, %v327
      %361 = vst.msk [vmem:[%s346 + $0xa9] sm:$0xff] %vm225, %v328
      %362 = vst.msk [vmem:[%s346 + $0xb1] sm:$0xff] %vm225, %v329
      %363 = vst.msk [vmem:[%s346 + $0xc1] sm:$0xff] %vm225, %v330
      %364 = vst.msk [vmem:[%s346 + $0xc9] sm:$0xff] %vm225, %v331
      %365 = vst.msk [vmem:[%s346 + $0xd9] sm:$0xff] %vm225, %v332
      %366 = vst.msk [vmem:[%s346 + $0xe1] sm:$0xff] %vm225, %v333
      %367 = vst.msk [vmem:[%s346 + $0xf1] sm:$0xff] %vm225, %v334
      %368 = vst.msk [vmem:[%s346 + $0xf9] sm:$0xff] %vm225, %v335
      %369 = vst.msk [vmem:[%s346 + $0x109] sm:$0xff] %vm225, %v336
      %370 = vst.msk [vmem:[%s346 + $0x111] sm:$0xff] %vm225, %v337
      %371 = vst.msk [vmem:[%s346 + $0x121] sm:$0xff] %vm225, %v338
      %372 = vst.msk [vmem:[%s346 + $0x129] sm:$0xff] %vm225, %v339
      %373 = vst.msk [vmem:[%s346 + $0x139] sm:$0xff] %vm225, %v340
      %374 = vst.msk [vmem:[%s346 + $0x141] sm:$0xff] %vm225, %v341
      %375 = vst.msk [vmem:[%s346 + $0x151] sm:$0xff] %vm225, %v342
      %376 = vst.msk [vmem:[%s346 + $0x159] sm:$0xff] %vm225, %v343
      %377 = vst.msk [vmem:[%s346 + $0x169] sm:$0xff] %vm225, %v344
      %378 = vst.msk [vmem:[%s346 + $0x171] sm:$0xff] %vm225, %v345
      %v379 = vld [vmem:[%s2] sm:$0x1]
      %v380 = vld [vmem:[%s4] sm:$0x1]
      %s381 = smul.u32 0, 24
      %s382 = scalar_lea.vmem [#allocation2], %s381
      %v383 = vld [vmem:[%s382] sm:$0xff]
      %v384 = vld [vmem:[%s382 + $0x8] sm:$0xff]
      %v385 = vld [vmem:[%s382 + $0x10] sm:$0x3]
      %v386 = vld [vmem:[%s382 + $0x18] sm:$0xff]
      %v387 = vld [vmem:[%s382 + $0x20] sm:$0xff]
      %v388 = vld [vmem:[%s382 + $0x28] sm:$0x3]
      %v389 = vld [vmem:[%s382 + $0x30] sm:$0xff]
      %v390 = vld [vmem:[%s382 + $0x38] sm:$0xff]
      %v391 = vld [vmem:[%s382 + $0x40] sm:$0x3]
      %v392 = vld [vmem:[%s382 + $0x48] sm:$0xff]
      %v393 = vld [vmem:[%s382 + $0x50] sm:$0xff]
      %v394 = vld [vmem:[%s382 + $0x58] sm:$0x3]
      %v395 = vld [vmem:[%s382 + $0x60] sm:$0xff]
      %v396 = vld [vmem:[%s382 + $0x68] sm:$0xff]
      %v397 = vld [vmem:[%s382 + $0x70] sm:$0x3]
      %v398 = vld [vmem:[%s382 + $0x78] sm:$0xff]
      %v399 = vld [vmem:[%s382 + $0x80] sm:$0xff]
      %v400 = vld [vmem:[%s382 + $0x88] sm:$0x3]
      %v401 = vld [vmem:[%s382 + $0x90] sm:$0xff]
      %v402 = vld [vmem:[%s382 + $0x98] sm:$0xff]
      %v403 = vld [vmem:[%s382 + $0xa0] sm:$0x3]
      %v404 = vld [vmem:[%s382 + $0xa8] sm:$0xff]
      %v405 = vld [vmem:[%s382 + $0xb0] sm:$0xff]
      %v406 = vld [vmem:[%s382 + $0xb8] sm:$0x3]
      %vm431 = vcmask 1046528
      %v432 = vrot.slane %v383, 1
      %v433 = vrot.slane %v384, 1
      %v434 = vsel %vm431, %v432, %v433
      %v435 = vrot.slane %v385, 1
      %v436 = vsel %vm431, %v433, %v435
      %v437 = vrot.slane %v386, 1
      %v438 = vrot.slane %v387, 1
      %v439 = vsel %vm431, %v437, %v438
      %v440 = vrot.slane %v388, 1
      %v441 = vsel %vm431, %v438, %v440
      %v442 = vrot.slane %v389, 1
      %v443 = vrot.slane %v390, 1
      %v444 = vsel %vm431, %v442, %v443
      %v445 = vrot.slane %v391, 1
      %v446 = vsel %vm431, %v443, %v445
      %v447 = vrot.slane %v392, 1
      %v448 = vrot.slane %v393, 1
      %v449 = vsel %vm431, %v447, %v448
      %v450 = vrot.slane %v394, 1
      %v451 = vsel %vm431, %v448, %v450
      %v452 = vrot.slane %v395, 1
      %v453 = vrot.slane %v396, 1
      %v454 = vsel %vm431, %v452, %v453
      %v455 = vrot.slane %v397, 1
      %v456 = vsel %vm431, %v453, %v455
      %v457 = vrot.slane %v398, 1
      %v458 = vrot.slane %v399, 1
      %v459 = vsel %vm431, %v457, %v458
      %v460 = vrot.slane %v400, 1
      %v461 = vsel %vm431, %v458, %v460
      %v462 = vrot.slane %v401, 1
      %v463 = vrot.slane %v402, 1
      %v464 = vsel %vm431, %v462, %v463
      %v465 = vrot.slane %v403, 1
      %v466 = vsel %vm431, %v463, %v465
      %v467 = vrot.slane %v404, 1
      %v468 = vrot.slane %v405, 1
      %v469 = vsel %vm431, %v467, %v468
      %v470 = vrot.slane %v406, 1
      %v471 = vsel %vm431, %v468, %v470
      %vm472 = vcmask 1045504
      %v473 = vrot.slane %v383, 2
      %v474 = vrot.slane %v384, 2
      %v475 = vsel %vm472, %v473, %v474
      %v476 = vrot.slane %v385, 2
      %v477 = vsel %vm472, %v474, %v476
      %v478 = vrot.slane %v386, 2
      %v479 = vrot.slane %v387, 2
      %v480 = vsel %vm472, %v478, %v479
      %v481 = vrot.slane %v388, 2
      %v482 = vsel %vm472, %v479, %v481
      %v483 = vrot.slane %v389, 2
      %v484 = vrot.slane %v390, 2
      %v485 = vsel %vm472, %v483, %v484
      %v486 = vrot.slane %v391, 2
      %v487 = vsel %vm472, %v484, %v486
      %v488 = vrot.slane %v392, 2
      %v489 = vrot.slane %v393, 2
      %v490 = vsel %vm472, %v488, %v489
      %v491 = vrot.slane %v394, 2
      %v492 = vsel %vm472, %v489, %v491
      %v493 = vrot.slane %v395, 2
      %v494 = vrot.slane %v396, 2
      %v495 = vsel %vm472, %v493, %v494
      %v496 = vrot.slane %v397, 2
      %v497 = vsel %vm472, %v494, %v496
      %v498 = vrot.slane %v398, 2
      %v499 = vrot.slane %v399, 2
      %v500 = vsel %vm472, %v498, %v499
      %v501 = vrot.slane %v400, 2
      %v502 = vsel %vm472, %v499, %v501
      %v503 = vrot.slane %v401, 2
      %v504 = vrot.slane %v402, 2
      %v505 = vsel %vm472, %v503, %v504
      %v506 = vrot.slane %v403, 2
      %v507 = vsel %vm472, %v504, %v506
      %v508 = vrot.slane %v404, 2
      %v509 = vrot.slane %v405, 2
      %v510 = vsel %vm472, %v508, %v509
      %v511 = vrot.slane %v406, 2
      %v512 = vsel %vm472, %v509, %v511
      %v513 = vld [vmem:[%s1] sm:$0xf]
      %v514 = vld [vmem:[%s1 + $0x4] sm:$0xf]
      %v515 = vsel %vm225, %v434, 0
      %v517 = vsel %vm225, %v436, 0
      %v519 = vsel %vm225, %v439, 0
      %v521 = vsel %vm225, %v441, 0
      %v523 = vsel %vm225, %v444, 0
      %v525 = vsel %vm225, %v446, 0
      %v527 = vsel %vm225, %v449, 0
      %v529 = vsel %vm225, %v451, 0
      %v531 = vsel %vm225, %v454, 0
      %v533 = vsel %vm225, %v456, 0
      %v535 = vsel %vm225, %v459, 0
      %v537 = vsel %vm225, %v461, 0
      %v539 = vsel %vm225, %v464, 0
      %v541 = vsel %vm225, %v466, 0
      %v543 = vsel %vm225, %v469, 0
      %v545 = vsel %vm225, %v471, 0
      %vm547 = vcmask 1043456
      %v549 = vsel %vm547, %v514, 0
      %551 = vmatprep.subr.mxu0 0.0
      %552 = vmatpush1.msra.mxu0 %v549
      %553 = vmatprep.subr.mxu0 0.0
      %554 = vmatpush1.msra.mxu0 0.0
      %555 = vmatprep.subr.mxu0 0.0
      %556 = vmatpush1.msra.mxu0 0.0
      %557 = vmatprep.subr.mxu0 0.0
      %558 = vmatpush1.msra.mxu0 0.0
      %559 = vmatprep.subr.mxu0 0.0
      %560 = vmatpush1.msra.mxu0 0.0
      %561 = vmatprep.subr.mxu0 0.0
      %562 = vmatpush1.msra.mxu0 0.0
      %563 = vmatprep.subr.mxu0 0.0
      %564 = vmatpush1.msra.mxu0 0.0
      %565 = vmatprep.subr.mxu0 0.0
      %566 = vmatpush1.msra.mxu0 0.0
      %567 = vmatprep.subr.mxu0 0.0
      %568 = vmatpush1.msra.mxu0 0.0
      %569 = vmatprep.subr.mxu0 0.0
      %570 = vmatpush1.msra.mxu0 0.0
      %571 = vmatprep.subr.mxu0 0.0
      %572 = vmatpush1.msra.mxu0 0.0
      %573 = vmatprep.subr.mxu0 0.0
      %574 = vmatpush1.msra.mxu0 0.0
      %575 = vmatprep.subr.mxu0 0.0
      %576 = vmatpush1.msra.mxu0 0.0
      %577 = vmatprep.subr.mxu0 0.0
      %578 = vmatpush1.msra.mxu0 0.0
      %579 = vmatprep.subr.mxu0 0.0
      %580 = vmatpush1.msra.mxu0 0.0
      %581 = vmatprep.subr.mxu0 0.0
      %582 = vmatpush1.msra.mxu0 0.0
      %583 = vmatprep.subr.mxu0 0.0
      %584 = vmatpush1.msra.mxu0 0.0
      %585 = vmatprep.subr.mxu0 0.0
      %586 = vmatpush1.msra.mxu0 0.0
      %587 = vmatprep.subr.mxu0 0.0
      %588 = vmatpush1.msra.mxu0 0.0
      %589 = vmatprep.subr.mxu0 0.0
      %590 = vmatpush1.msra.mxu0 0.0
      %591 = vmatprep.subr.mxu0 0.0
      %592 = vmatpush1.msra.mxu0 0.0
      %593 = vmatprep.subr.mxu0 0.0
      %594 = vmatpush1.msra.mxu0 0.0
      %595 = vmatprep.subr.mxu0 0.0
      %596 = vmatpush1.msra.mxu0 0.0
      %597 = vmatprep.subr.mxu0 0.0
      %598 = vmatpush1.msra.mxu0 0.0
      %599 = vmatprep.subr.mxu0 0.0
      %600 = vmatpush1.msra.mxu0 0.0
      %601 = vmatprep.subr.mxu0 0.0
      %602 = vmatpush1.msra.mxu0 0.0
      %603 = vmatprep.subr.mxu0 0.0
      %604 = vmatpush1.msra.mxu0 0.0
      %605 = vmatprep.subr.mxu0 0.0
      %606 = vmatpush1.msra.mxu0 0.0
      %607 = vmatprep.subr.mxu0 0.0
      %608 = vmatpush1.msra.mxu0 0.0
      %609 = vmatprep.subr.mxu0 0.0
      %610 = vmatpush1.msra.mxu0 0.0
      %611 = vmatprep.subr.mxu0 0.0
      %612 = vmatpush1.msra.mxu0 0.0
      %613 = vmatprep.subr.mxu0 0.0
      %614 = vmatpush1.msra.mxu0 0.0
      %615 = vmatprep.mubr.f32.mxu0 0.0
      %616 = vmatmul.mubr.f32.gmra.mrb[0].mxu0 %v515
      %v617 = vpop.f32.mrb[0].mxu0
      %v618 = vadd.f32 0.0, %v617
      %v619 = vpop.f32.mrb[0].mxu0
      %620 = vmatprep.mubr.f32.mxu0 0.0
      %621 = vmatmul.mubr.f32.gmra.mrb[0].mxu0 %v517
      %v622 = vpop.f32.mrb[0].mxu0
      %v623 = vadd.f32 0.0, %v622
      %v624 = vpop.f32.mrb[0].mxu0
      %625 = vmatprep.mubr.f32.mxu0 0.0
      %626 = vmatmul.mubr.f32.gmra.mrb[0].mxu0 %v519
      %v627 = vpop.f32.mrb[0].mxu0
      %v628 = vadd.f32 0.0, %v627
      %v629 = vpop.f32.mrb[0].mxu0
      %630 = vmatprep.mubr.f32.mxu0 0.0
      %631 = vmatmul.mubr.f32.gmra.mrb[0].mxu0 %v521
      %v632 = vpop.f32.mrb[0].mxu0
      %v633 = vadd.f32 0.0, %v632
      %v634 = vpop.f32.mrb[0].mxu0
      %635 = vmatprep.mubr.f32.mxu0 0.0
      %636 = vmatmul.mubr.f32.gmra.mrb[0].mxu0 %v523
      %v637 = vpop.f32.mrb[0].mxu0
      %v638 = vadd.f32 0.0, %v637
      %v639 = vpop.f32.mrb[0].mxu0
      %640 = vmatprep.mubr.f32.mxu0 0.0
      %641 = vmatmul.mubr.f32.gmra.mrb[0].mxu0 %v525
      %v642 = vpop.f32.mrb[0].mxu0
      %v643 = vadd.f32 0.0, %v642
      %v644 = vpop.f32.mrb[0].mxu0
      %645 = vmatprep.mubr.f32.mxu0 0.0
      %646 = vmatmul.mubr.f32.gmra.mrb[0].mxu0 %v527
      %v647 = vpop.f32.mrb[0].mxu0
      %v648 = vadd.f32 0.0, %v647
      %v649 = vpop.f32.mrb[0].mxu0
      %650 = vmatprep.mubr.f32.mxu0 0.0
      %651 = vmatmul.mubr.f32.gmra.mrb[0].mxu0 %v529
      %v652 = vpop.f32.mrb[0].mxu0
      %v653 = vadd.f32 0.0, %v652
      %v654 = vpop.f32.mrb[0].mxu0
      %655 = vmatprep.mubr.f32.mxu0 0.0
      %656 = vmatmul.mubr.f32.gmra.mrb[0].mxu0 %v531
      %v657 = vpop.f32.mrb[0].mxu0
      %v658 = vadd.f32 0.0, %v657
      %v659 = vpop.f32.mrb[0].mxu0
      %660 = vmatprep.mubr.f32.mxu0 0.0
      %661 = vmatmul.mubr.f32.gmra.mrb[0].mxu0 %v533
      %v662 = vpop.f32.mrb[0].mxu0
      %v663 = vadd.f32 0.0, %v662
      %v664 = vpop.f32.mrb[0].mxu0
      %665 = vmatprep.mubr.f32.mxu0 0.0
      %666 = vmatmul.mubr.f32.gmra.mrb[0].mxu0 %v535
      %v667 = vpop.f32.mrb[0].mxu0
      %v668 = vadd.f32 0.0, %v667
      %v669 = vpop.f32.mrb[0].mxu0
      %670 = vmatprep.mubr.f32.mxu0 0.0
      %671 = vmatmul.mubr.f32.gmra.mrb[0].mxu0 %v537
      %v672 = vpop.f32.mrb[0].mxu0
      %v673 = vadd.f32 0.0, %v672
      %v674 = vpop.f32.mrb[0].mxu0
      %675 = vmatprep.mubr.f32.mxu0 0.0
      %676 = vmatmul.mubr.f32.gmra.mrb[0].mxu0 %v539
      %v677 = vpop.f32.mrb[0].mxu0
      %v678 = vadd.f32 0.0, %v677
      %v679 = vpop.f32.mrb[0].mxu0
      %680 = vmatprep.mubr.f32.mxu0 0.0
      %681 = vmatmul.mubr.f32.gmra.mrb[0].mxu0 %v541
      %v682 = vpop.f32.mrb[0].mxu0
      %v683 = vadd.f32 0.0, %v682
      %v684 = vpop.f32.mrb[0].mxu0
      %685 = vmatprep.mubr.f32.mxu0 0.0
      %686 = vmatmul.mubr.f32.gmra.mrb[0].mxu0 %v543
      %v687 = vpop.f32.mrb[0].mxu0
      %v688 = vadd.f32 0.0, %v687
      %v689 = vpop.f32.mrb[0].mxu0
      %690 = vmatprep.mubr.f32.mxu0 0.0
      %691 = vmatmul.mubr.f32.gmra.mrb[0].mxu0 %v545
      %v692 = vpop.f32.mrb[0].mxu0
      %v693 = vadd.f32 0.0, %v692
      %v694 = vpop.f32.mrb[0].mxu0
      %695 = vdwg.mxu0
      %v696 = vsel %vm225, %v383, 0
      %v698 = vsel %vm225, %v384, 0
      %v700 = vsel %vm225, %v386, 0
      %v702 = vsel %vm225, %v387, 0
      %v704 = vsel %vm225, %v389, 0
      %v706 = vsel %vm225, %v390, 0
      %v708 = vsel %vm225, %v392, 0
      %v710 = vsel %vm225, %v393, 0
      %v712 = vsel %vm225, %v395, 0
      %v714 = vsel %vm225, %v396, 0
      %v716 = vsel %vm225, %v398, 0
      %v718 = vsel %vm225, %v399, 0
      %v720 = vsel %vm225, %v401, 0
      %v722 = vsel %vm225, %v402, 0
      %v724 = vsel %vm225, %v404, 0
      %v726 = vsel %vm225, %v405, 0
      %v729 = vsel %vm547, %v513, 0
      %731 = vmatprep.subr.mxu0 0.0
      %732 = vmatpush1.msra.mxu0 %v729
      %733 = vmatprep.subr.mxu0 0.0
      %734 = vmatpush1.msra.mxu0 0.0
      %735 = vmatprep.subr.mxu0 0.0
      %736 = vmatpush1.msra.mxu0 0.0
      %737 = vmatprep.subr.mxu0 0.0
      %738 = vmatpush1.msra.mxu0 0.0
      %739 = vmatprep.subr.mxu0 0.0
      %740 = vmatpush1.msra.mxu0 0.0
      %741 = vmatprep.subr.mxu0 0.0
      %742 = vmatpush1.msra.mxu0 0.0
      %743 = vmatprep.subr.mxu0 0.0
      %744 = vmatpush1.msra.mxu0 0.0
      %745 = vmatprep.subr.mxu0 0.0
      %746 = vmatpush1.msra.mxu0 0.0
      %747 = vmatprep.subr.mxu0 0.0
      %748 = vmatpush1.msra.mxu0 0.0
      %749 = vmatprep.subr.mxu0 0.0
      %750 = vmatpush1.msra.mxu0 0.0
      %751 = vmatprep.subr.mxu0 0.0
      %752 = vmatpush1.msra.mxu0 0.0
      %753 = vmatprep.subr.mxu0 0.0
      %754 = vmatpush1.msra.mxu0 0.0
      %755 = vmatprep.subr.mxu0 0.0
      %756 = vmatpush1.msra.mxu0 0.0
      %757 = vmatprep.subr.mxu0 0.0
      %758 = vmatpush1.msra.mxu0 0.0
      %759 = vmatprep.subr.mxu0 0.0
      %760 = vmatpush1.msra.mxu0 0.0
      %761 = vmatprep.subr.mxu0 0.0
      %762 = vmatpush1.msra.mxu0 0.0
      %763 = vmatprep.subr.mxu0 0.0
      %764 = vmatpush1.msra.mxu0 0.0
      %765 = vmatprep.subr.mxu0 0.0
      %766 = vmatpush1.msra.mxu0 0.0
      %767 = vmatprep.subr.mxu0 0.0
      %768 = vmatpush1.msra.mxu0 0.0
      %769 = vmatprep.subr.mxu0 0.0
      %770 = vmatpush1.msra.mxu0 0.0
      %771 = vmatprep.subr.mxu0 0.0
      %772 = vmatpush1.msra.mxu0 0.0
      %773 = vmatprep.subr.mxu0 0.0
      %774 = vmatpush1.msra.mxu0 0.0
      %775 = vmatprep.subr.mxu0 0.0
      %776 = vmatpush1.msra.mxu0 0.0
      %777 = vmatprep.subr.mxu0 0.0
      %778 = vmatpush1.msra.mxu0 0.0
      %779 = vmatprep.subr.mxu0 0.0
      %780 = vmatpush1.msra.mxu0 0.0
      %781 = vmatprep.subr.mxu0 0.0
      %782 = vmatpush1.msra.mxu0 0.0
      %783 = vmatprep.subr.mxu0 0.0
      %784 = vmatpush1.msra.mxu0 0.0
      %785 = vmatprep.subr.mxu0 0.0
      %786 = vmatpush1.msra.mxu0 0.0
      %787 = vmatprep.subr.mxu0 0.0
      %788 = vmatpush1.msra.mxu0 0.0
      %789 = vmatprep.subr.mxu0 0.0
      %790 = vmatpush1.msra.mxu0 0.0
      %791 = vmatprep.subr.mxu0 0.0
      %792 = vmatpush1.msra.mxu0 0.0
      %793 = vmatprep.subr.mxu0 0.0
      %794 = vmatpush1.msra.mxu0 0.0
      %795 = vmatprep.mubr.f32.mxu0 0.0
      %796 = vmatmul.mubr.f32.gmra.mrb[0].mxu0 %v696
      %v797 = vpop.f32.mrb[0].mxu0
      %v798 = vadd.f32 %v618, %v797
      %v799 = vpop.f32.mrb[0].mxu0
      %800 = vmatprep.mubr.f32.mxu0 0.0
      %801 = vmatmul.mubr.f32.gmra.mrb[0].mxu0 %v698
      %v802 = vpop.f32.mrb[0].mxu0
      %v803 = vadd.f32 %v623, %v802
      %v804 = vpop.f32.mrb[0].mxu0
      %805 = vmatprep.mubr.f32.mxu0 0.0
      %806 = vmatmul.mubr.f32.gmra.mrb[0].mxu0 %v700
      %v807 = vpop.f32.mrb[0].mxu0
      %v808 = vadd.f32 %v628, %v807
      %v809 = vpop.f32.mrb[0].mxu0
      %810 = vmatprep.mubr.f32.mxu0 0.0
      %811 = vmatmul.mubr.f32.gmra.mrb[0].mxu0 %v702
      %v812 = vpop.f32.mrb[0].mxu0
      %v813 = vadd.f32 %v633, %v812
      %v814 = vpop.f32.mrb[0].mxu0
      %815 = vmatprep.mubr.f32.mxu0 0.0
      %816 = vmatmul.mubr.f32.gmra.mrb[0].mxu0 %v704
      %v817 = vpop.f32.mrb[0].mxu0
      %v818 = vadd.f32 %v638, %v817
      %v819 = vpop.f32.mrb[0].mxu0
      %820 = vmatprep.mubr.f32.mxu0 0.0
      %821 = vmatmul.mubr.f32.gmra.mrb[0].mxu0 %v706
      %v822 = vpop.f32.mrb[0].mxu0
      %v823 = vadd.f32 %v643, %v822
      %v824 = vpop.f32.mrb[0].mxu0
      %825 = vmatprep.mubr.f32.mxu0 0.0
      %826 = vmatmul.mubr.f32.gmra.mrb[0].mxu0 %v708
      %v827 = vpop.f32.mrb[0].mxu0
      %v828 = vadd.f32 %v648, %v827
      %v829 = vpop.f32.mrb[0].mxu0
      %830 = vmatprep.mubr.f32.mxu0 0.0
      %831 = vmatmul.mubr.f32.gmra.mrb[0].mxu0 %v710
      %v832 = vpop.f32.mrb[0].mxu0
      %v833 = vadd.f32 %v653, %v832
      %v834 = vpop.f32.mrb[0].mxu0
      %835 = vmatprep.mubr.f32.mxu0 0.0
      %836 = vmatmul.mubr.f32.gmra.mrb[0].mxu0 %v712
      %v837 = vpop.f32.mrb[0].mxu0
      %v838 = vadd.f32 %v658, %v837
      %v839 = vpop.f32.mrb[0].mxu0
      %840 = vmatprep.mubr.f32.mxu0 0.0
      %841 = vmatmul.mubr.f32.gmra.mrb[0].mxu0 %v714
      %v842 = vpop.f32.mrb[0].mxu0
      %v843 = vadd.f32 %v663, %v842
      %v844 = vpop.f32.mrb[0].mxu0
      %845 = vmatprep.mubr.f32.mxu0 0.0
      %846 = vmatmul.mubr.f32.gmra.mrb[0].mxu0 %v716
      %v847 = vpop.f32.mrb[0].mxu0
      %v848 = vadd.f32 %v668, %v847
      %v849 = vpop.f32.mrb[0].mxu0
      %850 = vmatprep.mubr.f32.mxu0 0.0
      %851 = vmatmul.mubr.f32.gmra.mrb[0].mxu0 %v718
      %v852 = vpop.f32.mrb[0].mxu0
      %v853 = vadd.f32 %v673, %v852
      %v854 = vpop.f32.mrb[0].mxu0
      %855 = vmatprep.mubr.f32.mxu0 0.0
      %856 = vmatmul.mubr.f32.gmra.mrb[0].mxu0 %v720
      %v857 = vpop.f32.mrb[0].mxu0
      %v858 = vadd.f32 %v678, %v857
      %v859 = vpop.f32.mrb[0].mxu0
      %860 = vmatprep.mubr.f32.mxu0 0.0
      %861 = vmatmul.mubr.f32.gmra.mrb[0].mxu0 %v722
      %v862 = vpop.f32.mrb[0].mxu0
      %v863 = vadd.f32 %v683, %v862
      %v864 = vpop.f32.mrb[0].mxu0
      %865 = vmatprep.mubr.f32.mxu0 0.0
      %866 = vmatmul.mubr.f32.gmra.mrb[0].mxu0 %v724
      %v867 = vpop.f32.mrb[0].mxu0
      %v868 = vadd.f32 %v688, %v867
      %v869 = vpop.f32.mrb[0].mxu0
      %870 = vmatprep.mubr.f32.mxu0 0.0
      %871 = vmatmul.mubr.f32.gmra.mrb[0].mxu0 %v726
      %v872 = vpop.f32.mrb[0].mxu0
      %v873 = vadd.f32 %v693, %v872
      %v874 = vpop.f32.mrb[0].mxu0
      %875 = vdwg.mxu0
      %v876 = vld [vmem:[%s1 + $0x8] sm:$0xf]
      %v877 = vsel %vm225, %v475, 0
      %v879 = vsel %vm225, %v477, 0
      %v881 = vsel %vm225, %v480, 0
      %v883 = vsel %vm225, %v482, 0
      %v885 = vsel %vm225, %v485, 0
      %v887 = vsel %vm225, %v487, 0
      %v889 = vsel %vm225, %v490, 0
      %v891 = vsel %vm225, %v492, 0
      %v893 = vsel %vm225, %v495, 0
      %v895 = vsel %vm225, %v497, 0
      %v897 = vsel %vm225, %v500, 0
      %v899 = vsel %vm225, %v502, 0
      %v901 = vsel %vm225, %v505, 0
      %v903 = vsel %vm225, %v507, 0
      %v905 = vsel %vm225, %v510, 0
      %v907 = vsel %vm225, %v512, 0
      %v910 = vsel %vm547, %v876, 0
      %912 = vmatprep.subr.mxu0 0.0
      %913 = vmatpush1.msra.mxu0 %v910
      %914 = vmatprep.subr.mxu0 0.0
      %915 = vmatpush1.msra.mxu0 0.0
      %916 = vmatprep.subr.mxu0 0.0
      %917 = vmatpush1.msra.mxu0 0.0
      %918 = vmatprep.subr.mxu0 0.0
      %919 = vmatpush1.msra.mxu0 0.0
      %920 = vmatprep.subr.mxu0 0.0
      %921 = vmatpush1.msra.mxu0 0.0
      %922 = vmatprep.subr.mxu0 0.0
      %923 = vmatpush1.msra.mxu0 0.0
      %924 = vmatprep.subr.mxu0 0.0
      %925 = vmatpush1.msra.mxu0 0.0
      %926 = vmatprep.subr.mxu0 0.0
      %927 = vmatpush1.msra.mxu0 0.0
      %928 = vmatprep.subr.mxu0 0.0
      %929 = vmatpush1.msra.mxu0 0.0
      %930 = vmatprep.subr.mxu0 0.0
      %931 = vmatpush1.msra.mxu0 0.0
      %932 = vmatprep.subr.mxu0 0.0
      %933 = vmatpush1.msra.mxu0 0.0
      %934 = vmatprep.subr.mxu0 0.0
      %935 = vmatpush1.msra.mxu0 0.0
      %936 = vmatprep.subr.mxu0 0.0
      %937 = vmatpush1.msra.mxu0 0.0
      %938 = vmatprep.subr.mxu0 0.0
      %939 = vmatpush1.msra.mxu0 0.0
      %940 = vmatprep.subr.mxu0 0.0
      %941 = vmatpush1.msra.mxu0 0.0
      %942 = vmatprep.subr.mxu0 0.0
      %943 = vmatpush1.msra.mxu0 0.0
      %944 = vmatprep.subr.mxu0 0.0
      %945 = vmatpush1.msra.mxu0 0.0
      %946 = vmatprep.subr.mxu0 0.0
      %947 = vmatpush1.msra.mxu0 0.0
      %948 = vmatprep.subr.mxu0 0.0
      %949 = vmatpush1.msra.mxu0 0.0
      %950 = vmatprep.subr.mxu0 0.0
      %951 = vmatpush1.msra.mxu0 0.0
      %952 = vmatprep.subr.mxu0 0.0
      %953 = vmatpush1.msra.mxu0 0.0
      %954 = vmatprep.subr.mxu0 0.0
      %955 = vmatpush1.msra.mxu0 0.0
      %956 = vmatprep.subr.mxu0 0.0
      %957 = vmatpush1.msra.mxu0 0.0
      %958 = vmatprep.subr.mxu0 0.0
      %959 = vmatpush1.msra.mxu0 0.0
      %960 = vmatprep.subr.mxu0 0.0
      %961 = vmatpush1.msra.mxu0 0.0
      %962 = vmatprep.subr.mxu0 0.0
      %963 = vmatpush1.msra.mxu0 0.0
      %964 = vmatprep.subr.mxu0 0.0
      %965 = vmatpush1.msra.mxu0 0.0
      %966 = vmatprep.subr.mxu0 0.0
      %967 = vmatpush1.msra.mxu0 0.0
      %968 = vmatprep.subr.mxu0 0.0
      %969 = vmatpush1.msra.mxu0 0.0
      %970 = vmatprep.subr.mxu0 0.0
      %971 = vmatpush1.msra.mxu0 0.0
      %972 = vmatprep.subr.mxu0 0.0
      %973 = vmatpush1.msra.mxu0 0.0
      %974 = vmatprep.subr.mxu0 0.0
      %975 = vmatpush1.msra.mxu0 0.0
      %976 = vmatprep.mubr.f32.mxu0 0.0
      %977 = vmatmul.mubr.f32.gmra.mrb[0].mxu0 %v877
      %v978 = vpop.f32.mrb[0].mxu0
      %v979 = vadd.f32 0.0, %v978
      %v980 = vpop.f32.mrb[0].mxu0
      %981 = vmatprep.mubr.f32.mxu0 0.0
      %982 = vmatmul.mubr.f32.gmra.mrb[0].mxu0 %v879
      %v983 = vpop.f32.mrb[0].mxu0
      %v984 = vadd.f32 0.0, %v983
      %v985 = vpop.f32.mrb[0].mxu0
      %986 = vmatprep.mubr.f32.mxu0 0.0
      %987 = vmatmul.mubr.f32.gmra.mrb[0].mxu0 %v881
      %v988 = vpop.f32.mrb[0].mxu0
      %v989 = vadd.f32 0.0, %v988
      %v990 = vpop.f32.mrb[0].mxu0
      %991 = vmatprep.mubr.f32.mxu0 0.0
      %992 = vmatmul.mubr.f32.gmra.mrb[0].mxu0 %v883
      %v993 = vpop.f32.mrb[0].mxu0
      %v994 = vadd.f32 0.0, %v993
      %v995 = vpop.f32.mrb[0].mxu0
      %996 = vmatprep.mubr.f32.mxu0 0.0
      %997 = vmatmul.mubr.f32.gmra.mrb[0].mxu0 %v885
      %v998 = vpop.f32.mrb[0].mxu0
      %v999 = vadd.f32 0.0, %v998
      %v1000 = vpop.f32.mrb[0].mxu0
      %1001 = vmatprep.mubr.f32.mxu0 0.0
      %1002 = vmatmul.mubr.f32.gmra.mrb[0].mxu0 %v887
      %v1003 = vpop.f32.mrb[0].mxu0
      %v1004 = vadd.f32 0.0, %v1003
      %v1005 = vpop.f32.mrb[0].mxu0
      %1006 = vmatprep.mubr.f32.mxu0 0.0
      %1007 = vmatmul.mubr.f32.gmra.mrb[0].mxu0 %v889
      %v1008 = vpop.f32.mrb[0].mxu0
      %v1009 = vadd.f32 0.0, %v1008
      %v1010 = vpop.f32.mrb[0].mxu0
      %1011 = vmatprep.mubr.f32.mxu0 0.0
      %1012 = vmatmul.mubr.f32.gmra.mrb[0].mxu0 %v891
      %v1013 = vpop.f32.mrb[0].mxu0
      %v1014 = vadd.f32 0.0, %v1013
      %v1015 = vpop.f32.mrb[0].mxu0
      %1016 = vmatprep.mubr.f32.mxu0 0.0
      %1017 = vmatmul.mubr.f32.gmra.mrb[0].mxu0 %v893
      %v1018 = vpop.f32.mrb[0].mxu0
      %v1019 = vadd.f32 0.0, %v1018
      %v1020 = vpop.f32.mrb[0].mxu0
      %1021 = vmatprep.mubr.f32.mxu0 0.0
      %1022 = vmatmul.mubr.f32.gmra.mrb[0].mxu0 %v895
      %v1023 = vpop.f32.mrb[0].mxu0
      %v1024 = vadd.f32 0.0, %v1023
      %v1025 = vpop.f32.mrb[0].mxu0
      %1026 = vmatprep.mubr.f32.mxu0 0.0
      %1027 = vmatmul.mubr.f32.gmra.mrb[0].mxu0 %v897
      %v1028 = vpop.f32.mrb[0].mxu0
      %v1029 = vadd.f32 0.0, %v1028
      %v1030 = vpop.f32.mrb[0].mxu0
      %1031 = vmatprep.mubr.f32.mxu0 0.0
      %1032 = vmatmul.mubr.f32.gmra.mrb[0].mxu0 %v899
      %v1033 = vpop.f32.mrb[0].mxu0
      %v1034 = vadd.f32 0.0, %v1033
      %v1035 = vpop.f32.mrb[0].mxu0
      %1036 = vmatprep.mubr.f32.mxu0 0.0
      %1037 = vmatmul.mubr.f32.gmra.mrb[0].mxu0 %v901
      %v1038 = vpop.f32.mrb[0].mxu0
      %v1039 = vadd.f32 0.0, %v1038
      %v1040 = vpop.f32.mrb[0].mxu0
      %1041 = vmatprep.mubr.f32.mxu0 0.0
      %1042 = vmatmul.mubr.f32.gmra.mrb[0].mxu0 %v903
      %v1043 = vpop.f32.mrb[0].mxu0
      %v1044 = vadd.f32 0.0, %v1043
      %v1045 = vpop.f32.mrb[0].mxu0
      %1046 = vmatprep.mubr.f32.mxu0 0.0
      %1047 = vmatmul.mubr.f32.gmra.mrb[0].mxu0 %v905
      %v1048 = vpop.f32.mrb[0].mxu0
      %v1049 = vadd.f32 0.0, %v1048
      %v1050 = vpop.f32.mrb[0].mxu0
      %1051 = vmatprep.mubr.f32.mxu0 0.0
      %1052 = vmatmul.mubr.f32.gmra.mrb[0].mxu0 %v907
      %v1053 = vpop.f32.mrb[0].mxu0
      %v1054 = vadd.f32 0.0, %v1053
      %v1055 = vpop.f32.mrb[0].mxu0
      %1056 = vdwg.mxu0
      %v1057 = vadd.f32 %v798, %v979
      %v1058 = vadd.f32 %v803, %v984
      %v1059 = vadd.f32 %v808, %v989
      %v1060 = vadd.f32 %v813, %v994
      %v1061 = vadd.f32 %v818, %v999
      %v1062 = vadd.f32 %v823, %v1004
      %v1063 = vadd.f32 %v828, %v1009
      %v1064 = vadd.f32 %v833, %v1014
      %v1065 = vadd.f32 %v838, %v1019
      %v1066 = vadd.f32 %v843, %v1024
      %v1067 = vadd.f32 %v848, %v1029
      %v1068 = vadd.f32 %v853, %v1034
      %v1069 = vadd.f32 %v858, %v1039
      %v1070 = vadd.f32 %v863, %v1044
      %v1071 = vadd.f32 %v868, %v1049
      %v1072 = vadd.f32 %v873, %v1054
      %s1073 = sadd.s32 0, 1
      %s1074 = smul.u32 %s1073, 24
      %s1075 = scalar_lea.vmem [#allocation2], %s1074
      %v1076 = vld [vmem:[%s1075] sm:$0xff]
      %v1077 = vld [vmem:[%s1075 + $0x8] sm:$0xff]
      %v1078 = vld [vmem:[%s1075 + $0x10] sm:$0x3]
      %v1079 = vld [vmem:[%s1075 + $0x18] sm:$0xff]
      %v1080 = vld [vmem:[%s1075 + $0x20] sm:$0xff]
      %v1081 = vld [vmem:[%s1075 + $0x28] sm:$0x3]
      %v1082 = vld [vmem:[%s1075 + $0x30] sm:$0xff]
      %v1083 = vld [vmem:[%s1075 + $0x38] sm:$0xff]
      %v1084 = vld [vmem:[%s1075 + $0x40] sm:$0x3]
      %v1085 = vld [vmem:[%s1075 + $0x48] sm:$0xff]
      %v1086 = vld [vmem:[%s1075 + $0x50] sm:$0xff]
      %v1087 = vld [vmem:[%s1075 + $0x58] sm:$0x3]
      %v1088 = vld [vmem:[%s1075 + $0x60] sm:$0xff]
      %v1089 = vld [vmem:[%s1075 + $0x68] sm:$0xff]
      %v1090 = vld [vmem:[%s1075 + $0x70] sm:$0x3]
      %v1091 = vld [vmem:[%s1075 + $0x78] sm:$0xff]
      %v1092 = vld [vmem:[%s1075 + $0x80] sm:$0xff]
      %v1093 = vld [vmem:[%s1075 + $0x88] sm:$0x3]
      %v1094 = vld [vmem:[%s1075 + $0x90] sm:$0xff]
      %v1095 = vld [vmem:[%s1075 + $0x98] sm:$0xff]
      %v1096 = vld [vmem:[%s1075 + $0xa0] sm:$0x3]
      %v1097 = vld [vmem:[%s1075 + $0xa8] sm:$0xff]
      %v1098 = vld [vmem:[%s1075 + $0xb0] sm:$0xff]
      %v1099 = vld [vmem:[%s1075 + $0xb8] sm:$0x3]
      %v1124 = vrot.slane %v1076, 1
      %v1125 = vrot.slane %v1077, 1
      %v1126 = vsel %vm431, %v1124, %v1125
      %v1127 = vrot.slane %v1078, 1
      %v1128 = vsel %vm431, %v1125, %v1127
      %v1129 = vrot.slane %v1079, 1
      %v1130 = vrot.slane %v1080, 1
      %v1131 = vsel %vm431, %v1129, %v1130
      %v1132 = vrot.slane %v1081, 1
      %v1133 = vsel %vm431, %v1130, %v1132
      %v1134 = vrot.slane %v1082, 1
      %v1135 = vrot.slane %v1083, 1
      %v1136 = vsel %vm431, %v1134, %v1135
      %v1137 = vrot.slane %v1084, 1
      %v1138 = vsel %vm431, %v1135, %v1137
      %v1139 = vrot.slane %v1085, 1
      %v1140 = vrot.slane %v1086, 1
      %v1141 = vsel %vm431, %v1139, %v1140
      %v1142 = vrot.slane %v1087, 1
      %v1143 = vsel %vm431, %v1140, %v1142
      %v1144 = vrot.slane %v1088, 1
      %v1145 = vrot.slane %v1089, 1
      %v1146 = vsel %vm431, %v1144, %v1145
      %v1147 = vrot.slane %v1090, 1
      %v1148 = vsel %vm431, %v1145, %v1147
      %v1149 = vrot.slane %v1091, 1
      %v1150 = vrot.slane %v1092, 1
      %v1151 = vsel %vm431, %v1149, %v1150
      %v1152 = vrot.slane %v1093, 1
      %v1153 = vsel %vm431, %v1150, %v1152
      %v1154 = vrot.slane %v1094, 1
      %v1155 = vrot.slane %v1095, 1
      %v1156 = vsel %vm431, %v1154, %v1155
      %v1157 = vrot.slane %v1096, 1
      %v1158 = vsel %vm431, %v1155, %v1157
      %v1159 = vrot.slane %v1097, 1
      %v1160 = vrot.slane %v1098, 1
      %v1161 = vsel %vm431, %v1159, %v1160
      %v1162 = vrot.slane %v1099, 1
      %v1163 = vsel %vm431, %v1160, %v1162
      %v1164 = vrot.slane %v1076, 2
      %v1165 = vrot.slane %v1077, 2
      %v1166 = vsel %vm472, %v1164, %v1165
      %v1167 = vrot.slane %v1078, 2
      %v1168 = vsel %vm472, %v1165, %v1167
      %v1169 = vrot.slane %v1079, 2
      %v1170 = vrot.slane %v1080, 2
      %v1171 = vsel %vm472, %v1169, %v1170
      %v1172 = vrot.slane %v1081, 2
      %v1173 = vsel %vm472, %v1170, %v1172
      %v1174 = vrot.slane %v1082, 2
      %v1175 = vrot.slane %v1083, 2
      %v1176 = vsel %vm472, %v1174, %v1175
      %v1177 = vrot.slane %v1084, 2
      %v1178 = vsel %vm472, %v1175, %v1177
      %v1179 = vrot.slane %v1085, 2
      %v1180 = vrot.slane %v1086, 2
      %v1181 = vsel %vm472, %v1179, %v1180
      %v1182 = vrot.slane %v1087, 2
      %v1183 = vsel %vm472, %v1180, %v1182
      %v1184 = vrot.slane %v1088, 2
      %v1185 = vrot.slane %v1089, 2
      %v1186 = vsel %vm472, %v1184, %v1185
      %v1187 = vrot.slane %v1090, 2
      %v1188 = vsel %vm472, %v1185, %v1187
      %v1189 = vrot.slane %v1091, 2
      %v1190 = vrot.slane %v1092, 2
      %v1191 = vsel %vm472, %v1189, %v1190
      %v1192 = vrot.slane %v1093, 2
      %v1193 = vsel %vm472, %v1190, %v1192
      %v1194 = vrot.slane %v1094, 2
      %v1195 = vrot.slane %v1095, 2
      %v1196 = vsel %vm472, %v1194, %v1195
      %v1197 = vrot.slane %v1096, 2
      %v1198 = vsel %vm472, %v1195, %v1197
      %v1199 = vrot.slane %v1097, 2
      %v1200 = vrot.slane %v1098, 2
      %v1201 = vsel %vm472, %v1199, %v1200
      %v1202 = vrot.slane %v1099, 2
      %v1203 = vsel %vm472, %v1200, %v1202
      %v1204 = vld [vmem:[%s1 + $0xc] sm:$0xf]
      %v1205 = vsel %vm225, %v1076, 0
      %v1207 = vsel %vm225, %v1077, 0
      %v1209 = vsel %vm225, %v1079, 0
      %v1211 = vsel %vm225, %v1080, 0
      %v1213 = vsel %vm225, %v1082, 0
      %v1215 = vsel %vm225, %v1083, 0
      %v1217 = vsel %vm225, %v1085, 0
      %v1219 = vsel %vm225, %v1086, 0
      %v1221 = vsel %vm225, %v1088, 0
      %v1223 = vsel %vm225, %v1089, 0
      %v1225 = vsel %vm225, %v1091, 0
      %v1227 = vsel %vm225, %v1092, 0
      %v1229 = vsel %vm225, %v1094, 0
      %v1231 = vsel %vm225, %v1095, 0
      %v1233 = vsel %vm225, %v1097, 0
      %v1235 = vsel %vm225, %v1098, 0
      %v1238 = vsel %vm547, %v1204, 0
      %1240 = vmatprep.subr.mxu0 0.0
      %1241 = vmatpush1.msra.mxu0 %v1238
      %1242 = vmatprep.subr.mxu0 0.0
      %1243 = vmatpush1.msra.mxu0 0.0
      %1244 = vmatprep.subr.mxu0 0.0
      %1245 = vmatpush1.msra.mxu0 0.0
      %1246 = vmatprep.subr.mxu0 0.0
      %1247 = vmatpush1.msra.mxu0 0.0
      %1248 = vmatprep.subr.mxu0 0.0
      %1249 = vmatpush1.msra.mxu0 0.0
      %1250 = vmatprep.subr.mxu0 0.0
      %1251 = vmatpush1.msra.mxu0 0.0
      %1252 = vmatprep.subr.mxu0 0.0
      %1253 = vmatpush1.msra.mxu0 0.0
      %1254 = vmatprep.subr.mxu0 0.0
      %1255 = vmatpush1.msra.mxu0 0.0
      %1256 = vmatprep.subr.mxu0 0.0
      %1257 = vmatpush1.msra.mxu0 0.0
      %1258 = vmatprep.subr.mxu0 0.0
      %1259 = vmatpush1.msra.mxu0 0.0
      %1260 = vmatprep.subr.mxu0 0.0
      %1261 = vmatpush1.msra.mxu0 0.0
      %1262 = vmatprep.subr.mxu0 0.0
      %1263 = vmatpush1.msra.mxu0 0.0
      %1264 = vmatprep.subr.mxu0 0.0
      %1265 = vmatpush1.msra.mxu0 0.0
      %1266 = vmatprep.subr.mxu0 0.0
      %1267 = vmatpush1.msra.mxu0 0.0
      %1268 = vmatprep.subr.mxu0 0.0
      %1269 = vmatpush1.msra.mxu0 0.0
      %1270 = vmatprep.subr.mxu0 0.0
      %1271 = vmatpush1.msra.mxu0 0.0
      %1272 = vmatprep.subr.mxu0 0.0
      %1273 = vmatpush1.msra.mxu0 0.0
      %1274 = vmatprep.subr.mxu0 0.0
      %1275 = vmatpush1.msra.mxu0 0.0
      %1276 = vmatprep.subr.mxu0 0.0
      %1277 = vmatpush1.msra.mxu0 0.0
      %1278 = vmatprep.subr.mxu0 0.0
      %1279 = vmatpush1.msra.mxu0 0.0
      %1280 = vmatprep.subr.mxu0 0.0
      %1281 = vmatpush1.msra.mxu0 0.0
      %1282 = vmatprep.subr.mxu0 0.0
      %1283 = vmatpush1.msra.mxu0 0.0
      %1284 = vmatprep.subr.mxu0 0.0
      %1285 = vmatpush1.msra.mxu0 0.0
      %1286 = vmatprep.subr.mxu0 0.0
      %1287 = vmatpush1.msra.mxu0 0.0
      %1288 = vmatprep.subr.mxu0 0.0
      %1289 = vmatpush1.msra.mxu0 0.0
      %1290 = vmatprep.subr.mxu0 0.0
      %1291 = vmatpush1.msra.mxu0 0.0
      %1292 = vmatprep.subr.mxu0 0.0
      %1293 = vmatpush1.msra.mxu0 0.0
      %1294 = vmatprep.subr.mxu0 0.0
      %1295 = vmatpush1.msra.mxu0 0.0
      %1296 = vmatprep.subr.mxu0 0.0
      %1297 = vmatpush1.msra.mxu0 0.0
      %1298 = vmatprep.subr.mxu0 0.0
      %1299 = vmatpush1.msra.mxu0 0.0
      %1300 = vmatprep.subr.mxu0 0.0
      %1301 = vmatpush1.msra.mxu0 0.0
      %1302 = vmatprep.subr.mxu0 0.0
      %1303 = vmatpush1.msra.mxu0 0.0
      %1304 = vmatprep.mubr.f32.mxu0 0.0
      %1305 = vmatmul.mubr.f32.gmra.mrb[0].mxu0 %v1205
      %v1306 = vpop.f32.mrb[0].mxu0
      %v1307 = vadd.f32 0.0, %v1306
      %v1308 = vpop.f32.mrb[0].mxu0
      %1309 = vmatprep.mubr.f32.mxu0 0.0
      %1310 = vmatmul.mubr.f32.gmra.mrb[0].mxu0 %v1207
      %v1311 = vpop.f32.mrb[0].mxu0
      %v1312 = vadd.f32 0.0, %v1311
      %v1313 = vpop.f32.mrb[0].mxu0
      %1314 = vmatprep.mubr.f32.mxu0 0.0
      %1315 = vmatmul.mubr.f32.gmra.mrb[0].mxu0 %v1209
      %v1316 = vpop.f32.mrb[0].mxu0
      %v1317 = vadd.f32 0.0, %v1316
      %v1318 = vpop.f32.mrb[0].mxu0
      %1319 = vmatprep.mubr.f32.mxu0 0.0
      %1320 = vmatmul.mubr.f32.gmra.mrb[0].mxu0 %v1211
      %v1321 = vpop.f32.mrb[0].mxu0
      %v1322 = vadd.f32 0.0, %v1321
      %v1323 = vpop.f32.mrb[0].mxu0
      %1324 = vmatprep.mubr.f32.mxu0 0.0
      %1325 = vmatmul.mubr.f32.gmra.mrb[0].mxu0 %v1213
      %v1326 = vpop.f32.mrb[0].mxu0
      %v1327 = vadd.f32 0.0, %v1326
      %v1328 = vpop.f32.mrb[0].mxu0
      %1329 = vmatprep.mubr.f32.mxu0 0.0
      %1330 = vmatmul.mubr.f32.gmra.mrb[0].mxu0 %v1215
      %v1331 = vpop.f32.mrb[0].mxu0
      %v1332 = vadd.f32 0.0, %v1331
      %v1333 = vpop.f32.mrb[0].mxu0
      %1334 = vmatprep.mubr.f32.mxu0 0.0
      %1335 = vmatmul.mubr.f32.gmra.mrb[0].mxu0 %v1217
      %v1336 = vpop.f32.mrb[0].mxu0
      %v1337 = vadd.f32 0.0, %v1336
      %v1338 = vpop.f32.mrb[0].mxu0
      %1339 = vmatprep.mubr.f32.mxu0 0.0
      %1340 = vmatmul.mubr.f32.gmra.mrb[0].mxu0 %v1219
      %v1341 = vpop.f32.mrb[0].mxu0
      %v1342 = vadd.f32 0.0, %v1341
      %v1343 = vpop.f32.mrb[0].mxu0
      %1344 = vmatprep.mubr.f32.mxu0 0.0
      %1345 = vmatmul.mubr.f32.gmra.mrb[0].mxu0 %v1221
      %v1346 = vpop.f32.mrb[0].mxu0
      %v1347 = vadd.f32 0.0, %v1346
      %v1348 = vpop.f32.mrb[0].mxu0
      %1349 = vmatprep.mubr.f32.mxu0 0.0
      %1350 = vmatmul.mubr.f32.gmra.mrb[0].mxu0 %v1223
      %v1351 = vpop.f32.mrb[0].mxu0
      %v1352 = vadd.f32 0.0, %v1351
      %v1353 = vpop.f32.mrb[0].mxu0
      %1354 = vmatprep.mubr.f32.mxu0 0.0
      %1355 = vmatmul.mubr.f32.gmra.mrb[0].mxu0 %v1225
      %v1356 = vpop.f32.mrb[0].mxu0
      %v1357 = vadd.f32 0.0, %v1356
      %v1358 = vpop.f32.mrb[0].mxu0
      %1359 = vmatprep.mubr.f32.mxu0 0.0
      %1360 = vmatmul.mubr.f32.gmra.mrb[0].mxu0 %v1227
      %v1361 = vpop.f32.mrb[0].mxu0
      %v1362 = vadd.f32 0.0, %v1361
      %v1363 = vpop.f32.mrb[0].mxu0
      %1364 = vmatprep.mubr.f32.mxu0 0.0
      %1365 = vmatmul.mubr.f32.gmra.mrb[0].mxu0 %v1229
      %v1366 = vpop.f32.mrb[0].mxu0
      %v1367 = vadd.f32 0.0, %v1366
      %v1368 = vpop.f32.mrb[0].mxu0
      %1369 = vmatprep.mubr.f32.mxu0 0.0
      %1370 = vmatmul.mubr.f32.gmra.mrb[0].mxu0 %v1231
      %v1371 = vpop.f32.mrb[0].mxu0
      %v1372 = vadd.f32 0.0, %v1371
      %v1373 = vpop.f32.mrb[0].mxu0
      %1374 = vmatprep.mubr.f32.mxu0 0.0
      %1375 = vmatmul.mubr.f32.gmra.mrb[0].mxu0 %v1233
      %v1376 = vpop.f32.mrb[0].mxu0
      %v1377 = vadd.f32 0.0, %v1376
      %v1378 = vpop.f32.mrb[0].mxu0
      %1379 = vmatprep.mubr.f32.mxu0 0.0
      %1380 = vmatmul.mubr.f32.gmra.mrb[0].mxu0 %v1235
      %v1381 = vpop.f32.mrb[0].mxu0
      %v1382 = vadd.f32 0.0, %v1381
      %v1383 = vpop.f32.mrb[0].mxu0
      %1384 = vdwg.mxu0
      %v1385 = vadd.f32 %v1057, %v1307
      %v1386 = vadd.f32 %v1058, %v1312
      %v1387 = vadd.f32 %v1059, %v1317
      %v1388 = vadd.f32 %v1060, %v1322
      %v1389 = vadd.f32 %v1061, %v1327
      %v1390 = vadd.f32 %v1062, %v1332
      %v1391 = vadd.f32 %v1063, %v1337
      %v1392 = vadd.f32 %v1064, %v1342
      %v1393 = vadd.f32 %v1065, %v1347
      %v1394 = vadd.f32 %v1066, %v1352
      %v1395 = vadd.f32 %v1067, %v1357
      %v1396 = vadd.f32 %v1068, %v1362
      %v1397 = vadd.f32 %v1069, %v1367
      %v1398 = vadd.f32 %v1070, %v1372
      %v1399 = vadd.f32 %v1071, %v1377
      %v1400 = vadd.f32 %v1072, %v1382
      %v1401 = vld [vmem:[%s1 + $0x10] sm:$0xf]
      %v1402 = vsel %vm225, %v1126, 0
      %v1404 = vsel %vm225, %v1128, 0
      %v1406 = vsel %vm225, %v1131, 0
      %v1408 = vsel %vm225, %v1133, 0
      %v1410 = vsel %vm225, %v1136, 0
      %v1412 = vsel %vm225, %v1138, 0
      %v1414 = vsel %vm225, %v1141, 0
      %v1416 = vsel %vm225, %v1143, 0
      %v1418 = vsel %vm225, %v1146, 0
      %v1420 = vsel %vm225, %v1148, 0
      %v1422 = vsel %vm225, %v1151, 0
      %v1424 = vsel %vm225, %v1153, 0
      %v1426 = vsel %vm225, %v1156, 0
      %v1428 = vsel %vm225, %v1158, 0
      %v1430 = vsel %vm225, %v1161, 0
      %v1432 = vsel %vm225, %v1163, 0
      %v1435 = vsel %vm547, %v1401, 0
      %1437 = vmatprep.subr.mxu0 0.0
      %1438 = vmatpush1.msra.mxu0 %v1435
      %1439 = vmatprep.subr.mxu0 0.0
      %1440 = vmatpush1.msra.mxu0 0.0
      %1441 = vmatprep.subr.mxu0 0.0
      %1442 = vmatpush1.msra.mxu0 0.0
      %1443 = vmatprep.subr.mxu0 0.0
      %1444 = vmatpush1.msra.mxu0 0.0
      %1445 = vmatprep.subr.mxu0 0.0
      %1446 = vmatpush1.msra.mxu0 0.0
      %1447 = vmatprep.subr.mxu0 0.0
      %1448 = vmatpush1.msra.mxu0 0.0
      %1449 = vmatprep.subr.mxu0 0.0
      %1450 = vmatpush1.msra.mxu0 0.0
      %1451 = vmatprep.subr.mxu0 0.0
      %1452 = vmatpush1.msra.mxu0 0.0
      %1453 = vmatprep.subr.mxu0 0.0
      %1454 = vmatpush1.msra.mxu0 0.0
      %1455 = vmatprep.subr.mxu0 0.0
      %1456 = vmatpush1.msra.mxu0 0.0
      %1457 = vmatprep.subr.mxu0 0.0
      %1458 = vmatpush1.msra.mxu0 0.0
      %1459 = vmatprep.subr.mxu0 0.0
      %1460 = vmatpush1.msra.mxu0 0.0
      %1461 = vmatprep.subr.mxu0 0.0
      %1462 = vmatpush1.msra.mxu0 0.0
      %1463 = vmatprep.subr.mxu0 0.0
      %1464 = vmatpush1.msra.mxu0 0.0
      %1465 = vmatprep.subr.mxu0 0.0
      %1466 = vmatpush1.msra.mxu0 0.0
      %1467 = vmatprep.subr.mxu0 0.0
      %1468 = vmatpush1.msra.mxu0 0.0
      %1469 = vmatprep.subr.mxu0 0.0
      %1470 = vmatpush1.msra.mxu0 0.0
      %1471 = vmatprep.subr.mxu0 0.0
      %1472 = vmatpush1.msra.mxu0 0.0
      %1473 = vmatprep.subr.mxu0 0.0
      %1474 = vmatpush1.msra.mxu0 0.0
      %1475 = vmatprep.subr.mxu0 0.0
      %1476 = vmatpush1.msra.mxu0 0.0
      %1477 = vmatprep.subr.mxu0 0.0
      %1478 = vmatpush1.msra.mxu0 0.0
      %1479 = vmatprep.subr.mxu0 0.0
      %1480 = vmatpush1.msra.mxu0 0.0
      %1481 = vmatprep.subr.mxu0 0.0
      %1482 = vmatpush1.msra.mxu0 0.0
      %1483 = vmatprep.subr.mxu0 0.0
      %1484 = vmatpush1.msra.mxu0 0.0
      %1485 = vmatprep.subr.mxu0 0.0
      %1486 = vmatpush1.msra.mxu0 0.0
      %1487 = vmatprep.subr.mxu0 0.0
      %1488 = vmatpush1.msra.mxu0 0.0
      %1489 = vmatprep.subr.mxu0 0.0
      %1490 = vmatpush1.msra.mxu0 0.0
      %1491 = vmatprep.subr.mxu0 0.0
      %1492 = vmatpush1.msra.mxu0 0.0
      %1493 = vmatprep.subr.mxu0 0.0
      %1494 = vmatpush1.msra.mxu0 0.0
      %1495 = vmatprep.subr.mxu0 0.0
      %1496 = vmatpush1.msra.mxu0 0.0
      %1497 = vmatprep.subr.mxu0 0.0
      %1498 = vmatpush1.msra.mxu0 0.0
      %1499 = vmatprep.subr.mxu0 0.0
      %1500 = vmatpush1.msra.mxu0 0.0
      %1501 = vmatprep.mubr.f32.mxu0 0.0
      %1502 = vmatmul.mubr.f32.gmra.mrb[0].mxu0 %v1402
      %v1503 = vpop.f32.mrb[0].mxu0
      %v1504 = vadd.f32 0.0, %v1503
      %v1505 = vpop.f32.mrb[0].mxu0
      %1506 = vmatprep.mubr.f32.mxu0 0.0
      %1507 = vmatmul.mubr.f32.gmra.mrb[0].mxu0 %v1404
      %v1508 = vpop.f32.mrb[0].mxu0
      %v1509 = vadd.f32 0.0, %v1508
      %v1510 = vpop.f32.mrb[0].mxu0
      %1511 = vmatprep.mubr.f32.mxu0 0.0
      %1512 = vmatmul.mubr.f32.gmra.mrb[0].mxu0 %v1406
      %v1513 = vpop.f32.mrb[0].mxu0
      %v1514 = vadd.f32 0.0, %v1513
      %v1515 = vpop.f32.mrb[0].mxu0
      %1516 = vmatprep.mubr.f32.mxu0 0.0
      %1517 = vmatmul.mubr.f32.gmra.mrb[0].mxu0 %v1408
      %v1518 = vpop.f32.mrb[0].mxu0
      %v1519 = vadd.f32 0.0, %v1518
      %v1520 = vpop.f32.mrb[0].mxu0
      %1521 = vmatprep.mubr.f32.mxu0 0.0
      %1522 = vmatmul.mubr.f32.gmra.mrb[0].mxu0 %v1410
      %v1523 = vpop.f32.mrb[0].mxu0
      %v1524 = vadd.f32 0.0, %v1523
      %v1525 = vpop.f32.mrb[0].mxu0
      %1526 = vmatprep.mubr.f32.mxu0 0.0
      %1527 = vmatmul.mubr.f32.gmra.mrb[0].mxu0 %v1412
      %v1528 = vpop.f32.mrb[0].mxu0
      %v1529 = vadd.f32 0.0, %v1528
      %v1530 = vpop.f32.mrb[0].mxu0
      %1531 = vmatprep.mubr.f32.mxu0 0.0
      %1532 = vmatmul.mubr.f32.gmra.mrb[0].mxu0 %v1414
      %v1533 = vpop.f32.mrb[0].mxu0
      %v1534 = vadd.f32 0.0, %v1533
      %v1535 = vpop.f32.mrb[0].mxu0
      %1536 = vmatprep.mubr.f32.mxu0 0.0
      %1537 = vmatmul.mubr.f32.gmra.mrb[0].mxu0 %v1416
      %v1538 = vpop.f32.mrb[0].mxu0
      %v1539 = vadd.f32 0.0, %v1538
      %v1540 = vpop.f32.mrb[0].mxu0
      %1541 = vmatprep.mubr.f32.mxu0 0.0
      %1542 = vmatmul.mubr.f32.gmra.mrb[0].mxu0 %v1418
      %v1543 = vpop.f32.mrb[0].mxu0
      %v1544 = vadd.f32 0.0, %v1543
      %v1545 = vpop.f32.mrb[0].mxu0
      %1546 = vmatprep.mubr.f32.mxu0 0.0
      %1547 = vmatmul.mubr.f32.gmra.mrb[0].mxu0 %v1420
      %v1548 = vpop.f32.mrb[0].mxu0
      %v1549 = vadd.f32 0.0, %v1548
      %v1550 = vpop.f32.mrb[0].mxu0
      %1551 = vmatprep.mubr.f32.mxu0 0.0
      %1552 = vmatmul.mubr.f32.gmra.mrb[0].mxu0 %v1422
      %v1553 = vpop.f32.mrb[0].mxu0
      %v1554 = vadd.f32 0.0, %v1553
      %v1555 = vpop.f32.mrb[0].mxu0
      %1556 = vmatprep.mubr.f32.mxu0 0.0
      %1557 = vmatmul.mubr.f32.gmra.mrb[0].mxu0 %v1424
      %v1558 = vpop.f32.mrb[0].mxu0
      %v1559 = vadd.f32 0.0, %v1558
      %v1560 = vpop.f32.mrb[0].mxu0
      %1561 = vmatprep.mubr.f32.mxu0 0.0
      %1562 = vmatmul.mubr.f32.gmra.mrb[0].mxu0 %v1426
      %v1563 = vpop.f32.mrb[0].mxu0
      %v1564 = vadd.f32 0.0, %v1563
      %v1565 = vpop.f32.mrb[0].mxu0
      %1566 = vmatprep.mubr.f32.mxu0 0.0
      %1567 = vmatmul.mubr.f32.gmra.mrb[0].mxu0 %v1428
      %v1568 = vpop.f32.mrb[0].mxu0
      %v1569 = vadd.f32 0.0, %v1568
      %v1570 = vpop.f32.mrb[0].mxu0
      %1571 = vmatprep.mubr.f32.mxu0 0.0
      %1572 = vmatmul.mubr.f32.gmra.mrb[0].mxu0 %v1430
      %v1573 = vpop.f32.mrb[0].mxu0
      %v1574 = vadd.f32 0.0, %v1573
      %v1575 = vpop.f32.mrb[0].mxu0
      %1576 = vmatprep.mubr.f32.mxu0 0.0
      %1577 = vmatmul.mubr.f32.gmra.mrb[0].mxu0 %v1432
      %v1578 = vpop.f32.mrb[0].mxu0
      %v1579 = vadd.f32 0.0, %v1578
      %v1580 = vpop.f32.mrb[0].mxu0
      %1581 = vdwg.mxu0
      %v1582 = vadd.f32 %v1385, %v1504
      %v1583 = vadd.f32 %v1386, %v1509
      %v1584 = vadd.f32 %v1387, %v1514
      %v1585 = vadd.f32 %v1388, %v1519
      %v1586 = vadd.f32 %v1389, %v1524
      %v1587 = vadd.f32 %v1390, %v1529
      %v1588 = vadd.f32 %v1391, %v1534
      %v1589 = vadd.f32 %v1392, %v1539
      %v1590 = vadd.f32 %v1393, %v1544
      %v1591 = vadd.f32 %v1394, %v1549
      %v1592 = vadd.f32 %v1395, %v1554
      %v1593 = vadd.f32 %v1396, %v1559
      %v1594 = vadd.f32 %v1397, %v1564
      %v1595 = vadd.f32 %v1398, %v1569
      %v1596 = vadd.f32 %v1399, %v1574
      %v1597 = vadd.f32 %v1400, %v1579
      %v1598 = vld [vmem:[%s1 + $0x14] sm:$0xf]
      %v1599 = vsel %vm225, %v1166, 0
      %v1601 = vsel %vm225, %v1168, 0
      %v1603 = vsel %vm225, %v1171, 0
      %v1605 = vsel %vm225, %v1173, 0
      %v1607 = vsel %vm225, %v1176, 0
      %v1609 = vsel %vm225, %v1178, 0
      %v1611 = vsel %vm225, %v1181, 0
      %v1613 = vsel %vm225, %v1183, 0
      %v1615 = vsel %vm225, %v1186, 0
      %v1617 = vsel %vm225, %v1188, 0
      %v1619 = vsel %vm225, %v1191, 0
      %v1621 = vsel %vm225, %v1193, 0
      %v1623 = vsel %vm225, %v1196, 0
      %v1625 = vsel %vm225, %v1198, 0
      %v1627 = vsel %vm225, %v1201, 0
      %v1629 = vsel %vm225, %v1203, 0
      %v1632 = vsel %vm547, %v1598, 0
      %1634 = vmatprep.subr.mxu0 0.0
      %1635 = vmatpush1.msra.mxu0 %v1632
      %1636 = vmatprep.subr.mxu0 0.0
      %1637 = vmatpush1.msra.mxu0 0.0
      %1638 = vmatprep.subr.mxu0 0.0
      %1639 = vmatpush1.msra.mxu0 0.0
      %1640 = vmatprep.subr.mxu0 0.0
      %1641 = vmatpush1.msra.mxu0 0.0
      %1642 = vmatprep.subr.mxu0 0.0
      %1643 = vmatpush1.msra.mxu0 0.0
      %1644 = vmatprep.subr.mxu0 0.0
      %1645 = vmatpush1.msra.mxu0 0.0
      %1646 = vmatprep.subr.mxu0 0.0
      %1647 = vmatpush1.msra.mxu0 0.0
      %1648 = vmatprep.subr.mxu0 0.0
      %1649 = vmatpush1.msra.mxu0 0.0
      %1650 = vmatprep.subr.mxu0 0.0
      %1651 = vmatpush1.msra.mxu0 0.0
      %1652 = vmatprep.subr.mxu0 0.0
      %1653 = vmatpush1.msra.mxu0 0.0
      %1654 = vmatprep.subr.mxu0 0.0
      %1655 = vmatpush1.msra.mxu0 0.0
      %1656 = vmatprep.subr.mxu0 0.0
      %1657 = vmatpush1.msra.mxu0 0.0
      %1658 = vmatprep.subr.mxu0 0.0
      %1659 = vmatpush1.msra.mxu0 0.0
      %1660 = vmatprep.subr.mxu0 0.0
      %1661 = vmatpush1.msra.mxu0 0.0
      %1662 = vmatprep.subr.mxu0 0.0
      %1663 = vmatpush1.msra.mxu0 0.0
      %1664 = vmatprep.subr.mxu0 0.0
      %1665 = vmatpush1.msra.mxu0 0.0
      %1666 = vmatprep.subr.mxu0 0.0
      %1667 = vmatpush1.msra.mxu0 0.0
      %1668 = vmatprep.subr.mxu0 0.0
      %1669 = vmatpush1.msra.mxu0 0.0
      %1670 = vmatprep.subr.mxu0 0.0
      %1671 = vmatpush1.msra.mxu0 0.0
      %1672 = vmatprep.subr.mxu0 0.0
      %1673 = vmatpush1.msra.mxu0 0.0
      %1674 = vmatprep.subr.mxu0 0.0
      %1675 = vmatpush1.msra.mxu0 0.0
      %1676 = vmatprep.subr.mxu0 0.0
      %1677 = vmatpush1.msra.mxu0 0.0
      %1678 = vmatprep.subr.mxu0 0.0
      %1679 = vmatpush1.msra.mxu0 0.0
      %1680 = vmatprep.subr.mxu0 0.0
      %1681 = vmatpush1.msra.mxu0 0.0
      %1682 = vmatprep.subr.mxu0 0.0
      %1683 = vmatpush1.msra.mxu0 0.0
      %1684 = vmatprep.subr.mxu0 0.0
      %1685 = vmatpush1.msra.mxu0 0.0
      %1686 = vmatprep.subr.mxu0 0.0
      %1687 = vmatpush1.msra.mxu0 0.0
      %1688 = vmatprep.subr.mxu0 0.0
      %1689 = vmatpush1.msra.mxu0 0.0
      %1690 = vmatprep.subr.mxu0 0.0
      %1691 = vmatpush1.msra.mxu0 0.0
      %1692 = vmatprep.subr.mxu0 0.0
      %1693 = vmatpush1.msra.mxu0 0.0
      %1694 = vmatprep.subr.mxu0 0.0
      %1695 = vmatpush1.msra.mxu0 0.0
      %1696 = vmatprep.subr.mxu0 0.0
      %1697 = vmatpush1.msra.mxu0 0.0
      %1698 = vmatprep.mubr.f32.mxu0 0.0
      %1699 = vmatmul.mubr.f32.gmra.mrb[0].mxu0 %v1599
      %v1700 = vpop.f32.mrb[0].mxu0
      %v1701 = vadd.f32 0.0, %v1700
      %v1702 = vpop.f32.mrb[0].mxu0
      %1703 = vmatprep.mubr.f32.mxu0 0.0
      %1704 = vmatmul.mubr.f32.gmra.mrb[0].mxu0 %v1601
      %v1705 = vpop.f32.mrb[0].mxu0
      %v1706 = vadd.f32 0.0, %v1705
      %v1707 = vpop.f32.mrb[0].mxu0
      %1708 = vmatprep.mubr.f32.mxu0 0.0
      %1709 = vmatmul.mubr.f32.gmra.mrb[0].mxu0 %v1603
      %v1710 = vpop.f32.mrb[0].mxu0
      %v1711 = vadd.f32 0.0, %v1710
      %v1712 = vpop.f32.mrb[0].mxu0
      %1713 = vmatprep.mubr.f32.mxu0 0.0
      %1714 = vmatmul.mubr.f32.gmra.mrb[0].mxu0 %v1605
      %v1715 = vpop.f32.mrb[0].mxu0
      %v1716 = vadd.f32 0.0, %v1715
      %v1717 = vpop.f32.mrb[0].mxu0
      %1718 = vmatprep.mubr.f32.mxu0 0.0
      %1719 = vmatmul.mubr.f32.gmra.mrb[0].mxu0 %v1607
      %v1720 = vpop.f32.mrb[0].mxu0
      %v1721 = vadd.f32 0.0, %v1720
      %v1722 = vpop.f32.mrb[0].mxu0
      %1723 = vmatprep.mubr.f32.mxu0 0.0
      %1724 = vmatmul.mubr.f32.gmra.mrb[0].mxu0 %v1609
      %v1725 = vpop.f32.mrb[0].mxu0
      %v1726 = vadd.f32 0.0, %v1725
      %v1727 = vpop.f32.mrb[0].mxu0
      %1728 = vmatprep.mubr.f32.mxu0 0.0
      %1729 = vmatmul.mubr.f32.gmra.mrb[0].mxu0 %v1611
      %v1730 = vpop.f32.mrb[0].mxu0
      %v1731 = vadd.f32 0.0, %v1730
      %v1732 = vpop.f32.mrb[0].mxu0
      %1733 = vmatprep.mubr.f32.mxu0 0.0
      %1734 = vmatmul.mubr.f32.gmra.mrb[0].mxu0 %v1613
      %v1735 = vpop.f32.mrb[0].mxu0
      %v1736 = vadd.f32 0.0, %v1735
      %v1737 = vpop.f32.mrb[0].mxu0
      %1738 = vmatprep.mubr.f32.mxu0 0.0
      %1739 = vmatmul.mubr.f32.gmra.mrb[0].mxu0 %v1615
      %v1740 = vpop.f32.mrb[0].mxu0
      %v1741 = vadd.f32 0.0, %v1740
      %v1742 = vpop.f32.mrb[0].mxu0
      %1743 = vmatprep.mubr.f32.mxu0 0.0
      %1744 = vmatmul.mubr.f32.gmra.mrb[0].mxu0 %v1617
      %v1745 = vpop.f32.mrb[0].mxu0
      %v1746 = vadd.f32 0.0, %v1745
      %v1747 = vpop.f32.mrb[0].mxu0
      %1748 = vmatprep.mubr.f32.mxu0 0.0
      %1749 = vmatmul.mubr.f32.gmra.mrb[0].mxu0 %v1619
      %v1750 = vpop.f32.mrb[0].mxu0
      %v1751 = vadd.f32 0.0, %v1750
      %v1752 = vpop.f32.mrb[0].mxu0
      %1753 = vmatprep.mubr.f32.mxu0 0.0
      %1754 = vmatmul.mubr.f32.gmra.mrb[0].mxu0 %v1621
      %v1755 = vpop.f32.mrb[0].mxu0
      %v1756 = vadd.f32 0.0, %v1755
      %v1757 = vpop.f32.mrb[0].mxu0
      %1758 = vmatprep.mubr.f32.mxu0 0.0
      %1759 = vmatmul.mubr.f32.gmra.mrb[0].mxu0 %v1623
      %v1760 = vpop.f32.mrb[0].mxu0
      %v1761 = vadd.f32 0.0, %v1760
      %v1762 = vpop.f32.mrb[0].mxu0
      %1763 = vmatprep.mubr.f32.mxu0 0.0
      %1764 = vmatmul.mubr.f32.gmra.mrb[0].mxu0 %v1625
      %v1765 = vpop.f32.mrb[0].mxu0
      %v1766 = vadd.f32 0.0, %v1765
      %v1767 = vpop.f32.mrb[0].mxu0
      %1768 = vmatprep.mubr.f32.mxu0 0.0
      %1769 = vmatmul.mubr.f32.gmra.mrb[0].mxu0 %v1627
      %v1770 = vpop.f32.mrb[0].mxu0
      %v1771 = vadd.f32 0.0, %v1770
      %v1772 = vpop.f32.mrb[0].mxu0
      %1773 = vmatprep.mubr.f32.mxu0 0.0
      %1774 = vmatmul.mubr.f32.gmra.mrb[0].mxu0 %v1629
      %v1775 = vpop.f32.mrb[0].mxu0
      %v1776 = vadd.f32 0.0, %v1775
      %v1777 = vpop.f32.mrb[0].mxu0
      %1778 = vdwg.mxu0
      %v1779 = vadd.f32 %v1582, %v1701
      %v1780 = vadd.f32 %v1583, %v1706
      %v1781 = vadd.f32 %v1584, %v1711
      %v1782 = vadd.f32 %v1585, %v1716
      %v1783 = vadd.f32 %v1586, %v1721
      %v1784 = vadd.f32 %v1587, %v1726
      %v1785 = vadd.f32 %v1588, %v1731
      %v1786 = vadd.f32 %v1589, %v1736
      %v1787 = vadd.f32 %v1590, %v1741
      %v1788 = vadd.f32 %v1591, %v1746
      %v1789 = vadd.f32 %v1592, %v1751
      %v1790 = vadd.f32 %v1593, %v1756
      %v1791 = vadd.f32 %v1594, %v1761
      %v1792 = vadd.f32 %v1595, %v1766
      %v1793 = vadd.f32 %v1596, %v1771
      %v1794 = vadd.f32 %v1597, %v1776
      %s1795 = sadd.s32 0, 2
      %s1796 = smul.u32 %s1795, 24
      %s1797 = scalar_lea.vmem [#allocation2], %s1796
      %v1798 = vld [vmem:[%s1797] sm:$0xff]
      %v1799 = vld [vmem:[%s1797 + $0x8] sm:$0xff]
      %v1800 = vld [vmem:[%s1797 + $0x10] sm:$0x3]
      %v1801 = vld [vmem:[%s1797 + $0x18] sm:$0xff]
      %v1802 = vld [vmem:[%s1797 + $0x20] sm:$0xff]
      %v1803 = vld [vmem:[%s1797 + $0x28] sm:$0x3]
      %v1804 = vld [vmem:[%s1797 + $0x30] sm:$0xff]
      %v1805 = vld [vmem:[%s1797 + $0x38] sm:$0xff]
      %v1806 = vld [vmem:[%s1797 + $0x40] sm:$0x3]
      %v1807 = vld [vmem:[%s1797 + $0x48] sm:$0xff]
      %v1808 = vld [vmem:[%s1797 + $0x50] sm:$0xff]
      %v1809 = vld [vmem:[%s1797 + $0x58] sm:$0x3]
      %v1810 = vld [vmem:[%s1797 + $0x60] sm:$0xff]
      %v1811 = vld [vmem:[%s1797 + $0x68] sm:$0xff]
      %v1812 = vld [vmem:[%s1797 + $0x70] sm:$0x3]
      %v1813 = vld [vmem:[%s1797 + $0x78] sm:$0xff]
      %v1814 = vld [vmem:[%s1797 + $0x80] sm:$0xff]
      %v1815 = vld [vmem:[%s1797 + $0x88] sm:$0x3]
      %v1816 = vld [vmem:[%s1797 + $0x90] sm:$0xff]
      %v1817 = vld [vmem:[%s1797 + $0x98] sm:$0xff]
      %v1818 = vld [vmem:[%s1797 + $0xa0] sm:$0x3]
      %v1819 = vld [vmem:[%s1797 + $0xa8] sm:$0xff]
      %v1820 = vld [vmem:[%s1797 + $0xb0] sm:$0xff]
      %v1821 = vld [vmem:[%s1797 + $0xb8] sm:$0x3]
      %v1846 = vrot.slane %v1798, 1
      %v1847 = vrot.slane %v1799, 1
      %v1848 = vsel %vm431, %v1846, %v1847
      %v1849 = vrot.slane %v1800, 1
      %v1850 = vsel %vm431, %v1847, %v1849
      %v1851 = vrot.slane %v1801, 1
      %v1852 = vrot.slane %v1802, 1
      %v1853 = vsel %vm431, %v1851, %v1852
      %v1854 = vrot.slane %v1803, 1
      %v1855 = vsel %vm431, %v1852, %v1854
      %v1856 = vrot.slane %v1804, 1
      %v1857 = vrot.slane %v1805, 1
      %v1858 = vsel %vm431, %v1856, %v1857
      %v1859 = vrot.slane %v1806, 1
      %v1860 = vsel %vm431, %v1857, %v1859
      %v1861 = vrot.slane %v1807, 1
      %v1862 = vrot.slane %v1808, 1
      %v1863 = vsel %vm431, %v1861, %v1862
      %v1864 = vrot.slane %v1809, 1
      %v1865 = vsel %vm431, %v1862, %v1864
      %v1866 = vrot.slane %v1810, 1
      %v1867 = vrot.slane %v1811, 1
      %v1868 = vsel %vm431, %v1866, %v1867
      %v1869 = vrot.slane %v1812, 1
      %v1870 = vsel %vm431, %v1867, %v1869
      %v1871 = vrot.slane %v1813, 1
      %v1872 = vrot.slane %v1814, 1
      %v1873 = vsel %vm431, %v1871, %v1872
      %v1874 = vrot.slane %v1815, 1
      %v1875 = vsel %vm431, %v1872, %v1874
      %v1876 = vrot.slane %v1816, 1
      %v1877 = vrot.slane %v1817, 1
      %v1878 = vsel %vm431, %v1876, %v1877
      %v1879 = vrot.slane %v1818, 1
      %v1880 = vsel %vm431, %v1877, %v1879
      %v1881 = vrot.slane %v1819, 1
      %v1882 = vrot.slane %v1820, 1
      %v1883 = vsel %vm431, %v1881, %v1882
      %v1884 = vrot.slane %v1821, 1
      %v1885 = vsel %vm431, %v1882, %v1884
      %v1886 = vrot.slane %v1798, 2
      %v1887 = vrot.slane %v1799, 2
      %v1888 = vsel %vm472, %v1886, %v1887
      %v1889 = vrot.slane %v1800, 2
      %v1890 = vsel %vm472, %v1887, %v1889
      %v1891 = vrot.slane %v1801, 2
      %v1892 = vrot.slane %v1802, 2
      %v1893 = vsel %vm472, %v1891, %v1892
      %v1894 = vrot.slane %v1803, 2
      %v1895 = vsel %vm472, %v1892, %v1894
      %v1896 = vrot.slane %v1804, 2
      %v1897 = vrot.slane %v1805, 2
      %v1898 = vsel %vm472, %v1896, %v1897
      %v1899 = vrot.slane %v1806, 2
      %v1900 = vsel %vm472, %v1897, %v1899
      %v1901 = vrot.slane %v1807, 2
      %v1902 = vrot.slane %v1808, 2
      %v1903 = vsel %vm472, %v1901, %v1902
      %v1904 = vrot.slane %v1809, 2
      %v1905 = vsel %vm472, %v1902, %v1904
      %v1906 = vrot.slane %v1810, 2
      %v1907 = vrot.slane %v1811, 2
      %v1908 = vsel %vm472, %v1906, %v1907
      %v1909 = vrot.slane %v1812, 2
      %v1910 = vsel %vm472, %v1907, %v1909
      %v1911 = vrot.slane %v1813, 2
      %v1912 = vrot.slane %v1814, 2
      %v1913 = vsel %vm472, %v1911, %v1912
      %v1914 = vrot.slane %v1815, 2
      %v1915 = vsel %vm472, %v1912, %v1914
      %v1916 = vrot.slane %v1816, 2
      %v1917 = vrot.slane %v1817, 2
      %v1918 = vsel %vm472, %v1916, %v1917
      %v1919 = vrot.slane %v1818, 2
      %v1920 = vsel %vm472, %v1917, %v1919
      %v1921 = vrot.slane %v1819, 2
      %v1922 = vrot.slane %v1820, 2
      %v1923 = vsel %vm472, %v1921, %v1922
      %v1924 = vrot.slane %v1821, 2
      %v1925 = vsel %vm472, %v1922, %v1924
      %v1926 = vld [vmem:[%s1 + $0x18] sm:$0xf]
      %v1927 = vsel %vm225, %v1798, 0
      %v1929 = vsel %vm225, %v1799, 0
      %v1931 = vsel %vm225, %v1801, 0
      %v1933 = vsel %vm225, %v1802, 0
      %v1935 = vsel %vm225, %v1804, 0
      %v1937 = vsel %vm225, %v1805, 0
      %v1939 = vsel %vm225, %v1807, 0
      %v1941 = vsel %vm225, %v1808, 0
      %v1943 = vsel %vm225, %v1810, 0
      %v1945 = vsel %vm225, %v1811, 0
      %v1947 = vsel %vm225, %v1813, 0
      %v1949 = vsel %vm225, %v1814, 0
      %v1951 = vsel %vm225, %v1816, 0
      %v1953 = vsel %vm225, %v1817, 0
      %v1955 = vsel %vm225, %v1819, 0
      %v1957 = vsel %vm225, %v1820, 0
      %v1960 = vsel %vm547, %v1926, 0
      %1962 = vmatprep.subr.mxu0 0.0
      %1963 = vmatpush1.msra.mxu0 %v1960
      %1964 = vmatprep.subr.mxu0 0.0
      %1965 = vmatpush1.msra.mxu0 0.0
      %1966 = vmatprep.subr.mxu0 0.0
      %1967 = vmatpush1.msra.mxu0 0.0
      %1968 = vmatprep.subr.mxu0 0.0
      %1969 = vmatpush1.msra.mxu0 0.0
      %1970 = vmatprep.subr.mxu0 0.0
      %1971 = vmatpush1.msra.mxu0 0.0
      %1972 = vmatprep.subr.mxu0 0.0
      %1973 = vmatpush1.msra.mxu0 0.0
      %1974 = vmatprep.subr.mxu0 0.0
      %1975 = vmatpush1.msra.mxu0 0.0
      %1976 = vmatprep.subr.mxu0 0.0
      %1977 = vmatpush1.msra.mxu0 0.0
      %1978 = vmatprep.subr.mxu0 0.0
      %1979 = vmatpush1.msra.mxu0 0.0
      %1980 = vmatprep.subr.mxu0 0.0
      %1981 = vmatpush1.msra.mxu0 0.0
      %1982 = vmatprep.subr.mxu0 0.0
      %1983 = vmatpush1.msra.mxu0 0.0
      %1984 = vmatprep.subr.mxu0 0.0
      %1985 = vmatpush1.msra.mxu0 0.0
      %1986 = vmatprep.subr.mxu0 0.0
      %1987 = vmatpush1.msra.mxu0 0.0
      %1988 = vmatprep.subr.mxu0 0.0
      %1989 = vmatpush1.msra.mxu0 0.0
      %1990 = vmatprep.subr.mxu0 0.0
      %1991 = vmatpush1.msra.mxu0 0.0
      %1992 = vmatprep.subr.mxu0 0.0
      %1993 = vmatpush1.msra.mxu0 0.0
      %1994 = vmatprep.subr.mxu0 0.0
      %1995 = vmatpush1.msra.mxu0 0.0
      %1996 = vmatprep.subr.mxu0 0.0
      %1997 = vmatpush1.msra.mxu0 0.0
      %1998 = vmatprep.subr.mxu0 0.0
      %1999 = vmatpush1.msra.mxu0 0.0
      %2000 = vmatprep.subr.mxu0 0.0
      %2001 = vmatpush1.msra.mxu0 0.0
      %2002 = vmatprep.subr.mxu0 0.0
      %2003 = vmatpush1.msra.mxu0 0.0
      %2004 = vmatprep.subr.mxu0 0.0
      %2005 = vmatpush1.msra.mxu0 0.0
      %2006 = vmatprep.subr.mxu0 0.0
      %2007 = vmatpush1.msra.mxu0 0.0
      %2008 = vmatprep.subr.mxu0 0.0
      %2009 = vmatpush1.msra.mxu0 0.0
      %2010 = vmatprep.subr.mxu0 0.0
      %2011 = vmatpush1.msra.mxu0 0.0
      %2012 = vmatprep.subr.mxu0 0.0
      %2013 = vmatpush1.msra.mxu0 0.0
      %2014 = vmatprep.subr.mxu0 0.0
      %2015 = vmatpush1.msra.mxu0 0.0
      %2016 = vmatprep.subr.mxu0 0.0
      %2017 = vmatpush1.msra.mxu0 0.0
      %2018 = vmatprep.subr.mxu0 0.0
      %2019 = vmatpush1.msra.mxu0 0.0
      %2020 = vmatprep.subr.mxu0 0.0
      %2021 = vmatpush1.msra.mxu0 0.0
      %2022 = vmatprep.subr.mxu0 0.0
      %2023 = vmatpush1.msra.mxu0 0.0
      %2024 = vmatprep.subr.mxu0 0.0
      %2025 = vmatpush1.msra.mxu0 0.0
      %2026 = vmatprep.mubr.f32.mxu0 0.0
      %2027 = vmatmul.mubr.f32.gmra.mrb[0].mxu0 %v1927
      %v2028 = vpop.f32.mrb[0].mxu0
      %v2029 = vadd.f32 0.0, %v2028
      %v2030 = vpop.f32.mrb[0].mxu0
      %2031 = vmatprep.mubr.f32.mxu0 0.0
      %2032 = vmatmul.mubr.f32.gmra.mrb[0].mxu0 %v1929
      %v2033 = vpop.f32.mrb[0].mxu0
      %v2034 = vadd.f32 0.0, %v2033
      %v2035 = vpop.f32.mrb[0].mxu0
      %2036 = vmatprep.mubr.f32.mxu0 0.0
      %2037 = vmatmul.mubr.f32.gmra.mrb[0].mxu0 %v1931
      %v2038 = vpop.f32.mrb[0].mxu0
      %v2039 = vadd.f32 0.0, %v2038
      %v2040 = vpop.f32.mrb[0].mxu0
      %2041 = vmatprep.mubr.f32.mxu0 0.0
      %2042 = vmatmul.mubr.f32.gmra.mrb[0].mxu0 %v1933
      %v2043 = vpop.f32.mrb[0].mxu0
      %v2044 = vadd.f32 0.0, %v2043
      %v2045 = vpop.f32.mrb[0].mxu0
      %2046 = vmatprep.mubr.f32.mxu0 0.0
      %2047 = vmatmul.mubr.f32.gmra.mrb[0].mxu0 %v1935
      %v2048 = vpop.f32.mrb[0].mxu0
      %v2049 = vadd.f32 0.0, %v2048
      %v2050 = vpop.f32.mrb[0].mxu0
      %2051 = vmatprep.mubr.f32.mxu0 0.0
      %2052 = vmatmul.mubr.f32.gmra.mrb[0].mxu0 %v1937
      %v2053 = vpop.f32.mrb[0].mxu0
      %v2054 = vadd.f32 0.0, %v2053
      %v2055 = vpop.f32.mrb[0].mxu0
      %2056 = vmatprep.mubr.f32.mxu0 0.0
      %2057 = vmatmul.mubr.f32.gmra.mrb[0].mxu0 %v1939
      %v2058 = vpop.f32.mrb[0].mxu0
      %v2059 = vadd.f32 0.0, %v2058
      %v2060 = vpop.f32.mrb[0].mxu0
      %2061 = vmatprep.mubr.f32.mxu0 0.0
      %2062 = vmatmul.mubr.f32.gmra.mrb[0].mxu0 %v1941
      %v2063 = vpop.f32.mrb[0].mxu0
      %v2064 = vadd.f32 0.0, %v2063
      %v2065 = vpop.f32.mrb[0].mxu0
      %2066 = vmatprep.mubr.f32.mxu0 0.0
      %2067 = vmatmul.mubr.f32.gmra.mrb[0].mxu0 %v1943
      %v2068 = vpop.f32.mrb[0].mxu0
      %v2069 = vadd.f32 0.0, %v2068
      %v2070 = vpop.f32.mrb[0].mxu0
      %2071 = vmatprep.mubr.f32.mxu0 0.0
      %2072 = vmatmul.mubr.f32.gmra.mrb[0].mxu0 %v1945
      %v2073 = vpop.f32.mrb[0].mxu0
      %v2074 = vadd.f32 0.0, %v2073
      %v2075 = vpop.f32.mrb[0].mxu0
      %2076 = vmatprep.mubr.f32.mxu0 0.0
      %2077 = vmatmul.mubr.f32.gmra.mrb[0].mxu0 %v1947
      %v2078 = vpop.f32.mrb[0].mxu0
      %v2079 = vadd.f32 0.0, %v2078
      %v2080 = vpop.f32.mrb[0].mxu0
      %2081 = vmatprep.mubr.f32.mxu0 0.0
      %2082 = vmatmul.mubr.f32.gmra.mrb[0].mxu0 %v1949
      %v2083 = vpop.f32.mrb[0].mxu0
      %v2084 = vadd.f32 0.0, %v2083
      %v2085 = vpop.f32.mrb[0].mxu0
      %2086 = vmatprep.mubr.f32.mxu0 0.0
      %2087 = vmatmul.mubr.f32.gmra.mrb[0].mxu0 %v1951
      %v2088 = vpop.f32.mrb[0].mxu0
      %v2089 = vadd.f32 0.0, %v2088
      %v2090 = vpop.f32.mrb[0].mxu0
      %2091 = vmatprep.mubr.f32.mxu0 0.0
      %2092 = vmatmul.mubr.f32.gmra.mrb[0].mxu0 %v1953
      %v2093 = vpop.f32.mrb[0].mxu0
      %v2094 = vadd.f32 0.0, %v2093
      %v2095 = vpop.f32.mrb[0].mxu0
      %2096 = vmatprep.mubr.f32.mxu0 0.0
      %2097 = vmatmul.mubr.f32.gmra.mrb[0].mxu0 %v1955
      %v2098 = vpop.f32.mrb[0].mxu0
      %v2099 = vadd.f32 0.0, %v2098
      %v2100 = vpop.f32.mrb[0].mxu0
      %2101 = vmatprep.mubr.f32.mxu0 0.0
      %2102 = vmatmul.mubr.f32.gmra.mrb[0].mxu0 %v1957
      %v2103 = vpop.f32.mrb[0].mxu0
      %v2104 = vadd.f32 0.0, %v2103
      %v2105 = vpop.f32.mrb[0].mxu0
      %2106 = vdwg.mxu0
      %v2107 = vadd.f32 %v1779, %v2029
      %v2108 = vadd.f32 %v1780, %v2034
      %v2109 = vadd.f32 %v1781, %v2039
      %v2110 = vadd.f32 %v1782, %v2044
      %v2111 = vadd.f32 %v1783, %v2049
      %v2112 = vadd.f32 %v1784, %v2054
      %v2113 = vadd.f32 %v1785, %v2059
      %v2114 = vadd.f32 %v1786, %v2064
      %v2115 = vadd.f32 %v1787, %v2069
      %v2116 = vadd.f32 %v1788, %v2074
      %v2117 = vadd.f32 %v1789, %v2079
      %v2118 = vadd.f32 %v1790, %v2084
      %v2119 = vadd.f32 %v1791, %v2089
      %v2120 = vadd.f32 %v1792, %v2094
      %v2121 = vadd.f32 %v1793, %v2099
      %v2122 = vadd.f32 %v1794, %v2104
      %v2123 = vld [vmem:[%s1 + $0x1c] sm:$0xf]
      %v2124 = vsel %vm225, %v1848, 0
      %v2126 = vsel %vm225, %v1850, 0
      %v2128 = vsel %vm225, %v1853, 0
      %v2130 = vsel %vm225, %v1855, 0
      %v2132 = vsel %vm225, %v1858, 0
      %v2134 = vsel %vm225, %v1860, 0
      %v2136 = vsel %vm225, %v1863, 0
      %v2138 = vsel %vm225, %v1865, 0
      %v2140 = vsel %vm225, %v1868, 0
      %v2142 = vsel %vm225, %v1870, 0
      %v2144 = vsel %vm225, %v1873, 0
      %v2146 = vsel %vm225, %v1875, 0
      %v2148 = vsel %vm225, %v1878, 0
      %v2150 = vsel %vm225, %v1880, 0
      %v2152 = vsel %vm225, %v1883, 0
      %v2154 = vsel %vm225, %v1885, 0
      %v2157 = vsel %vm547, %v2123, 0
      %2159 = vmatprep.subr.mxu0 0.0
      %2160 = vmatpush1.msra.mxu0 %v2157
      %2161 = vmatprep.subr.mxu0 0.0
      %2162 = vmatpush1.msra.mxu0 0.0
      %2163 = vmatprep.subr.mxu0 0.0
      %2164 = vmatpush1.msra.mxu0 0.0
      %2165 = vmatprep.subr.mxu0 0.0
      %2166 = vmatpush1.msra.mxu0 0.0
      %2167 = vmatprep.subr.mxu0 0.0
      %2168 = vmatpush1.msra.mxu0 0.0
      %2169 = vmatprep.subr.mxu0 0.0
      %2170 = vmatpush1.msra.mxu0 0.0
      %2171 = vmatprep.subr.mxu0 0.0
      %2172 = vmatpush1.msra.mxu0 0.0
      %2173 = vmatprep.subr.mxu0 0.0
      %2174 = vmatpush1.msra.mxu0 0.0
      %2175 = vmatprep.subr.mxu0 0.0
      %2176 = vmatpush1.msra.mxu0 0.0
      %2177 = vmatprep.subr.mxu0 0.0
      %2178 = vmatpush1.msra.mxu0 0.0
      %2179 = vmatprep.subr.mxu0 0.0
      %2180 = vmatpush1.msra.mxu0 0.0
      %2181 = vmatprep.subr.mxu0 0.0
      %2182 = vmatpush1.msra.mxu0 0.0
      %2183 = vmatprep.subr.mxu0 0.0
      %2184 = vmatpush1.msra.mxu0 0.0
      %2185 = vmatprep.subr.mxu0 0.0
      %2186 = vmatpush1.msra.mxu0 0.0
      %2187 = vmatprep.subr.mxu0 0.0
      %2188 = vmatpush1.msra.mxu0 0.0
      %2189 = vmatprep.subr.mxu0 0.0
      %2190 = vmatpush1.msra.mxu0 0.0
      %2191 = vmatprep.subr.mxu0 0.0
      %2192 = vmatpush1.msra.mxu0 0.0
      %2193 = vmatprep.subr.mxu0 0.0
      %2194 = vmatpush1.msra.mxu0 0.0
      %2195 = vmatprep.subr.mxu0 0.0
      %2196 = vmatpush1.msra.mxu0 0.0
      %2197 = vmatprep.subr.mxu0 0.0
      %2198 = vmatpush1.msra.mxu0 0.0
      %2199 = vmatprep.subr.mxu0 0.0
      %2200 = vmatpush1.msra.mxu0 0.0
      %2201 = vmatprep.subr.mxu0 0.0
      %2202 = vmatpush1.msra.mxu0 0.0
      %2203 = vmatprep.subr.mxu0 0.0
      %2204 = vmatpush1.msra.mxu0 0.0
      %2205 = vmatprep.subr.mxu0 0.0
      %2206 = vmatpush1.msra.mxu0 0.0
      %2207 = vmatprep.subr.mxu0 0.0
      %2208 = vmatpush1.msra.mxu0 0.0
      %2209 = vmatprep.subr.mxu0 0.0
      %2210 = vmatpush1.msra.mxu0 0.0
      %2211 = vmatprep.subr.mxu0 0.0
      %2212 = vmatpush1.msra.mxu0 0.0
      %2213 = vmatprep.subr.mxu0 0.0
      %2214 = vmatpush1.msra.mxu0 0.0
      %2215 = vmatprep.subr.mxu0 0.0
      %2216 = vmatpush1.msra.mxu0 0.0
      %2217 = vmatprep.subr.mxu0 0.0
      %2218 = vmatpush1.msra.mxu0 0.0
      %2219 = vmatprep.subr.mxu0 0.0
      %2220 = vmatpush1.msra.mxu0 0.0
      %2221 = vmatprep.subr.mxu0 0.0
      %2222 = vmatpush1.msra.mxu0 0.0
      %2223 = vmatprep.mubr.f32.mxu0 0.0
      %2224 = vmatmul.mubr.f32.gmra.mrb[0].mxu0 %v2124
      %v2225 = vpop.f32.mrb[0].mxu0
      %v2226 = vadd.f32 0.0, %v2225
      %v2227 = vpop.f32.mrb[0].mxu0
      %2228 = vmatprep.mubr.f32.mxu0 0.0
      %2229 = vmatmul.mubr.f32.gmra.mrb[0].mxu0 %v2126
      %v2230 = vpop.f32.mrb[0].mxu0
      %v2231 = vadd.f32 0.0, %v2230
      %v2232 = vpop.f32.mrb[0].mxu0
      %2233 = vmatprep.mubr.f32.mxu0 0.0
      %2234 = vmatmul.mubr.f32.gmra.mrb[0].mxu0 %v2128
      %v2235 = vpop.f32.mrb[0].mxu0
      %v2236 = vadd.f32 0.0, %v2235
      %v2237 = vpop.f32.mrb[0].mxu0
      %2238 = vmatprep.mubr.f32.mxu0 0.0
      %2239 = vmatmul.mubr.f32.gmra.mrb[0].mxu0 %v2130
      %v2240 = vpop.f32.mrb[0].mxu0
      %v2241 = vadd.f32 0.0, %v2240
      %v2242 = vpop.f32.mrb[0].mxu0
      %2243 = vmatprep.mubr.f32.mxu0 0.0
      %2244 = vmatmul.mubr.f32.gmra.mrb[0].mxu0 %v2132
      %v2245 = vpop.f32.mrb[0].mxu0
      %v2246 = vadd.f32 0.0, %v2245
      %v2247 = vpop.f32.mrb[0].mxu0
      %2248 = vmatprep.mubr.f32.mxu0 0.0
      %2249 = vmatmul.mubr.f32.gmra.mrb[0].mxu0 %v2134
      %v2250 = vpop.f32.mrb[0].mxu0
      %v2251 = vadd.f32 0.0, %v2250
      %v2252 = vpop.f32.mrb[0].mxu0
      %2253 = vmatprep.mubr.f32.mxu0 0.0
      %2254 = vmatmul.mubr.f32.gmra.mrb[0].mxu0 %v2136
      %v2255 = vpop.f32.mrb[0].mxu0
      %v2256 = vadd.f32 0.0, %v2255
      %v2257 = vpop.f32.mrb[0].mxu0
      %2258 = vmatprep.mubr.f32.mxu0 0.0
      %2259 = vmatmul.mubr.f32.gmra.mrb[0].mxu0 %v2138
      %v2260 = vpop.f32.mrb[0].mxu0
      %v2261 = vadd.f32 0.0, %v2260
      %v2262 = vpop.f32.mrb[0].mxu0
      %2263 = vmatprep.mubr.f32.mxu0 0.0
      %2264 = vmatmul.mubr.f32.gmra.mrb[0].mxu0 %v2140
      %v2265 = vpop.f32.mrb[0].mxu0
      %v2266 = vadd.f32 0.0, %v2265
      %v2267 = vpop.f32.mrb[0].mxu0
      %2268 = vmatprep.mubr.f32.mxu0 0.0
      %2269 = vmatmul.mubr.f32.gmra.mrb[0].mxu0 %v2142
      %v2270 = vpop.f32.mrb[0].mxu0
      %v2271 = vadd.f32 0.0, %v2270
      %v2272 = vpop.f32.mrb[0].mxu0
      %2273 = vmatprep.mubr.f32.mxu0 0.0
      %2274 = vmatmul.mubr.f32.gmra.mrb[0].mxu0 %v2144
      %v2275 = vpop.f32.mrb[0].mxu0
      %v2276 = vadd.f32 0.0, %v2275
      %v2277 = vpop.f32.mrb[0].mxu0
      %2278 = vmatprep.mubr.f32.mxu0 0.0
      %2279 = vmatmul.mubr.f32.gmra.mrb[0].mxu0 %v2146
      %v2280 = vpop.f32.mrb[0].mxu0
      %v2281 = vadd.f32 0.0, %v2280
      %v2282 = vpop.f32.mrb[0].mxu0
      %2283 = vmatprep.mubr.f32.mxu0 0.0
      %2284 = vmatmul.mubr.f32.gmra.mrb[0].mxu0 %v2148
      %v2285 = vpop.f32.mrb[0].mxu0
      %v2286 = vadd.f32 0.0, %v2285
      %v2287 = vpop.f32.mrb[0].mxu0
      %2288 = vmatprep.mubr.f32.mxu0 0.0
      %2289 = vmatmul.mubr.f32.gmra.mrb[0].mxu0 %v2150
      %v2290 = vpop.f32.mrb[0].mxu0
      %v2291 = vadd.f32 0.0, %v2290
      %v2292 = vpop.f32.mrb[0].mxu0
      %2293 = vmatprep.mubr.f32.mxu0 0.0
      %2294 = vmatmul.mubr.f32.gmra.mrb[0].mxu0 %v2152
      %v2295 = vpop.f32.mrb[0].mxu0
      %v2296 = vadd.f32 0.0, %v2295
      %v2297 = vpop.f32.mrb[0].mxu0
      %2298 = vmatprep.mubr.f32.mxu0 0.0
      %2299 = vmatmul.mubr.f32.gmra.mrb[0].mxu0 %v2154
      %v2300 = vpop.f32.mrb[0].mxu0
      %v2301 = vadd.f32 0.0, %v2300
      %v2302 = vpop.f32.mrb[0].mxu0
      %2303 = vdwg.mxu0
      %v2304 = vadd.f32 %v2107, %v2226
      %v2305 = vadd.f32 %v2108, %v2231
      %v2306 = vadd.f32 %v2109, %v2236
      %v2307 = vadd.f32 %v2110, %v2241
      %v2308 = vadd.f32 %v2111, %v2246
      %v2309 = vadd.f32 %v2112, %v2251
      %v2310 = vadd.f32 %v2113, %v2256
      %v2311 = vadd.f32 %v2114, %v2261
      %v2312 = vadd.f32 %v2115, %v2266
      %v2313 = vadd.f32 %v2116, %v2271
      %v2314 = vadd.f32 %v2117, %v2276
      %v2315 = vadd.f32 %v2118, %v2281
      %v2316 = vadd.f32 %v2119, %v2286
      %v2317 = vadd.f32 %v2120, %v2291
      %v2318 = vadd.f32 %v2121, %v2296
      %v2319 = vadd.f32 %v2122, %v2301
      %v2320 = vld [vmem:[%s1 + $0x20] sm:$0xf]
      %v2321 = vsel %vm225, %v1888, 0
      %v2323 = vsel %vm225, %v1890, 0
      %v2325 = vsel %vm225, %v1893, 0
      %v2327 = vsel %vm225, %v1895, 0
      %v2329 = vsel %vm225, %v1898, 0
      %v2331 = vsel %vm225, %v1900, 0
      %v2333 = vsel %vm225, %v1903, 0
      %v2335 = vsel %vm225, %v1905, 0
      %v2337 = vsel %vm225, %v1908, 0
      %v2339 = vsel %vm225, %v1910, 0
      %v2341 = vsel %vm225, %v1913, 0
      %v2343 = vsel %vm225, %v1915, 0
      %v2345 = vsel %vm225, %v1918, 0
      %v2347 = vsel %vm225, %v1920, 0
      %v2349 = vsel %vm225, %v1923, 0
      %v2351 = vsel %vm225, %v1925, 0
      %v2354 = vsel %vm547, %v2320, 0
      %2356 = vmatprep.subr.mxu0 0.0
      %2357 = vmatpush1.msra.mxu0 %v2354
      %2358 = vmatprep.subr.mxu0 0.0
      %2359 = vmatpush1.msra.mxu0 0.0
      %2360 = vmatprep.subr.mxu0 0.0
      %2361 = vmatpush1.msra.mxu0 0.0
      %2362 = vmatprep.subr.mxu0 0.0
      %2363 = vmatpush1.msra.mxu0 0.0
      %2364 = vmatprep.subr.mxu0 0.0
      %2365 = vmatpush1.msra.mxu0 0.0
      %2366 = vmatprep.subr.mxu0 0.0
      %2367 = vmatpush1.msra.mxu0 0.0
      %2368 = vmatprep.subr.mxu0 0.0
      %2369 = vmatpush1.msra.mxu0 0.0
      %2370 = vmatprep.subr.mxu0 0.0
      %2371 = vmatpush1.msra.mxu0 0.0
      %2372 = vmatprep.subr.mxu0 0.0
      %2373 = vmatpush1.msra.mxu0 0.0
      %2374 = vmatprep.subr.mxu0 0.0
      %2375 = vmatpush1.msra.mxu0 0.0
      %2376 = vmatprep.subr.mxu0 0.0
      %2377 = vmatpush1.msra.mxu0 0.0
      %2378 = vmatprep.subr.mxu0 0.0
      %2379 = vmatpush1.msra.mxu0 0.0
      %2380 = vmatprep.subr.mxu0 0.0
      %2381 = vmatpush1.msra.mxu0 0.0
      %2382 = vmatprep.subr.mxu0 0.0
      %2383 = vmatpush1.msra.mxu0 0.0
      %2384 = vmatprep.subr.mxu0 0.0
      %2385 = vmatpush1.msra.mxu0 0.0
      %2386 = vmatprep.subr.mxu0 0.0
      %2387 = vmatpush1.msra.mxu0 0.0
      %2388 = vmatprep.subr.mxu0 0.0
      %2389 = vmatpush1.msra.mxu0 0.0
      %2390 = vmatprep.subr.mxu0 0.0
      %2391 = vmatpush1.msra.mxu0 0.0
      %2392 = vmatprep.subr.mxu0 0.0
      %2393 = vmatpush1.msra.mxu0 0.0
      %2394 = vmatprep.subr.mxu0 0.0
      %2395 = vmatpush1.msra.mxu0 0.0
      %2396 = vmatprep.subr.mxu0 0.0
      %2397 = vmatpush1.msra.mxu0 0.0
      %2398 = vmatprep.subr.mxu0 0.0
      %2399 = vmatpush1.msra.mxu0 0.0
      %2400 = vmatprep.subr.mxu0 0.0
      %2401 = vmatpush1.msra.mxu0 0.0
      %2402 = vmatprep.subr.mxu0 0.0
      %2403 = vmatpush1.msra.mxu0 0.0
      %2404 = vmatprep.subr.mxu0 0.0
      %2405 = vmatpush1.msra.mxu0 0.0
      %2406 = vmatprep.subr.mxu0 0.0
      %2407 = vmatpush1.msra.mxu0 0.0
      %2408 = vmatprep.subr.mxu0 0.0
      %2409 = vmatpush1.msra.mxu0 0.0
      %2410 = vmatprep.subr.mxu0 0.0
      %2411 = vmatpush1.msra.mxu0 0.0
      %2412 = vmatprep.subr.mxu0 0.0
      %2413 = vmatpush1.msra.mxu0 0.0
      %2414 = vmatprep.subr.mxu0 0.0
      %2415 = vmatpush1.msra.mxu0 0.0
      %2416 = vmatprep.subr.mxu0 0.0
      %2417 = vmatpush1.msra.mxu0 0.0
      %2418 = vmatprep.subr.mxu0 0.0
      %2419 = vmatpush1.msra.mxu0 0.0
      %2420 = vmatprep.mubr.f32.mxu0 0.0
      %2421 = vmatmul.mubr.f32.gmra.mrb[0].mxu0 %v2321
      %v2422 = vpop.f32.mrb[0].mxu0
      %v2423 = vadd.f32 0.0, %v2422
      %v2424 = vpop.f32.mrb[0].mxu0
      %2425 = vmatprep.mubr.f32.mxu0 0.0
      %2426 = vmatmul.mubr.f32.gmra.mrb[0].mxu0 %v2323
      %v2427 = vpop.f32.mrb[0].mxu0
      %v2428 = vadd.f32 0.0, %v2427
      %v2429 = vpop.f32.mrb[0].mxu0
      %2430 = vmatprep.mubr.f32.mxu0 0.0
      %2431 = vmatmul.mubr.f32.gmra.mrb[0].mxu0 %v2325
      %v2432 = vpop.f32.mrb[0].mxu0
      %v2433 = vadd.f32 0.0, %v2432
      %v2434 = vpop.f32.mrb[0].mxu0
      %2435 = vmatprep.mubr.f32.mxu0 0.0
      %2436 = vmatmul.mubr.f32.gmra.mrb[0].mxu0 %v2327
      %v2437 = vpop.f32.mrb[0].mxu0
      %v2438 = vadd.f32 0.0, %v2437
      %v2439 = vpop.f32.mrb[0].mxu0
      %2440 = vmatprep.mubr.f32.mxu0 0.0
      %2441 = vmatmul.mubr.f32.gmra.mrb[0].mxu0 %v2329
      %v2442 = vpop.f32.mrb[0].mxu0
      %v2443 = vadd.f32 0.0, %v2442
      %v2444 = vpop.f32.mrb[0].mxu0
      %2445 = vmatprep.mubr.f32.mxu0 0.0
      %2446 = vmatmul.mubr.f32.gmra.mrb[0].mxu0 %v2331
      %v2447 = vpop.f32.mrb[0].mxu0
      %v2448 = vadd.f32 0.0, %v2447
      %v2449 = vpop.f32.mrb[0].mxu0
      %2450 = vmatprep.mubr.f32.mxu0 0.0
      %2451 = vmatmul.mubr.f32.gmra.mrb[0].mxu0 %v2333
      %v2452 = vpop.f32.mrb[0].mxu0
      %v2453 = vadd.f32 0.0, %v2452
      %v2454 = vpop.f32.mrb[0].mxu0
      %2455 = vmatprep.mubr.f32.mxu0 0.0
      %2456 = vmatmul.mubr.f32.gmra.mrb[0].mxu0 %v2335
      %v2457 = vpop.f32.mrb[0].mxu0
      %v2458 = vadd.f32 0.0, %v2457
      %v2459 = vpop.f32.mrb[0].mxu0
      %2460 = vmatprep.mubr.f32.mxu0 0.0
      %2461 = vmatmul.mubr.f32.gmra.mrb[0].mxu0 %v2337
      %v2462 = vpop.f32.mrb[0].mxu0
      %v2463 = vadd.f32 0.0, %v2462
      %v2464 = vpop.f32.mrb[0].mxu0
      %2465 = vmatprep.mubr.f32.mxu0 0.0
      %2466 = vmatmul.mubr.f32.gmra.mrb[0].mxu0 %v2339
      %v2467 = vpop.f32.mrb[0].mxu0
      %v2468 = vadd.f32 0.0, %v2467
      %v2469 = vpop.f32.mrb[0].mxu0
      %2470 = vmatprep.mubr.f32.mxu0 0.0
      %2471 = vmatmul.mubr.f32.gmra.mrb[0].mxu0 %v2341
      %v2472 = vpop.f32.mrb[0].mxu0
      %v2473 = vadd.f32 0.0, %v2472
      %v2474 = vpop.f32.mrb[0].mxu0
      %2475 = vmatprep.mubr.f32.mxu0 0.0
      %2476 = vmatmul.mubr.f32.gmra.mrb[0].mxu0 %v2343
      %v2477 = vpop.f32.mrb[0].mxu0
      %v2478 = vadd.f32 0.0, %v2477
      %v2479 = vpop.f32.mrb[0].mxu0
      %2480 = vmatprep.mubr.f32.mxu0 0.0
      %2481 = vmatmul.mubr.f32.gmra.mrb[0].mxu0 %v2345
      %v2482 = vpop.f32.mrb[0].mxu0
      %v2483 = vadd.f32 0.0, %v2482
      %v2484 = vpop.f32.mrb[0].mxu0
      %2485 = vmatprep.mubr.f32.mxu0 0.0
      %2486 = vmatmul.mubr.f32.gmra.mrb[0].mxu0 %v2347
      %v2487 = vpop.f32.mrb[0].mxu0
      %v2488 = vadd.f32 0.0, %v2487
      %v2489 = vpop.f32.mrb[0].mxu0
      %2490 = vmatprep.mubr.f32.mxu0 0.0
      %2491 = vmatmul.mubr.f32.gmra.mrb[0].mxu0 %v2349
      %v2492 = vpop.f32.mrb[0].mxu0
      %v2493 = vadd.f32 0.0, %v2492
      %v2494 = vpop.f32.mrb[0].mxu0
      %2495 = vmatprep.mubr.f32.mxu0 0.0
      %2496 = vmatmul.mubr.f32.gmra.mrb[0].mxu0 %v2351
      %v2497 = vpop.f32.mrb[0].mxu0
      %v2498 = vadd.f32 0.0, %v2497
      %v2499 = vpop.f32.mrb[0].mxu0
      %2500 = vdwg.mxu0
      %v2501 = vadd.f32 %v2304, %v2423
      %v2502 = vadd.f32 %v2305, %v2428
      %v2503 = vadd.f32 %v2306, %v2433
      %v2504 = vadd.f32 %v2307, %v2438
      %v2505 = vadd.f32 %v2308, %v2443
      %v2506 = vadd.f32 %v2309, %v2448
      %v2507 = vadd.f32 %v2310, %v2453
      %v2508 = vadd.f32 %v2311, %v2458
      %v2509 = vadd.f32 %v2312, %v2463
      %v2510 = vadd.f32 %v2313, %v2468
      %v2511 = vadd.f32 %v2314, %v2473
      %v2512 = vadd.f32 %v2315, %v2478
      %v2513 = vadd.f32 %v2316, %v2483
      %v2514 = vadd.f32 %v2317, %v2488
      %v2515 = vadd.f32 %v2318, %v2493
      %v2516 = vadd.f32 %v2319, %v2498
      %v2518 = vlaneseq
      %v2519 = vshrl.u32 %v2518, 7
      %v2520 = vsub.s32 0, %v2519
      %v2521 = vrot.slane %v379, %v2520
      %v2523 = vadd.f32 %v2501, %v2521
      %v2524 = vadd.f32 %v2502, %v2521
      %v2525 = vadd.f32 %v2503, %v2521
      %v2526 = vadd.f32 %v2504, %v2521
      %v2527 = vadd.f32 %v2505, %v2521
      %v2528 = vadd.f32 %v2506, %v2521
      %v2529 = vadd.f32 %v2507, %v2521
      %v2530 = vadd.f32 %v2508, %v2521
      %v2531 = vadd.f32 %v2509, %v2521
      %v2532 = vadd.f32 %v2510, %v2521
      %v2533 = vadd.f32 %v2511, %v2521
      %v2534 = vadd.f32 %v2512, %v2521
      %v2535 = vadd.f32 %v2513, %v2521
      %v2536 = vadd.f32 %v2514, %v2521
      %v2537 = vadd.f32 %v2515, %v2521
      %v2538 = vadd.f32 %v2516, %v2521
      %vm2539 = vcmp.gt.f32.partialorder %v2523, 0.0
      %vm2540 = vcmp.gt.f32.partialorder %v2524, 0.0
      %vm2541 = vcmp.gt.f32.partialorder %v2525, 0.0
      %vm2542 = vcmp.gt.f32.partialorder %v2526, 0.0
      %vm2543 = vcmp.gt.f32.partialorder %v2527, 0.0
      %vm2544 = vcmp.gt.f32.partialorder %v2528, 0.0
      %vm2545 = vcmp.gt.f32.partialorder %v2529, 0.0
      %vm2546 = vcmp.gt.f32.partialorder %v2530, 0.0
      %vm2547 = vcmp.gt.f32.partialorder %v2531, 0.0
      %vm2548 = vcmp.gt.f32.partialorder %v2532, 0.0
      %vm2549 = vcmp.gt.f32.partialorder %v2533, 0.0
      %vm2550 = vcmp.gt.f32.partialorder %v2534, 0.0
      %vm2551 = vcmp.gt.f32.partialorder %v2535, 0.0
      %vm2552 = vcmp.gt.f32.partialorder %v2536, 0.0
      %vm2553 = vcmp.gt.f32.partialorder %v2537, 0.0
      %vm2554 = vcmp.gt.f32.partialorder %v2538, 0.0
      %v2555 = vmul.f32 %v2523, 0.2
      %v2556 = vmul.f32 %v2524, 0.2
      %v2557 = vmul.f32 %v2525, 0.2
      %v2558 = vmul.f32 %v2526, 0.2
      %v2559 = vmul.f32 %v2527, 0.2
      %v2560 = vmul.f32 %v2528, 0.2
      %v2561 = vmul.f32 %v2529, 0.2
      %v2562 = vmul.f32 %v2530, 0.2
      %v2563 = vmul.f32 %v2531, 0.2
      %v2564 = vmul.f32 %v2532, 0.2
      %v2565 = vmul.f32 %v2533, 0.2
      %v2566 = vmul.f32 %v2534, 0.2
      %v2567 = vmul.f32 %v2535, 0.2
      %v2568 = vmul.f32 %v2536, 0.2
      %v2569 = vmul.f32 %v2537, 0.2
      %v2570 = vmul.f32 %v2538, 0.2
      %v2571 = vsel %vm2539, %v2523, %v2555
      %v2572 = vsel %vm2540, %v2524, %v2556
      %v2573 = vsel %vm2541, %v2525, %v2557
      %v2574 = vsel %vm2542, %v2526, %v2558
      %v2575 = vsel %vm2543, %v2527, %v2559
      %v2576 = vsel %vm2544, %v2528, %v2560
      %v2577 = vsel %vm2545, %v2529, %v2561
      %v2578 = vsel %vm2546, %v2530, %v2562
      %v2579 = vsel %vm2547, %v2531, %v2563
      %v2580 = vsel %vm2548, %v2532, %v2564
      %v2581 = vsel %vm2549, %v2533, %v2565
      %v2582 = vsel %vm2550, %v2534, %v2566
      %v2583 = vsel %vm2551, %v2535, %v2567
      %v2584 = vsel %vm2552, %v2536, %v2568
      %v2585 = vsel %vm2553, %v2537, %v2569
      %v2586 = vsel %vm2554, %v2538, %v2570
      %s2587 = scalar_lea.vmem [#allocation3], %s1074
      %2588 = vst.msk [vmem:[%s2587 + $0x1] sm:$0xff] %vm225, %v2571
      %2589 = vst.msk [vmem:[%s2587 + $0x9] sm:$0xff] %vm225, %v2572
      %2590 = vst.msk [vmem:[%s2587 + $0x19] sm:$0xff] %vm225, %v2573
      %2591 = vst.msk [vmem:[%s2587 + $0x21] sm:$0xff] %vm225, %v2574
      %2592 = vst.msk [vmem:[%s2587 + $0x31] sm:$0xff] %vm225, %v2575
      %2593 = vst.msk [vmem:[%s2587 + $0x39] sm:$0xff] %vm225, %v2576
      %2594 = vst.msk [vmem:[%s2587 + $0x49] sm:$0xff] %vm225, %v2577
      %2595 = vst.msk [vmem:[%s2587 + $0x51] sm:$0xff] %vm225, %v2578
      %2596 = vst.msk [vmem:[%s2587 + $0x61] sm:$0xff] %vm225, %v2579
      %2597 = vst.msk [vmem:[%s2587 + $0x69] sm:$0xff] %vm225, %v2580
      %2598 = vst.msk [vmem:[%s2587 + $0x79] sm:$0xff] %vm225, %v2581
      %2599 = vst.msk [vmem:[%s2587 + $0x81] sm:$0xff] %vm225, %v2582
      %2600 = vst.msk [vmem:[%s2587 + $0x91] sm:$0xff] %vm225, %v2583
      %2601 = vst.msk [vmem:[%s2587 + $0x99] sm:$0xff] %vm225, %v2584
      %2602 = vst.msk [vmem:[%s2587 + $0xa9] sm:$0xff] %vm225, %v2585
      %2603 = vst.msk [vmem:[%s2587 + $0xb1] sm:$0xff] %vm225, %v2586
      %s2604 = smul.u32 8, 24
      %s2605 = scalar_lea.vmem [#allocation2], %s2604
      %v2606 = vld [vmem:[%s2605] sm:$0xff]
      %v2607 = vld [vmem:[%s2605 + $0x8] sm:$0xff]
      %v2608 = vld [vmem:[%s2605 + $0x10] sm:$0x3]
      %v2609 = vld [vmem:[%s2605 + $0x18] sm:$0xff]
      %v2610 = vld [vmem:[%s2605 + $0x20] sm:$0xff]
      %v2611 = vld [vmem:[%s2605 + $0x28] sm:$0x3]
      %v2612 = vld [vmem:[%s2605 + $0x30] sm:$0xff]
      %v2613 = vld [vmem:[%s2605 + $0x38] sm:$0xff]
      %v2614 = vld [vmem:[%s2605 + $0x40] sm:$0x3]
      %v2615 = vld [vmem:[%s2605 + $0x48] sm:$0xff]
      %v2616 = vld [vmem:[%s2605 + $0x50] sm:$0xff]
      %v2617 = vld [vmem:[%s2605 + $0x58] sm:$0x3]
      %v2618 = vld [vmem:[%s2605 + $0x60] sm:$0xff]
      %v2619 = vld [vmem:[%s2605 + $0x68] sm:$0xff]
      %v2620 = vld [vmem:[%s2605 + $0x70] sm:$0x3]
      %v2621 = vld [vmem:[%s2605 + $0x78] sm:$0xff]
      %v2622 = vld [vmem:[%s2605 + $0x80] sm:$0xff]
      %v2623 = vld [vmem:[%s2605 + $0x88] sm:$0x3]
      %v2624 = vld [vmem:[%s2605 + $0x90] sm:$0xff]
      %v2625 = vld [vmem:[%s2605 + $0x98] sm:$0xff]
      %v2626 = vld [vmem:[%s2605 + $0xa0] sm:$0x3]
      %v2627 = vld [vmem:[%s2605 + $0xa8] sm:$0xff]
      %v2628 = vld [vmem:[%s2605 + $0xb0] sm:$0xff]
      %v2629 = vld [vmem:[%s2605 + $0xb8] sm:$0x3]
      %v2654 = vrot.slane %v2606, 1
      %v2655 = vrot.slane %v2607, 1
      %v2656 = vsel %vm431, %v2654, %v2655
      %v2657 = vrot.slane %v2608, 1
      %v2658 = vsel %vm431, %v2655, %v2657
      %v2659 = vrot.slane %v2609, 1
      %v2660 = vrot.slane %v2610, 1
      %v2661 = vsel %vm431, %v2659, %v2660
      %v2662 = vrot.slane %v2611, 1
      %v2663 = vsel %vm431, %v2660, %v2662
      %v2664 = vrot.slane %v2612, 1
      %v2665 = vrot.slane %v2613, 1
      %v2666 = vsel %vm431, %v2664, %v2665
      %v2667 = vrot.slane %v2614, 1
      %v2668 = vsel %vm431, %v2665, %v2667
      %v2669 = vrot.slane %v2615, 1
      %v2670 = vrot.slane %v2616, 1
      %v2671 = vsel %vm431, %v2669, %v2670
      %v2672 = vrot.slane %v2617, 1
      %v2673 = vsel %vm431, %v2670, %v2672
      %v2674 = vrot.slane %v2618, 1
      %v2675 = vrot.slane %v2619, 1
      %v2676 = vsel %vm431, %v2674, %v2675
      %v2677 = vrot.slane %v2620, 1
      %v2678 = vsel %vm431, %v2675, %v2677
      %v2679 = vrot.slane %v2621, 1
      %v2680 = vrot.slane %v2622, 1
      %v2681 = vsel %vm431, %v2679, %v2680
      %v2682 = vrot.slane %v2623, 1
      %v2683 = vsel %vm431, %v2680, %v2682
      %v2684 = vrot.slane %v2624, 1
      %v2685 = vrot.slane %v2625, 1
      %v2686 = vsel %vm431, %v2684, %v2685
      %v2687 = vrot.slane %v2626, 1
      %v2688 = vsel %vm431, %v2685, %v2687
      %v2689 = vrot.slane %v2627, 1
      %v2690 = vrot.slane %v2628, 1
      %v2691 = vsel %vm431, %v2689, %v2690
      %v2692 = vrot.slane %v2629, 1
      %v2693 = vsel %vm431, %v2690, %v2692
      %v2694 = vrot.slane %v2606, 2
      %v2695 = vrot.slane %v2607, 2
      %v2696 = vsel %vm472, %v2694, %v2695
      %v2697 = vrot.slane %v2608, 2
      %v2698 = vsel %vm472, %v2695, %v2697
      %v2699 = vrot.slane %v2609, 2
      %v2700 = vrot.slane %v2610, 2
      %v2701 = vsel %vm472, %v2699, %v2700
      %v2702 = vrot.slane %v2611, 2
      %v2703 = vsel %vm472, %v2700, %v2702
      %v2704 = vrot.slane %v2612, 2
      %v2705 = vrot.slane %v2613, 2
      %v2706 = vsel %vm472, %v2704, %v2705
      %v2707 = vrot.slane %v2614, 2
      %v2708 = vsel %vm472, %v2705, %v2707
      %v2709 = vrot.slane %v2615, 2
      %v2710 = vrot.slane %v2616, 2
      %v2711 = vsel %vm472, %v2709, %v2710
      %v2712 = vrot.slane %v2617, 2
      %v2713 = vsel %vm472, %v2710, %v2712
      %v2714 = vrot.slane %v2618, 2
      %v2715 = vrot.slane %v2619, 2
      %v2716 = vsel %vm472, %v2714, %v2715
      %v2717 = vrot.slane %v2620, 2
      %v2718 = vsel %vm472, %v2715, %v2717
      %v2719 = vrot.slane %v2621, 2
      %v2720 = vrot.slane %v2622, 2
      %v2721 = vsel %vm472, %v2719, %v2720
      %v2722 = vrot.slane %v2623, 2
      %v2723 = vsel %vm472, %v2720, %v2722
      %v2724 = vrot.slane %v2624, 2
      %v2725 = vrot.slane %v2625, 2
      %v2726 = vsel %vm472, %v2724, %v2725
      %v2727 = vrot.slane %v2626, 2
      %v2728 = vsel %vm472, %v2725, %v2727
      %v2729 = vrot.slane %v2627, 2
      %v2730 = vrot.slane %v2628, 2
      %v2731 = vsel %vm472, %v2729, %v2730
      %v2732 = vrot.slane %v2629, 2
      %v2733 = vsel %vm472, %v2730, %v2732
      %v2734 = vld [vmem:[%s1] sm:$0xf]
      %v2735 = vld [vmem:[%s1 + $0x4] sm:$0xf]
      %v2736 = vsel %vm225, %v2656, 0
      %v2738 = vsel %vm225, %v2658, 0
      %v2740 = vsel %vm225, %v2661, 0
      %v2742 = vsel %vm225, %v2663, 0
      %v2744 = vsel %vm225, %v2666, 0
      %v2746 = vsel %vm225, %v2668, 0
      %v2748 = vsel %vm225, %v2671, 0
      %v2750 = vsel %vm225, %v2673, 0
      %v2752 = vsel %vm225, %v2676, 0
      %v2754 = vsel %vm225, %v2678, 0
      %v2756 = vsel %vm225, %v2681, 0
      %v2758 = vsel %vm225, %v2683, 0
      %v2760 = vsel %vm225, %v2686, 0
      %v2762 = vsel %vm225, %v2688, 0
      %v2764 = vsel %vm225, %v2691, 0
      %v2766 = vsel %vm225, %v2693, 0
      %v2769 = vsel %vm547, %v2735, 0
      %2771 = vmatprep.subr.mxu0 0.0
      %2772 = vmatpush1.msra.mxu0 %v2769
      %2773 = vmatprep.subr.mxu0 0.0
      %2774 = vmatpush1.msra.mxu0 0.0
      %2775 = vmatprep.subr.mxu0 0.0
      %2776 = vmatpush1.msra.mxu0 0.0
      %2777 = vmatprep.subr.mxu0 0.0
      %2778 = vmatpush1.msra.mxu0 0.0
      %2779 = vmatprep.subr.mxu0 0.0
      %2780 = vmatpush1.msra.mxu0 0.0
      %2781 = vmatprep.subr.mxu0 0.0
      %2782 = vmatpush1.msra.mxu0 0.0
      %2783 = vmatprep.subr.mxu0 0.0
      %2784 = vmatpush1.msra.mxu0 0.0
      %2785 = vmatprep.subr.mxu0 0.0
      %2786 = vmatpush1.msra.mxu0 0.0
      %2787 = vmatprep.subr.mxu0 0.0
      %2788 = vmatpush1.msra.mxu0 0.0
      %2789 = vmatprep.subr.mxu0 0.0
      %2790 = vmatpush1.msra.mxu0 0.0
      %2791 = vmatprep.subr.mxu0 0.0
      %2792 = vmatpush1.msra.mxu0 0.0
      %2793 = vmatprep.subr.mxu0 0.0
      %2794 = vmatpush1.msra.mxu0 0.0
      %2795 = vmatprep.subr.mxu0 0.0
      %2796 = vmatpush1.msra.mxu0 0.0
      %2797 = vmatprep.subr.mxu0 0.0
      %2798 = vmatpush1.msra.mxu0 0.0
      %2799 = vmatprep.subr.mxu0 0.0
      %2800 = vmatpush1.msra.mxu0 0.0
      %2801 = vmatprep.subr.mxu0 0.0
      %2802 = vmatpush1.msra.mxu0 0.0
      %2803 = vmatprep.subr.mxu0 0.0
      %2804 = vmatpush1.msra.mxu0 0.0
      %2805 = vmatprep.subr.mxu0 0.0
      %2806 = vmatpush1.msra.mxu0 0.0
      %2807 = vmatprep.subr.mxu0 0.0
      %2808 = vmatpush1.msra.mxu0 0.0
      %2809 = vmatprep.subr.mxu0 0.0
      %2810 = vmatpush1.msra.mxu0 0.0
      %2811 = vmatprep.subr.mxu0 0.0
      %2812 = vmatpush1.msra.mxu0 0.0
      %2813 = vmatprep.subr.mxu0 0.0
      %2814 = vmatpush1.msra.mxu0 0.0
      %2815 = vmatprep.subr.mxu0 0.0
      %2816 = vmatpush1.msra.mxu0 0.0
      %2817 = vmatprep.subr.mxu0 0.0
      %2818 = vmatpush1.msra.mxu0 0.0
      %2819 = vmatprep.subr.mxu0 0.0
      %2820 = vmatpush1.msra.mxu0 0.0
      %2821 = vmatprep.subr.mxu0 0.0
      %2822 = vmatpush1.msra.mxu0 0.0
      %2823 = vmatprep.subr.mxu0 0.0
      %2824 = vmatpush1.msra.mxu0 0.0
      %2825 = vmatprep.subr.mxu0 0.0
      %2826 = vmatpush1.msra.mxu0 0.0
      %2827 = vmatprep.subr.mxu0 0.0
      %2828 = vmatpush1.msra.mxu0 0.0
      %2829 = vmatprep.subr.mxu0 0.0
      %2830 = vmatpush1.msra.mxu0 0.0
      %2831 = vmatprep.subr.mxu0 0.0
      %2832 = vmatpush1.msra.mxu0 0.0
      %2833 = vmatprep.subr.mxu0 0.0
      %2834 = vmatpush1.msra.mxu0 0.0
      %2835 = vmatprep.mubr.f32.mxu0 0.0
      %2836 = vmatmul.mubr.f32.gmra.mrb[0].mxu0 %v2736
      %v2837 = vpop.f32.mrb[0].mxu0
      %v2838 = vadd.f32 0.0, %v2837
      %v2839 = vpop.f32.mrb[0].mxu0
      %2840 = vmatprep.mubr.f32.mxu0 0.0
      %2841 = vmatmul.mubr.f32.gmra.mrb[0].mxu0 %v2738
      %v2842 = vpop.f32.mrb[0].mxu0
      %v2843 = vadd.f32 0.0, %v2842
      %v2844 = vpop.f32.mrb[0].mxu0
      %2845 = vmatprep.mubr.f32.mxu0 0.0
      %2846 = vmatmul.mubr.f32.gmra.mrb[0].mxu0 %v2740
      %v2847 = vpop.f32.mrb[0].mxu0
      %v2848 = vadd.f32 0.0, %v2847
      %v2849 = vpop.f32.mrb[0].mxu0
      %2850 = vmatprep.mubr.f32.mxu0 0.0
      %2851 = vmatmul.mubr.f32.gmra.mrb[0].mxu0 %v2742
      %v2852 = vpop.f32.mrb[0].mxu0
      %v2853 = vadd.f32 0.0, %v2852
      %v2854 = vpop.f32.mrb[0].mxu0
      %2855 = vmatprep.mubr.f32.mxu0 0.0
      %2856 = vmatmul.mubr.f32.gmra.mrb[0].mxu0 %v2744
      %v2857 = vpop.f32.mrb[0].mxu0
      %v2858 = vadd.f32 0.0, %v2857
      %v2859 = vpop.f32.mrb[0].mxu0
      %2860 = vmatprep.mubr.f32.mxu0 0.0
      %2861 = vmatmul.mubr.f32.gmra.mrb[0].mxu0 %v2746
      %v2862 = vpop.f32.mrb[0].mxu0
      %v2863 = vadd.f32 0.0, %v2862
      %v2864 = vpop.f32.mrb[0].mxu0
      %2865 = vmatprep.mubr.f32.mxu0 0.0
      %2866 = vmatmul.mubr.f32.gmra.mrb[0].mxu0 %v2748
      %v2867 = vpop.f32.mrb[0].mxu0
      %v2868 = vadd.f32 0.0, %v2867
      %v2869 = vpop.f32.mrb[0].mxu0
      %2870 = vmatprep.mubr.f32.mxu0 0.0
      %2871 = vmatmul.mubr.f32.gmra.mrb[0].mxu0 %v2750
      %v2872 = vpop.f32.mrb[0].mxu0
      %v2873 = vadd.f32 0.0, %v2872
      %v2874 = vpop.f32.mrb[0].mxu0
      %2875 = vmatprep.mubr.f32.mxu0 0.0
      %2876 = vmatmul.mubr.f32.gmra.mrb[0].mxu0 %v2752
      %v2877 = vpop.f32.mrb[0].mxu0
      %v2878 = vadd.f32 0.0, %v2877
      %v2879 = vpop.f32.mrb[0].mxu0
      %2880 = vmatprep.mubr.f32.mxu0 0.0
      %2881 = vmatmul.mubr.f32.gmra.mrb[0].mxu0 %v2754
      %v2882 = vpop.f32.mrb[0].mxu0
      %v2883 = vadd.f32 0.0, %v2882
      %v2884 = vpop.f32.mrb[0].mxu0
      %2885 = vmatprep.mubr.f32.mxu0 0.0
      %2886 = vmatmul.mubr.f32.gmra.mrb[0].mxu0 %v2756
      %v2887 = vpop.f32.mrb[0].mxu0
      %v2888 = vadd.f32 0.0, %v2887
      %v2889 = vpop.f32.mrb[0].mxu0
      %2890 = vmatprep.mubr.f32.mxu0 0.0
      %2891 = vmatmul.mubr.f32.gmra.mrb[0].mxu0 %v2758
      %v2892 = vpop.f32.mrb[0].mxu0
      %v2893 = vadd.f32 0.0, %v2892
      %v2894 = vpop.f32.mrb[0].mxu0
      %2895 = vmatprep.mubr.f32.mxu0 0.0
      %2896 = vmatmul.mubr.f32.gmra.mrb[0].mxu0 %v2760
      %v2897 = vpop.f32.mrb[0].mxu0
      %v2898 = vadd.f32 0.0, %v2897
      %v2899 = vpop.f32.mrb[0].mxu0
      %2900 = vmatprep.mubr.f32.mxu0 0.0
      %2901 = vmatmul.mubr.f32.gmra.mrb[0].mxu0 %v2762
      %v2902 = vpop.f32.mrb[0].mxu0
      %v2903 = vadd.f32 0.0, %v2902
      %v2904 = vpop.f32.mrb[0].mxu0
      %2905 = vmatprep.mubr.f32.mxu0 0.0
      %2906 = vmatmul.mubr.f32.gmra.mrb[0].mxu0 %v2764
      %v2907 = vpop.f32.mrb[0].mxu0
      %v2908 = vadd.f32 0.0, %v2907
      %v2909 = vpop.f32.mrb[0].mxu0
      %2910 = vmatprep.mubr.f32.mxu0 0.0
      %2911 = vmatmul.mubr.f32.gmra.mrb[0].mxu0 %v2766
      %v2912 = vpop.f32.mrb[0].mxu0
      %v2913 = vadd.f32 0.0, %v2912
      %v2914 = vpop.f32.mrb[0].mxu0
      %2915 = vdwg.mxu0
      %v2916 = vsel %vm225, %v2606, 0
      %v2918 = vsel %vm225, %v2607, 0
      %v2920 = vsel %vm225, %v2609, 0
      %v2922 = vsel %vm225, %v2610, 0
      %v2924 = vsel %vm225, %v2612, 0
      %v2926 = vsel %vm225, %v2613, 0
      %v2928 = vsel %vm225, %v2615, 0
      %v2930 = vsel %vm225, %v2616, 0
      %v2932 = vsel %vm225, %v2618, 0
      %v2934 = vsel %vm225, %v2619, 0
      %v2936 = vsel %vm225, %v2621, 0
      %v2938 = vsel %vm225, %v2622, 0
      %v2940 = vsel %vm225, %v2624, 0
      %v2942 = vsel %vm225, %v2625, 0
      %v2944 = vsel %vm225, %v2627, 0
      %v2946 = vsel %vm225, %v2628, 0
      %v2949 = vsel %vm547, %v2734, 0
      %2951 = vmatprep.subr.mxu0 0.0
      %2952 = vmatpush1.msra.mxu0 %v2949
      %2953 = vmatprep.subr.mxu0 0.0
      %2954 = vmatpush1.msra.mxu0 0.0
      %2955 = vmatprep.subr.mxu0 0.0
      %2956 = vmatpush1.msra.mxu0 0.0
      %2957 = vmatprep.subr.mxu0 0.0
      %2958 = vmatpush1.msra.mxu0 0.0
      %2959 = vmatprep.subr.mxu0 0.0
      %2960 = vmatpush1.msra.mxu0 0.0
      %2961 = vmatprep.subr.mxu0 0.0
      %2962 = vmatpush1.msra.mxu0 0.0
      %2963 = vmatprep.subr.mxu0 0.0
      %2964 = vmatpush1.msra.mxu0 0.0
      %2965 = vmatprep.subr.mxu0 0.0
      %2966 = vmatpush1.msra.mxu0 0.0
      %2967 = vmatprep.subr.mxu0 0.0
      %2968 = vmatpush1.msra.mxu0 0.0
      %2969 = vmatprep.subr.mxu0 0.0
      %2970 = vmatpush1.msra.mxu0 0.0
      %2971 = vmatprep.subr.mxu0 0.0
      %2972 = vmatpush1.msra.mxu0 0.0
      %2973 = vmatprep.subr.mxu0 0.0
      %2974 = vmatpush1.msra.mxu0 0.0
      %2975 = vmatprep.subr.mxu0 0.0
      %2976 = vmatpush1.msra.mxu0 0.0
      %2977 = vmatprep.subr.mxu0 0.0
      %2978 = vmatpush1.msra.mxu0 0.0
      %2979 = vmatprep.subr.mxu0 0.0
      %2980 = vmatpush1.msra.mxu0 0.0
      %2981 = vmatprep.subr.mxu0 0.0
      %2982 = vmatpush1.msra.mxu0 0.0
      %2983 = vmatprep.subr.mxu0 0.0
      %2984 = vmatpush1.msra.mxu0 0.0
      %2985 = vmatprep.subr.mxu0 0.0
      %2986 = vmatpush1.msra.mxu0 0.0
      %2987 = vmatprep.subr.mxu0 0.0
      %2988 = vmatpush1.msra.mxu0 0.0
      %2989 = vmatprep.subr.mxu0 0.0
      %2990 = vmatpush1.msra.mxu0 0.0
      %2991 = vmatprep.subr.mxu0 0.0
      %2992 = vmatpush1.msra.mxu0 0.0
      %2993 = vmatprep.subr.mxu0 0.0
      %2994 = vmatpush1.msra.mxu0 0.0
      %2995 = vmatprep.subr.mxu0 0.0
      %2996 = vmatpush1.msra.mxu0 0.0
      %2997 = vmatprep.subr.mxu0 0.0
      %2998 = vmatpush1.msra.mxu0 0.0
      %2999 = vmatprep.subr.mxu0 0.0
      %3000 = vmatpush1.msra.mxu0 0.0
      %3001 = vmatprep.subr.mxu0 0.0
      %3002 = vmatpush1.msra.mxu0 0.0
      %3003 = vmatprep.subr.mxu0 0.0
      %3004 = vmatpush1.msra.mxu0 0.0
      %3005 = vmatprep.subr.mxu0 0.0
      %3006 = vmatpush1.msra.mxu0 0.0
      %3007 = vmatprep.subr.mxu0 0.0
      %3008 = vmatpush1.msra.mxu0 0.0
      %3009 = vmatprep.subr.mxu0 0.0
      %3010 = vmatpush1.msra.mxu0 0.0
      %3011 = vmatprep.subr.mxu0 0.0
      %3012 = vmatpush1.msra.mxu0 0.0
      %3013 = vmatprep.subr.mxu0 0.0
      %3014 = vmatpush1.msra.mxu0 0.0
      %3015 = vmatprep.mubr.f32.mxu0 0.0
      %3016 = vmatmul.mubr.f32.gmra.mrb[0].mxu0 %v2916
      %v3017 = vpop.f32.mrb[0].mxu0
      %v3018 = vadd.f32 %v2838, %v3017
      %v3019 = vpop.f32.mrb[0].mxu0
      %3020 = vmatprep.mubr.f32.mxu0 0.0
      %3021 = vmatmul.mubr.f32.gmra.mrb[0].mxu0 %v2918
      %v3022 = vpop.f32.mrb[0].mxu0
      %v3023 = vadd.f32 %v2843, %v3022
      %v3024 = vpop.f32.mrb[0].mxu0
      %3025 = vmatprep.mubr.f32.mxu0 0.0
      %3026 = vmatmul.mubr.f32.gmra.mrb[0].mxu0 %v2920
      %v3027 = vpop.f32.mrb[0].mxu0
      %v3028 = vadd.f32 %v2848, %v3027
      %v3029 = vpop.f32.mrb[0].mxu0
      %3030 = vmatprep.mubr.f32.mxu0 0.0
      %3031 = vmatmul.mubr.f32.gmra.mrb[0].mxu0 %v2922
      %v3032 = vpop.f32.mrb[0].mxu0
      %v3033 = vadd.f32 %v2853, %v3032
      %v3034 = vpop.f32.mrb[0].mxu0
      %3035 = vmatprep.mubr.f32.mxu0 0.0
      %3036 = vmatmul.mubr.f32.gmra.mrb[0].mxu0 %v2924
      %v3037 = vpop.f32.mrb[0].mxu0
      %v3038 = vadd.f32 %v2858, %v3037
      %v3039 = vpop.f32.mrb[0].mxu0
      %3040 = vmatprep.mubr.f32.mxu0 0.0
      %3041 = vmatmul.mubr.f32.gmra.mrb[0].mxu0 %v2926
      %v3042 = vpop.f32.mrb[0].mxu0
      %v3043 = vadd.f32 %v2863, %v3042
      %v3044 = vpop.f32.mrb[0].mxu0
      %3045 = vmatprep.mubr.f32.mxu0 0.0
      %3046 = vmatmul.mubr.f32.gmra.mrb[0].mxu0 %v2928
      %v3047 = vpop.f32.mrb[0].mxu0
      %v3048 = vadd.f32 %v2868, %v3047
      %v3049 = vpop.f32.mrb[0].mxu0
      %3050 = vmatprep.mubr.f32.mxu0 0.0
      %3051 = vmatmul.mubr.f32.gmra.mrb[0].mxu0 %v2930
      %v3052 = vpop.f32.mrb[0].mxu0
      %v3053 = vadd.f32 %v2873, %v3052
      %v3054 = vpop.f32.mrb[0].mxu0
      %3055 = vmatprep.mubr.f32.mxu0 0.0
      %3056 = vmatmul.mubr.f32.gmra.mrb[0].mxu0 %v2932
      %v3057 = vpop.f32.mrb[0].mxu0
      %v3058 = vadd.f32 %v2878, %v3057
      %v3059 = vpop.f32.mrb[0].mxu0
      %3060 = vmatprep.mubr.f32.mxu0 0.0
      %3061 = vmatmul.mubr.f32.gmra.mrb[0].mxu0 %v2934
      %v3062 = vpop.f32.mrb[0].mxu0
      %v3063 = vadd.f32 %v2883, %v3062
      %v3064 = vpop.f32.mrb[0].mxu0
      %3065 = vmatprep.mubr.f32.mxu0 0.0
      %3066 = vmatmul.mubr.f32.gmra.mrb[0].mxu0 %v2936
      %v3067 = vpop.f32.mrb[0].mxu0
      %v3068 = vadd.f32 %v2888, %v3067
      %v3069 = vpop.f32.mrb[0].mxu0
      %3070 = vmatprep.mubr.f32.mxu0 0.0
      %3071 = vmatmul.mubr.f32.gmra.mrb[0].mxu0 %v2938
      %v3072 = vpop.f32.mrb[0].mxu0
      %v3073 = vadd.f32 %v2893, %v3072
      %v3074 = vpop.f32.mrb[0].mxu0
      %3075 = vmatprep.mubr.f32.mxu0 0.0
      %3076 = vmatmul.mubr.f32.gmra.mrb[0].mxu0 %v2940
      %v3077 = vpop.f32.mrb[0].mxu0
      %v3078 = vadd.f32 %v2898, %v3077
      %v3079 = vpop.f32.mrb[0].mxu0
      %3080 = vmatprep.mubr.f32.mxu0 0.0
      %3081 = vmatmul.mubr.f32.gmra.mrb[0].mxu0 %v2942
      %v3082 = vpop.f32.mrb[0].mxu0
      %v3083 = vadd.f32 %v2903, %v3082
      %v3084 = vpop.f32.mrb[0].mxu0
      %3085 = vmatprep.mubr.f32.mxu0 0.0
      %3086 = vmatmul.mubr.f32.gmra.mrb[0].mxu0 %v2944
      %v3087 = vpop.f32.mrb[0].mxu0
      %v3088 = vadd.f32 %v2908, %v3087
      %v3089 = vpop.f32.mrb[0].mxu0
      %3090 = vmatprep.mubr.f32.mxu0 0.0
      %3091 = vmatmul.mubr.f32.gmra.mrb[0].mxu0 %v2946
      %v3092 = vpop.f32.mrb[0].mxu0
      %v3093 = vadd.f32 %v2913, %v3092
      %v3094 = vpop.f32.mrb[0].mxu0
      %3095 = vdwg.mxu0
      %v3096 = vld [vmem:[%s1 + $0x8] sm:$0xf]
      %v3097 = vsel %vm225, %v2696, 0
      %v3099 = vsel %vm225, %v2698, 0
      %v3101 = vsel %vm225, %v2701, 0
      %v3103 = vsel %vm225, %v2703, 0
      %v3105 = vsel %vm225, %v2706, 0
      %v3107 = vsel %vm225, %v2708, 0
      %v3109 = vsel %vm225, %v2711, 0
      %v3111 = vsel %vm225, %v2713, 0
      %v3113 = vsel %vm225, %v2716, 0
      %v3115 = vsel %vm225, %v2718, 0
      %v3117 = vsel %vm225, %v2721, 0
      %v3119 = vsel %vm225, %v2723, 0
      %v3121 = vsel %vm225, %v2726, 0
      %v3123 = vsel %vm225, %v2728, 0
      %v3125 = vsel %vm225, %v2731, 0
      %v3127 = vsel %vm225, %v2733, 0
      %v3130 = vsel %vm547, %v3096, 0
      %3132 = vmatprep.subr.mxu0 0.0
      %3133 = vmatpush1.msra.mxu0 %v3130
      %3134 = vmatprep.subr.mxu0 0.0
      %3135 = vmatpush1.msra.mxu0 0.0
      %3136 = vmatprep.subr.mxu0 0.0
      %3137 = vmatpush1.msra.mxu0 0.0
      %3138 = vmatprep.subr.mxu0 0.0
      %3139 = vmatpush1.msra.mxu0 0.0
      %3140 = vmatprep.subr.mxu0 0.0
      %3141 = vmatpush1.msra.mxu0 0.0
      %3142 = vmatprep.subr.mxu0 0.0
      %3143 = vmatpush1.msra.mxu0 0.0
      %3144 = vmatprep.subr.mxu0 0.0
      %3145 = vmatpush1.msra.mxu0 0.0
      %3146 = vmatprep.subr.mxu0 0.0
      %3147 = vmatpush1.msra.mxu0 0.0
      %3148 = vmatprep.subr.mxu0 0.0
      %3149 = vmatpush1.msra.mxu0 0.0
      %3150 = vmatprep.subr.mxu0 0.0
      %3151 = vmatpush1.msra.mxu0 0.0
      %3152 = vmatprep.subr.mxu0 0.0
      %3153 = vmatpush1.msra.mxu0 0.0
      %3154 = vmatprep.subr.mxu0 0.0
      %3155 = vmatpush1.msra.mxu0 0.0
      %3156 = vmatprep.subr.mxu0 0.0
      %3157 = vmatpush1.msra.mxu0 0.0
      %3158 = vmatprep.subr.mxu0 0.0
      %3159 = vmatpush1.msra.mxu0 0.0
      %3160 = vmatprep.subr.mxu0 0.0
      %3161 = vmatpush1.msra.mxu0 0.0
      %3162 = vmatprep.subr.mxu0 0.0
      %3163 = vmatpush1.msra.mxu0 0.0
      %3164 = vmatprep.subr.mxu0 0.0
      %3165 = vmatpush1.msra.mxu0 0.0
      %3166 = vmatprep.subr.mxu0 0.0
      %3167 = vmatpush1.msra.mxu0 0.0
      %3168 = vmatprep.subr.mxu0 0.0
      %3169 = vmatpush1.msra.mxu0 0.0
      %3170 = vmatprep.subr.mxu0 0.0
      %3171 = vmatpush1.msra.mxu0 0.0
      %3172 = vmatprep.subr.mxu0 0.0
      %3173 = vmatpush1.msra.mxu0 0.0
      %3174 = vmatprep.subr.mxu0 0.0
      %3175 = vmatpush1.msra.mxu0 0.0
      %3176 = vmatprep.subr.mxu0 0.0
      %3177 = vmatpush1.msra.mxu0 0.0
      %3178 = vmatprep.subr.mxu0 0.0
      %3179 = vmatpush1.msra.mxu0 0.0
      %3180 = vmatprep.subr.mxu0 0.0
      %3181 = vmatpush1.msra.mxu0 0.0
      %3182 = vmatprep.subr.mxu0 0.0
      %3183 = vmatpush1.msra.mxu0 0.0
      %3184 = vmatprep.subr.mxu0 0.0
      %3185 = vmatpush1.msra.mxu0 0.0
      %3186 = vmatprep.subr.mxu0 0.0
      %3187 = vmatpush1.msra.mxu0 0.0
      %3188 = vmatprep.subr.mxu0 0.0
      %3189 = vmatpush1.msra.mxu0 0.0
      %3190 = vmatprep.subr.mxu0 0.0
      %3191 = vmatpush1.msra.mxu0 0.0
      %3192 = vmatprep.subr.mxu0 0.0
      %3193 = vmatpush1.msra.mxu0 0.0
      %3194 = vmatprep.subr.mxu0 0.0
      %3195 = vmatpush1.msra.mxu0 0.0
      %3196 = vmatprep.mubr.f32.mxu0 0.0
      %3197 = vmatmul.mubr.f32.gmra.mrb[0].mxu0 %v3097
      %v3198 = vpop.f32.mrb[0].mxu0
      %v3199 = vadd.f32 0.0, %v3198
      %v3200 = vpop.f32.mrb[0].mxu0
      %3201 = vmatprep.mubr.f32.mxu0 0.0
      %3202 = vmatmul.mubr.f32.gmra.mrb[0].mxu0 %v3099
      %v3203 = vpop.f32.mrb[0].mxu0
      %v3204 = vadd.f32 0.0, %v3203
      %v3205 = vpop.f32.mrb[0].mxu0
      %3206 = vmatprep.mubr.f32.mxu0 0.0
      %3207 = vmatmul.mubr.f32.gmra.mrb[0].mxu0 %v3101
      %v3208 = vpop.f32.mrb[0].mxu0
      %v3209 = vadd.f32 0.0, %v3208
      %v3210 = vpop.f32.mrb[0].mxu0
      %3211 = vmatprep.mubr.f32.mxu0 0.0
      %3212 = vmatmul.mubr.f32.gmra.mrb[0].mxu0 %v3103
      %v3213 = vpop.f32.mrb[0].mxu0
      %v3214 = vadd.f32 0.0, %v3213
      %v3215 = vpop.f32.mrb[0].mxu0
      %3216 = vmatprep.mubr.f32.mxu0 0.0
      %3217 = vmatmul.mubr.f32.gmra.mrb[0].mxu0 %v3105
      %v3218 = vpop.f32.mrb[0].mxu0
      %v3219 = vadd.f32 0.0, %v3218
      %v3220 = vpop.f32.mrb[0].mxu0
      %3221 = vmatprep.mubr.f32.mxu0 0.0
      %3222 = vmatmul.mubr.f32.gmra.mrb[0].mxu0 %v3107
      %v3223 = vpop.f32.mrb[0].mxu0
      %v3224 = vadd.f32 0.0, %v3223
      %v3225 = vpop.f32.mrb[0].mxu0
      %3226 = vmatprep.mubr.f32.mxu0 0.0
      %3227 = vmatmul.mubr.f32.gmra.mrb[0].mxu0 %v3109
      %v3228 = vpop.f32.mrb[0].mxu0
      %v3229 = vadd.f32 0.0, %v3228
      %v3230 = vpop.f32.mrb[0].mxu0
      %3231 = vmatprep.mubr.f32.mxu0 0.0
      %3232 = vmatmul.mubr.f32.gmra.mrb[0].mxu0 %v3111
      %v3233 = vpop.f32.mrb[0].mxu0
      %v3234 = vadd.f32 0.0, %v3233
      %v3235 = vpop.f32.mrb[0].mxu0
      %3236 = vmatprep.mubr.f32.mxu0 0.0
      %3237 = vmatmul.mubr.f32.gmra.mrb[0].mxu0 %v3113
      %v3238 = vpop.f32.mrb[0].mxu0
      %v3239 = vadd.f32 0.0, %v3238
      %v3240 = vpop.f32.mrb[0].mxu0
      %3241 = vmatprep.mubr.f32.mxu0 0.0
      %3242 = vmatmul.mubr.f32.gmra.mrb[0].mxu0 %v3115
      %v3243 = vpop.f32.mrb[0].mxu0
      %v3244 = vadd.f32 0.0, %v3243
      %v3245 = vpop.f32.mrb[0].mxu0
      %3246 = vmatprep.mubr.f32.mxu0 0.0
      %3247 = vmatmul.mubr.f32.gmra.mrb[0].mxu0 %v3117
      %v3248 = vpop.f32.mrb[0].mxu0
      %v3249 = vadd.f32 0.0, %v3248
      %v3250 = vpop.f32.mrb[0].mxu0
      %3251 = vmatprep.mubr.f32.mxu0 0.0
      %3252 = vmatmul.mubr.f32.gmra.mrb[0].mxu0 %v3119
      %v3253 = vpop.f32.mrb[0].mxu0
      %v3254 = vadd.f32 0.0, %v3253
      %v3255 = vpop.f32.mrb[0].mxu0
      %3256 = vmatprep.mubr.f32.mxu0 0.0
      %3257 = vmatmul.mubr.f32.gmra.mrb[0].mxu0 %v3121
      %v3258 = vpop.f32.mrb[0].mxu0
      %v3259 = vadd.f32 0.0, %v3258
      %v3260 = vpop.f32.mrb[0].mxu0
      %3261 = vmatprep.mubr.f32.mxu0 0.0
      %3262 = vmatmul.mubr.f32.gmra.mrb[0].mxu0 %v3123
      %v3263 = vpop.f32.mrb[0].mxu0
      %v3264 = vadd.f32 0.0, %v3263
      %v3265 = vpop.f32.mrb[0].mxu0
      %3266 = vmatprep.mubr.f32.mxu0 0.0
      %3267 = vmatmul.mubr.f32.gmra.mrb[0].mxu0 %v3125
      %v3268 = vpop.f32.mrb[0].mxu0
      %v3269 = vadd.f32 0.0, %v3268
      %v3270 = vpop.f32.mrb[0].mxu0
      %3271 = vmatprep.mubr.f32.mxu0 0.0
      %3272 = vmatmul.mubr.f32.gmra.mrb[0].mxu0 %v3127
      %v3273 = vpop.f32.mrb[0].mxu0
      %v3274 = vadd.f32 0.0, %v3273
      %v3275 = vpop.f32.mrb[0].mxu0
      %3276 = vdwg.mxu0
      %v3277 = vadd.f32 %v3018, %v3199
      %v3278 = vadd.f32 %v3023, %v3204
      %v3279 = vadd.f32 %v3028, %v3209
      %v3280 = vadd.f32 %v3033, %v3214
      %v3281 = vadd.f32 %v3038, %v3219
      %v3282 = vadd.f32 %v3043, %v3224
      %v3283 = vadd.f32 %v3048, %v3229
      %v3284 = vadd.f32 %v3053, %v3234
      %v3285 = vadd.f32 %v3058, %v3239
      %v3286 = vadd.f32 %v3063, %v3244
      %v3287 = vadd.f32 %v3068, %v3249
      %v3288 = vadd.f32 %v3073, %v3254
      %v3289 = vadd.f32 %v3078, %v3259
      %v3290 = vadd.f32 %v3083, %v3264
      %v3291 = vadd.f32 %v3088, %v3269
      %v3292 = vadd.f32 %v3093, %v3274
      %s3293 = sadd.s32 8, 1
      %s3294 = smul.u32 %s3293, 24
      %s3295 = scalar_lea.vmem [#allocation2], %s3294
      %v3296 = vld [vmem:[%s3295] sm:$0xff]
      %v3297 = vld [vmem:[%s3295 + $0x8] sm:$0xff]
      %v3298 = vld [vmem:[%s3295 + $0x10] sm:$0x3]
      %v3299 = vld [vmem:[%s3295 + $0x18] sm:$0xff]
      %v3300 = vld [vmem:[%s3295 + $0x20] sm:$0xff]
      %v3301 = vld [vmem:[%s3295 + $0x28] sm:$0x3]
      %v3302 = vld [vmem:[%s3295 + $0x30] sm:$0xff]
      %v3303 = vld [vmem:[%s3295 + $0x38] sm:$0xff]
      %v3304 = vld [vmem:[%s3295 + $0x40] sm:$0x3]
      %v3305 = vld [vmem:[%s3295 + $0x48] sm:$0xff]
      %v3306 = vld [vmem:[%s3295 + $0x50] sm:$0xff]
      %v3307 = vld [vmem:[%s3295 + $0x58] sm:$0x3]
      %v3308 = vld [vmem:[%s3295 + $0x60] sm:$0xff]
      %v3309 = vld [vmem:[%s3295 + $0x68] sm:$0xff]
      %v3310 = vld [vmem:[%s3295 + $0x70] sm:$0x3]
      %v3311 = vld [vmem:[%s3295 + $0x78] sm:$0xff]
      %v3312 = vld [vmem:[%s3295 + $0x80] sm:$0xff]
      %v3313 = vld [vmem:[%s3295 + $0x88] sm:$0x3]
      %v3314 = vld [vmem:[%s3295 + $0x90] sm:$0xff]
      %v3315 = vld [vmem:[%s3295 + $0x98] sm:$0xff]
      %v3316 = vld [vmem:[%s3295 + $0xa0] sm:$0x3]
      %v3317 = vld [vmem:[%s3295 + $0xa8] sm:$0xff]
      %v3318 = vld [vmem:[%s3295 + $0xb0] sm:$0xff]
      %v3319 = vld [vmem:[%s3295 + $0xb8] sm:$0x3]
      %v3344 = vrot.slane %v3296, 1
      %v3345 = vrot.slane %v3297, 1
      %v3346 = vsel %vm431, %v3344, %v3345
      %v3347 = vrot.slane %v3298, 1
      %v3348 = vsel %vm431, %v3345, %v3347
      %v3349 = vrot.slane %v3299, 1
      %v3350 = vrot.slane %v3300, 1
      %v3351 = vsel %vm431, %v3349, %v3350
      %v3352 = vrot.slane %v3301, 1
      %v3353 = vsel %vm431, %v3350, %v3352
      %v3354 = vrot.slane %v3302, 1
      %v3355 = vrot.slane %v3303, 1
      %v3356 = vsel %vm431, %v3354, %v3355
      %v3357 = vrot.slane %v3304, 1
      %v3358 = vsel %vm431, %v3355, %v3357
      %v3359 = vrot.slane %v3305, 1
      %v3360 = vrot.slane %v3306, 1
      %v3361 = vsel %vm431, %v3359, %v3360
      %v3362 = vrot.slane %v3307, 1
      %v3363 = vsel %vm431, %v3360, %v3362
      %v3364 = vrot.slane %v3308, 1
      %v3365 = vrot.slane %v3309, 1
      %v3366 = vsel %vm431, %v3364, %v3365
      %v3367 = vrot.slane %v3310, 1
      %v3368 = vsel %vm431, %v3365, %v3367
      %v3369 = vrot.slane %v3311, 1
      %v3370 = vrot.slane %v3312, 1
      %v3371 = vsel %vm431, %v3369, %v3370
      %v3372 = vrot.slane %v3313, 1
      %v3373 = vsel %vm431, %v3370, %v3372
      %v3374 = vrot.slane %v3314, 1
      %v3375 = vrot.slane %v3315, 1
      %v3376 = vsel %vm431, %v3374, %v3375
      %v3377 = vrot.slane %v3316, 1
      %v3378 = vsel %vm431, %v3375, %v3377
      %v3379 = vrot.slane %v3317, 1
      %v3380 = vrot.slane %v3318, 1
      %v3381 = vsel %vm431, %v3379, %v3380
      %v3382 = vrot.slane %v3319, 1
      %v3383 = vsel %vm431, %v3380, %v3382
      %v3384 = vrot.slane %v3296, 2
      %v3385 = vrot.slane %v3297, 2
      %v3386 = vsel %vm472, %v3384, %v3385
      %v3387 = vrot.slane %v3298, 2
      %v3388 = vsel %vm472, %v3385, %v3387
      %v3389 = vrot.slane %v3299, 2
      %v3390 = vrot.slane %v3300, 2
      %v3391 = vsel %vm472, %v3389, %v3390
      %v3392 = vrot.slane %v3301, 2
      %v3393 = vsel %vm472, %v3390, %v3392
      %v3394 = vrot.slane %v3302, 2
      %v3395 = vrot.slane %v3303, 2
      %v3396 = vsel %vm472, %v3394, %v3395
      %v3397 = vrot.slane %v3304, 2
      %v3398 = vsel %vm472, %v3395, %v3397
      %v3399 = vrot.slane %v3305, 2
      %v3400 = vrot.slane %v3306, 2
      %v3401 = vsel %vm472, %v3399, %v3400
      %v3402 = vrot.slane %v3307, 2
      %v3403 = vsel %vm472, %v3400, %v3402
      %v3404 = vrot.slane %v3308, 2
      %v3405 = vrot.slane %v3309, 2
      %v3406 = vsel %vm472, %v3404, %v3405
      %v3407 = vrot.slane %v3310, 2
      %v3408 = vsel %vm472, %v3405, %v3407
      %v3409 = vrot.slane %v3311, 2
      %v3410 = vrot.slane %v3312, 2
      %v3411 = vsel %vm472, %v3409, %v3410
      %v3412 = vrot.slane %v3313, 2
      %v3413 = vsel %vm472, %v3410, %v3412
      %v3414 = vrot.slane %v3314, 2
      %v3415 = vrot.slane %v3315, 2
      %v3416 = vsel %vm472, %v3414, %v3415
      %v3417 = vrot.slane %v3316, 2
      %v3418 = vsel %vm472, %v3415, %v3417
      %v3419 = vrot.slane %v3317, 2
      %v3420 = vrot.slane %v3318, 2
      %v3421 = vsel %vm472, %v3419, %v3420
      %v3422 = vrot.slane %v3319, 2
      %v3423 = vsel %vm472, %v3420, %v3422
      %v3424 = vld [vmem:[%s1 + $0xc] sm:$0xf]
      %v3425 = vsel %vm225, %v3296, 0
      %v3427 = vsel %vm225, %v3297, 0
      %v3429 = vsel %vm225, %v3299, 0
      %v3431 = vsel %vm225, %v3300, 0
      %v3433 = vsel %vm225, %v3302, 0
      %v3435 = vsel %vm225, %v3303, 0
      %v3437 = vsel %vm225, %v3305, 0
      %v3439 = vsel %vm225, %v3306, 0
      %v3441 = vsel %vm225, %v3308, 0
      %v3443 = vsel %vm225, %v3309, 0
      %v3445 = vsel %vm225, %v3311, 0
      %v3447 = vsel %vm225, %v3312, 0
      %v3449 = vsel %vm225, %v3314, 0
      %v3451 = vsel %vm225, %v3315, 0
      %v3453 = vsel %vm225, %v3317, 0
      %v3455 = vsel %vm225, %v3318, 0
      %v3458 = vsel %vm547, %v3424, 0
      %3460 = vmatprep.subr.mxu0 0.0
      %3461 = vmatpush1.msra.mxu0 %v3458
      %3462 = vmatprep.subr.mxu0 0.0
      %3463 = vmatpush1.msra.mxu0 0.0
      %3464 = vmatprep.subr.mxu0 0.0
      %3465 = vmatpush1.msra.mxu0 0.0
      %3466 = vmatprep.subr.mxu0 0.0
      %3467 = vmatpush1.msra.mxu0 0.0
      %3468 = vmatprep.subr.mxu0 0.0
      %3469 = vmatpush1.msra.mxu0 0.0
      %3470 = vmatprep.subr.mxu0 0.0
      %3471 = vmatpush1.msra.mxu0 0.0
      %3472 = vmatprep.subr.mxu0 0.0
      %3473 = vmatpush1.msra.mxu0 0.0
      %3474 = vmatprep.subr.mxu0 0.0
      %3475 = vmatpush1.msra.mxu0 0.0
      %3476 = vmatprep.subr.mxu0 0.0
      %3477 = vmatpush1.msra.mxu0 0.0
      %3478 = vmatprep.subr.mxu0 0.0
      %3479 = vmatpush1.msra.mxu0 0.0
      %3480 = vmatprep.subr.mxu0 0.0
      %3481 = vmatpush1.msra.mxu0 0.0
      %3482 = vmatprep.subr.mxu0 0.0
      %3483 = vmatpush1.msra.mxu0 0.0
      %3484 = vmatprep.subr.mxu0 0.0
      %3485 = vmatpush1.msra.mxu0 0.0
      %3486 = vmatprep.subr.mxu0 0.0
      %3487 = vmatpush1.msra.mxu0 0.0
      %3488 = vmatprep.subr.mxu0 0.0
      %3489 = vmatpush1.msra.mxu0 0.0
      %3490 = vmatprep.subr.mxu0 0.0
      %3491 = vmatpush1.msra.mxu0 0.0
      %3492 = vmatprep.subr.mxu0 0.0
      %3493 = vmatpush1.msra.mxu0 0.0
      %3494 = vmatprep.subr.mxu0 0.0
      %3495 = vmatpush1.msra.mxu0 0.0
      %3496 = vmatprep.subr.mxu0 0.0
      %3497 = vmatpush1.msra.mxu0 0.0
      %3498 = vmatprep.subr.mxu0 0.0
      %3499 = vmatpush1.msra.mxu0 0.0
      %3500 = vmatprep.subr.mxu0 0.0
      %3501 = vmatpush1.msra.mxu0 0.0
      %3502 = vmatprep.subr.mxu0 0.0
      %3503 = vmatpush1.msra.mxu0 0.0
      %3504 = vmatprep.subr.mxu0 0.0
      %3505 = vmatpush1.msra.mxu0 0.0
      %3506 = vmatprep.subr.mxu0 0.0
      %3507 = vmatpush1.msra.mxu0 0.0
      %3508 = vmatprep.subr.mxu0 0.0
      %3509 = vmatpush1.msra.mxu0 0.0
      %3510 = vmatprep.subr.mxu0 0.0
      %3511 = vmatpush1.msra.mxu0 0.0
      %3512 = vmatprep.subr.mxu0 0.0
      %3513 = vmatpush1.msra.mxu0 0.0
      %3514 = vmatprep.subr.mxu0 0.0
      %3515 = vmatpush1.msra.mxu0 0.0
      %3516 = vmatprep.subr.mxu0 0.0
      %3517 = vmatpush1.msra.mxu0 0.0
      %3518 = vmatprep.subr.mxu0 0.0
      %3519 = vmatpush1.msra.mxu0 0.0
      %3520 = vmatprep.subr.mxu0 0.0
      %3521 = vmatpush1.msra.mxu0 0.0
      %3522 = vmatprep.subr.mxu0 0.0
      %3523 = vmatpush1.msra.mxu0 0.0
      %3524 = vmatprep.mubr.f32.mxu0 0.0
      %3525 = vmatmul.mubr.f32.gmra.mrb[0].mxu0 %v3425
      %v3526 = vpop.f32.mrb[0].mxu0
      %v3527 = vadd.f32 0.0, %v3526
      %v3528 = vpop.f32.mrb[0].mxu0
      %3529 = vmatprep.mubr.f32.mxu0 0.0
      %3530 = vmatmul.mubr.f32.gmra.mrb[0].mxu0 %v3427
      %v3531 = vpop.f32.mrb[0].mxu0
      %v3532 = vadd.f32 0.0, %v3531
      %v3533 = vpop.f32.mrb[0].mxu0
      %3534 = vmatprep.mubr.f32.mxu0 0.0
      %3535 = vmatmul.mubr.f32.gmra.mrb[0].mxu0 %v3429
      %v3536 = vpop.f32.mrb[0].mxu0
      %v3537 = vadd.f32 0.0, %v3536
      %v3538 = vpop.f32.mrb[0].mxu0
      %3539 = vmatprep.mubr.f32.mxu0 0.0
      %3540 = vmatmul.mubr.f32.gmra.mrb[0].mxu0 %v3431
      %v3541 = vpop.f32.mrb[0].mxu0
      %v3542 = vadd.f32 0.0, %v3541
      %v3543 = vpop.f32.mrb[0].mxu0
      %3544 = vmatprep.mubr.f32.mxu0 0.0
      %3545 = vmatmul.mubr.f32.gmra.mrb[0].mxu0 %v3433
      %v3546 = vpop.f32.mrb[0].mxu0
      %v3547 = vadd.f32 0.0, %v3546
      %v3548 = vpop.f32.mrb[0].mxu0
      %3549 = vmatprep.mubr.f32.mxu0 0.0
      %3550 = vmatmul.mubr.f32.gmra.mrb[0].mxu0 %v3435
      %v3551 = vpop.f32.mrb[0].mxu0
      %v3552 = vadd.f32 0.0, %v3551
      %v3553 = vpop.f32.mrb[0].mxu0
      %3554 = vmatprep.mubr.f32.mxu0 0.0
      %3555 = vmatmul.mubr.f32.gmra.mrb[0].mxu0 %v3437
      %v3556 = vpop.f32.mrb[0].mxu0
      %v3557 = vadd.f32 0.0, %v3556
      %v3558 = vpop.f32.mrb[0].mxu0
      %3559 = vmatprep.mubr.f32.mxu0 0.0
      %3560 = vmatmul.mubr.f32.gmra.mrb[0].mxu0 %v3439
      %v3561 = vpop.f32.mrb[0].mxu0
      %v3562 = vadd.f32 0.0, %v3561
      %v3563 = vpop.f32.mrb[0].mxu0
      %3564 = vmatprep.mubr.f32.mxu0 0.0
      %3565 = vmatmul.mubr.f32.gmra.mrb[0].mxu0 %v3441
      %v3566 = vpop.f32.mrb[0].mxu0
      %v3567 = vadd.f32 0.0, %v3566
      %v3568 = vpop.f32.mrb[0].mxu0
      %3569 = vmatprep.mubr.f32.mxu0 0.0
      %3570 = vmatmul.mubr.f32.gmra.mrb[0].mxu0 %v3443
      %v3571 = vpop.f32.mrb[0].mxu0
      %v3572 = vadd.f32 0.0, %v3571
      %v3573 = vpop.f32.mrb[0].mxu0
      %3574 = vmatprep.mubr.f32.mxu0 0.0
      %3575 = vmatmul.mubr.f32.gmra.mrb[0].mxu0 %v3445
      %v3576 = vpop.f32.mrb[0].mxu0
      %v3577 = vadd.f32 0.0, %v3576
      %v3578 = vpop.f32.mrb[0].mxu0
      %3579 = vmatprep.mubr.f32.mxu0 0.0
      %3580 = vmatmul.mubr.f32.gmra.mrb[0].mxu0 %v3447
      %v3581 = vpop.f32.mrb[0].mxu0
      %v3582 = vadd.f32 0.0, %v3581
      %v3583 = vpop.f32.mrb[0].mxu0
      %3584 = vmatprep.mubr.f32.mxu0 0.0
      %3585 = vmatmul.mubr.f32.gmra.mrb[0].mxu0 %v3449
      %v3586 = vpop.f32.mrb[0].mxu0
      %v3587 = vadd.f32 0.0, %v3586
      %v3588 = vpop.f32.mrb[0].mxu0
      %3589 = vmatprep.mubr.f32.mxu0 0.0
      %3590 = vmatmul.mubr.f32.gmra.mrb[0].mxu0 %v3451
      %v3591 = vpop.f32.mrb[0].mxu0
      %v3592 = vadd.f32 0.0, %v3591
      %v3593 = vpop.f32.mrb[0].mxu0
      %3594 = vmatprep.mubr.f32.mxu0 0.0
      %3595 = vmatmul.mubr.f32.gmra.mrb[0].mxu0 %v3453
      %v3596 = vpop.f32.mrb[0].mxu0
      %v3597 = vadd.f32 0.0, %v3596
      %v3598 = vpop.f32.mrb[0].mxu0
      %3599 = vmatprep.mubr.f32.mxu0 0.0
      %3600 = vmatmul.mubr.f32.gmra.mrb[0].mxu0 %v3455
      %v3601 = vpop.f32.mrb[0].mxu0
      %v3602 = vadd.f32 0.0, %v3601
      %v3603 = vpop.f32.mrb[0].mxu0
      %3604 = vdwg.mxu0
      %v3605 = vadd.f32 %v3277, %v3527
      %v3606 = vadd.f32 %v3278, %v3532
      %v3607 = vadd.f32 %v3279, %v3537
      %v3608 = vadd.f32 %v3280, %v3542
      %v3609 = vadd.f32 %v3281, %v3547
      %v3610 = vadd.f32 %v3282, %v3552
      %v3611 = vadd.f32 %v3283, %v3557
      %v3612 = vadd.f32 %v3284, %v3562
      %v3613 = vadd.f32 %v3285, %v3567
      %v3614 = vadd.f32 %v3286, %v3572
      %v3615 = vadd.f32 %v3287, %v3577
      %v3616 = vadd.f32 %v3288, %v3582
      %v3617 = vadd.f32 %v3289, %v3587
      %v3618 = vadd.f32 %v3290, %v3592
      %v3619 = vadd.f32 %v3291, %v3597
      %v3620 = vadd.f32 %v3292, %v3602
      %v3621 = vld [vmem:[%s1 + $0x10] sm:$0xf]
      %v3622 = vsel %vm225, %v3346, 0
      %v3624 = vsel %vm225, %v3348, 0
      %v3626 = vsel %vm225, %v3351, 0
      %v3628 = vsel %vm225, %v3353, 0
      %v3630 = vsel %vm225, %v3356, 0
      %v3632 = vsel %vm225, %v3358, 0
      %v3634 = vsel %vm225, %v3361, 0
      %v3636 = vsel %vm225, %v3363, 0
      %v3638 = vsel %vm225, %v3366, 0
      %v3640 = vsel %vm225, %v3368, 0
      %v3642 = vsel %vm225, %v3371, 0
      %v3644 = vsel %vm225, %v3373, 0
      %v3646 = vsel %vm225, %v3376, 0
      %v3648 = vsel %vm225, %v3378, 0
      %v3650 = vsel %vm225, %v3381, 0
      %v3652 = vsel %vm225, %v3383, 0
      %v3655 = vsel %vm547, %v3621, 0
      %3657 = vmatprep.subr.mxu0 0.0
      %3658 = vmatpush1.msra.mxu0 %v3655
      %3659 = vmatprep.subr.mxu0 0.0
      %3660 = vmatpush1.msra.mxu0 0.0
      %3661 = vmatprep.subr.mxu0 0.0
      %3662 = vmatpush1.msra.mxu0 0.0
      %3663 = vmatprep.subr.mxu0 0.0
      %3664 = vmatpush1.msra.mxu0 0.0
      %3665 = vmatprep.subr.mxu0 0.0
      %3666 = vmatpush1.msra.mxu0 0.0
      %3667 = vmatprep.subr.mxu0 0.0
      %3668 = vmatpush1.msra.mxu0 0.0
      %3669 = vmatprep.subr.mxu0 0.0
      %3670 = vmatpush1.msra.mxu0 0.0
      %3671 = vmatprep.subr.mxu0 0.0
      %3672 = vmatpush1.msra.mxu0 0.0
      %3673 = vmatprep.subr.mxu0 0.0
      %3674 = vmatpush1.msra.mxu0 0.0
      %3675 = vmatprep.subr.mxu0 0.0
      %3676 = vmatpush1.msra.mxu0 0.0
      %3677 = vmatprep.subr.mxu0 0.0
      %3678 = vmatpush1.msra.mxu0 0.0
      %3679 = vmatprep.subr.mxu0 0.0
      %3680 = vmatpush1.msra.mxu0 0.0
      %3681 = vmatprep.subr.mxu0 0.0
      %3682 = vmatpush1.msra.mxu0 0.0
      %3683 = vmatprep.subr.mxu0 0.0
      %3684 = vmatpush1.msra.mxu0 0.0
      %3685 = vmatprep.subr.mxu0 0.0
      %3686 = vmatpush1.msra.mxu0 0.0
      %3687 = vmatprep.subr.mxu0 0.0
      %3688 = vmatpush1.msra.mxu0 0.0
      %3689 = vmatprep.subr.mxu0 0.0
      %3690 = vmatpush1.msra.mxu0 0.0
      %3691 = vmatprep.subr.mxu0 0.0
      %3692 = vmatpush1.msra.mxu0 0.0
      %3693 = vmatprep.subr.mxu0 0.0
      %3694 = vmatpush1.msra.mxu0 0.0
      %3695 = vmatprep.subr.mxu0 0.0
      %3696 = vmatpush1.msra.mxu0 0.0
      %3697 = vmatprep.subr.mxu0 0.0
      %3698 = vmatpush1.msra.mxu0 0.0
      %3699 = vmatprep.subr.mxu0 0.0
      %3700 = vmatpush1.msra.mxu0 0.0
      %3701 = vmatprep.subr.mxu0 0.0
      %3702 = vmatpush1.msra.mxu0 0.0
      %3703 = vmatprep.subr.mxu0 0.0
      %3704 = vmatpush1.msra.mxu0 0.0
      %3705 = vmatprep.subr.mxu0 0.0
      %3706 = vmatpush1.msra.mxu0 0.0
      %3707 = vmatprep.subr.mxu0 0.0
      %3708 = vmatpush1.msra.mxu0 0.0
      %3709 = vmatprep.subr.mxu0 0.0
      %3710 = vmatpush1.msra.mxu0 0.0
      %3711 = vmatprep.subr.mxu0 0.0
      %3712 = vmatpush1.msra.mxu0 0.0
      %3713 = vmatprep.subr.mxu0 0.0
      %3714 = vmatpush1.msra.mxu0 0.0
      %3715 = vmatprep.subr.mxu0 0.0
      %3716 = vmatpush1.msra.mxu0 0.0
      %3717 = vmatprep.subr.mxu0 0.0
      %3718 = vmatpush1.msra.mxu0 0.0
      %3719 = vmatprep.subr.mxu0 0.0
      %3720 = vmatpush1.msra.mxu0 0.0
      %3721 = vmatprep.mubr.f32.mxu0 0.0
      %3722 = vmatmul.mubr.f32.gmra.mrb[0].mxu0 %v3622
      %v3723 = vpop.f32.mrb[0].mxu0
      %v3724 = vadd.f32 0.0, %v3723
      %v3725 = vpop.f32.mrb[0].mxu0
      %3726 = vmatprep.mubr.f32.mxu0 0.0
      %3727 = vmatmul.mubr.f32.gmra.mrb[0].mxu0 %v3624
      %v3728 = vpop.f32.mrb[0].mxu0
      %v3729 = vadd.f32 0.0, %v3728
      %v3730 = vpop.f32.mrb[0].mxu0
      %3731 = vmatprep.mubr.f32.mxu0 0.0
      %3732 = vmatmul.mubr.f32.gmra.mrb[0].mxu0 %v3626
      %v3733 = vpop.f32.mrb[0].mxu0
      %v3734 = vadd.f32 0.0, %v3733
      %v3735 = vpop.f32.mrb[0].mxu0
      %3736 = vmatprep.mubr.f32.mxu0 0.0
      %3737 = vmatmul.mubr.f32.gmra.mrb[0].mxu0 %v3628
      %v3738 = vpop.f32.mrb[0].mxu0
      %v3739 = vadd.f32 0.0, %v3738
      %v3740 = vpop.f32.mrb[0].mxu0
      %3741 = vmatprep.mubr.f32.mxu0 0.0
      %3742 = vmatmul.mubr.f32.gmra.mrb[0].mxu0 %v3630
      %v3743 = vpop.f32.mrb[0].mxu0
      %v3744 = vadd.f32 0.0, %v3743
      %v3745 = vpop.f32.mrb[0].mxu0
      %3746 = vmatprep.mubr.f32.mxu0 0.0
      %3747 = vmatmul.mubr.f32.gmra.mrb[0].mxu0 %v3632
      %v3748 = vpop.f32.mrb[0].mxu0
      %v3749 = vadd.f32 0.0, %v3748
      %v3750 = vpop.f32.mrb[0].mxu0
      %3751 = vmatprep.mubr.f32.mxu0 0.0
      %3752 = vmatmul.mubr.f32.gmra.mrb[0].mxu0 %v3634
      %v3753 = vpop.f32.mrb[0].mxu0
      %v3754 = vadd.f32 0.0, %v3753
      %v3755 = vpop.f32.mrb[0].mxu0
      %3756 = vmatprep.mubr.f32.mxu0 0.0
      %3757 = vmatmul.mubr.f32.gmra.mrb[0].mxu0 %v3636
      %v3758 = vpop.f32.mrb[0].mxu0
      %v3759 = vadd.f32 0.0, %v3758
      %v3760 = vpop.f32.mrb[0].mxu0
      %3761 = vmatprep.mubr.f32.mxu0 0.0
      %3762 = vmatmul.mubr.f32.gmra.mrb[0].mxu0 %v3638
      %v3763 = vpop.f32.mrb[0].mxu0
      %v3764 = vadd.f32 0.0, %v3763
      %v3765 = vpop.f32.mrb[0].mxu0
      %3766 = vmatprep.mubr.f32.mxu0 0.0
      %3767 = vmatmul.mubr.f32.gmra.mrb[0].mxu0 %v3640
      %v3768 = vpop.f32.mrb[0].mxu0
      %v3769 = vadd.f32 0.0, %v3768
      %v3770 = vpop.f32.mrb[0].mxu0
      %3771 = vmatprep.mubr.f32.mxu0 0.0
      %3772 = vmatmul.mubr.f32.gmra.mrb[0].mxu0 %v3642
      %v3773 = vpop.f32.mrb[0].mxu0
      %v3774 = vadd.f32 0.0, %v3773
      %v3775 = vpop.f32.mrb[0].mxu0
      %3776 = vmatprep.mubr.f32.mxu0 0.0
      %3777 = vmatmul.mubr.f32.gmra.mrb[0].mxu0 %v3644
      %v3778 = vpop.f32.mrb[0].mxu0
      %v3779 = vadd.f32 0.0, %v3778
      %v3780 = vpop.f32.mrb[0].mxu0
      %3781 = vmatprep.mubr.f32.mxu0 0.0
      %3782 = vmatmul.mubr.f32.gmra.mrb[0].mxu0 %v3646
      %v3783 = vpop.f32.mrb[0].mxu0
      %v3784 = vadd.f32 0.0, %v3783
      %v3785 = vpop.f32.mrb[0].mxu0
      %3786 = vmatprep.mubr.f32.mxu0 0.0
      %3787 = vmatmul.mubr.f32.gmra.mrb[0].mxu0 %v3648
      %v3788 = vpop.f32.mrb[0].mxu0
      %v3789 = vadd.f32 0.0, %v3788
      %v3790 = vpop.f32.mrb[0].mxu0
      %3791 = vmatprep.mubr.f32.mxu0 0.0
      %3792 = vmatmul.mubr.f32.gmra.mrb[0].mxu0 %v3650
      %v3793 = vpop.f32.mrb[0].mxu0
      %v3794 = vadd.f32 0.0, %v3793
      %v3795 = vpop.f32.mrb[0].mxu0
      %3796 = vmatprep.mubr.f32.mxu0 0.0
      %3797 = vmatmul.mubr.f32.gmra.mrb[0].mxu0 %v3652
      %v3798 = vpop.f32.mrb[0].mxu0
      %v3799 = vadd.f32 0.0, %v3798
      %v3800 = vpop.f32.mrb[0].mxu0
      %3801 = vdwg.mxu0
      %v3802 = vadd.f32 %v3605, %v3724
      %v3803 = vadd.f32 %v3606, %v3729
      %v3804 = vadd.f32 %v3607, %v3734
      %v3805 = vadd.f32 %v3608, %v3739
      %v3806 = vadd.f32 %v3609, %v3744
      %v3807 = vadd.f32 %v3610, %v3749
      %v3808 = vadd.f32 %v3611, %v3754
      %v3809 = vadd.f32 %v3612, %v3759
      %v3810 = vadd.f32 %v3613, %v3764
      %v3811 = vadd.f32 %v3614, %v3769
      %v3812 = vadd.f32 %v3615, %v3774
      %v3813 = vadd.f32 %v3616, %v3779
      %v3814 = vadd.f32 %v3617, %v3784
      %v3815 = vadd.f32 %v3618, %v3789
      %v3816 = vadd.f32 %v3619, %v3794
      %v3817 = vadd.f32 %v3620, %v3799
      %v3818 = vld [vmem:[%s1 + $0x14] sm:$0xf]
      %v3819 = vsel %vm225, %v3386, 0
      %v3821 = vsel %vm225, %v3388, 0
      %v3823 = vsel %vm225, %v3391, 0
      %v3825 = vsel %vm225, %v3393, 0
      %v3827 = vsel %vm225, %v3396, 0
      %v3829 = vsel %vm225, %v3398, 0
      %v3831 = vsel %vm225, %v3401, 0
      %v3833 = vsel %vm225, %v3403, 0
      %v3835 = vsel %vm225, %v3406, 0
      %v3837 = vsel %vm225, %v3408, 0
      %v3839 = vsel %vm225, %v3411, 0
      %v3841 = vsel %vm225, %v3413, 0
      %v3843 = vsel %vm225, %v3416, 0
      %v3845 = vsel %vm225, %v3418, 0
      %v3847 = vsel %vm225, %v3421, 0
      %v3849 = vsel %vm225, %v3423, 0
      %v3852 = vsel %vm547, %v3818, 0
      %3854 = vmatprep.subr.mxu0 0.0
      %3855 = vmatpush1.msra.mxu0 %v3852
      %3856 = vmatprep.subr.mxu0 0.0
      %3857 = vmatpush1.msra.mxu0 0.0
      %3858 = vmatprep.subr.mxu0 0.0
      %3859 = vmatpush1.msra.mxu0 0.0
      %3860 = vmatprep.subr.mxu0 0.0
      %3861 = vmatpush1.msra.mxu0 0.0
      %3862 = vmatprep.subr.mxu0 0.0
      %3863 = vmatpush1.msra.mxu0 0.0
      %3864 = vmatprep.subr.mxu0 0.0
      %3865 = vmatpush1.msra.mxu0 0.0
      %3866 = vmatprep.subr.mxu0 0.0
      %3867 = vmatpush1.msra.mxu0 0.0
      %3868 = vmatprep.subr.mxu0 0.0
      %3869 = vmatpush1.msra.mxu0 0.0
      %3870 = vmatprep.subr.mxu0 0.0
      %3871 = vmatpush1.msra.mxu0 0.0
      %3872 = vmatprep.subr.mxu0 0.0
      %3873 = vmatpush1.msra.mxu0 0.0
      %3874 = vmatprep.subr.mxu0 0.0
      %3875 = vmatpush1.msra.mxu0 0.0
      %3876 = vmatprep.subr.mxu0 0.0
      %3877 = vmatpush1.msra.mxu0 0.0
      %3878 = vmatprep.subr.mxu0 0.0
      %3879 = vmatpush1.msra.mxu0 0.0
      %3880 = vmatprep.subr.mxu0 0.0
      %3881 = vmatpush1.msra.mxu0 0.0
      %3882 = vmatprep.subr.mxu0 0.0
      %3883 = vmatpush1.msra.mxu0 0.0
      %3884 = vmatprep.subr.mxu0 0.0
      %3885 = vmatpush1.msra.mxu0 0.0
      %3886 = vmatprep.subr.mxu0 0.0
      %3887 = vmatpush1.msra.mxu0 0.0
      %3888 = vmatprep.subr.mxu0 0.0
      %3889 = vmatpush1.msra.mxu0 0.0
      %3890 = vmatprep.subr.mxu0 0.0
      %3891 = vmatpush1.msra.mxu0 0.0
      %3892 = vmatprep.subr.mxu0 0.0
      %3893 = vmatpush1.msra.mxu0 0.0
      %3894 = vmatprep.subr.mxu0 0.0
      %3895 = vmatpush1.msra.mxu0 0.0
      %3896 = vmatprep.subr.mxu0 0.0
      %3897 = vmatpush1.msra.mxu0 0.0
      %3898 = vmatprep.subr.mxu0 0.0
      %3899 = vmatpush1.msra.mxu0 0.0
      %3900 = vmatprep.subr.mxu0 0.0
      %3901 = vmatpush1.msra.mxu0 0.0
      %3902 = vmatprep.subr.mxu0 0.0
      %3903 = vmatpush1.msra.mxu0 0.0
      %3904 = vmatprep.subr.mxu0 0.0
      %3905 = vmatpush1.msra.mxu0 0.0
      %3906 = vmatprep.subr.mxu0 0.0
      %3907 = vmatpush1.msra.mxu0 0.0
      %3908 = vmatprep.subr.mxu0 0.0
      %3909 = vmatpush1.msra.mxu0 0.0
      %3910 = vmatprep.subr.mxu0 0.0
      %3911 = vmatpush1.msra.mxu0 0.0
      %3912 = vmatprep.subr.mxu0 0.0
      %3913 = vmatpush1.msra.mxu0 0.0
      %3914 = vmatprep.subr.mxu0 0.0
      %3915 = vmatpush1.msra.mxu0 0.0
      %3916 = vmatprep.subr.mxu0 0.0
      %3917 = vmatpush1.msra.mxu0 0.0
      %3918 = vmatprep.mubr.f32.mxu0 0.0
      %3919 = vmatmul.mubr.f32.gmra.mrb[0].mxu0 %v3819
      %v3920 = vpop.f32.mrb[0].mxu0
      %v3921 = vadd.f32 0.0, %v3920
      %v3922 = vpop.f32.mrb[0].mxu0
      %3923 = vmatprep.mubr.f32.mxu0 0.0
      %3924 = vmatmul.mubr.f32.gmra.mrb[0].mxu0 %v3821
      %v3925 = vpop.f32.mrb[0].mxu0
      %v3926 = vadd.f32 0.0, %v3925
      %v3927 = vpop.f32.mrb[0].mxu0
      %3928 = vmatprep.mubr.f32.mxu0 0.0
      %3929 = vmatmul.mubr.f32.gmra.mrb[0].mxu0 %v3823
      %v3930 = vpop.f32.mrb[0].mxu0
      %v3931 = vadd.f32 0.0, %v3930
      %v3932 = vpop.f32.mrb[0].mxu0
      %3933 = vmatprep.mubr.f32.mxu0 0.0
      %3934 = vmatmul.mubr.f32.gmra.mrb[0].mxu0 %v3825
      %v3935 = vpop.f32.mrb[0].mxu0
      %v3936 = vadd.f32 0.0, %v3935
      %v3937 = vpop.f32.mrb[0].mxu0
      %3938 = vmatprep.mubr.f32.mxu0 0.0
      %3939 = vmatmul.mubr.f32.gmra.mrb[0].mxu0 %v3827
      %v3940 = vpop.f32.mrb[0].mxu0
      %v3941 = vadd.f32 0.0, %v3940
      %v3942 = vpop.f32.mrb[0].mxu0
      %3943 = vmatprep.mubr.f32.mxu0 0.0
      %3944 = vmatmul.mubr.f32.gmra.mrb[0].mxu0 %v3829
      %v3945 = vpop.f32.mrb[0].mxu0
      %v3946 = vadd.f32 0.0, %v3945
      %v3947 = vpop.f32.mrb[0].mxu0
      %3948 = vmatprep.mubr.f32.mxu0 0.0
      %3949 = vmatmul.mubr.f32.gmra.mrb[0].mxu0 %v3831
      %v3950 = vpop.f32.mrb[0].mxu0
      %v3951 = vadd.f32 0.0, %v3950
      %v3952 = vpop.f32.mrb[0].mxu0
      %3953 = vmatprep.mubr.f32.mxu0 0.0
      %3954 = vmatmul.mubr.f32.gmra.mrb[0].mxu0 %v3833
      %v3955 = vpop.f32.mrb[0].mxu0
      %v3956 = vadd.f32 0.0, %v3955
      %v3957 = vpop.f32.mrb[0].mxu0
      %3958 = vmatprep.mubr.f32.mxu0 0.0
      %3959 = vmatmul.mubr.f32.gmra.mrb[0].mxu0 %v3835
      %v3960 = vpop.f32.mrb[0].mxu0
      %v3961 = vadd.f32 0.0, %v3960
      %v3962 = vpop.f32.mrb[0].mxu0
      %3963 = vmatprep.mubr.f32.mxu0 0.0
      %3964 = vmatmul.mubr.f32.gmra.mrb[0].mxu0 %v3837
      %v3965 = vpop.f32.mrb[0].mxu0
      %v3966 = vadd.f32 0.0, %v3965
      %v3967 = vpop.f32.mrb[0].mxu0
      %3968 = vmatprep.mubr.f32.mxu0 0.0
      %3969 = vmatmul.mubr.f32.gmra.mrb[0].mxu0 %v3839
      %v3970 = vpop.f32.mrb[0].mxu0
      %v3971 = vadd.f32 0.0, %v3970
      %v3972 = vpop.f32.mrb[0].mxu0
      %3973 = vmatprep.mubr.f32.mxu0 0.0
      %3974 = vmatmul.mubr.f32.gmra.mrb[0].mxu0 %v3841
      %v3975 = vpop.f32.mrb[0].mxu0
      %v3976 = vadd.f32 0.0, %v3975
      %v3977 = vpop.f32.mrb[0].mxu0
      %3978 = vmatprep.mubr.f32.mxu0 0.0
      %3979 = vmatmul.mubr.f32.gmra.mrb[0].mxu0 %v3843
      %v3980 = vpop.f32.mrb[0].mxu0
      %v3981 = vadd.f32 0.0, %v3980
      %v3982 = vpop.f32.mrb[0].mxu0
      %3983 = vmatprep.mubr.f32.mxu0 0.0
      %3984 = vmatmul.mubr.f32.gmra.mrb[0].mxu0 %v3845
      %v3985 = vpop.f32.mrb[0].mxu0
      %v3986 = vadd.f32 0.0, %v3985
      %v3987 = vpop.f32.mrb[0].mxu0
      %3988 = vmatprep.mubr.f32.mxu0 0.0
      %3989 = vmatmul.mubr.f32.gmra.mrb[0].mxu0 %v3847
      %v3990 = vpop.f32.mrb[0].mxu0
      %v3991 = vadd.f32 0.0, %v3990
      %v3992 = vpop.f32.mrb[0].mxu0
      %3993 = vmatprep.mubr.f32.mxu0 0.0
      %3994 = vmatmul.mubr.f32.gmra.mrb[0].mxu0 %v3849
      %v3995 = vpop.f32.mrb[0].mxu0
      %v3996 = vadd.f32 0.0, %v3995
      %v3997 = vpop.f32.mrb[0].mxu0
      %3998 = vdwg.mxu0
      %v3999 = vadd.f32 %v3802, %v3921
      %v4000 = vadd.f32 %v3803, %v3926
      %v4001 = vadd.f32 %v3804, %v3931
      %v4002 = vadd.f32 %v3805, %v3936
      %v4003 = vadd.f32 %v3806, %v3941
      %v4004 = vadd.f32 %v3807, %v3946
      %v4005 = vadd.f32 %v3808, %v3951
      %v4006 = vadd.f32 %v3809, %v3956
      %v4007 = vadd.f32 %v3810, %v3961
      %v4008 = vadd.f32 %v3811, %v3966
      %v4009 = vadd.f32 %v3812, %v3971
      %v4010 = vadd.f32 %v3813, %v3976
      %v4011 = vadd.f32 %v3814, %v3981
      %v4012 = vadd.f32 %v3815, %v3986
      %v4013 = vadd.f32 %v3816, %v3991
      %v4014 = vadd.f32 %v3817, %v3996
      %s4015 = sadd.s32 8, 2
      %s4016 = smul.u32 %s4015, 24
      %s4017 = scalar_lea.vmem [#allocation2], %s4016
      %v4018 = vld [vmem:[%s4017] sm:$0xff]
      %v4019 = vld [vmem:[%s4017 + $0x8] sm:$0xff]
      %v4020 = vld [vmem:[%s4017 + $0x10] sm:$0x3]
      %v4021 = vld [vmem:[%s4017 + $0x18] sm:$0xff]
      %v4022 = vld [vmem:[%s4017 + $0x20] sm:$0xff]
      %v4023 = vld [vmem:[%s4017 + $0x28] sm:$0x3]
      %v4024 = vld [vmem:[%s4017 + $0x30] sm:$0xff]
      %v4025 = vld [vmem:[%s4017 + $0x38] sm:$0xff]
      %v4026 = vld [vmem:[%s4017 + $0x40] sm:$0x3]
      %v4027 = vld [vmem:[%s4017 + $0x48] sm:$0xff]
      %v4028 = vld [vmem:[%s4017 + $0x50] sm:$0xff]
      %v4029 = vld [vmem:[%s4017 + $0x58] sm:$0x3]
      %v4030 = vld [vmem:[%s4017 + $0x60] sm:$0xff]
      %v4031 = vld [vmem:[%s4017 + $0x68] sm:$0xff]
      %v4032 = vld [vmem:[%s4017 + $0x70] sm:$0x3]
      %v4033 = vld [vmem:[%s4017 + $0x78] sm:$0xff]
      %v4034 = vld [vmem:[%s4017 + $0x80] sm:$0xff]
      %v4035 = vld [vmem:[%s4017 + $0x88] sm:$0x3]
      %v4036 = vld [vmem:[%s4017 + $0x90] sm:$0xff]
      %v4037 = vld [vmem:[%s4017 + $0x98] sm:$0xff]
      %v4038 = vld [vmem:[%s4017 + $0xa0] sm:$0x3]
      %v4039 = vld [vmem:[%s4017 + $0xa8] sm:$0xff]
      %v4040 = vld [vmem:[%s4017 + $0xb0] sm:$0xff]
      %v4041 = vld [vmem:[%s4017 + $0xb8] sm:$0x3]
      %v4066 = vrot.slane %v4018, 1
      %v4067 = vrot.slane %v4019, 1
      %v4068 = vsel %vm431, %v4066, %v4067
      %v4069 = vrot.slane %v4020, 1
      %v4070 = vsel %vm431, %v4067, %v4069
      %v4071 = vrot.slane %v4021, 1
      %v4072 = vrot.slane %v4022, 1
      %v4073 = vsel %vm431, %v4071, %v4072
      %v4074 = vrot.slane %v4023, 1
      %v4075 = vsel %vm431, %v4072, %v4074
      %v4076 = vrot.slane %v4024, 1
      %v4077 = vrot.slane %v4025, 1
      %v4078 = vsel %vm431, %v4076, %v4077
      %v4079 = vrot.slane %v4026, 1
      %v4080 = vsel %vm431, %v4077, %v4079
      %v4081 = vrot.slane %v4027, 1
      %v4082 = vrot.slane %v4028, 1
      %v4083 = vsel %vm431, %v4081, %v4082
      %v4084 = vrot.slane %v4029, 1
      %v4085 = vsel %vm431, %v4082, %v4084
      %v4086 = vrot.slane %v4030, 1
      %v4087 = vrot.slane %v4031, 1
      %v4088 = vsel %vm431, %v4086, %v4087
      %v4089 = vrot.slane %v4032, 1
      %v4090 = vsel %vm431, %v4087, %v4089
      %v4091 = vrot.slane %v4033, 1
      %v4092 = vrot.slane %v4034, 1
      %v4093 = vsel %vm431, %v4091, %v4092
      %v4094 = vrot.slane %v4035, 1
      %v4095 = vsel %vm431, %v4092, %v4094
      %v4096 = vrot.slane %v4036, 1
      %v4097 = vrot.slane %v4037, 1
      %v4098 = vsel %vm431, %v4096, %v4097
      %v4099 = vrot.slane %v4038, 1
      %v4100 = vsel %vm431, %v4097, %v4099
      %v4101 = vrot.slane %v4039, 1
      %v4102 = vrot.slane %v4040, 1
      %v4103 = vsel %vm431, %v4101, %v4102
      %v4104 = vrot.slane %v4041, 1
      %v4105 = vsel %vm431, %v4102, %v4104
      %v4106 = vrot.slane %v4018, 2
      %v4107 = vrot.slane %v4019, 2
      %v4108 = vsel %vm472, %v4106, %v4107
      %v4109 = vrot.slane %v4020, 2
      %v4110 = vsel %vm472, %v4107, %v4109
      %v4111 = vrot.slane %v4021, 2
      %v4112 = vrot.slane %v4022, 2
      %v4113 = vsel %vm472, %v4111, %v4112
      %v4114 = vrot.slane %v4023, 2
      %v4115 = vsel %vm472, %v4112, %v4114
      %v4116 = vrot.slane %v4024, 2
      %v4117 = vrot.slane %v4025, 2
      %v4118 = vsel %vm472, %v4116, %v4117
      %v4119 = vrot.slane %v4026, 2
      %v4120 = vsel %vm472, %v4117, %v4119
      %v4121 = vrot.slane %v4027, 2
      %v4122 = vrot.slane %v4028, 2
      %v4123 = vsel %vm472, %v4121, %v4122
      %v4124 = vrot.slane %v4029, 2
      %v4125 = vsel %vm472, %v4122, %v4124
      %v4126 = vrot.slane %v4030, 2
      %v4127 = vrot.slane %v4031, 2
      %v4128 = vsel %vm472, %v4126, %v4127
      %v4129 = vrot.slane %v4032, 2
      %v4130 = vsel %vm472, %v4127, %v4129
      %v4131 = vrot.slane %v4033, 2
      %v4132 = vrot.slane %v4034, 2
      %v4133 = vsel %vm472, %v4131, %v4132
      %v4134 = vrot.slane %v4035, 2
      %v4135 = vsel %vm472, %v4132, %v4134
      %v4136 = vrot.slane %v4036, 2
      %v4137 = vrot.slane %v4037, 2
      %v4138 = vsel %vm472, %v4136, %v4137
      %v4139 = vrot.slane %v4038, 2
      %v4140 = vsel %vm472, %v4137, %v4139
      %v4141 = vrot.slane %v4039, 2
      %v4142 = vrot.slane %v4040, 2
      %v4143 = vsel %vm472, %v4141, %v4142
      %v4144 = vrot.slane %v4041, 2
      %v4145 = vsel %vm472, %v4142, %v4144
      %v4146 = vld [vmem:[%s1 + $0x18] sm:$0xf]
      %v4147 = vsel %vm225, %v4018, 0
      %v4149 = vsel %vm225, %v4019, 0
      %v4151 = vsel %vm225, %v4021, 0
      %v4153 = vsel %vm225, %v4022, 0
      %v4155 = vsel %vm225, %v4024, 0
      %v4157 = vsel %vm225, %v4025, 0
      %v4159 = vsel %vm225, %v4027, 0
      %v4161 = vsel %vm225, %v4028, 0
      %v4163 = vsel %vm225, %v4030, 0
      %v4165 = vsel %vm225, %v4031, 0
      %v4167 = vsel %vm225, %v4033, 0
      %v4169 = vsel %vm225, %v4034, 0
      %v4171 = vsel %vm225, %v4036, 0
      %v4173 = vsel %vm225, %v4037, 0
      %v4175 = vsel %vm225, %v4039, 0
      %v4177 = vsel %vm225, %v4040, 0
      %v4180 = vsel %vm547, %v4146, 0
      %4182 = vmatprep.subr.mxu0 0.0
      %4183 = vmatpush1.msra.mxu0 %v4180
      %4184 = vmatprep.subr.mxu0 0.0
      %4185 = vmatpush1.msra.mxu0 0.0
      %4186 = vmatprep.subr.mxu0 0.0
      %4187 = vmatpush1.msra.mxu0 0.0
      %4188 = vmatprep.subr.mxu0 0.0
      %4189 = vmatpush1.msra.mxu0 0.0
      %4190 = vmatprep.subr.mxu0 0.0
      %4191 = vmatpush1.msra.mxu0 0.0
      %4192 = vmatprep.subr.mxu0 0.0
      %4193 = vmatpush1.msra.mxu0 0.0
      %4194 = vmatprep.subr.mxu0 0.0
      %4195 = vmatpush1.msra.mxu0 0.0
      %4196 = vmatprep.subr.mxu0 0.0
      %4197 = vmatpush1.msra.mxu0 0.0
      %4198 = vmatprep.subr.mxu0 0.0
      %4199 = vmatpush1.msra.mxu0 0.0
      %4200 = vmatprep.subr.mxu0 0.0
      %4201 = vmatpush1.msra.mxu0 0.0
      %4202 = vmatprep.subr.mxu0 0.0
      %4203 = vmatpush1.msra.mxu0 0.0
      %4204 = vmatprep.subr.mxu0 0.0
      %4205 = vmatpush1.msra.mxu0 0.0
      %4206 = vmatprep.subr.mxu0 0.0
      %4207 = vmatpush1.msra.mxu0 0.0
      %4208 = vmatprep.subr.mxu0 0.0
      %4209 = vmatpush1.msra.mxu0 0.0
      %4210 = vmatprep.subr.mxu0 0.0
      %4211 = vmatpush1.msra.mxu0 0.0
      %4212 = vmatprep.subr.mxu0 0.0
      %4213 = vmatpush1.msra.mxu0 0.0
      %4214 = vmatprep.subr.mxu0 0.0
      %4215 = vmatpush1.msra.mxu0 0.0
      %4216 = vmatprep.subr.mxu0 0.0
      %4217 = vmatpush1.msra.mxu0 0.0
      %4218 = vmatprep.subr.mxu0 0.0
      %4219 = vmatpush1.msra.mxu0 0.0
      %4220 = vmatprep.subr.mxu0 0.0
      %4221 = vmatpush1.msra.mxu0 0.0
      %4222 = vmatprep.subr.mxu0 0.0
      %4223 = vmatpush1.msra.mxu0 0.0
      %4224 = vmatprep.subr.mxu0 0.0
      %4225 = vmatpush1.msra.mxu0 0.0
      %4226 = vmatprep.subr.mxu0 0.0
      %4227 = vmatpush1.msra.mxu0 0.0
      %4228 = vmatprep.subr.mxu0 0.0
      %4229 = vmatpush1.msra.mxu0 0.0
      %4230 = vmatprep.subr.mxu0 0.0
      %4231 = vmatpush1.msra.mxu0 0.0
      %4232 = vmatprep.subr.mxu0 0.0
      %4233 = vmatpush1.msra.mxu0 0.0
      %4234 = vmatprep.subr.mxu0 0.0
      %4235 = vmatpush1.msra.mxu0 0.0
      %4236 = vmatprep.subr.mxu0 0.0
      %4237 = vmatpush1.msra.mxu0 0.0
      %4238 = vmatprep.subr.mxu0 0.0
      %4239 = vmatpush1.msra.mxu0 0.0
      %4240 = vmatprep.subr.mxu0 0.0
      %4241 = vmatpush1.msra.mxu0 0.0
      %4242 = vmatprep.subr.mxu0 0.0
      %4243 = vmatpush1.msra.mxu0 0.0
      %4244 = vmatprep.subr.mxu0 0.0
      %4245 = vmatpush1.msra.mxu0 0.0
      %4246 = vmatprep.mubr.f32.mxu0 0.0
      %4247 = vmatmul.mubr.f32.gmra.mrb[0].mxu0 %v4147
      %v4248 = vpop.f32.mrb[0].mxu0
      %v4249 = vadd.f32 0.0, %v4248
      %v4250 = vpop.f32.mrb[0].mxu0
      %4251 = vmatprep.mubr.f32.mxu0 0.0
      %4252 = vmatmul.mubr.f32.gmra.mrb[0].mxu0 %v4149
      %v4253 = vpop.f32.mrb[0].mxu0
      %v4254 = vadd.f32 0.0, %v4253
      %v4255 = vpop.f32.mrb[0].mxu0
      %4256 = vmatprep.mubr.f32.mxu0 0.0
      %4257 = vmatmul.mubr.f32.gmra.mrb[0].mxu0 %v4151
      %v4258 = vpop.f32.mrb[0].mxu0
      %v4259 = vadd.f32 0.0, %v4258
      %v4260 = vpop.f32.mrb[0].mxu0
      %4261 = vmatprep.mubr.f32.mxu0 0.0
      %4262 = vmatmul.mubr.f32.gmra.mrb[0].mxu0 %v4153
      %v4263 = vpop.f32.mrb[0].mxu0
      %v4264 = vadd.f32 0.0, %v4263
      %v4265 = vpop.f32.mrb[0].mxu0
      %4266 = vmatprep.mubr.f32.mxu0 0.0
      %4267 = vmatmul.mubr.f32.gmra.mrb[0].mxu0 %v4155
      %v4268 = vpop.f32.mrb[0].mxu0
      %v4269 = vadd.f32 0.0, %v4268
      %v4270 = vpop.f32.mrb[0].mxu0
      %4271 = vmatprep.mubr.f32.mxu0 0.0
      %4272 = vmatmul.mubr.f32.gmra.mrb[0].mxu0 %v4157
      %v4273 = vpop.f32.mrb[0].mxu0
      %v4274 = vadd.f32 0.0, %v4273
      %v4275 = vpop.f32.mrb[0].mxu0
      %4276 = vmatprep.mubr.f32.mxu0 0.0
      %4277 = vmatmul.mubr.f32.gmra.mrb[0].mxu0 %v4159
      %v4278 = vpop.f32.mrb[0].mxu0
      %v4279 = vadd.f32 0.0, %v4278
      %v4280 = vpop.f32.mrb[0].mxu0
      %4281 = vmatprep.mubr.f32.mxu0 0.0
      %4282 = vmatmul.mubr.f32.gmra.mrb[0].mxu0 %v4161
      %v4283 = vpop.f32.mrb[0].mxu0
      %v4284 = vadd.f32 0.0, %v4283
      %v4285 = vpop.f32.mrb[0].mxu0
      %4286 = vmatprep.mubr.f32.mxu0 0.0
      %4287 = vmatmul.mubr.f32.gmra.mrb[0].mxu0 %v4163
      %v4288 = vpop.f32.mrb[0].mxu0
      %v4289 = vadd.f32 0.0, %v4288
      %v4290 = vpop.f32.mrb[0].mxu0
      %4291 = vmatprep.mubr.f32.mxu0 0.0
      %4292 = vmatmul.mubr.f32.gmra.mrb[0].mxu0 %v4165
      %v4293 = vpop.f32.mrb[0].mxu0
      %v4294 = vadd.f32 0.0, %v4293
      %v4295 = vpop.f32.mrb[0].mxu0
      %4296 = vmatprep.mubr.f32.mxu0 0.0
      %4297 = vmatmul.mubr.f32.gmra.mrb[0].mxu0 %v4167
      %v4298 = vpop.f32.mrb[0].mxu0
      %v4299 = vadd.f32 0.0, %v4298
      %v4300 = vpop.f32.mrb[0].mxu0
      %4301 = vmatprep.mubr.f32.mxu0 0.0
      %4302 = vmatmul.mubr.f32.gmra.mrb[0].mxu0 %v4169
      %v4303 = vpop.f32.mrb[0].mxu0
      %v4304 = vadd.f32 0.0, %v4303
      %v4305 = vpop.f32.mrb[0].mxu0
      %4306 = vmatprep.mubr.f32.mxu0 0.0
      %4307 = vmatmul.mubr.f32.gmra.mrb[0].mxu0 %v4171
      %v4308 = vpop.f32.mrb[0].mxu0
      %v4309 = vadd.f32 0.0, %v4308
      %v4310 = vpop.f32.mrb[0].mxu0
      %4311 = vmatprep.mubr.f32.mxu0 0.0
      %4312 = vmatmul.mubr.f32.gmra.mrb[0].mxu0 %v4173
      %v4313 = vpop.f32.mrb[0].mxu0
      %v4314 = vadd.f32 0.0, %v4313
      %v4315 = vpop.f32.mrb[0].mxu0
      %4316 = vmatprep.mubr.f32.mxu0 0.0
      %4317 = vmatmul.mubr.f32.gmra.mrb[0].mxu0 %v4175
      %v4318 = vpop.f32.mrb[0].mxu0
      %v4319 = vadd.f32 0.0, %v4318
      %v4320 = vpop.f32.mrb[0].mxu0
      %4321 = vmatprep.mubr.f32.mxu0 0.0
      %4322 = vmatmul.mubr.f32.gmra.mrb[0].mxu0 %v4177
      %v4323 = vpop.f32.mrb[0].mxu0
      %v4324 = vadd.f32 0.0, %v4323
      %v4325 = vpop.f32.mrb[0].mxu0
      %4326 = vdwg.mxu0
      %v4327 = vadd.f32 %v3999, %v4249
      %v4328 = vadd.f32 %v4000, %v4254
      %v4329 = vadd.f32 %v4001, %v4259
      %v4330 = vadd.f32 %v4002, %v4264
      %v4331 = vadd.f32 %v4003, %v4269
      %v4332 = vadd.f32 %v4004, %v4274
      %v4333 = vadd.f32 %v4005, %v4279
      %v4334 = vadd.f32 %v4006, %v4284
      %v4335 = vadd.f32 %v4007, %v4289
      %v4336 = vadd.f32 %v4008, %v4294
      %v4337 = vadd.f32 %v4009, %v4299
      %v4338 = vadd.f32 %v4010, %v4304
      %v4339 = vadd.f32 %v4011, %v4309
      %v4340 = vadd.f32 %v4012, %v4314
      %v4341 = vadd.f32 %v4013, %v4319
      %v4342 = vadd.f32 %v4014, %v4324
      %v4343 = vld [vmem:[%s1 + $0x1c] sm:$0xf]
      %v4344 = vsel %vm225, %v4068, 0
      %v4346 = vsel %vm225, %v4070, 0
      %v4348 = vsel %vm225, %v4073, 0
      %v4350 = vsel %vm225, %v4075, 0
      %v4352 = vsel %vm225, %v4078, 0
      %v4354 = vsel %vm225, %v4080, 0
      %v4356 = vsel %vm225, %v4083, 0
      %v4358 = vsel %vm225, %v4085, 0
      %v4360 = vsel %vm225, %v4088, 0
      %v4362 = vsel %vm225, %v4090, 0
      %v4364 = vsel %vm225, %v4093, 0
      %v4366 = vsel %vm225, %v4095, 0
      %v4368 = vsel %vm225, %v4098, 0
      %v4370 = vsel %vm225, %v4100, 0
      %v4372 = vsel %vm225, %v4103, 0
      %v4374 = vsel %vm225, %v4105, 0
      %v4377 = vsel %vm547, %v4343, 0
      %4379 = vmatprep.subr.mxu0 0.0
      %4380 = vmatpush1.msra.mxu0 %v4377
      %4381 = vmatprep.subr.mxu0 0.0
      %4382 = vmatpush1.msra.mxu0 0.0
      %4383 = vmatprep.subr.mxu0 0.0
      %4384 = vmatpush1.msra.mxu0 0.0
      %4385 = vmatprep.subr.mxu0 0.0
      %4386 = vmatpush1.msra.mxu0 0.0
      %4387 = vmatprep.subr.mxu0 0.0
      %4388 = vmatpush1.msra.mxu0 0.0
      %4389 = vmatprep.subr.mxu0 0.0
      %4390 = vmatpush1.msra.mxu0 0.0
      %4391 = vmatprep.subr.mxu0 0.0
      %4392 = vmatpush1.msra.mxu0 0.0
      %4393 = vmatprep.subr.mxu0 0.0
      %4394 = vmatpush1.msra.mxu0 0.0
      %4395 = vmatprep.subr.mxu0 0.0
      %4396 = vmatpush1.msra.mxu0 0.0
      %4397 = vmatprep.subr.mxu0 0.0
      %4398 = vmatpush1.msra.mxu0 0.0
      %4399 = vmatprep.subr.mxu0 0.0
      %4400 = vmatpush1.msra.mxu0 0.0
      %4401 = vmatprep.subr.mxu0 0.0
      %4402 = vmatpush1.msra.mxu0 0.0
      %4403 = vmatprep.subr.mxu0 0.0
      %4404 = vmatpush1.msra.mxu0 0.0
      %4405 = vmatprep.subr.mxu0 0.0
      %4406 = vmatpush1.msra.mxu0 0.0
      %4407 = vmatprep.subr.mxu0 0.0
      %4408 = vmatpush1.msra.mxu0 0.0
      %4409 = vmatprep.subr.mxu0 0.0
      %4410 = vmatpush1.msra.mxu0 0.0
      %4411 = vmatprep.subr.mxu0 0.0
      %4412 = vmatpush1.msra.mxu0 0.0
      %4413 = vmatprep.subr.mxu0 0.0
      %4414 = vmatpush1.msra.mxu0 0.0
      %4415 = vmatprep.subr.mxu0 0.0
      %4416 = vmatpush1.msra.mxu0 0.0
      %4417 = vmatprep.subr.mxu0 0.0
      %4418 = vmatpush1.msra.mxu0 0.0
      %4419 = vmatprep.subr.mxu0 0.0
      %4420 = vmatpush1.msra.mxu0 0.0
      %4421 = vmatprep.subr.mxu0 0.0
      %4422 = vmatpush1.msra.mxu0 0.0
      %4423 = vmatprep.subr.mxu0 0.0
      %4424 = vmatpush1.msra.mxu0 0.0
      %4425 = vmatprep.subr.mxu0 0.0
      %4426 = vmatpush1.msra.mxu0 0.0
      %4427 = vmatprep.subr.mxu0 0.0
      %4428 = vmatpush1.msra.mxu0 0.0
      %4429 = vmatprep.subr.mxu0 0.0
      %4430 = vmatpush1.msra.mxu0 0.0
      %4431 = vmatprep.subr.mxu0 0.0
      %4432 = vmatpush1.msra.mxu0 0.0
      %4433 = vmatprep.subr.mxu0 0.0
      %4434 = vmatpush1.msra.mxu0 0.0
      %4435 = vmatprep.subr.mxu0 0.0
      %4436 = vmatpush1.msra.mxu0 0.0
      %4437 = vmatprep.subr.mxu0 0.0
      %4438 = vmatpush1.msra.mxu0 0.0
      %4439 = vmatprep.subr.mxu0 0.0
      %4440 = vmatpush1.msra.mxu0 0.0
      %4441 = vmatprep.subr.mxu0 0.0
      %4442 = vmatpush1.msra.mxu0 0.0
      %4443 = vmatprep.mubr.f32.mxu0 0.0
      %4444 = vmatmul.mubr.f32.gmra.mrb[0].mxu0 %v4344
      %v4445 = vpop.f32.mrb[0].mxu0
      %v4446 = vadd.f32 0.0, %v4445
      %v4447 = vpop.f32.mrb[0].mxu0
      %4448 = vmatprep.mubr.f32.mxu0 0.0
      %4449 = vmatmul.mubr.f32.gmra.mrb[0].mxu0 %v4346
      %v4450 = vpop.f32.mrb[0].mxu0
      %v4451 = vadd.f32 0.0, %v4450
      %v4452 = vpop.f32.mrb[0].mxu0
      %4453 = vmatprep.mubr.f32.mxu0 0.0
      %4454 = vmatmul.mubr.f32.gmra.mrb[0].mxu0 %v4348
      %v4455 = vpop.f32.mrb[0].mxu0
      %v4456 = vadd.f32 0.0, %v4455
      %v4457 = vpop.f32.mrb[0].mxu0
      %4458 = vmatprep.mubr.f32.mxu0 0.0
      %4459 = vmatmul.mubr.f32.gmra.mrb[0].mxu0 %v4350
      %v4460 = vpop.f32.mrb[0].mxu0
      %v4461 = vadd.f32 0.0, %v4460
      %v4462 = vpop.f32.mrb[0].mxu0
      %4463 = vmatprep.mubr.f32.mxu0 0.0
      %4464 = vmatmul.mubr.f32.gmra.mrb[0].mxu0 %v4352
      %v4465 = vpop.f32.mrb[0].mxu0
      %v4466 = vadd.f32 0.0, %v4465
      %v4467 = vpop.f32.mrb[0].mxu0
      %4468 = vmatprep.mubr.f32.mxu0 0.0
      %4469 = vmatmul.mubr.f32.gmra.mrb[0].mxu0 %v4354
      %v4470 = vpop.f32.mrb[0].mxu0
      %v4471 = vadd.f32 0.0, %v4470
      %v4472 = vpop.f32.mrb[0].mxu0
      %4473 = vmatprep.mubr.f32.mxu0 0.0
      %4474 = vmatmul.mubr.f32.gmra.mrb[0].mxu0 %v4356
      %v4475 = vpop.f32.mrb[0].mxu0
      %v4476 = vadd.f32 0.0, %v4475
      %v4477 = vpop.f32.mrb[0].mxu0
      %4478 = vmatprep.mubr.f32.mxu0 0.0
      %4479 = vmatmul.mubr.f32.gmra.mrb[0].mxu0 %v4358
      %v4480 = vpop.f32.mrb[0].mxu0
      %v4481 = vadd.f32 0.0, %v4480
      %v4482 = vpop.f32.mrb[0].mxu0
      %4483 = vmatprep.mubr.f32.mxu0 0.0
      %4484 = vmatmul.mubr.f32.gmra.mrb[0].mxu0 %v4360
      %v4485 = vpop.f32.mrb[0].mxu0
      %v4486 = vadd.f32 0.0, %v4485
      %v4487 = vpop.f32.mrb[0].mxu0
      %4488 = vmatprep.mubr.f32.mxu0 0.0
      %4489 = vmatmul.mubr.f32.gmra.mrb[0].mxu0 %v4362
      %v4490 = vpop.f32.mrb[0].mxu0
      %v4491 = vadd.f32 0.0, %v4490
      %v4492 = vpop.f32.mrb[0].mxu0
      %4493 = vmatprep.mubr.f32.mxu0 0.0
      %4494 = vmatmul.mubr.f32.gmra.mrb[0].mxu0 %v4364
      %v4495 = vpop.f32.mrb[0].mxu0
      %v4496 = vadd.f32 0.0, %v4495
      %v4497 = vpop.f32.mrb[0].mxu0
      %4498 = vmatprep.mubr.f32.mxu0 0.0
      %4499 = vmatmul.mubr.f32.gmra.mrb[0].mxu0 %v4366
      %v4500 = vpop.f32.mrb[0].mxu0
      %v4501 = vadd.f32 0.0, %v4500
      %v4502 = vpop.f32.mrb[0].mxu0
      %4503 = vmatprep.mubr.f32.mxu0 0.0
      %4504 = vmatmul.mubr.f32.gmra.mrb[0].mxu0 %v4368
      %v4505 = vpop.f32.mrb[0].mxu0
      %v4506 = vadd.f32 0.0, %v4505
      %v4507 = vpop.f32.mrb[0].mxu0
      %4508 = vmatprep.mubr.f32.mxu0 0.0
      %4509 = vmatmul.mubr.f32.gmra.mrb[0].mxu0 %v4370
      %v4510 = vpop.f32.mrb[0].mxu0
      %v4511 = vadd.f32 0.0, %v4510
      %v4512 = vpop.f32.mrb[0].mxu0
      %4513 = vmatprep.mubr.f32.mxu0 0.0
      %4514 = vmatmul.mubr.f32.gmra.mrb[0].mxu0 %v4372
      %v4515 = vpop.f32.mrb[0].mxu0
      %v4516 = vadd.f32 0.0, %v4515
      %v4517 = vpop.f32.mrb[0].mxu0
      %4518 = vmatprep.mubr.f32.mxu0 0.0
      %4519 = vmatmul.mubr.f32.gmra.mrb[0].mxu0 %v4374
      %v4520 = vpop.f32.mrb[0].mxu0
      %v4521 = vadd.f32 0.0, %v4520
      %v4522 = vpop.f32.mrb[0].mxu0
      %4523 = vdwg.mxu0
      %v4524 = vadd.f32 %v4327, %v4446
      %v4525 = vadd.f32 %v4328, %v4451
      %v4526 = vadd.f32 %v4329, %v4456
      %v4527 = vadd.f32 %v4330, %v4461
      %v4528 = vadd.f32 %v4331, %v4466
      %v4529 = vadd.f32 %v4332, %v4471
      %v4530 = vadd.f32 %v4333, %v4476
      %v4531 = vadd.f32 %v4334, %v4481
      %v4532 = vadd.f32 %v4335, %v4486
      %v4533 = vadd.f32 %v4336, %v4491
      %v4534 = vadd.f32 %v4337, %v4496
      %v4535 = vadd.f32 %v4338, %v4501
      %v4536 = vadd.f32 %v4339, %v4506
      %v4537 = vadd.f32 %v4340, %v4511
      %v4538 = vadd.f32 %v4341, %v4516
      %v4539 = vadd.f32 %v4342, %v4521
      %v4540 = vld [vmem:[%s1 + $0x20] sm:$0xf]
      %v4541 = vsel %vm225, %v4108, 0
      %v4543 = vsel %vm225, %v4110, 0
      %v4545 = vsel %vm225, %v4113, 0
      %v4547 = vsel %vm225, %v4115, 0
      %v4549 = vsel %vm225, %v4118, 0
      %v4551 = vsel %vm225, %v4120, 0
      %v4553 = vsel %vm225, %v4123, 0
      %v4555 = vsel %vm225, %v4125, 0
      %v4557 = vsel %vm225, %v4128, 0
      %v4559 = vsel %vm225, %v4130, 0
      %v4561 = vsel %vm225, %v4133, 0
      %v4563 = vsel %vm225, %v4135, 0
      %v4565 = vsel %vm225, %v4138, 0
      %v4567 = vsel %vm225, %v4140, 0
      %v4569 = vsel %vm225, %v4143, 0
      %v4571 = vsel %vm225, %v4145, 0
      %v4574 = vsel %vm547, %v4540, 0
      %4576 = vmatprep.subr.mxu0 0.0
      %4577 = vmatpush1.msra.mxu0 %v4574
      %4578 = vmatprep.subr.mxu0 0.0
      %4579 = vmatpush1.msra.mxu0 0.0
      %4580 = vmatprep.subr.mxu0 0.0
      %4581 = vmatpush1.msra.mxu0 0.0
      %4582 = vmatprep.subr.mxu0 0.0
      %4583 = vmatpush1.msra.mxu0 0.0
      %4584 = vmatprep.subr.mxu0 0.0
      %4585 = vmatpush1.msra.mxu0 0.0
      %4586 = vmatprep.subr.mxu0 0.0
      %4587 = vmatpush1.msra.mxu0 0.0
      %4588 = vmatprep.subr.mxu0 0.0
      %4589 = vmatpush1.msra.mxu0 0.0
      %4590 = vmatprep.subr.mxu0 0.0
      %4591 = vmatpush1.msra.mxu0 0.0
      %4592 = vmatprep.subr.mxu0 0.0
      %4593 = vmatpush1.msra.mxu0 0.0
      %4594 = vmatprep.subr.mxu0 0.0
      %4595 = vmatpush1.msra.mxu0 0.0
      %4596 = vmatprep.subr.mxu0 0.0
      %4597 = vmatpush1.msra.mxu0 0.0
      %4598 = vmatprep.subr.mxu0 0.0
      %4599 = vmatpush1.msra.mxu0 0.0
      %4600 = vmatprep.subr.mxu0 0.0
      %4601 = vmatpush1.msra.mxu0 0.0
      %4602 = vmatprep.subr.mxu0 0.0
      %4603 = vmatpush1.msra.mxu0 0.0
      %4604 = vmatprep.subr.mxu0 0.0
      %4605 = vmatpush1.msra.mxu0 0.0
      %4606 = vmatprep.subr.mxu0 0.0
      %4607 = vmatpush1.msra.mxu0 0.0
      %4608 = vmatprep.subr.mxu0 0.0
      %4609 = vmatpush1.msra.mxu0 0.0
      %4610 = vmatprep.subr.mxu0 0.0
      %4611 = vmatpush1.msra.mxu0 0.0
      %4612 = vmatprep.subr.mxu0 0.0
      %4613 = vmatpush1.msra.mxu0 0.0
      %4614 = vmatprep.subr.mxu0 0.0
      %4615 = vmatpush1.msra.mxu0 0.0
      %4616 = vmatprep.subr.mxu0 0.0
      %4617 = vmatpush1.msra.mxu0 0.0
      %4618 = vmatprep.subr.mxu0 0.0
      %4619 = vmatpush1.msra.mxu0 0.0
      %4620 = vmatprep.subr.mxu0 0.0
      %4621 = vmatpush1.msra.mxu0 0.0
      %4622 = vmatprep.subr.mxu0 0.0
      %4623 = vmatpush1.msra.mxu0 0.0
      %4624 = vmatprep.subr.mxu0 0.0
      %4625 = vmatpush1.msra.mxu0 0.0
      %4626 = vmatprep.subr.mxu0 0.0
      %4627 = vmatpush1.msra.mxu0 0.0
      %4628 = vmatprep.subr.mxu0 0.0
      %4629 = vmatpush1.msra.mxu0 0.0
      %4630 = vmatprep.subr.mxu0 0.0
      %4631 = vmatpush1.msra.mxu0 0.0
      %4632 = vmatprep.subr.mxu0 0.0
      %4633 = vmatpush1.msra.mxu0 0.0
      %4634 = vmatprep.subr.mxu0 0.0
      %4635 = vmatpush1.msra.mxu0 0.0
      %4636 = vmatprep.subr.mxu0 0.0
      %4637 = vmatpush1.msra.mxu0 0.0
      %4638 = vmatprep.subr.mxu0 0.0
      %4639 = vmatpush1.msra.mxu0 0.0
      %4640 = vmatprep.mubr.f32.mxu0 0.0
      %4641 = vmatmul.mubr.f32.gmra.mrb[0].mxu0 %v4541
      %v4642 = vpop.f32.mrb[0].mxu0
      %v4643 = vadd.f32 0.0, %v4642
      %v4644 = vpop.f32.mrb[0].mxu0
      %4645 = vmatprep.mubr.f32.mxu0 0.0
      %4646 = vmatmul.mubr.f32.gmra.mrb[0].mxu0 %v4543
      %v4647 = vpop.f32.mrb[0].mxu0
      %v4648 = vadd.f32 0.0, %v4647
      %v4649 = vpop.f32.mrb[0].mxu0
      %4650 = vmatprep.mubr.f32.mxu0 0.0
      %4651 = vmatmul.mubr.f32.gmra.mrb[0].mxu0 %v4545
      %v4652 = vpop.f32.mrb[0].mxu0
      %v4653 = vadd.f32 0.0, %v4652
      %v4654 = vpop.f32.mrb[0].mxu0
      %4655 = vmatprep.mubr.f32.mxu0 0.0
      %4656 = vmatmul.mubr.f32.gmra.mrb[0].mxu0 %v4547
      %v4657 = vpop.f32.mrb[0].mxu0
      %v4658 = vadd.f32 0.0, %v4657
      %v4659 = vpop.f32.mrb[0].mxu0
      %4660 = vmatprep.mubr.f32.mxu0 0.0
      %4661 = vmatmul.mubr.f32.gmra.mrb[0].mxu0 %v4549
      %v4662 = vpop.f32.mrb[0].mxu0
      %v4663 = vadd.f32 0.0, %v4662
      %v4664 = vpop.f32.mrb[0].mxu0
      %4665 = vmatprep.mubr.f32.mxu0 0.0
      %4666 = vmatmul.mubr.f32.gmra.mrb[0].mxu0 %v4551
      %v4667 = vpop.f32.mrb[0].mxu0
      %v4668 = vadd.f32 0.0, %v4667
      %v4669 = vpop.f32.mrb[0].mxu0
      %4670 = vmatprep.mubr.f32.mxu0 0.0
      %4671 = vmatmul.mubr.f32.gmra.mrb[0].mxu0 %v4553
      %v4672 = vpop.f32.mrb[0].mxu0
      %v4673 = vadd.f32 0.0, %v4672
      %v4674 = vpop.f32.mrb[0].mxu0
      %4675 = vmatprep.mubr.f32.mxu0 0.0
      %4676 = vmatmul.mubr.f32.gmra.mrb[0].mxu0 %v4555
      %v4677 = vpop.f32.mrb[0].mxu0
      %v4678 = vadd.f32 0.0, %v4677
      %v4679 = vpop.f32.mrb[0].mxu0
      %4680 = vmatprep.mubr.f32.mxu0 0.0
      %4681 = vmatmul.mubr.f32.gmra.mrb[0].mxu0 %v4557
      %v4682 = vpop.f32.mrb[0].mxu0
      %v4683 = vadd.f32 0.0, %v4682
      %v4684 = vpop.f32.mrb[0].mxu0
      %4685 = vmatprep.mubr.f32.mxu0 0.0
      %4686 = vmatmul.mubr.f32.gmra.mrb[0].mxu0 %v4559
      %v4687 = vpop.f32.mrb[0].mxu0
      %v4688 = vadd.f32 0.0, %v4687
      %v4689 = vpop.f32.mrb[0].mxu0
      %4690 = vmatprep.mubr.f32.mxu0 0.0
      %4691 = vmatmul.mubr.f32.gmra.mrb[0].mxu0 %v4561
      %v4692 = vpop.f32.mrb[0].mxu0
      %v4693 = vadd.f32 0.0, %v4692
      %v4694 = vpop.f32.mrb[0].mxu0
      %4695 = vmatprep.mubr.f32.mxu0 0.0
      %4696 = vmatmul.mubr.f32.gmra.mrb[0].mxu0 %v4563
      %v4697 = vpop.f32.mrb[0].mxu0
      %v4698 = vadd.f32 0.0, %v4697
      %v4699 = vpop.f32.mrb[0].mxu0
      %4700 = vmatprep.mubr.f32.mxu0 0.0
      %4701 = vmatmul.mubr.f32.gmra.mrb[0].mxu0 %v4565
      %v4702 = vpop.f32.mrb[0].mxu0
      %v4703 = vadd.f32 0.0, %v4702
      %v4704 = vpop.f32.mrb[0].mxu0
      %4705 = vmatprep.mubr.f32.mxu0 0.0
      %4706 = vmatmul.mubr.f32.gmra.mrb[0].mxu0 %v4567
      %v4707 = vpop.f32.mrb[0].mxu0
      %v4708 = vadd.f32 0.0, %v4707
      %v4709 = vpop.f32.mrb[0].mxu0
      %4710 = vmatprep.mubr.f32.mxu0 0.0
      %4711 = vmatmul.mubr.f32.gmra.mrb[0].mxu0 %v4569
      %v4712 = vpop.f32.mrb[0].mxu0
      %v4713 = vadd.f32 0.0, %v4712
      %v4714 = vpop.f32.mrb[0].mxu0
      %4715 = vmatprep.mubr.f32.mxu0 0.0
      %4716 = vmatmul.mubr.f32.gmra.mrb[0].mxu0 %v4571
      %v4717 = vpop.f32.mrb[0].mxu0
      %v4718 = vadd.f32 0.0, %v4717
      %v4719 = vpop.f32.mrb[0].mxu0
      %4720 = vdwg.mxu0
      %v4721 = vadd.f32 %v4524, %v4643
      %v4722 = vadd.f32 %v4525, %v4648
      %v4723 = vadd.f32 %v4526, %v4653
      %v4724 = vadd.f32 %v4527, %v4658
      %v4725 = vadd.f32 %v4528, %v4663
      %v4726 = vadd.f32 %v4529, %v4668
      %v4727 = vadd.f32 %v4530, %v4673
      %v4728 = vadd.f32 %v4531, %v4678
      %v4729 = vadd.f32 %v4532, %v4683
      %v4730 = vadd.f32 %v4533, %v4688
      %v4731 = vadd.f32 %v4534, %v4693
      %v4732 = vadd.f32 %v4535, %v4698
      %v4733 = vadd.f32 %v4536, %v4703
      %v4734 = vadd.f32 %v4537, %v4708
      %v4735 = vadd.f32 %v4538, %v4713
      %v4736 = vadd.f32 %v4539, %v4718
      %v4737 = vadd.f32 %v4721, %v2521
      %v4738 = vadd.f32 %v4722, %v2521
      %v4739 = vadd.f32 %v4723, %v2521
      %v4740 = vadd.f32 %v4724, %v2521
      %v4741 = vadd.f32 %v4725, %v2521
      %v4742 = vadd.f32 %v4726, %v2521
      %v4743 = vadd.f32 %v4727, %v2521
      %v4744 = vadd.f32 %v4728, %v2521
      %v4745 = vadd.f32 %v4729, %v2521
      %v4746 = vadd.f32 %v4730, %v2521
      %v4747 = vadd.f32 %v4731, %v2521
      %v4748 = vadd.f32 %v4732, %v2521
      %v4749 = vadd.f32 %v4733, %v2521
      %v4750 = vadd.f32 %v4734, %v2521
      %v4751 = vadd.f32 %v4735, %v2521
      %v4752 = vadd.f32 %v4736, %v2521
      %vm4753 = vcmp.gt.f32.partialorder %v4737, 0.0
      %vm4754 = vcmp.gt.f32.partialorder %v4738, 0.0
      %vm4755 = vcmp.gt.f32.partialorder %v4739, 0.0
      %vm4756 = vcmp.gt.f32.partialorder %v4740, 0.0
      %vm4757 = vcmp.gt.f32.partialorder %v4741, 0.0
      %vm4758 = vcmp.gt.f32.partialorder %v4742, 0.0
      %vm4759 = vcmp.gt.f32.partialorder %v4743, 0.0
      %vm4760 = vcmp.gt.f32.partialorder %v4744, 0.0
      %vm4761 = vcmp.gt.f32.partialorder %v4745, 0.0
      %vm4762 = vcmp.gt.f32.partialorder %v4746, 0.0
      %vm4763 = vcmp.gt.f32.partialorder %v4747, 0.0
      %vm4764 = vcmp.gt.f32.partialorder %v4748, 0.0
      %vm4765 = vcmp.gt.f32.partialorder %v4749, 0.0
      %vm4766 = vcmp.gt.f32.partialorder %v4750, 0.0
      %vm4767 = vcmp.gt.f32.partialorder %v4751, 0.0
      %vm4768 = vcmp.gt.f32.partialorder %v4752, 0.0
      %v4769 = vmul.f32 %v4737, 0.2
      %v4770 = vmul.f32 %v4738, 0.2
      %v4771 = vmul.f32 %v4739, 0.2
      %v4772 = vmul.f32 %v4740, 0.2
      %v4773 = vmul.f32 %v4741, 0.2
      %v4774 = vmul.f32 %v4742, 0.2
      %v4775 = vmul.f32 %v4743, 0.2
      %v4776 = vmul.f32 %v4744, 0.2
      %v4777 = vmul.f32 %v4745, 0.2
      %v4778 = vmul.f32 %v4746, 0.2
      %v4779 = vmul.f32 %v4747, 0.2
      %v4780 = vmul.f32 %v4748, 0.2
      %v4781 = vmul.f32 %v4749, 0.2
      %v4782 = vmul.f32 %v4750, 0.2
      %v4783 = vmul.f32 %v4751, 0.2
      %v4784 = vmul.f32 %v4752, 0.2
      %v4785 = vsel %vm4753, %v4737, %v4769
      %v4786 = vsel %vm4754, %v4738, %v4770
      %v4787 = vsel %vm4755, %v4739, %v4771
      %v4788 = vsel %vm4756, %v4740, %v4772
      %v4789 = vsel %vm4757, %v4741, %v4773
      %v4790 = vsel %vm4758, %v4742, %v4774
      %v4791 = vsel %vm4759, %v4743, %v4775
      %v4792 = vsel %vm4760, %v4744, %v4776
      %v4793 = vsel %vm4761, %v4745, %v4777
      %v4794 = vsel %vm4762, %v4746, %v4778
      %v4795 = vsel %vm4763, %v4747, %v4779
      %v4796 = vsel %vm4764, %v4748, %v4780
      %v4797 = vsel %vm4765, %v4749, %v4781
      %v4798 = vsel %vm4766, %v4750, %v4782
      %v4799 = vsel %vm4767, %v4751, %v4783
      %v4800 = vsel %vm4768, %v4752, %v4784
      %s4801 = scalar_lea.vmem [#allocation3], %s3294
      %4802 = vst.msk [vmem:[%s4801 + $0x1] sm:$0xff] %vm225, %v4785
      %4803 = vst.msk [vmem:[%s4801 + $0x9] sm:$0xff] %vm225, %v4786
      %4804 = vst.msk [vmem:[%s4801 + $0x19] sm:$0xff] %vm225, %v4787
      %4805 = vst.msk [vmem:[%s4801 + $0x21] sm:$0xff] %vm225, %v4788
      %4806 = vst.msk [vmem:[%s4801 + $0x31] sm:$0xff] %vm225, %v4789
      %4807 = vst.msk [vmem:[%s4801 + $0x39] sm:$0xff] %vm225, %v4790
      %4808 = vst.msk [vmem:[%s4801 + $0x49] sm:$0xff] %vm225, %v4791
      %4809 = vst.msk [vmem:[%s4801 + $0x51] sm:$0xff] %vm225, %v4792
      %4810 = vst.msk [vmem:[%s4801 + $0x61] sm:$0xff] %vm225, %v4793
      %4811 = vst.msk [vmem:[%s4801 + $0x69] sm:$0xff] %vm225, %v4794
      %4812 = vst.msk [vmem:[%s4801 + $0x79] sm:$0xff] %vm225, %v4795
      %4813 = vst.msk [vmem:[%s4801 + $0x81] sm:$0xff] %vm225, %v4796
      %4814 = vst.msk [vmem:[%s4801 + $0x91] sm:$0xff] %vm225, %v4797
      %4815 = vst.msk [vmem:[%s4801 + $0x99] sm:$0xff] %vm225, %v4798
      %4816 = vst.msk [vmem:[%s4801 + $0xa9] sm:$0xff] %vm225, %v4799
      %4817 = vst.msk [vmem:[%s4801 + $0xb1] sm:$0xff] %vm225, %v4800
      %s4818 = scalar_lea.vmem [#allocation3], %s381
      %v4819 = vld [vmem:[%s4818] sm:$0xff]
      %v4820 = vld [vmem:[%s4818 + $0x8] sm:$0xff]
      %v4821 = vld [vmem:[%s4818 + $0x10] sm:$0x3]
      %v4822 = vld [vmem:[%s4818 + $0x18] sm:$0xff]
      %v4823 = vld [vmem:[%s4818 + $0x20] sm:$0xff]
      %v4824 = vld [vmem:[%s4818 + $0x28] sm:$0x3]
      %v4825 = vld [vmem:[%s4818 + $0x30] sm:$0xff]
      %v4826 = vld [vmem:[%s4818 + $0x38] sm:$0xff]
      %v4827 = vld [vmem:[%s4818 + $0x40] sm:$0x3]
      %v4828 = vld [vmem:[%s4818 + $0x48] sm:$0xff]
      %v4829 = vld [vmem:[%s4818 + $0x50] sm:$0xff]
      %v4830 = vld [vmem:[%s4818 + $0x58] sm:$0x3]
      %v4831 = vld [vmem:[%s4818 + $0x60] sm:$0xff]
      %v4832 = vld [vmem:[%s4818 + $0x68] sm:$0xff]
      %v4833 = vld [vmem:[%s4818 + $0x70] sm:$0x3]
      %v4834 = vld [vmem:[%s4818 + $0x78] sm:$0xff]
      %v4835 = vld [vmem:[%s4818 + $0x80] sm:$0xff]
      %v4836 = vld [vmem:[%s4818 + $0x88] sm:$0x3]
      %v4837 = vld [vmem:[%s4818 + $0x90] sm:$0xff]
      %v4838 = vld [vmem:[%s4818 + $0x98] sm:$0xff]
      %v4839 = vld [vmem:[%s4818 + $0xa0] sm:$0x3]
      %v4840 = vld [vmem:[%s4818 + $0xa8] sm:$0xff]
      %v4841 = vld [vmem:[%s4818 + $0xb0] sm:$0xff]
      %v4842 = vld [vmem:[%s4818 + $0xb8] sm:$0x3]
      %v4867 = vrot.slane %v4819, 1
      %v4868 = vrot.slane %v4820, 1
      %v4869 = vsel %vm431, %v4867, %v4868
      %v4870 = vrot.slane %v4821, 1
      %v4871 = vsel %vm431, %v4868, %v4870
      %v4872 = vrot.slane %v4822, 1
      %v4873 = vrot.slane %v4823, 1
      %v4874 = vsel %vm431, %v4872, %v4873
      %v4875 = vrot.slane %v4824, 1
      %v4876 = vsel %vm431, %v4873, %v4875
      %v4877 = vrot.slane %v4825, 1
      %v4878 = vrot.slane %v4826, 1
      %v4879 = vsel %vm431, %v4877, %v4878
      %v4880 = vrot.slane %v4827, 1
      %v4881 = vsel %vm431, %v4878, %v4880
      %v4882 = vrot.slane %v4828, 1
      %v4883 = vrot.slane %v4829, 1
      %v4884 = vsel %vm431, %v4882, %v4883
      %v4885 = vrot.slane %v4830, 1
      %v4886 = vsel %vm431, %v4883, %v4885
      %v4887 = vrot.slane %v4831, 1
      %v4888 = vrot.slane %v4832, 1
      %v4889 = vsel %vm431, %v4887, %v4888
      %v4890 = vrot.slane %v4833, 1
      %v4891 = vsel %vm431, %v4888, %v4890
      %v4892 = vrot.slane %v4834, 1
      %v4893 = vrot.slane %v4835, 1
      %v4894 = vsel %vm431, %v4892, %v4893
      %v4895 = vrot.slane %v4836, 1
      %v4896 = vsel %vm431, %v4893, %v4895
      %v4897 = vrot.slane %v4837, 1
      %v4898 = vrot.slane %v4838, 1
      %v4899 = vsel %vm431, %v4897, %v4898
      %v4900 = vrot.slane %v4839, 1
      %v4901 = vsel %vm431, %v4898, %v4900
      %v4902 = vrot.slane %v4840, 1
      %v4903 = vrot.slane %v4841, 1
      %v4904 = vsel %vm431, %v4902, %v4903
      %v4905 = vrot.slane %v4842, 1
      %v4906 = vsel %vm431, %v4903, %v4905
      %v4907 = vrot.slane %v4819, 2
      %v4908 = vrot.slane %v4820, 2
      %v4909 = vsel %vm472, %v4907, %v4908
      %v4910 = vrot.slane %v4821, 2
      %v4911 = vsel %vm472, %v4908, %v4910
      %v4912 = vrot.slane %v4822, 2
      %v4913 = vrot.slane %v4823, 2
      %v4914 = vsel %vm472, %v4912, %v4913
      %v4915 = vrot.slane %v4824, 2
      %v4916 = vsel %vm472, %v4913, %v4915
      %v4917 = vrot.slane %v4825, 2
      %v4918 = vrot.slane %v4826, 2
      %v4919 = vsel %vm472, %v4917, %v4918
      %v4920 = vrot.slane %v4827, 2
      %v4921 = vsel %vm472, %v4918, %v4920
      %v4922 = vrot.slane %v4828, 2
      %v4923 = vrot.slane %v4829, 2
      %v4924 = vsel %vm472, %v4922, %v4923
      %v4925 = vrot.slane %v4830, 2
      %v4926 = vsel %vm472, %v4923, %v4925
      %v4927 = vrot.slane %v4831, 2
      %v4928 = vrot.slane %v4832, 2
      %v4929 = vsel %vm472, %v4927, %v4928
      %v4930 = vrot.slane %v4833, 2
      %v4931 = vsel %vm472, %v4928, %v4930
      %v4932 = vrot.slane %v4834, 2
      %v4933 = vrot.slane %v4835, 2
      %v4934 = vsel %vm472, %v4932, %v4933
      %v4935 = vrot.slane %v4836, 2
      %v4936 = vsel %vm472, %v4933, %v4935
      %v4937 = vrot.slane %v4837, 2
      %v4938 = vrot.slane %v4838, 2
      %v4939 = vsel %vm472, %v4937, %v4938
      %v4940 = vrot.slane %v4839, 2
      %v4941 = vsel %vm472, %v4938, %v4940
      %v4942 = vrot.slane %v4840, 2
      %v4943 = vrot.slane %v4841, 2
      %v4944 = vsel %vm472, %v4942, %v4943
      %v4945 = vrot.slane %v4842, 2
      %v4946 = vsel %vm472, %v4943, %v4945
      %v4947 = vld [vmem:[%s3] sm:$0xf]
      %v4948 = vld [vmem:[%s3 + $0x4] sm:$0xf]
      %v4949 = vsel %vm225, %v4869, 0
      %v4951 = vsel %vm225, %v4871, 0
      %v4953 = vsel %vm225, %v4874, 0
      %v4955 = vsel %vm225, %v4876, 0
      %v4957 = vsel %vm225, %v4879, 0
      %v4959 = vsel %vm225, %v4881, 0
      %v4961 = vsel %vm225, %v4884, 0
      %v4963 = vsel %vm225, %v4886, 0
      %v4965 = vsel %vm225, %v4889, 0
      %v4967 = vsel %vm225, %v4891, 0
      %v4969 = vsel %vm225, %v4894, 0
      %v4971 = vsel %vm225, %v4896, 0
      %v4973 = vsel %vm225, %v4899, 0
      %v4975 = vsel %vm225, %v4901, 0
      %v4977 = vsel %vm225, %v4904, 0
      %v4979 = vsel %vm225, %v4906, 0
      %v4982 = vsel %vm547, %v4948, 0
      %4984 = vmatprep.subr.mxu0 0.0
      %4985 = vmatpush1.msra.mxu0 %v4982
      %4986 = vmatprep.subr.mxu0 0.0
      %4987 = vmatpush1.msra.mxu0 0.0
      %4988 = vmatprep.subr.mxu0 0.0
      %4989 = vmatpush1.msra.mxu0 0.0
      %4990 = vmatprep.subr.mxu0 0.0
      %4991 = vmatpush1.msra.mxu0 0.0
      %4992 = vmatprep.subr.mxu0 0.0
      %4993 = vmatpush1.msra.mxu0 0.0
      %4994 = vmatprep.subr.mxu0 0.0
      %4995 = vmatpush1.msra.mxu0 0.0
      %4996 = vmatprep.subr.mxu0 0.0
      %4997 = vmatpush1.msra.mxu0 0.0
      %4998 = vmatprep.subr.mxu0 0.0
      %4999 = vmatpush1.msra.mxu0 0.0
      %5000 = vmatprep.subr.mxu0 0.0
      %5001 = vmatpush1.msra.mxu0 0.0
      %5002 = vmatprep.subr.mxu0 0.0
      %5003 = vmatpush1.msra.mxu0 0.0
      %5004 = vmatprep.subr.mxu0 0.0
      %5005 = vmatpush1.msra.mxu0 0.0
      %5006 = vmatprep.subr.mxu0 0.0
      %5007 = vmatpush1.msra.mxu0 0.0
      %5008 = vmatprep.subr.mxu0 0.0
      %5009 = vmatpush1.msra.mxu0 0.0
      %5010 = vmatprep.subr.mxu0 0.0
      %5011 = vmatpush1.msra.mxu0 0.0
      %5012 = vmatprep.subr.mxu0 0.0
      %5013 = vmatpush1.msra.mxu0 0.0
      %5014 = vmatprep.subr.mxu0 0.0
      %5015 = vmatpush1.msra.mxu0 0.0
      %5016 = vmatprep.subr.mxu0 0.0
      %5017 = vmatpush1.msra.mxu0 0.0
      %5018 = vmatprep.subr.mxu0 0.0
      %5019 = vmatpush1.msra.mxu0 0.0
      %5020 = vmatprep.subr.mxu0 0.0
      %5021 = vmatpush1.msra.mxu0 0.0
      %5022 = vmatprep.subr.mxu0 0.0
      %5023 = vmatpush1.msra.mxu0 0.0
      %5024 = vmatprep.subr.mxu0 0.0
      %5025 = vmatpush1.msra.mxu0 0.0
      %5026 = vmatprep.subr.mxu0 0.0
      %5027 = vmatpush1.msra.mxu0 0.0
      %5028 = vmatprep.subr.mxu0 0.0
      %5029 = vmatpush1.msra.mxu0 0.0
      %5030 = vmatprep.subr.mxu0 0.0
      %5031 = vmatpush1.msra.mxu0 0.0
      %5032 = vmatprep.subr.mxu0 0.0
      %5033 = vmatpush1.msra.mxu0 0.0
      %5034 = vmatprep.subr.mxu0 0.0
      %5035 = vmatpush1.msra.mxu0 0.0
      %5036 = vmatprep.subr.mxu0 0.0
      %5037 = vmatpush1.msra.mxu0 0.0
      %5038 = vmatprep.subr.mxu0 0.0
      %5039 = vmatpush1.msra.mxu0 0.0
      %5040 = vmatprep.subr.mxu0 0.0
      %5041 = vmatpush1.msra.mxu0 0.0
      %5042 = vmatprep.subr.mxu0 0.0
      %5043 = vmatpush1.msra.mxu0 0.0
      %5044 = vmatprep.subr.mxu0 0.0
      %5045 = vmatpush1.msra.mxu0 0.0
      %5046 = vmatprep.subr.mxu0 0.0
      %5047 = vmatpush1.msra.mxu0 0.0
      %5048 = vmatprep.mubr.f32.mxu0 0.0
      %5049 = vmatmul.mubr.f32.gmra.mrb[0].mxu0 %v4949
      %v5050 = vpop.f32.mrb[0].mxu0
      %v5051 = vadd.f32 0.0, %v5050
      %v5052 = vpop.f32.mrb[0].mxu0
      %5053 = vmatprep.mubr.f32.mxu0 0.0
      %5054 = vmatmul.mubr.f32.gmra.mrb[0].mxu0 %v4951
      %v5055 = vpop.f32.mrb[0].mxu0
      %v5056 = vadd.f32 0.0, %v5055
      %v5057 = vpop.f32.mrb[0].mxu0
      %5058 = vmatprep.mubr.f32.mxu0 0.0
      %5059 = vmatmul.mubr.f32.gmra.mrb[0].mxu0 %v4953
      %v5060 = vpop.f32.mrb[0].mxu0
      %v5061 = vadd.f32 0.0, %v5060
      %v5062 = vpop.f32.mrb[0].mxu0
      %5063 = vmatprep.mubr.f32.mxu0 0.0
      %5064 = vmatmul.mubr.f32.gmra.mrb[0].mxu0 %v4955
      %v5065 = vpop.f32.mrb[0].mxu0
      %v5066 = vadd.f32 0.0, %v5065
      %v5067 = vpop.f32.mrb[0].mxu0
      %5068 = vmatprep.mubr.f32.mxu0 0.0
      %5069 = vmatmul.mubr.f32.gmra.mrb[0].mxu0 %v4957
      %v5070 = vpop.f32.mrb[0].mxu0
      %v5071 = vadd.f32 0.0, %v5070
      %v5072 = vpop.f32.mrb[0].mxu0
      %5073 = vmatprep.mubr.f32.mxu0 0.0
      %5074 = vmatmul.mubr.f32.gmra.mrb[0].mxu0 %v4959
      %v5075 = vpop.f32.mrb[0].mxu0
      %v5076 = vadd.f32 0.0, %v5075
      %v5077 = vpop.f32.mrb[0].mxu0
      %5078 = vmatprep.mubr.f32.mxu0 0.0
      %5079 = vmatmul.mubr.f32.gmra.mrb[0].mxu0 %v4961
      %v5080 = vpop.f32.mrb[0].mxu0
      %v5081 = vadd.f32 0.0, %v5080
      %v5082 = vpop.f32.mrb[0].mxu0
      %5083 = vmatprep.mubr.f32.mxu0 0.0
      %5084 = vmatmul.mubr.f32.gmra.mrb[0].mxu0 %v4963
      %v5085 = vpop.f32.mrb[0].mxu0
      %v5086 = vadd.f32 0.0, %v5085
      %v5087 = vpop.f32.mrb[0].mxu0
      %5088 = vmatprep.mubr.f32.mxu0 0.0
      %5089 = vmatmul.mubr.f32.gmra.mrb[0].mxu0 %v4965
      %v5090 = vpop.f32.mrb[0].mxu0
      %v5091 = vadd.f32 0.0, %v5090
      %v5092 = vpop.f32.mrb[0].mxu0
      %5093 = vmatprep.mubr.f32.mxu0 0.0
      %5094 = vmatmul.mubr.f32.gmra.mrb[0].mxu0 %v4967
      %v5095 = vpop.f32.mrb[0].mxu0
      %v5096 = vadd.f32 0.0, %v5095
      %v5097 = vpop.f32.mrb[0].mxu0
      %5098 = vmatprep.mubr.f32.mxu0 0.0
      %5099 = vmatmul.mubr.f32.gmra.mrb[0].mxu0 %v4969
      %v5100 = vpop.f32.mrb[0].mxu0
      %v5101 = vadd.f32 0.0, %v5100
      %v5102 = vpop.f32.mrb[0].mxu0
      %5103 = vmatprep.mubr.f32.mxu0 0.0
      %5104 = vmatmul.mubr.f32.gmra.mrb[0].mxu0 %v4971
      %v5105 = vpop.f32.mrb[0].mxu0
      %v5106 = vadd.f32 0.0, %v5105
      %v5107 = vpop.f32.mrb[0].mxu0
      %5108 = vmatprep.mubr.f32.mxu0 0.0
      %5109 = vmatmul.mubr.f32.gmra.mrb[0].mxu0 %v4973
      %v5110 = vpop.f32.mrb[0].mxu0
      %v5111 = vadd.f32 0.0, %v5110
      %v5112 = vpop.f32.mrb[0].mxu0
      %5113 = vmatprep.mubr.f32.mxu0 0.0
      %5114 = vmatmul.mubr.f32.gmra.mrb[0].mxu0 %v4975
      %v5115 = vpop.f32.mrb[0].mxu0
      %v5116 = vadd.f32 0.0, %v5115
      %v5117 = vpop.f32.mrb[0].mxu0
      %5118 = vmatprep.mubr.f32.mxu0 0.0
      %5119 = vmatmul.mubr.f32.gmra.mrb[0].mxu0 %v4977
      %v5120 = vpop.f32.mrb[0].mxu0
      %v5121 = vadd.f32 0.0, %v5120
      %v5122 = vpop.f32.mrb[0].mxu0
      %5123 = vmatprep.mubr.f32.mxu0 0.0
      %5124 = vmatmul.mubr.f32.gmra.mrb[0].mxu0 %v4979
      %v5125 = vpop.f32.mrb[0].mxu0
      %v5126 = vadd.f32 0.0, %v5125
      %v5127 = vpop.f32.mrb[0].mxu0
      %5128 = vdwg.mxu0
      %v5129 = vsel %vm225, %v4819, 0
      %v5131 = vsel %vm225, %v4820, 0
      %v5133 = vsel %vm225, %v4822, 0
      %v5135 = vsel %vm225, %v4823, 0
      %v5137 = vsel %vm225, %v4825, 0
      %v5139 = vsel %vm225, %v4826, 0
      %v5141 = vsel %vm225, %v4828, 0
      %v5143 = vsel %vm225, %v4829, 0
      %v5145 = vsel %vm225, %v4831, 0
      %v5147 = vsel %vm225, %v4832, 0
      %v5149 = vsel %vm225, %v4834, 0
      %v5151 = vsel %vm225, %v4835, 0
      %v5153 = vsel %vm225, %v4837, 0
      %v5155 = vsel %vm225, %v4838, 0
      %v5157 = vsel %vm225, %v4840, 0
      %v5159 = vsel %vm225, %v4841, 0
      %v5162 = vsel %vm547, %v4947, 0
      %5164 = vmatprep.subr.mxu0 0.0
      %5165 = vmatpush1.msra.mxu0 %v5162
      %5166 = vmatprep.subr.mxu0 0.0
      %5167 = vmatpush1.msra.mxu0 0.0
      %5168 = vmatprep.subr.mxu0 0.0
      %5169 = vmatpush1.msra.mxu0 0.0
      %5170 = vmatprep.subr.mxu0 0.0
      %5171 = vmatpush1.msra.mxu0 0.0
      %5172 = vmatprep.subr.mxu0 0.0
      %5173 = vmatpush1.msra.mxu0 0.0
      %5174 = vmatprep.subr.mxu0 0.0
      %5175 = vmatpush1.msra.mxu0 0.0
      %5176 = vmatprep.subr.mxu0 0.0
      %5177 = vmatpush1.msra.mxu0 0.0
      %5178 = vmatprep.subr.mxu0 0.0
      %5179 = vmatpush1.msra.mxu0 0.0
      %5180 = vmatprep.subr.mxu0 0.0
      %5181 = vmatpush1.msra.mxu0 0.0
      %5182 = vmatprep.subr.mxu0 0.0
      %5183 = vmatpush1.msra.mxu0 0.0
      %5184 = vmatprep.subr.mxu0 0.0
      %5185 = vmatpush1.msra.mxu0 0.0
      %5186 = vmatprep.subr.mxu0 0.0
      %5187 = vmatpush1.msra.mxu0 0.0
      %5188 = vmatprep.subr.mxu0 0.0
      %5189 = vmatpush1.msra.mxu0 0.0
      %5190 = vmatprep.subr.mxu0 0.0
      %5191 = vmatpush1.msra.mxu0 0.0
      %5192 = vmatprep.subr.mxu0 0.0
      %5193 = vmatpush1.msra.mxu0 0.0
      %5194 = vmatprep.subr.mxu0 0.0
      %5195 = vmatpush1.msra.mxu0 0.0
      %5196 = vmatprep.subr.mxu0 0.0
      %5197 = vmatpush1.msra.mxu0 0.0
      %5198 = vmatprep.subr.mxu0 0.0
      %5199 = vmatpush1.msra.mxu0 0.0
      %5200 = vmatprep.subr.mxu0 0.0
      %5201 = vmatpush1.msra.mxu0 0.0
      %5202 = vmatprep.subr.mxu0 0.0
      %5203 = vmatpush1.msra.mxu0 0.0
      %5204 = vmatprep.subr.mxu0 0.0
      %5205 = vmatpush1.msra.mxu0 0.0
      %5206 = vmatprep.subr.mxu0 0.0
      %5207 = vmatpush1.msra.mxu0 0.0
      %5208 = vmatprep.subr.mxu0 0.0
      %5209 = vmatpush1.msra.mxu0 0.0
      %5210 = vmatprep.subr.mxu0 0.0
      %5211 = vmatpush1.msra.mxu0 0.0
      %5212 = vmatprep.subr.mxu0 0.0
      %5213 = vmatpush1.msra.mxu0 0.0
      %5214 = vmatprep.subr.mxu0 0.0
      %5215 = vmatpush1.msra.mxu0 0.0
      %5216 = vmatprep.subr.mxu0 0.0
      %5217 = vmatpush1.msra.mxu0 0.0
      %5218 = vmatprep.subr.mxu0 0.0
      %5219 = vmatpush1.msra.mxu0 0.0
      %5220 = vmatprep.subr.mxu0 0.0
      %5221 = vmatpush1.msra.mxu0 0.0
      %5222 = vmatprep.subr.mxu0 0.0
      %5223 = vmatpush1.msra.mxu0 0.0
      %5224 = vmatprep.subr.mxu0 0.0
      %5225 = vmatpush1.msra.mxu0 0.0
      %5226 = vmatprep.subr.mxu0 0.0
      %5227 = vmatpush1.msra.mxu0 0.0
      %5228 = vmatprep.mubr.f32.mxu0 0.0
      %5229 = vmatmul.mubr.f32.gmra.mrb[0].mxu0 %v5129
      %v5230 = vpop.f32.mrb[0].mxu0
      %v5231 = vadd.f32 %v5051, %v5230
      %v5232 = vpop.f32.mrb[0].mxu0
      %5233 = vmatprep.mubr.f32.mxu0 0.0
      %5234 = vmatmul.mubr.f32.gmra.mrb[0].mxu0 %v5131
      %v5235 = vpop.f32.mrb[0].mxu0
      %v5236 = vadd.f32 %v5056, %v5235
      %v5237 = vpop.f32.mrb[0].mxu0
      %5238 = vmatprep.mubr.f32.mxu0 0.0
      %5239 = vmatmul.mubr.f32.gmra.mrb[0].mxu0 %v5133
      %v5240 = vpop.f32.mrb[0].mxu0
      %v5241 = vadd.f32 %v5061, %v5240
      %v5242 = vpop.f32.mrb[0].mxu0
      %5243 = vmatprep.mubr.f32.mxu0 0.0
      %5244 = vmatmul.mubr.f32.gmra.mrb[0].mxu0 %v5135
      %v5245 = vpop.f32.mrb[0].mxu0
      %v5246 = vadd.f32 %v5066, %v5245
      %v5247 = vpop.f32.mrb[0].mxu0
      %5248 = vmatprep.mubr.f32.mxu0 0.0
      %5249 = vmatmul.mubr.f32.gmra.mrb[0].mxu0 %v5137
      %v5250 = vpop.f32.mrb[0].mxu0
      %v5251 = vadd.f32 %v5071, %v5250
      %v5252 = vpop.f32.mrb[0].mxu0
      %5253 = vmatprep.mubr.f32.mxu0 0.0
      %5254 = vmatmul.mubr.f32.gmra.mrb[0].mxu0 %v5139
      %v5255 = vpop.f32.mrb[0].mxu0
      %v5256 = vadd.f32 %v5076, %v5255
      %v5257 = vpop.f32.mrb[0].mxu0
      %5258 = vmatprep.mubr.f32.mxu0 0.0
      %5259 = vmatmul.mubr.f32.gmra.mrb[0].mxu0 %v5141
      %v5260 = vpop.f32.mrb[0].mxu0
      %v5261 = vadd.f32 %v5081, %v5260
      %v5262 = vpop.f32.mrb[0].mxu0
      %5263 = vmatprep.mubr.f32.mxu0 0.0
      %5264 = vmatmul.mubr.f32.gmra.mrb[0].mxu0 %v5143
      %v5265 = vpop.f32.mrb[0].mxu0
      %v5266 = vadd.f32 %v5086, %v5265
      %v5267 = vpop.f32.mrb[0].mxu0
      %5268 = vmatprep.mubr.f32.mxu0 0.0
      %5269 = vmatmul.mubr.f32.gmra.mrb[0].mxu0 %v5145
      %v5270 = vpop.f32.mrb[0].mxu0
      %v5271 = vadd.f32 %v5091, %v5270
      %v5272 = vpop.f32.mrb[0].mxu0
      %5273 = vmatprep.mubr.f32.mxu0 0.0
      %5274 = vmatmul.mubr.f32.gmra.mrb[0].mxu0 %v5147
      %v5275 = vpop.f32.mrb[0].mxu0
      %v5276 = vadd.f32 %v5096, %v5275
      %v5277 = vpop.f32.mrb[0].mxu0
      %5278 = vmatprep.mubr.f32.mxu0 0.0
      %5279 = vmatmul.mubr.f32.gmra.mrb[0].mxu0 %v5149
      %v5280 = vpop.f32.mrb[0].mxu0
      %v5281 = vadd.f32 %v5101, %v5280
      %v5282 = vpop.f32.mrb[0].mxu0
      %5283 = vmatprep.mubr.f32.mxu0 0.0
      %5284 = vmatmul.mubr.f32.gmra.mrb[0].mxu0 %v5151
      %v5285 = vpop.f32.mrb[0].mxu0
      %v5286 = vadd.f32 %v5106, %v5285
      %v5287 = vpop.f32.mrb[0].mxu0
      %5288 = vmatprep.mubr.f32.mxu0 0.0
      %5289 = vmatmul.mubr.f32.gmra.mrb[0].mxu0 %v5153
      %v5290 = vpop.f32.mrb[0].mxu0
      %v5291 = vadd.f32 %v5111, %v5290
      %v5292 = vpop.f32.mrb[0].mxu0
      %5293 = vmatprep.mubr.f32.mxu0 0.0
      %5294 = vmatmul.mubr.f32.gmra.mrb[0].mxu0 %v5155
      %v5295 = vpop.f32.mrb[0].mxu0
      %v5296 = vadd.f32 %v5116, %v5295
      %v5297 = vpop.f32.mrb[0].mxu0
      %5298 = vmatprep.mubr.f32.mxu0 0.0
      %5299 = vmatmul.mubr.f32.gmra.mrb[0].mxu0 %v5157
      %v5300 = vpop.f32.mrb[0].mxu0
      %v5301 = vadd.f32 %v5121, %v5300
      %v5302 = vpop.f32.mrb[0].mxu0
      %5303 = vmatprep.mubr.f32.mxu0 0.0
      %5304 = vmatmul.mubr.f32.gmra.mrb[0].mxu0 %v5159
      %v5305 = vpop.f32.mrb[0].mxu0
      %v5306 = vadd.f32 %v5126, %v5305
      %v5307 = vpop.f32.mrb[0].mxu0
      %5308 = vdwg.mxu0
      %v5309 = vld [vmem:[%s3 + $0x8] sm:$0xf]
      %v5310 = vsel %vm225, %v4909, 0
      %v5312 = vsel %vm225, %v4911, 0
      %v5314 = vsel %vm225, %v4914, 0
      %v5316 = vsel %vm225, %v4916, 0
      %v5318 = vsel %vm225, %v4919, 0
      %v5320 = vsel %vm225, %v4921, 0
      %v5322 = vsel %vm225, %v4924, 0
      %v5324 = vsel %vm225, %v4926, 0
      %v5326 = vsel %vm225, %v4929, 0
      %v5328 = vsel %vm225, %v4931, 0
      %v5330 = vsel %vm225, %v4934, 0
      %v5332 = vsel %vm225, %v4936, 0
      %v5334 = vsel %vm225, %v4939, 0
      %v5336 = vsel %vm225, %v4941, 0
      %v5338 = vsel %vm225, %v4944, 0
      %v5340 = vsel %vm225, %v4946, 0
      %v5343 = vsel %vm547, %v5309, 0
      %5345 = vmatprep.subr.mxu0 0.0
      %5346 = vmatpush1.msra.mxu0 %v5343
      %5347 = vmatprep.subr.mxu0 0.0
      %5348 = vmatpush1.msra.mxu0 0.0
      %5349 = vmatprep.subr.mxu0 0.0
      %5350 = vmatpush1.msra.mxu0 0.0
      %5351 = vmatprep.subr.mxu0 0.0
      %5352 = vmatpush1.msra.mxu0 0.0
      %5353 = vmatprep.subr.mxu0 0.0
      %5354 = vmatpush1.msra.mxu0 0.0
      %5355 = vmatprep.subr.mxu0 0.0
      %5356 = vmatpush1.msra.mxu0 0.0
      %5357 = vmatprep.subr.mxu0 0.0
      %5358 = vmatpush1.msra.mxu0 0.0
      %5359 = vmatprep.subr.mxu0 0.0
      %5360 = vmatpush1.msra.mxu0 0.0
      %5361 = vmatprep.subr.mxu0 0.0
      %5362 = vmatpush1.msra.mxu0 0.0
      %5363 = vmatprep.subr.mxu0 0.0
      %5364 = vmatpush1.msra.mxu0 0.0
      %5365 = vmatprep.subr.mxu0 0.0
      %5366 = vmatpush1.msra.mxu0 0.0
      %5367 = vmatprep.subr.mxu0 0.0
      %5368 = vmatpush1.msra.mxu0 0.0
      %5369 = vmatprep.subr.mxu0 0.0
      %5370 = vmatpush1.msra.mxu0 0.0
      %5371 = vmatprep.subr.mxu0 0.0
      %5372 = vmatpush1.msra.mxu0 0.0
      %5373 = vmatprep.subr.mxu0 0.0
      %5374 = vmatpush1.msra.mxu0 0.0
      %5375 = vmatprep.subr.mxu0 0.0
      %5376 = vmatpush1.msra.mxu0 0.0
      %5377 = vmatprep.subr.mxu0 0.0
      %5378 = vmatpush1.msra.mxu0 0.0
      %5379 = vmatprep.subr.mxu0 0.0
      %5380 = vmatpush1.msra.mxu0 0.0
      %5381 = vmatprep.subr.mxu0 0.0
      %5382 = vmatpush1.msra.mxu0 0.0
      %5383 = vmatprep.subr.mxu0 0.0
      %5384 = vmatpush1.msra.mxu0 0.0
      %5385 = vmatprep.subr.mxu0 0.0
      %5386 = vmatpush1.msra.mxu0 0.0
      %5387 = vmatprep.subr.mxu0 0.0
      %5388 = vmatpush1.msra.mxu0 0.0
      %5389 = vmatprep.subr.mxu0 0.0
      %5390 = vmatpush1.msra.mxu0 0.0
      %5391 = vmatprep.subr.mxu0 0.0
      %5392 = vmatpush1.msra.mxu0 0.0
      %5393 = vmatprep.subr.mxu0 0.0
      %5394 = vmatpush1.msra.mxu0 0.0
      %5395 = vmatprep.subr.mxu0 0.0
      %5396 = vmatpush1.msra.mxu0 0.0
      %5397 = vmatprep.subr.mxu0 0.0
      %5398 = vmatpush1.msra.mxu0 0.0
      %5399 = vmatprep.subr.mxu0 0.0
      %5400 = vmatpush1.msra.mxu0 0.0
      %5401 = vmatprep.subr.mxu0 0.0
      %5402 = vmatpush1.msra.mxu0 0.0
      %5403 = vmatprep.subr.mxu0 0.0
      %5404 = vmatpush1.msra.mxu0 0.0
      %5405 = vmatprep.subr.mxu0 0.0
      %5406 = vmatpush1.msra.mxu0 0.0
      %5407 = vmatprep.subr.mxu0 0.0
      %5408 = vmatpush1.msra.mxu0 0.0
      %5409 = vmatprep.mubr.f32.mxu0 0.0
      %5410 = vmatmul.mubr.f32.gmra.mrb[0].mxu0 %v5310
      %v5411 = vpop.f32.mrb[0].mxu0
      %v5412 = vadd.f32 0.0, %v5411
      %v5413 = vpop.f32.mrb[0].mxu0
      %5414 = vmatprep.mubr.f32.mxu0 0.0
      %5415 = vmatmul.mubr.f32.gmra.mrb[0].mxu0 %v5312
      %v5416 = vpop.f32.mrb[0].mxu0
      %v5417 = vadd.f32 0.0, %v5416
      %v5418 = vpop.f32.mrb[0].mxu0
      %5419 = vmatprep.mubr.f32.mxu0 0.0
      %5420 = vmatmul.mubr.f32.gmra.mrb[0].mxu0 %v5314
      %v5421 = vpop.f32.mrb[0].mxu0
      %v5422 = vadd.f32 0.0, %v5421
      %v5423 = vpop.f32.mrb[0].mxu0
      %5424 = vmatprep.mubr.f32.mxu0 0.0
      %5425 = vmatmul.mubr.f32.gmra.mrb[0].mxu0 %v5316
      %v5426 = vpop.f32.mrb[0].mxu0
      %v5427 = vadd.f32 0.0, %v5426
      %v5428 = vpop.f32.mrb[0].mxu0
      %5429 = vmatprep.mubr.f32.mxu0 0.0
      %5430 = vmatmul.mubr.f32.gmra.mrb[0].mxu0 %v5318
      %v5431 = vpop.f32.mrb[0].mxu0
      %v5432 = vadd.f32 0.0, %v5431
      %v5433 = vpop.f32.mrb[0].mxu0
      %5434 = vmatprep.mubr.f32.mxu0 0.0
      %5435 = vmatmul.mubr.f32.gmra.mrb[0].mxu0 %v5320
      %v5436 = vpop.f32.mrb[0].mxu0
      %v5437 = vadd.f32 0.0, %v5436
      %v5438 = vpop.f32.mrb[0].mxu0
      %5439 = vmatprep.mubr.f32.mxu0 0.0
      %5440 = vmatmul.mubr.f32.gmra.mrb[0].mxu0 %v5322
      %v5441 = vpop.f32.mrb[0].mxu0
      %v5442 = vadd.f32 0.0, %v5441
      %v5443 = vpop.f32.mrb[0].mxu0
      %5444 = vmatprep.mubr.f32.mxu0 0.0
      %5445 = vmatmul.mubr.f32.gmra.mrb[0].mxu0 %v5324
      %v5446 = vpop.f32.mrb[0].mxu0
      %v5447 = vadd.f32 0.0, %v5446
      %v5448 = vpop.f32.mrb[0].mxu0
      %5449 = vmatprep.mubr.f32.mxu0 0.0
      %5450 = vmatmul.mubr.f32.gmra.mrb[0].mxu0 %v5326
      %v5451 = vpop.f32.mrb[0].mxu0
      %v5452 = vadd.f32 0.0, %v5451
      %v5453 = vpop.f32.mrb[0].mxu0
      %5454 = vmatprep.mubr.f32.mxu0 0.0
      %5455 = vmatmul.mubr.f32.gmra.mrb[0].mxu0 %v5328
      %v5456 = vpop.f32.mrb[0].mxu0
      %v5457 = vadd.f32 0.0, %v5456
      %v5458 = vpop.f32.mrb[0].mxu0
      %5459 = vmatprep.mubr.f32.mxu0 0.0
      %5460 = vmatmul.mubr.f32.gmra.mrb[0].mxu0 %v5330
      %v5461 = vpop.f32.mrb[0].mxu0
      %v5462 = vadd.f32 0.0, %v5461
      %v5463 = vpop.f32.mrb[0].mxu0
      %5464 = vmatprep.mubr.f32.mxu0 0.0
      %5465 = vmatmul.mubr.f32.gmra.mrb[0].mxu0 %v5332
      %v5466 = vpop.f32.mrb[0].mxu0
      %v5467 = vadd.f32 0.0, %v5466
      %v5468 = vpop.f32.mrb[0].mxu0
      %5469 = vmatprep.mubr.f32.mxu0 0.0
      %5470 = vmatmul.mubr.f32.gmra.mrb[0].mxu0 %v5334
      %v5471 = vpop.f32.mrb[0].mxu0
      %v5472 = vadd.f32 0.0, %v5471
      %v5473 = vpop.f32.mrb[0].mxu0
      %5474 = vmatprep.mubr.f32.mxu0 0.0
      %5475 = vmatmul.mubr.f32.gmra.mrb[0].mxu0 %v5336
      %v5476 = vpop.f32.mrb[0].mxu0
      %v5477 = vadd.f32 0.0, %v5476
      %v5478 = vpop.f32.mrb[0].mxu0
      %5479 = vmatprep.mubr.f32.mxu0 0.0
      %5480 = vmatmul.mubr.f32.gmra.mrb[0].mxu0 %v5338
      %v5481 = vpop.f32.mrb[0].mxu0
      %v5482 = vadd.f32 0.0, %v5481
      %v5483 = vpop.f32.mrb[0].mxu0
      %5484 = vmatprep.mubr.f32.mxu0 0.0
      %5485 = vmatmul.mubr.f32.gmra.mrb[0].mxu0 %v5340
      %v5486 = vpop.f32.mrb[0].mxu0
      %v5487 = vadd.f32 0.0, %v5486
      %v5488 = vpop.f32.mrb[0].mxu0
      %5489 = vdwg.mxu0
      %v5490 = vadd.f32 %v5231, %v5412
      %v5491 = vadd.f32 %v5236, %v5417
      %v5492 = vadd.f32 %v5241, %v5422
      %v5493 = vadd.f32 %v5246, %v5427
      %v5494 = vadd.f32 %v5251, %v5432
      %v5495 = vadd.f32 %v5256, %v5437
      %v5496 = vadd.f32 %v5261, %v5442
      %v5497 = vadd.f32 %v5266, %v5447
      %v5498 = vadd.f32 %v5271, %v5452
      %v5499 = vadd.f32 %v5276, %v5457
      %v5500 = vadd.f32 %v5281, %v5462
      %v5501 = vadd.f32 %v5286, %v5467
      %v5502 = vadd.f32 %v5291, %v5472
      %v5503 = vadd.f32 %v5296, %v5477
      %v5504 = vadd.f32 %v5301, %v5482
      %v5505 = vadd.f32 %v5306, %v5487
      %v5506 = vld [vmem:[%s2587] sm:$0xff]
      %v5507 = vld [vmem:[%s2587 + $0x8] sm:$0xff]
      %v5508 = vld [vmem:[%s2587 + $0x10] sm:$0x3]
      %v5509 = vld [vmem:[%s2587 + $0x18] sm:$0xff]
      %v5510 = vld [vmem:[%s2587 + $0x20] sm:$0xff]
      %v5511 = vld [vmem:[%s2587 + $0x28] sm:$0x3]
      %v5512 = vld [vmem:[%s2587 + $0x30] sm:$0xff]
      %v5513 = vld [vmem:[%s2587 + $0x38] sm:$0xff]
      %v5514 = vld [vmem:[%s2587 + $0x40] sm:$0x3]
      %v5515 = vld [vmem:[%s2587 + $0x48] sm:$0xff]
      %v5516 = vld [vmem:[%s2587 + $0x50] sm:$0xff]
      %v5517 = vld [vmem:[%s2587 + $0x58] sm:$0x3]
      %v5518 = vld [vmem:[%s2587 + $0x60] sm:$0xff]
      %v5519 = vld [vmem:[%s2587 + $0x68] sm:$0xff]
      %v5520 = vld [vmem:[%s2587 + $0x70] sm:$0x3]
      %v5521 = vld [vmem:[%s2587 + $0x78] sm:$0xff]
      %v5522 = vld [vmem:[%s2587 + $0x80] sm:$0xff]
      %v5523 = vld [vmem:[%s2587 + $0x88] sm:$0x3]
      %v5524 = vld [vmem:[%s2587 + $0x90] sm:$0xff]
      %v5525 = vld [vmem:[%s2587 + $0x98] sm:$0xff]
      %v5526 = vld [vmem:[%s2587 + $0xa0] sm:$0x3]
      %v5527 = vld [vmem:[%s2587 + $0xa8] sm:$0xff]
      %v5528 = vld [vmem:[%s2587 + $0xb0] sm:$0xff]
      %v5529 = vld [vmem:[%s2587 + $0xb8] sm:$0x3]
      %v5554 = vrot.slane %v5506, 1
      %v5555 = vrot.slane %v5507, 1
      %v5556 = vsel %vm431, %v5554, %v5555
      %v5557 = vrot.slane %v5508, 1
      %v5558 = vsel %vm431, %v5555, %v5557
      %v5559 = vrot.slane %v5509, 1
      %v5560 = vrot.slane %v5510, 1
      %v5561 = vsel %vm431, %v5559, %v5560
      %v5562 = vrot.slane %v5511, 1
      %v5563 = vsel %vm431, %v5560, %v5562
      %v5564 = vrot.slane %v5512, 1
      %v5565 = vrot.slane %v5513, 1
      %v5566 = vsel %vm431, %v5564, %v5565
      %v5567 = vrot.slane %v5514, 1
      %v5568 = vsel %vm431, %v5565, %v5567
      %v5569 = vrot.slane %v5515, 1
      %v5570 = vrot.slane %v5516, 1
      %v5571 = vsel %vm431, %v5569, %v5570
      %v5572 = vrot.slane %v5517, 1
      %v5573 = vsel %vm431, %v5570, %v5572
      %v5574 = vrot.slane %v5518, 1
      %v5575 = vrot.slane %v5519, 1
      %v5576 = vsel %vm431, %v5574, %v5575
      %v5577 = vrot.slane %v5520, 1
      %v5578 = vsel %vm431, %v5575, %v5577
      %v5579 = vrot.slane %v5521, 1
      %v5580 = vrot.slane %v5522, 1
      %v5581 = vsel %vm431, %v5579, %v5580
      %v5582 = vrot.slane %v5523, 1
      %v5583 = vsel %vm431, %v5580, %v5582
      %v5584 = vrot.slane %v5524, 1
      %v5585 = vrot.slane %v5525, 1
      %v5586 = vsel %vm431, %v5584, %v5585
      %v5587 = vrot.slane %v5526, 1
      %v5588 = vsel %vm431, %v5585, %v5587
      %v5589 = vrot.slane %v5527, 1
      %v5590 = vrot.slane %v5528, 1
      %v5591 = vsel %vm431, %v5589, %v5590
      %v5592 = vrot.slane %v5529, 1
      %v5593 = vsel %vm431, %v5590, %v5592
      %v5594 = vrot.slane %v5506, 2
      %v5595 = vrot.slane %v5507, 2
      %v5596 = vsel %vm472, %v5594, %v5595
      %v5597 = vrot.slane %v5508, 2
      %v5598 = vsel %vm472, %v5595, %v5597
      %v5599 = vrot.slane %v5509, 2
      %v5600 = vrot.slane %v5510, 2
      %v5601 = vsel %vm472, %v5599, %v5600
      %v5602 = vrot.slane %v5511, 2
      %v5603 = vsel %vm472, %v5600, %v5602
      %v5604 = vrot.slane %v5512, 2
      %v5605 = vrot.slane %v5513, 2
      %v5606 = vsel %vm472, %v5604, %v5605
      %v5607 = vrot.slane %v5514, 2
      %v5608 = vsel %vm472, %v5605, %v5607
      %v5609 = vrot.slane %v5515, 2
      %v5610 = vrot.slane %v5516, 2
      %v5611 = vsel %vm472, %v5609, %v5610
      %v5612 = vrot.slane %v5517, 2
      %v5613 = vsel %vm472, %v5610, %v5612
      %v5614 = vrot.slane %v5518, 2
      %v5615 = vrot.slane %v5519, 2
      %v5616 = vsel %vm472, %v5614, %v5615
      %v5617 = vrot.slane %v5520, 2
      %v5618 = vsel %vm472, %v5615, %v5617
      %v5619 = vrot.slane %v5521, 2
      %v5620 = vrot.slane %v5522, 2
      %v5621 = vsel %vm472, %v5619, %v5620
      %v5622 = vrot.slane %v5523, 2
      %v5623 = vsel %vm472, %v5620, %v5622
      %v5624 = vrot.slane %v5524, 2
      %v5625 = vrot.slane %v5525, 2
      %v5626 = vsel %vm472, %v5624, %v5625
      %v5627 = vrot.slane %v5526, 2
      %v5628 = vsel %vm472, %v5625, %v5627
      %v5629 = vrot.slane %v5527, 2
      %v5630 = vrot.slane %v5528, 2
      %v5631 = vsel %vm472, %v5629, %v5630
      %v5632 = vrot.slane %v5529, 2
      %v5633 = vsel %vm472, %v5630, %v5632
      %v5634 = vld [vmem:[%s3 + $0xc] sm:$0xf]
      %v5635 = vsel %vm225, %v5506, 0
      %v5637 = vsel %vm225, %v5507, 0
      %v5639 = vsel %vm225, %v5509, 0
      %v5641 = vsel %vm225, %v5510, 0
      %v5643 = vsel %vm225, %v5512, 0
      %v5645 = vsel %vm225, %v5513, 0
      %v5647 = vsel %vm225, %v5515, 0
      %v5649 = vsel %vm225, %v5516, 0
      %v5651 = vsel %vm225, %v5518, 0
      %v5653 = vsel %vm225, %v5519, 0
      %v5655 = vsel %vm225, %v5521, 0
      %v5657 = vsel %vm225, %v5522, 0
      %v5659 = vsel %vm225, %v5524, 0
      %v5661 = vsel %vm225, %v5525, 0
      %v5663 = vsel %vm225, %v5527, 0
      %v5665 = vsel %vm225, %v5528, 0
      %v5668 = vsel %vm547, %v5634, 0
      %5670 = vmatprep.subr.mxu0 0.0
      %5671 = vmatpush1.msra.mxu0 %v5668
      %5672 = vmatprep.subr.mxu0 0.0
      %5673 = vmatpush1.msra.mxu0 0.0
      %5674 = vmatprep.subr.mxu0 0.0
      %5675 = vmatpush1.msra.mxu0 0.0
      %5676 = vmatprep.subr.mxu0 0.0
      %5677 = vmatpush1.msra.mxu0 0.0
      %5678 = vmatprep.subr.mxu0 0.0
      %5679 = vmatpush1.msra.mxu0 0.0
      %5680 = vmatprep.subr.mxu0 0.0
      %5681 = vmatpush1.msra.mxu0 0.0
      %5682 = vmatprep.subr.mxu0 0.0
      %5683 = vmatpush1.msra.mxu0 0.0
      %5684 = vmatprep.subr.mxu0 0.0
      %5685 = vmatpush1.msra.mxu0 0.0
      %5686 = vmatprep.subr.mxu0 0.0
      %5687 = vmatpush1.msra.mxu0 0.0
      %5688 = vmatprep.subr.mxu0 0.0
      %5689 = vmatpush1.msra.mxu0 0.0
      %5690 = vmatprep.subr.mxu0 0.0
      %5691 = vmatpush1.msra.mxu0 0.0
      %5692 = vmatprep.subr.mxu0 0.0
      %5693 = vmatpush1.msra.mxu0 0.0
      %5694 = vmatprep.subr.mxu0 0.0
      %5695 = vmatpush1.msra.mxu0 0.0
      %5696 = vmatprep.subr.mxu0 0.0
      %5697 = vmatpush1.msra.mxu0 0.0
      %5698 = vmatprep.subr.mxu0 0.0
      %5699 = vmatpush1.msra.mxu0 0.0
      %5700 = vmatprep.subr.mxu0 0.0
      %5701 = vmatpush1.msra.mxu0 0.0
      %5702 = vmatprep.subr.mxu0 0.0
      %5703 = vmatpush1.msra.mxu0 0.0
      %5704 = vmatprep.subr.mxu0 0.0
      %5705 = vmatpush1.msra.mxu0 0.0
      %5706 = vmatprep.subr.mxu0 0.0
      %5707 = vmatpush1.msra.mxu0 0.0
      %5708 = vmatprep.subr.mxu0 0.0
      %5709 = vmatpush1.msra.mxu0 0.0
      %5710 = vmatprep.subr.mxu0 0.0
      %5711 = vmatpush1.msra.mxu0 0.0
      %5712 = vmatprep.subr.mxu0 0.0
      %5713 = vmatpush1.msra.mxu0 0.0
      %5714 = vmatprep.subr.mxu0 0.0
      %5715 = vmatpush1.msra.mxu0 0.0
      %5716 = vmatprep.subr.mxu0 0.0
      %5717 = vmatpush1.msra.mxu0 0.0
      %5718 = vmatprep.subr.mxu0 0.0
      %5719 = vmatpush1.msra.mxu0 0.0
      %5720 = vmatprep.subr.mxu0 0.0
      %5721 = vmatpush1.msra.mxu0 0.0
      %5722 = vmatprep.subr.mxu0 0.0
      %5723 = vmatpush1.msra.mxu0 0.0
      %5724 = vmatprep.subr.mxu0 0.0
      %5725 = vmatpush1.msra.mxu0 0.0
      %5726 = vmatprep.subr.mxu0 0.0
      %5727 = vmatpush1.msra.mxu0 0.0
      %5728 = vmatprep.subr.mxu0 0.0
      %5729 = vmatpush1.msra.mxu0 0.0
      %5730 = vmatprep.subr.mxu0 0.0
      %5731 = vmatpush1.msra.mxu0 0.0
      %5732 = vmatprep.subr.mxu0 0.0
      %5733 = vmatpush1.msra.mxu0 0.0
      %5734 = vmatprep.mubr.f32.mxu0 0.0
      %5735 = vmatmul.mubr.f32.gmra.mrb[0].mxu0 %v5635
      %v5736 = vpop.f32.mrb[0].mxu0
      %v5737 = vadd.f32 0.0, %v5736
      %v5738 = vpop.f32.mrb[0].mxu0
      %5739 = vmatprep.mubr.f32.mxu0 0.0
      %5740 = vmatmul.mubr.f32.gmra.mrb[0].mxu0 %v5637
      %v5741 = vpop.f32.mrb[0].mxu0
      %v5742 = vadd.f32 0.0, %v5741
      %v5743 = vpop.f32.mrb[0].mxu0
      %5744 = vmatprep.mubr.f32.mxu0 0.0
      %5745 = vmatmul.mubr.f32.gmra.mrb[0].mxu0 %v5639
      %v5746 = vpop.f32.mrb[0].mxu0
      %v5747 = vadd.f32 0.0, %v5746
      %v5748 = vpop.f32.mrb[0].mxu0
      %5749 = vmatprep.mubr.f32.mxu0 0.0
      %5750 = vmatmul.mubr.f32.gmra.mrb[0].mxu0 %v5641
      %v5751 = vpop.f32.mrb[0].mxu0
      %v5752 = vadd.f32 0.0, %v5751
      %v5753 = vpop.f32.mrb[0].mxu0
      %5754 = vmatprep.mubr.f32.mxu0 0.0
      %5755 = vmatmul.mubr.f32.gmra.mrb[0].mxu0 %v5643
      %v5756 = vpop.f32.mrb[0].mxu0
      %v5757 = vadd.f32 0.0, %v5756
      %v5758 = vpop.f32.mrb[0].mxu0
      %5759 = vmatprep.mubr.f32.mxu0 0.0
      %5760 = vmatmul.mubr.f32.gmra.mrb[0].mxu0 %v5645
      %v5761 = vpop.f32.mrb[0].mxu0
      %v5762 = vadd.f32 0.0, %v5761
      %v5763 = vpop.f32.mrb[0].mxu0
      %5764 = vmatprep.mubr.f32.mxu0 0.0
      %5765 = vmatmul.mubr.f32.gmra.mrb[0].mxu0 %v5647
      %v5766 = vpop.f32.mrb[0].mxu0
      %v5767 = vadd.f32 0.0, %v5766
      %v5768 = vpop.f32.mrb[0].mxu0
      %5769 = vmatprep.mubr.f32.mxu0 0.0
      %5770 = vmatmul.mubr.f32.gmra.mrb[0].mxu0 %v5649
      %v5771 = vpop.f32.mrb[0].mxu0
      %v5772 = vadd.f32 0.0, %v5771
      %v5773 = vpop.f32.mrb[0].mxu0
      %5774 = vmatprep.mubr.f32.mxu0 0.0
      %5775 = vmatmul.mubr.f32.gmra.mrb[0].mxu0 %v5651
      %v5776 = vpop.f32.mrb[0].mxu0
      %v5777 = vadd.f32 0.0, %v5776
      %v5778 = vpop.f32.mrb[0].mxu0
      %5779 = vmatprep.mubr.f32.mxu0 0.0
      %5780 = vmatmul.mubr.f32.gmra.mrb[0].mxu0 %v5653
      %v5781 = vpop.f32.mrb[0].mxu0
      %v5782 = vadd.f32 0.0, %v5781
      %v5783 = vpop.f32.mrb[0].mxu0
      %5784 = vmatprep.mubr.f32.mxu0 0.0
      %5785 = vmatmul.mubr.f32.gmra.mrb[0].mxu0 %v5655
      %v5786 = vpop.f32.mrb[0].mxu0
      %v5787 = vadd.f32 0.0, %v5786
      %v5788 = vpop.f32.mrb[0].mxu0
      %5789 = vmatprep.mubr.f32.mxu0 0.0
      %5790 = vmatmul.mubr.f32.gmra.mrb[0].mxu0 %v5657
      %v5791 = vpop.f32.mrb[0].mxu0
      %v5792 = vadd.f32 0.0, %v5791
      %v5793 = vpop.f32.mrb[0].mxu0
      %5794 = vmatprep.mubr.f32.mxu0 0.0
      %5795 = vmatmul.mubr.f32.gmra.mrb[0].mxu0 %v5659
      %v5796 = vpop.f32.mrb[0].mxu0
      %v5797 = vadd.f32 0.0, %v5796
      %v5798 = vpop.f32.mrb[0].mxu0
      %5799 = vmatprep.mubr.f32.mxu0 0.0
      %5800 = vmatmul.mubr.f32.gmra.mrb[0].mxu0 %v5661
      %v5801 = vpop.f32.mrb[0].mxu0
      %v5802 = vadd.f32 0.0, %v5801
      %v5803 = vpop.f32.mrb[0].mxu0
      %5804 = vmatprep.mubr.f32.mxu0 0.0
      %5805 = vmatmul.mubr.f32.gmra.mrb[0].mxu0 %v5663
      %v5806 = vpop.f32.mrb[0].mxu0
      %v5807 = vadd.f32 0.0, %v5806
      %v5808 = vpop.f32.mrb[0].mxu0
      %5809 = vmatprep.mubr.f32.mxu0 0.0
      %5810 = vmatmul.mubr.f32.gmra.mrb[0].mxu0 %v5665
      %v5811 = vpop.f32.mrb[0].mxu0
      %v5812 = vadd.f32 0.0, %v5811
      %v5813 = vpop.f32.mrb[0].mxu0
      %5814 = vdwg.mxu0
      %v5815 = vadd.f32 %v5490, %v5737
      %v5816 = vadd.f32 %v5491, %v5742
      %v5817 = vadd.f32 %v5492, %v5747
      %v5818 = vadd.f32 %v5493, %v5752
      %v5819 = vadd.f32 %v5494, %v5757
      %v5820 = vadd.f32 %v5495, %v5762
      %v5821 = vadd.f32 %v5496, %v5767
      %v5822 = vadd.f32 %v5497, %v5772
      %v5823 = vadd.f32 %v5498, %v5777
      %v5824 = vadd.f32 %v5499, %v5782
      %v5825 = vadd.f32 %v5500, %v5787
      %v5826 = vadd.f32 %v5501, %v5792
      %v5827 = vadd.f32 %v5502, %v5797
      %v5828 = vadd.f32 %v5503, %v5802
      %v5829 = vadd.f32 %v5504, %v5807
      %v5830 = vadd.f32 %v5505, %v5812
      %v5831 = vld [vmem:[%s3 + $0x10] sm:$0xf]
      %v5832 = vsel %vm225, %v5556, 0
      %v5834 = vsel %vm225, %v5558, 0
      %v5836 = vsel %vm225, %v5561, 0
      %v5838 = vsel %vm225, %v5563, 0
      %v5840 = vsel %vm225, %v5566, 0
      %v5842 = vsel %vm225, %v5568, 0
      %v5844 = vsel %vm225, %v5571, 0
      %v5846 = vsel %vm225, %v5573, 0
      %v5848 = vsel %vm225, %v5576, 0
      %v5850 = vsel %vm225, %v5578, 0
      %v5852 = vsel %vm225, %v5581, 0
      %v5854 = vsel %vm225, %v5583, 0
      %v5856 = vsel %vm225, %v5586, 0
      %v5858 = vsel %vm225, %v5588, 0
      %v5860 = vsel %vm225, %v5591, 0
      %v5862 = vsel %vm225, %v5593, 0
      %v5865 = vsel %vm547, %v5831, 0
      %5867 = vmatprep.subr.mxu0 0.0
      %5868 = vmatpush1.msra.mxu0 %v5865
      %5869 = vmatprep.subr.mxu0 0.0
      %5870 = vmatpush1.msra.mxu0 0.0
      %5871 = vmatprep.subr.mxu0 0.0
      %5872 = vmatpush1.msra.mxu0 0.0
      %5873 = vmatprep.subr.mxu0 0.0
      %5874 = vmatpush1.msra.mxu0 0.0
      %5875 = vmatprep.subr.mxu0 0.0
      %5876 = vmatpush1.msra.mxu0 0.0
      %5877 = vmatprep.subr.mxu0 0.0
      %5878 = vmatpush1.msra.mxu0 0.0
      %5879 = vmatprep.subr.mxu0 0.0
      %5880 = vmatpush1.msra.mxu0 0.0
      %5881 = vmatprep.subr.mxu0 0.0
      %5882 = vmatpush1.msra.mxu0 0.0
      %5883 = vmatprep.subr.mxu0 0.0
      %5884 = vmatpush1.msra.mxu0 0.0
      %5885 = vmatprep.subr.mxu0 0.0
      %5886 = vmatpush1.msra.mxu0 0.0
      %5887 = vmatprep.subr.mxu0 0.0
      %5888 = vmatpush1.msra.mxu0 0.0
      %5889 = vmatprep.subr.mxu0 0.0
      %5890 = vmatpush1.msra.mxu0 0.0
      %5891 = vmatprep.subr.mxu0 0.0
      %5892 = vmatpush1.msra.mxu0 0.0
      %5893 = vmatprep.subr.mxu0 0.0
      %5894 = vmatpush1.msra.mxu0 0.0
      %5895 = vmatprep.subr.mxu0 0.0
      %5896 = vmatpush1.msra.mxu0 0.0
      %5897 = vmatprep.subr.mxu0 0.0
      %5898 = vmatpush1.msra.mxu0 0.0
      %5899 = vmatprep.subr.mxu0 0.0
      %5900 = vmatpush1.msra.mxu0 0.0
      %5901 = vmatprep.subr.mxu0 0.0
      %5902 = vmatpush1.msra.mxu0 0.0
      %5903 = vmatprep.subr.mxu0 0.0
      %5904 = vmatpush1.msra.mxu0 0.0
      %5905 = vmatprep.subr.mxu0 0.0
      %5906 = vmatpush1.msra.mxu0 0.0
      %5907 = vmatprep.subr.mxu0 0.0
      %5908 = vmatpush1.msra.mxu0 0.0
      %5909 = vmatprep.subr.mxu0 0.0
      %5910 = vmatpush1.msra.mxu0 0.0
      %5911 = vmatprep.subr.mxu0 0.0
      %5912 = vmatpush1.msra.mxu0 0.0
      %5913 = vmatprep.subr.mxu0 0.0
      %5914 = vmatpush1.msra.mxu0 0.0
      %5915 = vmatprep.subr.mxu0 0.0
      %5916 = vmatpush1.msra.mxu0 0.0
      %5917 = vmatprep.subr.mxu0 0.0
      %5918 = vmatpush1.msra.mxu0 0.0
      %5919 = vmatprep.subr.mxu0 0.0
      %5920 = vmatpush1.msra.mxu0 0.0
      %5921 = vmatprep.subr.mxu0 0.0
      %5922 = vmatpush1.msra.mxu0 0.0
      %5923 = vmatprep.subr.mxu0 0.0
      %5924 = vmatpush1.msra.mxu0 0.0
      %5925 = vmatprep.subr.mxu0 0.0
      %5926 = vmatpush1.msra.mxu0 0.0
      %5927 = vmatprep.subr.mxu0 0.0
      %5928 = vmatpush1.msra.mxu0 0.0
      %5929 = vmatprep.subr.mxu0 0.0
      %5930 = vmatpush1.msra.mxu0 0.0
      %5931 = vmatprep.mubr.f32.mxu0 0.0
      %5932 = vmatmul.mubr.f32.gmra.mrb[0].mxu0 %v5832
      %v5933 = vpop.f32.mrb[0].mxu0
      %v5934 = vadd.f32 0.0, %v5933
      %v5935 = vpop.f32.mrb[0].mxu0
      %5936 = vmatprep.mubr.f32.mxu0 0.0
      %5937 = vmatmul.mubr.f32.gmra.mrb[0].mxu0 %v5834
      %v5938 = vpop.f32.mrb[0].mxu0
      %v5939 = vadd.f32 0.0, %v5938
      %v5940 = vpop.f32.mrb[0].mxu0
      %5941 = vmatprep.mubr.f32.mxu0 0.0
      %5942 = vmatmul.mubr.f32.gmra.mrb[0].mxu0 %v5836
      %v5943 = vpop.f32.mrb[0].mxu0
      %v5944 = vadd.f32 0.0, %v5943
      %v5945 = vpop.f32.mrb[0].mxu0
      %5946 = vmatprep.mubr.f32.mxu0 0.0
      %5947 = vmatmul.mubr.f32.gmra.mrb[0].mxu0 %v5838
      %v5948 = vpop.f32.mrb[0].mxu0
      %v5949 = vadd.f32 0.0, %v5948
      %v5950 = vpop.f32.mrb[0].mxu0
      %5951 = vmatprep.mubr.f32.mxu0 0.0
      %5952 = vmatmul.mubr.f32.gmra.mrb[0].mxu0 %v5840
      %v5953 = vpop.f32.mrb[0].mxu0
      %v5954 = vadd.f32 0.0, %v5953
      %v5955 = vpop.f32.mrb[0].mxu0
      %5956 = vmatprep.mubr.f32.mxu0 0.0
      %5957 = vmatmul.mubr.f32.gmra.mrb[0].mxu0 %v5842
      %v5958 = vpop.f32.mrb[0].mxu0
      %v5959 = vadd.f32 0.0, %v5958
      %v5960 = vpop.f32.mrb[0].mxu0
      %5961 = vmatprep.mubr.f32.mxu0 0.0
      %5962 = vmatmul.mubr.f32.gmra.mrb[0].mxu0 %v5844
      %v5963 = vpop.f32.mrb[0].mxu0
      %v5964 = vadd.f32 0.0, %v5963
      %v5965 = vpop.f32.mrb[0].mxu0
      %5966 = vmatprep.mubr.f32.mxu0 0.0
      %5967 = vmatmul.mubr.f32.gmra.mrb[0].mxu0 %v5846
      %v5968 = vpop.f32.mrb[0].mxu0
      %v5969 = vadd.f32 0.0, %v5968
      %v5970 = vpop.f32.mrb[0].mxu0
      %5971 = vmatprep.mubr.f32.mxu0 0.0
      %5972 = vmatmul.mubr.f32.gmra.mrb[0].mxu0 %v5848
      %v5973 = vpop.f32.mrb[0].mxu0
      %v5974 = vadd.f32 0.0, %v5973
      %v5975 = vpop.f32.mrb[0].mxu0
      %5976 = vmatprep.mubr.f32.mxu0 0.0
      %5977 = vmatmul.mubr.f32.gmra.mrb[0].mxu0 %v5850
      %v5978 = vpop.f32.mrb[0].mxu0
      %v5979 = vadd.f32 0.0, %v5978
      %v5980 = vpop.f32.mrb[0].mxu0
      %5981 = vmatprep.mubr.f32.mxu0 0.0
      %5982 = vmatmul.mubr.f32.gmra.mrb[0].mxu0 %v5852
      %v5983 = vpop.f32.mrb[0].mxu0
      %v5984 = vadd.f32 0.0, %v5983
      %v5985 = vpop.f32.mrb[0].mxu0
      %5986 = vmatprep.mubr.f32.mxu0 0.0
      %5987 = vmatmul.mubr.f32.gmra.mrb[0].mxu0 %v5854
      %v5988 = vpop.f32.mrb[0].mxu0
      %v5989 = vadd.f32 0.0, %v5988
      %v5990 = vpop.f32.mrb[0].mxu0
      %5991 = vmatprep.mubr.f32.mxu0 0.0
      %5992 = vmatmul.mubr.f32.gmra.mrb[0].mxu0 %v5856
      %v5993 = vpop.f32.mrb[0].mxu0
      %v5994 = vadd.f32 0.0, %v5993
      %v5995 = vpop.f32.mrb[0].mxu0
      %5996 = vmatprep.mubr.f32.mxu0 0.0
      %5997 = vmatmul.mubr.f32.gmra.mrb[0].mxu0 %v5858
      %v5998 = vpop.f32.mrb[0].mxu0
      %v5999 = vadd.f32 0.0, %v5998
      %v6000 = vpop.f32.mrb[0].mxu0
      %6001 = vmatprep.mubr.f32.mxu0 0.0
      %6002 = vmatmul.mubr.f32.gmra.mrb[0].mxu0 %v5860
      %v6003 = vpop.f32.mrb[0].mxu0
      %v6004 = vadd.f32 0.0, %v6003
      %v6005 = vpop.f32.mrb[0].mxu0
      %6006 = vmatprep.mubr.f32.mxu0 0.0
      %6007 = vmatmul.mubr.f32.gmra.mrb[0].mxu0 %v5862
      %v6008 = vpop.f32.mrb[0].mxu0
      %v6009 = vadd.f32 0.0, %v6008
      %v6010 = vpop.f32.mrb[0].mxu0
      %6011 = vdwg.mxu0
      %v6012 = vadd.f32 %v5815, %v5934
      %v6013 = vadd.f32 %v5816, %v5939
      %v6014 = vadd.f32 %v5817, %v5944
      %v6015 = vadd.f32 %v5818, %v5949
      %v6016 = vadd.f32 %v5819, %v5954
      %v6017 = vadd.f32 %v5820, %v5959
      %v6018 = vadd.f32 %v5821, %v5964
      %v6019 = vadd.f32 %v5822, %v5969
      %v6020 = vadd.f32 %v5823, %v5974
      %v6021 = vadd.f32 %v5824, %v5979
      %v6022 = vadd.f32 %v5825, %v5984
      %v6023 = vadd.f32 %v5826, %v5989
      %v6024 = vadd.f32 %v5827, %v5994
      %v6025 = vadd.f32 %v5828, %v5999
      %v6026 = vadd.f32 %v5829, %v6004
      %v6027 = vadd.f32 %v5830, %v6009
      %v6028 = vld [vmem:[%s3 + $0x14] sm:$0xf]
      %v6029 = vsel %vm225, %v5596, 0
      %v6031 = vsel %vm225, %v5598, 0
      %v6033 = vsel %vm225, %v5601, 0
      %v6035 = vsel %vm225, %v5603, 0
      %v6037 = vsel %vm225, %v5606, 0
      %v6039 = vsel %vm225, %v5608, 0
      %v6041 = vsel %vm225, %v5611, 0
      %v6043 = vsel %vm225, %v5613, 0
      %v6045 = vsel %vm225, %v5616, 0
      %v6047 = vsel %vm225, %v5618, 0
      %v6049 = vsel %vm225, %v5621, 0
      %v6051 = vsel %vm225, %v5623, 0
      %v6053 = vsel %vm225, %v5626, 0
      %v6055 = vsel %vm225, %v5628, 0
      %v6057 = vsel %vm225, %v5631, 0
      %v6059 = vsel %vm225, %v5633, 0
      %v6062 = vsel %vm547, %v6028, 0
      %6064 = vmatprep.subr.mxu0 0.0
      %6065 = vmatpush1.msra.mxu0 %v6062
      %6066 = vmatprep.subr.mxu0 0.0
      %6067 = vmatpush1.msra.mxu0 0.0
      %6068 = vmatprep.subr.mxu0 0.0
      %6069 = vmatpush1.msra.mxu0 0.0
      %6070 = vmatprep.subr.mxu0 0.0
      %6071 = vmatpush1.msra.mxu0 0.0
      %6072 = vmatprep.subr.mxu0 0.0
      %6073 = vmatpush1.msra.mxu0 0.0
      %6074 = vmatprep.subr.mxu0 0.0
      %6075 = vmatpush1.msra.mxu0 0.0
      %6076 = vmatprep.subr.mxu0 0.0
      %6077 = vmatpush1.msra.mxu0 0.0
      %6078 = vmatprep.subr.mxu0 0.0
      %6079 = vmatpush1.msra.mxu0 0.0
      %6080 = vmatprep.subr.mxu0 0.0
      %6081 = vmatpush1.msra.mxu0 0.0
      %6082 = vmatprep.subr.mxu0 0.0
      %6083 = vmatpush1.msra.mxu0 0.0
      %6084 = vmatprep.subr.mxu0 0.0
      %6085 = vmatpush1.msra.mxu0 0.0
      %6086 = vmatprep.subr.mxu0 0.0
      %6087 = vmatpush1.msra.mxu0 0.0
      %6088 = vmatprep.subr.mxu0 0.0
      %6089 = vmatpush1.msra.mxu0 0.0
      %6090 = vmatprep.subr.mxu0 0.0
      %6091 = vmatpush1.msra.mxu0 0.0
      %6092 = vmatprep.subr.mxu0 0.0
      %6093 = vmatpush1.msra.mxu0 0.0
      %6094 = vmatprep.subr.mxu0 0.0
      %6095 = vmatpush1.msra.mxu0 0.0
      %6096 = vmatprep.subr.mxu0 0.0
      %6097 = vmatpush1.msra.mxu0 0.0
      %6098 = vmatprep.subr.mxu0 0.0
      %6099 = vmatpush1.msra.mxu0 0.0
      %6100 = vmatprep.subr.mxu0 0.0
      %6101 = vmatpush1.msra.mxu0 0.0
      %6102 = vmatprep.subr.mxu0 0.0
      %6103 = vmatpush1.msra.mxu0 0.0
      %6104 = vmatprep.subr.mxu0 0.0
      %6105 = vmatpush1.msra.mxu0 0.0
      %6106 = vmatprep.subr.mxu0 0.0
      %6107 = vmatpush1.msra.mxu0 0.0
      %6108 = vmatprep.subr.mxu0 0.0
      %6109 = vmatpush1.msra.mxu0 0.0
      %6110 = vmatprep.subr.mxu0 0.0
      %6111 = vmatpush1.msra.mxu0 0.0
      %6112 = vmatprep.subr.mxu0 0.0
      %6113 = vmatpush1.msra.mxu0 0.0
      %6114 = vmatprep.subr.mxu0 0.0
      %6115 = vmatpush1.msra.mxu0 0.0
      %6116 = vmatprep.subr.mxu0 0.0
      %6117 = vmatpush1.msra.mxu0 0.0
      %6118 = vmatprep.subr.mxu0 0.0
      %6119 = vmatpush1.msra.mxu0 0.0
      %6120 = vmatprep.subr.mxu0 0.0
      %6121 = vmatpush1.msra.mxu0 0.0
      %6122 = vmatprep.subr.mxu0 0.0
      %6123 = vmatpush1.msra.mxu0 0.0
      %6124 = vmatprep.subr.mxu0 0.0
      %6125 = vmatpush1.msra.mxu0 0.0
      %6126 = vmatprep.subr.mxu0 0.0
      %6127 = vmatpush1.msra.mxu0 0.0
      %6128 = vmatprep.mubr.f32.mxu0 0.0
      %6129 = vmatmul.mubr.f32.gmra.mrb[0].mxu0 %v6029
      %v6130 = vpop.f32.mrb[0].mxu0
      %v6131 = vadd.f32 0.0, %v6130
      %v6132 = vpop.f32.mrb[0].mxu0
      %6133 = vmatprep.mubr.f32.mxu0 0.0
      %6134 = vmatmul.mubr.f32.gmra.mrb[0].mxu0 %v6031
      %v6135 = vpop.f32.mrb[0].mxu0
      %v6136 = vadd.f32 0.0, %v6135
      %v6137 = vpop.f32.mrb[0].mxu0
      %6138 = vmatprep.mubr.f32.mxu0 0.0
      %6139 = vmatmul.mubr.f32.gmra.mrb[0].mxu0 %v6033
      %v6140 = vpop.f32.mrb[0].mxu0
      %v6141 = vadd.f32 0.0, %v6140
      %v6142 = vpop.f32.mrb[0].mxu0
      %6143 = vmatprep.mubr.f32.mxu0 0.0
      %6144 = vmatmul.mubr.f32.gmra.mrb[0].mxu0 %v6035
      %v6145 = vpop.f32.mrb[0].mxu0
      %v6146 = vadd.f32 0.0, %v6145
      %v6147 = vpop.f32.mrb[0].mxu0
      %6148 = vmatprep.mubr.f32.mxu0 0.0
      %6149 = vmatmul.mubr.f32.gmra.mrb[0].mxu0 %v6037
      %v6150 = vpop.f32.mrb[0].mxu0
      %v6151 = vadd.f32 0.0, %v6150
      %v6152 = vpop.f32.mrb[0].mxu0
      %6153 = vmatprep.mubr.f32.mxu0 0.0
      %6154 = vmatmul.mubr.f32.gmra.mrb[0].mxu0 %v6039
      %v6155 = vpop.f32.mrb[0].mxu0
      %v6156 = vadd.f32 0.0, %v6155
      %v6157 = vpop.f32.mrb[0].mxu0
      %6158 = vmatprep.mubr.f32.mxu0 0.0
      %6159 = vmatmul.mubr.f32.gmra.mrb[0].mxu0 %v6041
      %v6160 = vpop.f32.mrb[0].mxu0
      %v6161 = vadd.f32 0.0, %v6160
      %v6162 = vpop.f32.mrb[0].mxu0
      %6163 = vmatprep.mubr.f32.mxu0 0.0
      %6164 = vmatmul.mubr.f32.gmra.mrb[0].mxu0 %v6043
      %v6165 = vpop.f32.mrb[0].mxu0
      %v6166 = vadd.f32 0.0, %v6165
      %v6167 = vpop.f32.mrb[0].mxu0
      %6168 = vmatprep.mubr.f32.mxu0 0.0
      %6169 = vmatmul.mubr.f32.gmra.mrb[0].mxu0 %v6045
      %v6170 = vpop.f32.mrb[0].mxu0
      %v6171 = vadd.f32 0.0, %v6170
      %v6172 = vpop.f32.mrb[0].mxu0
      %6173 = vmatprep.mubr.f32.mxu0 0.0
      %6174 = vmatmul.mubr.f32.gmra.mrb[0].mxu0 %v6047
      %v6175 = vpop.f32.mrb[0].mxu0
      %v6176 = vadd.f32 0.0, %v6175
      %v6177 = vpop.f32.mrb[0].mxu0
      %6178 = vmatprep.mubr.f32.mxu0 0.0
      %6179 = vmatmul.mubr.f32.gmra.mrb[0].mxu0 %v6049
      %v6180 = vpop.f32.mrb[0].mxu0
      %v6181 = vadd.f32 0.0, %v6180
      %v6182 = vpop.f32.mrb[0].mxu0
      %6183 = vmatprep.mubr.f32.mxu0 0.0
      %6184 = vmatmul.mubr.f32.gmra.mrb[0].mxu0 %v6051
      %v6185 = vpop.f32.mrb[0].mxu0
      %v6186 = vadd.f32 0.0, %v6185
      %v6187 = vpop.f32.mrb[0].mxu0
      %6188 = vmatprep.mubr.f32.mxu0 0.0
      %6189 = vmatmul.mubr.f32.gmra.mrb[0].mxu0 %v6053
      %v6190 = vpop.f32.mrb[0].mxu0
      %v6191 = vadd.f32 0.0, %v6190
      %v6192 = vpop.f32.mrb[0].mxu0
      %6193 = vmatprep.mubr.f32.mxu0 0.0
      %6194 = vmatmul.mubr.f32.gmra.mrb[0].mxu0 %v6055
      %v6195 = vpop.f32.mrb[0].mxu0
      %v6196 = vadd.f32 0.0, %v6195
      %v6197 = vpop.f32.mrb[0].mxu0
      %6198 = vmatprep.mubr.f32.mxu0 0.0
      %6199 = vmatmul.mubr.f32.gmra.mrb[0].mxu0 %v6057
      %v6200 = vpop.f32.mrb[0].mxu0
      %v6201 = vadd.f32 0.0, %v6200
      %v6202 = vpop.f32.mrb[0].mxu0
      %6203 = vmatprep.mubr.f32.mxu0 0.0
      %6204 = vmatmul.mubr.f32.gmra.mrb[0].mxu0 %v6059
      %v6205 = vpop.f32.mrb[0].mxu0
      %v6206 = vadd.f32 0.0, %v6205
      %v6207 = vpop.f32.mrb[0].mxu0
      %6208 = vdwg.mxu0
      %v6209 = vadd.f32 %v6012, %v6131
      %v6210 = vadd.f32 %v6013, %v6136
      %v6211 = vadd.f32 %v6014, %v6141
      %v6212 = vadd.f32 %v6015, %v6146
      %v6213 = vadd.f32 %v6016, %v6151
      %v6214 = vadd.f32 %v6017, %v6156
      %v6215 = vadd.f32 %v6018, %v6161
      %v6216 = vadd.f32 %v6019, %v6166
      %v6217 = vadd.f32 %v6020, %v6171
      %v6218 = vadd.f32 %v6021, %v6176
      %v6219 = vadd.f32 %v6022, %v6181
      %v6220 = vadd.f32 %v6023, %v6186
      %v6221 = vadd.f32 %v6024, %v6191
      %v6222 = vadd.f32 %v6025, %v6196
      %v6223 = vadd.f32 %v6026, %v6201
      %v6224 = vadd.f32 %v6027, %v6206
      %s6225 = scalar_lea.vmem [#allocation3], %s1796
      %v6226 = vld [vmem:[%s6225] sm:$0xff]
      %v6227 = vld [vmem:[%s6225 + $0x8] sm:$0xff]
      %v6228 = vld [vmem:[%s6225 + $0x10] sm:$0x3]
      %v6229 = vld [vmem:[%s6225 + $0x18] sm:$0xff]
      %v6230 = vld [vmem:[%s6225 + $0x20] sm:$0xff]
      %v6231 = vld [vmem:[%s6225 + $0x28] sm:$0x3]
      %v6232 = vld [vmem:[%s6225 + $0x30] sm:$0xff]
      %v6233 = vld [vmem:[%s6225 + $0x38] sm:$0xff]
      %v6234 = vld [vmem:[%s6225 + $0x40] sm:$0x3]
      %v6235 = vld [vmem:[%s6225 + $0x48] sm:$0xff]
      %v6236 = vld [vmem:[%s6225 + $0x50] sm:$0xff]
      %v6237 = vld [vmem:[%s6225 + $0x58] sm:$0x3]
      %v6238 = vld [vmem:[%s6225 + $0x60] sm:$0xff]
      %v6239 = vld [vmem:[%s6225 + $0x68] sm:$0xff]
      %v6240 = vld [vmem:[%s6225 + $0x70] sm:$0x3]
      %v6241 = vld [vmem:[%s6225 + $0x78] sm:$0xff]
      %v6242 = vld [vmem:[%s6225 + $0x80] sm:$0xff]
      %v6243 = vld [vmem:[%s6225 + $0x88] sm:$0x3]
      %v6244 = vld [vmem:[%s6225 + $0x90] sm:$0xff]
      %v6245 = vld [vmem:[%s6225 + $0x98] sm:$0xff]
      %v6246 = vld [vmem:[%s6225 + $0xa0] sm:$0x3]
      %v6247 = vld [vmem:[%s6225 + $0xa8] sm:$0xff]
      %v6248 = vld [vmem:[%s6225 + $0xb0] sm:$0xff]
      %v6249 = vld [vmem:[%s6225 + $0xb8] sm:$0x3]
      %v6274 = vrot.slane %v6226, 1
      %v6275 = vrot.slane %v6227, 1
      %v6276 = vsel %vm431, %v6274, %v6275
      %v6277 = vrot.slane %v6228, 1
      %v6278 = vsel %vm431, %v6275, %v6277
      %v6279 = vrot.slane %v6229, 1
      %v6280 = vrot.slane %v6230, 1
      %v6281 = vsel %vm431, %v6279, %v6280
      %v6282 = vrot.slane %v6231, 1
      %v6283 = vsel %vm431, %v6280, %v6282
      %v6284 = vrot.slane %v6232, 1
      %v6285 = vrot.slane %v6233, 1
      %v6286 = vsel %vm431, %v6284, %v6285
      %v6287 = vrot.slane %v6234, 1
      %v6288 = vsel %vm431, %v6285, %v6287
      %v6289 = vrot.slane %v6235, 1
      %v6290 = vrot.slane %v6236, 1
      %v6291 = vsel %vm431, %v6289, %v6290
      %v6292 = vrot.slane %v6237, 1
      %v6293 = vsel %vm431, %v6290, %v6292
      %v6294 = vrot.slane %v6238, 1
      %v6295 = vrot.slane %v6239, 1
      %v6296 = vsel %vm431, %v6294, %v6295
      %v6297 = vrot.slane %v6240, 1
      %v6298 = vsel %vm431, %v6295, %v6297
      %v6299 = vrot.slane %v6241, 1
      %v6300 = vrot.slane %v6242, 1
      %v6301 = vsel %vm431, %v6299, %v6300
      %v6302 = vrot.slane %v6243, 1
      %v6303 = vsel %vm431, %v6300, %v6302
      %v6304 = vrot.slane %v6244, 1
      %v6305 = vrot.slane %v6245, 1
      %v6306 = vsel %vm431, %v6304, %v6305
      %v6307 = vrot.slane %v6246, 1
      %v6308 = vsel %vm431, %v6305, %v6307
      %v6309 = vrot.slane %v6247, 1
      %v6310 = vrot.slane %v6248, 1
      %v6311 = vsel %vm431, %v6309, %v6310
      %v6312 = vrot.slane %v6249, 1
      %v6313 = vsel %vm431, %v6310, %v6312
      %v6314 = vrot.slane %v6226, 2
      %v6315 = vrot.slane %v6227, 2
      %v6316 = vsel %vm472, %v6314, %v6315
      %v6317 = vrot.slane %v6228, 2
      %v6318 = vsel %vm472, %v6315, %v6317
      %v6319 = vrot.slane %v6229, 2
      %v6320 = vrot.slane %v6230, 2
      %v6321 = vsel %vm472, %v6319, %v6320
      %v6322 = vrot.slane %v6231, 2
      %v6323 = vsel %vm472, %v6320, %v6322
      %v6324 = vrot.slane %v6232, 2
      %v6325 = vrot.slane %v6233, 2
      %v6326 = vsel %vm472, %v6324, %v6325
      %v6327 = vrot.slane %v6234, 2
      %v6328 = vsel %vm472, %v6325, %v6327
      %v6329 = vrot.slane %v6235, 2
      %v6330 = vrot.slane %v6236, 2
      %v6331 = vsel %vm472, %v6329, %v6330
      %v6332 = vrot.slane %v6237, 2
      %v6333 = vsel %vm472, %v6330, %v6332
      %v6334 = vrot.slane %v6238, 2
      %v6335 = vrot.slane %v6239, 2
      %v6336 = vsel %vm472, %v6334, %v6335
      %v6337 = vrot.slane %v6240, 2
      %v6338 = vsel %vm472, %v6335, %v6337
      %v6339 = vrot.slane %v6241, 2
      %v6340 = vrot.slane %v6242, 2
      %v6341 = vsel %vm472, %v6339, %v6340
      %v6342 = vrot.slane %v6243, 2
      %v6343 = vsel %vm472, %v6340, %v6342
      %v6344 = vrot.slane %v6244, 2
      %v6345 = vrot.slane %v6245, 2
      %v6346 = vsel %vm472, %v6344, %v6345
      %v6347 = vrot.slane %v6246, 2
      %v6348 = vsel %vm472, %v6345, %v6347
      %v6349 = vrot.slane %v6247, 2
      %v6350 = vrot.slane %v6248, 2
      %v6351 = vsel %vm472, %v6349, %v6350
      %v6352 = vrot.slane %v6249, 2
      %v6353 = vsel %vm472, %v6350, %v6352
      %v6354 = vld [vmem:[%s3 + $0x18] sm:$0xf]
      %v6355 = vsel %vm225, %v6226, 0
      %v6357 = vsel %vm225, %v6227, 0
      %v6359 = vsel %vm225, %v6229, 0
      %v6361 = vsel %vm225, %v6230, 0
      %v6363 = vsel %vm225, %v6232, 0
      %v6365 = vsel %vm225, %v6233, 0
      %v6367 = vsel %vm225, %v6235, 0
      %v6369 = vsel %vm225, %v6236, 0
      %v6371 = vsel %vm225, %v6238, 0
      %v6373 = vsel %vm225, %v6239, 0
      %v6375 = vsel %vm225, %v6241, 0
      %v6377 = vsel %vm225, %v6242, 0
      %v6379 = vsel %vm225, %v6244, 0
      %v6381 = vsel %vm225, %v6245, 0
      %v6383 = vsel %vm225, %v6247, 0
      %v6385 = vsel %vm225, %v6248, 0
      %v6388 = vsel %vm547, %v6354, 0
      %6390 = vmatprep.subr.mxu0 0.0
      %6391 = vmatpush1.msra.mxu0 %v6388
      %6392 = vmatprep.subr.mxu0 0.0
      %6393 = vmatpush1.msra.mxu0 0.0
      %6394 = vmatprep.subr.mxu0 0.0
      %6395 = vmatpush1.msra.mxu0 0.0
      %6396 = vmatprep.subr.mxu0 0.0
      %6397 = vmatpush1.msra.mxu0 0.0
      %6398 = vmatprep.subr.mxu0 0.0
      %6399 = vmatpush1.msra.mxu0 0.0
      %6400 = vmatprep.subr.mxu0 0.0
      %6401 = vmatpush1.msra.mxu0 0.0
      %6402 = vmatprep.subr.mxu0 0.0
      %6403 = vmatpush1.msra.mxu0 0.0
      %6404 = vmatprep.subr.mxu0 0.0
      %6405 = vmatpush1.msra.mxu0 0.0
      %6406 = vmatprep.subr.mxu0 0.0
      %6407 = vmatpush1.msra.mxu0 0.0
      %6408 = vmatprep.subr.mxu0 0.0
      %6409 = vmatpush1.msra.mxu0 0.0
      %6410 = vmatprep.subr.mxu0 0.0
      %6411 = vmatpush1.msra.mxu0 0.0
      %6412 = vmatprep.subr.mxu0 0.0
      %6413 = vmatpush1.msra.mxu0 0.0
      %6414 = vmatprep.subr.mxu0 0.0
      %6415 = vmatpush1.msra.mxu0 0.0
      %6416 = vmatprep.subr.mxu0 0.0
      %6417 = vmatpush1.msra.mxu0 0.0
      %6418 = vmatprep.subr.mxu0 0.0
      %6419 = vmatpush1.msra.mxu0 0.0
      %6420 = vmatprep.subr.mxu0 0.0
      %6421 = vmatpush1.msra.mxu0 0.0
      %6422 = vmatprep.subr.mxu0 0.0
      %6423 = vmatpush1.msra.mxu0 0.0
      %6424 = vmatprep.subr.mxu0 0.0
      %6425 = vmatpush1.msra.mxu0 0.0
      %6426 = vmatprep.subr.mxu0 0.0
      %6427 = vmatpush1.msra.mxu0 0.0
      %6428 = vmatprep.subr.mxu0 0.0
      %6429 = vmatpush1.msra.mxu0 0.0
      %6430 = vmatprep.subr.mxu0 0.0
      %6431 = vmatpush1.msra.mxu0 0.0
      %6432 = vmatprep.subr.mxu0 0.0
      %6433 = vmatpush1.msra.mxu0 0.0
      %6434 = vmatprep.subr.mxu0 0.0
      %6435 = vmatpush1.msra.mxu0 0.0
      %6436 = vmatprep.subr.mxu0 0.0
      %6437 = vmatpush1.msra.mxu0 0.0
      %6438 = vmatprep.subr.mxu0 0.0
      %6439 = vmatpush1.msra.mxu0 0.0
      %6440 = vmatprep.subr.mxu0 0.0
      %6441 = vmatpush1.msra.mxu0 0.0
      %6442 = vmatprep.subr.mxu0 0.0
      %6443 = vmatpush1.msra.mxu0 0.0
      %6444 = vmatprep.subr.mxu0 0.0
      %6445 = vmatpush1.msra.mxu0 0.0
      %6446 = vmatprep.subr.mxu0 0.0
      %6447 = vmatpush1.msra.mxu0 0.0
      %6448 = vmatprep.subr.mxu0 0.0
      %6449 = vmatpush1.msra.mxu0 0.0
      %6450 = vmatprep.subr.mxu0 0.0
      %6451 = vmatpush1.msra.mxu0 0.0
      %6452 = vmatprep.subr.mxu0 0.0
      %6453 = vmatpush1.msra.mxu0 0.0
      %6454 = vmatprep.mubr.f32.mxu0 0.0
      %6455 = vmatmul.mubr.f32.gmra.mrb[0].mxu0 %v6355
      %v6456 = vpop.f32.mrb[0].mxu0
      %v6457 = vadd.f32 0.0, %v6456
      %v6458 = vpop.f32.mrb[0].mxu0
      %6459 = vmatprep.mubr.f32.mxu0 0.0
      %6460 = vmatmul.mubr.f32.gmra.mrb[0].mxu0 %v6357
      %v6461 = vpop.f32.mrb[0].mxu0
      %v6462 = vadd.f32 0.0, %v6461
      %v6463 = vpop.f32.mrb[0].mxu0
      %6464 = vmatprep.mubr.f32.mxu0 0.0
      %6465 = vmatmul.mubr.f32.gmra.mrb[0].mxu0 %v6359
      %v6466 = vpop.f32.mrb[0].mxu0
      %v6467 = vadd.f32 0.0, %v6466
      %v6468 = vpop.f32.mrb[0].mxu0
      %6469 = vmatprep.mubr.f32.mxu0 0.0
      %6470 = vmatmul.mubr.f32.gmra.mrb[0].mxu0 %v6361
      %v6471 = vpop.f32.mrb[0].mxu0
      %v6472 = vadd.f32 0.0, %v6471
      %v6473 = vpop.f32.mrb[0].mxu0
      %6474 = vmatprep.mubr.f32.mxu0 0.0
      %6475 = vmatmul.mubr.f32.gmra.mrb[0].mxu0 %v6363
      %v6476 = vpop.f32.mrb[0].mxu0
      %v6477 = vadd.f32 0.0, %v6476
      %v6478 = vpop.f32.mrb[0].mxu0
      %6479 = vmatprep.mubr.f32.mxu0 0.0
      %6480 = vmatmul.mubr.f32.gmra.mrb[0].mxu0 %v6365
      %v6481 = vpop.f32.mrb[0].mxu0
      %v6482 = vadd.f32 0.0, %v6481
      %v6483 = vpop.f32.mrb[0].mxu0
      %6484 = vmatprep.mubr.f32.mxu0 0.0
      %6485 = vmatmul.mubr.f32.gmra.mrb[0].mxu0 %v6367
      %v6486 = vpop.f32.mrb[0].mxu0
      %v6487 = vadd.f32 0.0, %v6486
      %v6488 = vpop.f32.mrb[0].mxu0
      %6489 = vmatprep.mubr.f32.mxu0 0.0
      %6490 = vmatmul.mubr.f32.gmra.mrb[0].mxu0 %v6369
      %v6491 = vpop.f32.mrb[0].mxu0
      %v6492 = vadd.f32 0.0, %v6491
      %v6493 = vpop.f32.mrb[0].mxu0
      %6494 = vmatprep.mubr.f32.mxu0 0.0
      %6495 = vmatmul.mubr.f32.gmra.mrb[0].mxu0 %v6371
      %v6496 = vpop.f32.mrb[0].mxu0
      %v6497 = vadd.f32 0.0, %v6496
      %v6498 = vpop.f32.mrb[0].mxu0
      %6499 = vmatprep.mubr.f32.mxu0 0.0
      %6500 = vmatmul.mubr.f32.gmra.mrb[0].mxu0 %v6373
      %v6501 = vpop.f32.mrb[0].mxu0
      %v6502 = vadd.f32 0.0, %v6501
      %v6503 = vpop.f32.mrb[0].mxu0
      %6504 = vmatprep.mubr.f32.mxu0 0.0
      %6505 = vmatmul.mubr.f32.gmra.mrb[0].mxu0 %v6375
      %v6506 = vpop.f32.mrb[0].mxu0
      %v6507 = vadd.f32 0.0, %v6506
      %v6508 = vpop.f32.mrb[0].mxu0
      %6509 = vmatprep.mubr.f32.mxu0 0.0
      %6510 = vmatmul.mubr.f32.gmra.mrb[0].mxu0 %v6377
      %v6511 = vpop.f32.mrb[0].mxu0
      %v6512 = vadd.f32 0.0, %v6511
      %v6513 = vpop.f32.mrb[0].mxu0
      %6514 = vmatprep.mubr.f32.mxu0 0.0
      %6515 = vmatmul.mubr.f32.gmra.mrb[0].mxu0 %v6379
      %v6516 = vpop.f32.mrb[0].mxu0
      %v6517 = vadd.f32 0.0, %v6516
      %v6518 = vpop.f32.mrb[0].mxu0
      %6519 = vmatprep.mubr.f32.mxu0 0.0
      %6520 = vmatmul.mubr.f32.gmra.mrb[0].mxu0 %v6381
      %v6521 = vpop.f32.mrb[0].mxu0
      %v6522 = vadd.f32 0.0, %v6521
      %v6523 = vpop.f32.mrb[0].mxu0
      %6524 = vmatprep.mubr.f32.mxu0 0.0
      %6525 = vmatmul.mubr.f32.gmra.mrb[0].mxu0 %v6383
      %v6526 = vpop.f32.mrb[0].mxu0
      %v6527 = vadd.f32 0.0, %v6526
      %v6528 = vpop.f32.mrb[0].mxu0
      %6529 = vmatprep.mubr.f32.mxu0 0.0
      %6530 = vmatmul.mubr.f32.gmra.mrb[0].mxu0 %v6385
      %v6531 = vpop.f32.mrb[0].mxu0
      %v6532 = vadd.f32 0.0, %v6531
      %v6533 = vpop.f32.mrb[0].mxu0
      %6534 = vdwg.mxu0
      %v6535 = vadd.f32 %v6209, %v6457
      %v6536 = vadd.f32 %v6210, %v6462
      %v6537 = vadd.f32 %v6211, %v6467
      %v6538 = vadd.f32 %v6212, %v6472
      %v6539 = vadd.f32 %v6213, %v6477
      %v6540 = vadd.f32 %v6214, %v6482
      %v6541 = vadd.f32 %v6215, %v6487
      %v6542 = vadd.f32 %v6216, %v6492
      %v6543 = vadd.f32 %v6217, %v6497
      %v6544 = vadd.f32 %v6218, %v6502
      %v6545 = vadd.f32 %v6219, %v6507
      %v6546 = vadd.f32 %v6220, %v6512
      %v6547 = vadd.f32 %v6221, %v6517
      %v6548 = vadd.f32 %v6222, %v6522
      %v6549 = vadd.f32 %v6223, %v6527
      %v6550 = vadd.f32 %v6224, %v6532
      %v6551 = vld [vmem:[%s3 + $0x1c] sm:$0xf]
      %v6552 = vsel %vm225, %v6276, 0
      %v6554 = vsel %vm225, %v6278, 0
      %v6556 = vsel %vm225, %v6281, 0
      %v6558 = vsel %vm225, %v6283, 0
      %v6560 = vsel %vm225, %v6286, 0
      %v6562 = vsel %vm225, %v6288, 0
      %v6564 = vsel %vm225, %v6291, 0
      %v6566 = vsel %vm225, %v6293, 0
      %v6568 = vsel %vm225, %v6296, 0
      %v6570 = vsel %vm225, %v6298, 0
      %v6572 = vsel %vm225, %v6301, 0
      %v6574 = vsel %vm225, %v6303, 0
      %v6576 = vsel %vm225, %v6306, 0
      %v6578 = vsel %vm225, %v6308, 0
      %v6580 = vsel %vm225, %v6311, 0
      %v6582 = vsel %vm225, %v6313, 0
      %v6585 = vsel %vm547, %v6551, 0
      %6587 = vmatprep.subr.mxu0 0.0
      %6588 = vmatpush1.msra.mxu0 %v6585
      %6589 = vmatprep.subr.mxu0 0.0
      %6590 = vmatpush1.msra.mxu0 0.0
      %6591 = vmatprep.subr.mxu0 0.0
      %6592 = vmatpush1.msra.mxu0 0.0
      %6593 = vmatprep.subr.mxu0 0.0
      %6594 = vmatpush1.msra.mxu0 0.0
      %6595 = vmatprep.subr.mxu0 0.0
      %6596 = vmatpush1.msra.mxu0 0.0
      %6597 = vmatprep.subr.mxu0 0.0
      %6598 = vmatpush1.msra.mxu0 0.0
      %6599 = vmatprep.subr.mxu0 0.0
      %6600 = vmatpush1.msra.mxu0 0.0
      %6601 = vmatprep.subr.mxu0 0.0
      %6602 = vmatpush1.msra.mxu0 0.0
      %6603 = vmatprep.subr.mxu0 0.0
      %6604 = vmatpush1.msra.mxu0 0.0
      %6605 = vmatprep.subr.mxu0 0.0
      %6606 = vmatpush1.msra.mxu0 0.0
      %6607 = vmatprep.subr.mxu0 0.0
      %6608 = vmatpush1.msra.mxu0 0.0
      %6609 = vmatprep.subr.mxu0 0.0
      %6610 = vmatpush1.msra.mxu0 0.0
      %6611 = vmatprep.subr.mxu0 0.0
      %6612 = vmatpush1.msra.mxu0 0.0
      %6613 = vmatprep.subr.mxu0 0.0
      %6614 = vmatpush1.msra.mxu0 0.0
      %6615 = vmatprep.subr.mxu0 0.0
      %6616 = vmatpush1.msra.mxu0 0.0
      %6617 = vmatprep.subr.mxu0 0.0
      %6618 = vmatpush1.msra.mxu0 0.0
      %6619 = vmatprep.subr.mxu0 0.0
      %6620 = vmatpush1.msra.mxu0 0.0
      %6621 = vmatprep.subr.mxu0 0.0
      %6622 = vmatpush1.msra.mxu0 0.0
      %6623 = vmatprep.subr.mxu0 0.0
      %6624 = vmatpush1.msra.mxu0 0.0
      %6625 = vmatprep.subr.mxu0 0.0
      %6626 = vmatpush1.msra.mxu0 0.0
      %6627 = vmatprep.subr.mxu0 0.0
      %6628 = vmatpush1.msra.mxu0 0.0
      %6629 = vmatprep.subr.mxu0 0.0
      %6630 = vmatpush1.msra.mxu0 0.0
      %6631 = vmatprep.subr.mxu0 0.0
      %6632 = vmatpush1.msra.mxu0 0.0
      %6633 = vmatprep.subr.mxu0 0.0
      %6634 = vmatpush1.msra.mxu0 0.0
      %6635 = vmatprep.subr.mxu0 0.0
      %6636 = vmatpush1.msra.mxu0 0.0
      %6637 = vmatprep.subr.mxu0 0.0
      %6638 = vmatpush1.msra.mxu0 0.0
      %6639 = vmatprep.subr.mxu0 0.0
      %6640 = vmatpush1.msra.mxu0 0.0
      %6641 = vmatprep.subr.mxu0 0.0
      %6642 = vmatpush1.msra.mxu0 0.0
      %6643 = vmatprep.subr.mxu0 0.0
      %6644 = vmatpush1.msra.mxu0 0.0
      %6645 = vmatprep.subr.mxu0 0.0
      %6646 = vmatpush1.msra.mxu0 0.0
      %6647 = vmatprep.subr.mxu0 0.0
      %6648 = vmatpush1.msra.mxu0 0.0
      %6649 = vmatprep.subr.mxu0 0.0
      %6650 = vmatpush1.msra.mxu0 0.0
      %6651 = vmatprep.mubr.f32.mxu0 0.0
      %6652 = vmatmul.mubr.f32.gmra.mrb[0].mxu0 %v6552
      %v6653 = vpop.f32.mrb[0].mxu0
      %v6654 = vadd.f32 0.0, %v6653
      %v6655 = vpop.f32.mrb[0].mxu0
      %6656 = vmatprep.mubr.f32.mxu0 0.0
      %6657 = vmatmul.mubr.f32.gmra.mrb[0].mxu0 %v6554
      %v6658 = vpop.f32.mrb[0].mxu0
      %v6659 = vadd.f32 0.0, %v6658
      %v6660 = vpop.f32.mrb[0].mxu0
      %6661 = vmatprep.mubr.f32.mxu0 0.0
      %6662 = vmatmul.mubr.f32.gmra.mrb[0].mxu0 %v6556
      %v6663 = vpop.f32.mrb[0].mxu0
      %v6664 = vadd.f32 0.0, %v6663
      %v6665 = vpop.f32.mrb[0].mxu0
      %6666 = vmatprep.mubr.f32.mxu0 0.0
      %6667 = vmatmul.mubr.f32.gmra.mrb[0].mxu0 %v6558
      %v6668 = vpop.f32.mrb[0].mxu0
      %v6669 = vadd.f32 0.0, %v6668
      %v6670 = vpop.f32.mrb[0].mxu0
      %6671 = vmatprep.mubr.f32.mxu0 0.0
      %6672 = vmatmul.mubr.f32.gmra.mrb[0].mxu0 %v6560
      %v6673 = vpop.f32.mrb[0].mxu0
      %v6674 = vadd.f32 0.0, %v6673
      %v6675 = vpop.f32.mrb[0].mxu0
      %6676 = vmatprep.mubr.f32.mxu0 0.0
      %6677 = vmatmul.mubr.f32.gmra.mrb[0].mxu0 %v6562
      %v6678 = vpop.f32.mrb[0].mxu0
      %v6679 = vadd.f32 0.0, %v6678
      %v6680 = vpop.f32.mrb[0].mxu0
      %6681 = vmatprep.mubr.f32.mxu0 0.0
      %6682 = vmatmul.mubr.f32.gmra.mrb[0].mxu0 %v6564
      %v6683 = vpop.f32.mrb[0].mxu0
      %v6684 = vadd.f32 0.0, %v6683
      %v6685 = vpop.f32.mrb[0].mxu0
      %6686 = vmatprep.mubr.f32.mxu0 0.0
      %6687 = vmatmul.mubr.f32.gmra.mrb[0].mxu0 %v6566
      %v6688 = vpop.f32.mrb[0].mxu0
      %v6689 = vadd.f32 0.0, %v6688
      %v6690 = vpop.f32.mrb[0].mxu0
      %6691 = vmatprep.mubr.f32.mxu0 0.0
      %6692 = vmatmul.mubr.f32.gmra.mrb[0].mxu0 %v6568
      %v6693 = vpop.f32.mrb[0].mxu0
      %v6694 = vadd.f32 0.0, %v6693
      %v6695 = vpop.f32.mrb[0].mxu0
      %6696 = vmatprep.mubr.f32.mxu0 0.0
      %6697 = vmatmul.mubr.f32.gmra.mrb[0].mxu0 %v6570
      %v6698 = vpop.f32.mrb[0].mxu0
      %v6699 = vadd.f32 0.0, %v6698
      %v6700 = vpop.f32.mrb[0].mxu0
      %6701 = vmatprep.mubr.f32.mxu0 0.0
      %6702 = vmatmul.mubr.f32.gmra.mrb[0].mxu0 %v6572
      %v6703 = vpop.f32.mrb[0].mxu0
      %v6704 = vadd.f32 0.0, %v6703
      %v6705 = vpop.f32.mrb[0].mxu0
      %6706 = vmatprep.mubr.f32.mxu0 0.0
      %6707 = vmatmul.mubr.f32.gmra.mrb[0].mxu0 %v6574
      %v6708 = vpop.f32.mrb[0].mxu0
      %v6709 = vadd.f32 0.0, %v6708
      %v6710 = vpop.f32.mrb[0].mxu0
      %6711 = vmatprep.mubr.f32.mxu0 0.0
      %6712 = vmatmul.mubr.f32.gmra.mrb[0].mxu0 %v6576
      %v6713 = vpop.f32.mrb[0].mxu0
      %v6714 = vadd.f32 0.0, %v6713
      %v6715 = vpop.f32.mrb[0].mxu0
      %6716 = vmatprep.mubr.f32.mxu0 0.0
      %6717 = vmatmul.mubr.f32.gmra.mrb[0].mxu0 %v6578
      %v6718 = vpop.f32.mrb[0].mxu0
      %v6719 = vadd.f32 0.0, %v6718
      %v6720 = vpop.f32.mrb[0].mxu0
      %6721 = vmatprep.mubr.f32.mxu0 0.0
      %6722 = vmatmul.mubr.f32.gmra.mrb[0].mxu0 %v6580
      %v6723 = vpop.f32.mrb[0].mxu0
      %v6724 = vadd.f32 0.0, %v6723
      %v6725 = vpop.f32.mrb[0].mxu0
      %6726 = vmatprep.mubr.f32.mxu0 0.0
      %6727 = vmatmul.mubr.f32.gmra.mrb[0].mxu0 %v6582
      %v6728 = vpop.f32.mrb[0].mxu0
      %v6729 = vadd.f32 0.0, %v6728
      %v6730 = vpop.f32.mrb[0].mxu0
      %6731 = vdwg.mxu0
      %v6732 = vadd.f32 %v6535, %v6654
      %v6733 = vadd.f32 %v6536, %v6659
      %v6734 = vadd.f32 %v6537, %v6664
      %v6735 = vadd.f32 %v6538, %v6669
      %v6736 = vadd.f32 %v6539, %v6674
      %v6737 = vadd.f32 %v6540, %v6679
      %v6738 = vadd.f32 %v6541, %v6684
      %v6739 = vadd.f32 %v6542, %v6689
      %v6740 = vadd.f32 %v6543, %v6694
      %v6741 = vadd.f32 %v6544, %v6699
      %v6742 = vadd.f32 %v6545, %v6704
      %v6743 = vadd.f32 %v6546, %v6709
      %v6744 = vadd.f32 %v6547, %v6714
      %v6745 = vadd.f32 %v6548, %v6719
      %v6746 = vadd.f32 %v6549, %v6724
      %v6747 = vadd.f32 %v6550, %v6729
      %v6748 = vld [vmem:[%s3 + $0x20] sm:$0xf]
      %v6749 = vsel %vm225, %v6316, 0
      %v6751 = vsel %vm225, %v6318, 0
      %v6753 = vsel %vm225, %v6321, 0
      %v6755 = vsel %vm225, %v6323, 0
      %v6757 = vsel %vm225, %v6326, 0
      %v6759 = vsel %vm225, %v6328, 0
      %v6761 = vsel %vm225, %v6331, 0
      %v6763 = vsel %vm225, %v6333, 0
      %v6765 = vsel %vm225, %v6336, 0
      %v6767 = vsel %vm225, %v6338, 0
      %v6769 = vsel %vm225, %v6341, 0
      %v6771 = vsel %vm225, %v6343, 0
      %v6773 = vsel %vm225, %v6346, 0
      %v6775 = vsel %vm225, %v6348, 0
      %v6777 = vsel %vm225, %v6351, 0
      %v6779 = vsel %vm225, %v6353, 0
      %v6782 = vsel %vm547, %v6748, 0
      %6784 = vmatprep.subr.mxu0 0.0
      %6785 = vmatpush1.msra.mxu0 %v6782
      %6786 = vmatprep.subr.mxu0 0.0
      %6787 = vmatpush1.msra.mxu0 0.0
      %6788 = vmatprep.subr.mxu0 0.0
      %6789 = vmatpush1.msra.mxu0 0.0
      %6790 = vmatprep.subr.mxu0 0.0
      %6791 = vmatpush1.msra.mxu0 0.0
      %6792 = vmatprep.subr.mxu0 0.0
      %6793 = vmatpush1.msra.mxu0 0.0
      %6794 = vmatprep.subr.mxu0 0.0
      %6795 = vmatpush1.msra.mxu0 0.0
      %6796 = vmatprep.subr.mxu0 0.0
      %6797 = vmatpush1.msra.mxu0 0.0
      %6798 = vmatprep.subr.mxu0 0.0
      %6799 = vmatpush1.msra.mxu0 0.0
      %6800 = vmatprep.subr.mxu0 0.0
      %6801 = vmatpush1.msra.mxu0 0.0
      %6802 = vmatprep.subr.mxu0 0.0
      %6803 = vmatpush1.msra.mxu0 0.0
      %6804 = vmatprep.subr.mxu0 0.0
      %6805 = vmatpush1.msra.mxu0 0.0
      %6806 = vmatprep.subr.mxu0 0.0
      %6807 = vmatpush1.msra.mxu0 0.0
      %6808 = vmatprep.subr.mxu0 0.0
      %6809 = vmatpush1.msra.mxu0 0.0
      %6810 = vmatprep.subr.mxu0 0.0
      %6811 = vmatpush1.msra.mxu0 0.0
      %6812 = vmatprep.subr.mxu0 0.0
      %6813 = vmatpush1.msra.mxu0 0.0
      %6814 = vmatprep.subr.mxu0 0.0
      %6815 = vmatpush1.msra.mxu0 0.0
      %6816 = vmatprep.subr.mxu0 0.0
      %6817 = vmatpush1.msra.mxu0 0.0
      %6818 = vmatprep.subr.mxu0 0.0
      %6819 = vmatpush1.msra.mxu0 0.0
      %6820 = vmatprep.subr.mxu0 0.0
      %6821 = vmatpush1.msra.mxu0 0.0
      %6822 = vmatprep.subr.mxu0 0.0
      %6823 = vmatpush1.msra.mxu0 0.0
      %6824 = vmatprep.subr.mxu0 0.0
      %6825 = vmatpush1.msra.mxu0 0.0
      %6826 = vmatprep.subr.mxu0 0.0
      %6827 = vmatpush1.msra.mxu0 0.0
      %6828 = vmatprep.subr.mxu0 0.0
      %6829 = vmatpush1.msra.mxu0 0.0
      %6830 = vmatprep.subr.mxu0 0.0
      %6831 = vmatpush1.msra.mxu0 0.0
      %6832 = vmatprep.subr.mxu0 0.0
      %6833 = vmatpush1.msra.mxu0 0.0
      %6834 = vmatprep.subr.mxu0 0.0
      %6835 = vmatpush1.msra.mxu0 0.0
      %6836 = vmatprep.subr.mxu0 0.0
      %6837 = vmatpush1.msra.mxu0 0.0
      %6838 = vmatprep.subr.mxu0 0.0
      %6839 = vmatpush1.msra.mxu0 0.0
      %6840 = vmatprep.subr.mxu0 0.0
      %6841 = vmatpush1.msra.mxu0 0.0
      %6842 = vmatprep.subr.mxu0 0.0
      %6843 = vmatpush1.msra.mxu0 0.0
      %6844 = vmatprep.subr.mxu0 0.0
      %6845 = vmatpush1.msra.mxu0 0.0
      %6846 = vmatprep.subr.mxu0 0.0
      %6847 = vmatpush1.msra.mxu0 0.0
      %6848 = vmatprep.mubr.f32.mxu0 0.0
      %6849 = vmatmul.mubr.f32.gmra.mrb[0].mxu0 %v6749
      %v6850 = vpop.f32.mrb[0].mxu0
      %v6851 = vadd.f32 0.0, %v6850
      %v6852 = vpop.f32.mrb[0].mxu0
      %6853 = vmatprep.mubr.f32.mxu0 0.0
      %6854 = vmatmul.mubr.f32.gmra.mrb[0].mxu0 %v6751
      %v6855 = vpop.f32.mrb[0].mxu0
      %v6856 = vadd.f32 0.0, %v6855
      %v6857 = vpop.f32.mrb[0].mxu0
      %6858 = vmatprep.mubr.f32.mxu0 0.0
      %6859 = vmatmul.mubr.f32.gmra.mrb[0].mxu0 %v6753
      %v6860 = vpop.f32.mrb[0].mxu0
      %v6861 = vadd.f32 0.0, %v6860
      %v6862 = vpop.f32.mrb[0].mxu0
      %6863 = vmatprep.mubr.f32.mxu0 0.0
      %6864 = vmatmul.mubr.f32.gmra.mrb[0].mxu0 %v6755
      %v6865 = vpop.f32.mrb[0].mxu0
      %v6866 = vadd.f32 0.0, %v6865
      %v6867 = vpop.f32.mrb[0].mxu0
      %6868 = vmatprep.mubr.f32.mxu0 0.0
      %6869 = vmatmul.mubr.f32.gmra.mrb[0].mxu0 %v6757
      %v6870 = vpop.f32.mrb[0].mxu0
      %v6871 = vadd.f32 0.0, %v6870
      %v6872 = vpop.f32.mrb[0].mxu0
      %6873 = vmatprep.mubr.f32.mxu0 0.0
      %6874 = vmatmul.mubr.f32.gmra.mrb[0].mxu0 %v6759
      %v6875 = vpop.f32.mrb[0].mxu0
      %v6876 = vadd.f32 0.0, %v6875
      %v6877 = vpop.f32.mrb[0].mxu0
      %6878 = vmatprep.mubr.f32.mxu0 0.0
      %6879 = vmatmul.mubr.f32.gmra.mrb[0].mxu0 %v6761
      %v6880 = vpop.f32.mrb[0].mxu0
      %v6881 = vadd.f32 0.0, %v6880
      %v6882 = vpop.f32.mrb[0].mxu0
      %6883 = vmatprep.mubr.f32.mxu0 0.0
      %6884 = vmatmul.mubr.f32.gmra.mrb[0].mxu0 %v6763
      %v6885 = vpop.f32.mrb[0].mxu0
      %v6886 = vadd.f32 0.0, %v6885
      %v6887 = vpop.f32.mrb[0].mxu0
      %6888 = vmatprep.mubr.f32.mxu0 0.0
      %6889 = vmatmul.mubr.f32.gmra.mrb[0].mxu0 %v6765
      %v6890 = vpop.f32.mrb[0].mxu0
      %v6891 = vadd.f32 0.0, %v6890
      %v6892 = vpop.f32.mrb[0].mxu0
      %6893 = vmatprep.mubr.f32.mxu0 0.0
      %6894 = vmatmul.mubr.f32.gmra.mrb[0].mxu0 %v6767
      %v6895 = vpop.f32.mrb[0].mxu0
      %v6896 = vadd.f32 0.0, %v6895
      %v6897 = vpop.f32.mrb[0].mxu0
      %6898 = vmatprep.mubr.f32.mxu0 0.0
      %6899 = vmatmul.mubr.f32.gmra.mrb[0].mxu0 %v6769
      %v6900 = vpop.f32.mrb[0].mxu0
      %v6901 = vadd.f32 0.0, %v6900
      %v6902 = vpop.f32.mrb[0].mxu0
      %6903 = vmatprep.mubr.f32.mxu0 0.0
      %6904 = vmatmul.mubr.f32.gmra.mrb[0].mxu0 %v6771
      %v6905 = vpop.f32.mrb[0].mxu0
      %v6906 = vadd.f32 0.0, %v6905
      %v6907 = vpop.f32.mrb[0].mxu0
      %6908 = vmatprep.mubr.f32.mxu0 0.0
      %6909 = vmatmul.mubr.f32.gmra.mrb[0].mxu0 %v6773
      %v6910 = vpop.f32.mrb[0].mxu0
      %v6911 = vadd.f32 0.0, %v6910
      %v6912 = vpop.f32.mrb[0].mxu0
      %6913 = vmatprep.mubr.f32.mxu0 0.0
      %6914 = vmatmul.mubr.f32.gmra.mrb[0].mxu0 %v6775
      %v6915 = vpop.f32.mrb[0].mxu0
      %v6916 = vadd.f32 0.0, %v6915
      %v6917 = vpop.f32.mrb[0].mxu0
      %6918 = vmatprep.mubr.f32.mxu0 0.0
      %6919 = vmatmul.mubr.f32.gmra.mrb[0].mxu0 %v6777
      %v6920 = vpop.f32.mrb[0].mxu0
      %v6921 = vadd.f32 0.0, %v6920
      %v6922 = vpop.f32.mrb[0].mxu0
      %6923 = vmatprep.mubr.f32.mxu0 0.0
      %6924 = vmatmul.mubr.f32.gmra.mrb[0].mxu0 %v6779
      %v6925 = vpop.f32.mrb[0].mxu0
      %v6926 = vadd.f32 0.0, %v6925
      %v6927 = vpop.f32.mrb[0].mxu0
      %6928 = vdwg.mxu0
      %v6929 = vadd.f32 %v6732, %v6851
      %v6930 = vadd.f32 %v6733, %v6856
      %v6931 = vadd.f32 %v6734, %v6861
      %v6932 = vadd.f32 %v6735, %v6866
      %v6933 = vadd.f32 %v6736, %v6871
      %v6934 = vadd.f32 %v6737, %v6876
      %v6935 = vadd.f32 %v6738, %v6881
      %v6936 = vadd.f32 %v6739, %v6886
      %v6937 = vadd.f32 %v6740, %v6891
      %v6938 = vadd.f32 %v6741, %v6896
      %v6939 = vadd.f32 %v6742, %v6901
      %v6940 = vadd.f32 %v6743, %v6906
      %v6941 = vadd.f32 %v6744, %v6911
      %v6942 = vadd.f32 %v6745, %v6916
      %v6943 = vadd.f32 %v6746, %v6921
      %v6944 = vadd.f32 %v6747, %v6926
      %v6946 = vlaneseq
      %v6947 = vshrl.u32 %v6946, 7
      %v6948 = vsub.s32 0, %v6947
      %v6949 = vrot.slane %v380, %v6948
      %v6951 = vadd.f32 %v6929, %v6949
      %v6952 = vadd.f32 %v6930, %v6949
      %v6953 = vadd.f32 %v6931, %v6949
      %v6954 = vadd.f32 %v6932, %v6949
      %v6955 = vadd.f32 %v6933, %v6949
      %v6956 = vadd.f32 %v6934, %v6949
      %v6957 = vadd.f32 %v6935, %v6949
      %v6958 = vadd.f32 %v6936, %v6949
      %v6959 = vadd.f32 %v6937, %v6949
      %v6960 = vadd.f32 %v6938, %v6949
      %v6961 = vadd.f32 %v6939, %v6949
      %v6962 = vadd.f32 %v6940, %v6949
      %v6963 = vadd.f32 %v6941, %v6949
      %v6964 = vadd.f32 %v6942, %v6949
      %v6965 = vadd.f32 %v6943, %v6949
      %v6966 = vadd.f32 %v6944, %v6949
      %s6967 = smul.u32 0, 16
      %s6968 = scalar_lea.vmem %s219, %s6967
      %v6969 = vld [vmem:[%s6968] sm:$0xff]
      %v6970 = vld [vmem:[%s6968 + $0x8] sm:$0xff]
      %v6971 = vld [vmem:[%s6968 + $0x10] sm:$0xff]
      %v6972 = vld [vmem:[%s6968 + $0x18] sm:$0xff]
      %v6973 = vld [vmem:[%s6968 + $0x20] sm:$0xff]
      %v6974 = vld [vmem:[%s6968 + $0x28] sm:$0xff]
      %v6975 = vld [vmem:[%s6968 + $0x30] sm:$0xff]
      %v6976 = vld [vmem:[%s6968 + $0x38] sm:$0xff]
      %v6977 = vld [vmem:[%s6968 + $0x40] sm:$0xff]
      %v6978 = vld [vmem:[%s6968 + $0x48] sm:$0xff]
      %v6979 = vld [vmem:[%s6968 + $0x50] sm:$0xff]
      %v6980 = vld [vmem:[%s6968 + $0x58] sm:$0xff]
      %v6981 = vld [vmem:[%s6968 + $0x60] sm:$0xff]
      %v6982 = vld [vmem:[%s6968 + $0x68] sm:$0xff]
      %v6983 = vld [vmem:[%s6968 + $0x70] sm:$0xff]
      %v6984 = vld [vmem:[%s6968 + $0x78] sm:$0xff]
      %v6985 = vadd.f32 %v6951, %v6969
      %v6986 = vadd.f32 %v6952, %v6970
      %v6987 = vadd.f32 %v6953, %v6971
      %v6988 = vadd.f32 %v6954, %v6972
      %v6989 = vadd.f32 %v6955, %v6973
      %v6990 = vadd.f32 %v6956, %v6974
      %v6991 = vadd.f32 %v6957, %v6975
      %v6992 = vadd.f32 %v6958, %v6976
      %v6993 = vadd.f32 %v6959, %v6977
      %v6994 = vadd.f32 %v6960, %v6978
      %v6995 = vadd.f32 %v6961, %v6979
      %v6996 = vadd.f32 %v6962, %v6980
      %v6997 = vadd.f32 %v6963, %v6981
      %v6998 = vadd.f32 %v6964, %v6982
      %v6999 = vadd.f32 %v6965, %v6983
      %v7000 = vadd.f32 %v6966, %v6984
      %vm7001 = vcmp.gt.f32.partialorder %v6985, 0.0
      %vm7002 = vcmp.gt.f32.partialorder %v6986, 0.0
      %vm7003 = vcmp.gt.f32.partialorder %v6987, 0.0
      %vm7004 = vcmp.gt.f32.partialorder %v6988, 0.0
      %vm7005 = vcmp.gt.f32.partialorder %v6989, 0.0
      %vm7006 = vcmp.gt.f32.partialorder %v6990, 0.0
      %vm7007 = vcmp.gt.f32.partialorder %v6991, 0.0
      %vm7008 = vcmp.gt.f32.partialorder %v6992, 0.0
      %vm7009 = vcmp.gt.f32.partialorder %v6993, 0.0
      %vm7010 = vcmp.gt.f32.partialorder %v6994, 0.0
      %vm7011 = vcmp.gt.f32.partialorder %v6995, 0.0
      %vm7012 = vcmp.gt.f32.partialorder %v6996, 0.0
      %vm7013 = vcmp.gt.f32.partialorder %v6997, 0.0
      %vm7014 = vcmp.gt.f32.partialorder %v6998, 0.0
      %vm7015 = vcmp.gt.f32.partialorder %v6999, 0.0
      %vm7016 = vcmp.gt.f32.partialorder %v7000, 0.0
      %v7017 = vmul.f32 %v6985, 0.2
      %v7018 = vmul.f32 %v6986, 0.2
      %v7019 = vmul.f32 %v6987, 0.2
      %v7020 = vmul.f32 %v6988, 0.2
      %v7021 = vmul.f32 %v6989, 0.2
      %v7022 = vmul.f32 %v6990, 0.2
      %v7023 = vmul.f32 %v6991, 0.2
      %v7024 = vmul.f32 %v6992, 0.2
      %v7025 = vmul.f32 %v6993, 0.2
      %v7026 = vmul.f32 %v6994, 0.2
      %v7027 = vmul.f32 %v6995, 0.2
      %v7028 = vmul.f32 %v6996, 0.2
      %v7029 = vmul.f32 %v6997, 0.2
      %v7030 = vmul.f32 %v6998, 0.2
      %v7031 = vmul.f32 %v6999, 0.2
      %v7032 = vmul.f32 %v7000, 0.2
      %v7033 = vsel %vm7001, %v6985, %v7017
      %v7034 = vsel %vm7002, %v6986, %v7018
      %v7035 = vsel %vm7003, %v6987, %v7019
      %v7036 = vsel %vm7004, %v6988, %v7020
      %v7037 = vsel %vm7005, %v6989, %v7021
      %v7038 = vsel %vm7006, %v6990, %v7022
      %v7039 = vsel %vm7007, %v6991, %v7023
      %v7040 = vsel %vm7008, %v6992, %v7024
      %v7041 = vsel %vm7009, %v6993, %v7025
      %v7042 = vsel %vm7010, %v6994, %v7026
      %v7043 = vsel %vm7011, %v6995, %v7027
      %v7044 = vsel %vm7012, %v6996, %v7028
      %v7045 = vsel %vm7013, %v6997, %v7029
      %v7046 = vsel %vm7014, %v6998, %v7030
      %v7047 = vsel %vm7015, %v6999, %v7031
      %v7048 = vsel %vm7016, %v7000, %v7032
      %s7049 = scalar_lea.vmem %s224, %s6967
      %7050 = vst.msk [vmem:[%s7049] sm:$0xff] %vm225, %v7033
      %7051 = vst.msk [vmem:[%s7049 + $0x8] sm:$0xff] %vm225, %v7034
      %7052 = vst.msk [vmem:[%s7049 + $0x10] sm:$0xff] %vm225, %v7035
      %7053 = vst.msk [vmem:[%s7049 + $0x18] sm:$0xff] %vm225, %v7036
      %7054 = vst.msk [vmem:[%s7049 + $0x20] sm:$0xff] %vm225, %v7037
      %7055 = vst.msk [vmem:[%s7049 + $0x28] sm:$0xff] %vm225, %v7038
      %7056 = vst.msk [vmem:[%s7049 + $0x30] sm:$0xff] %vm225, %v7039
      %7057 = vst.msk [vmem:[%s7049 + $0x38] sm:$0xff] %vm225, %v7040
      %7058 = vst.msk [vmem:[%s7049 + $0x40] sm:$0xff] %vm225, %v7041
      %7059 = vst.msk [vmem:[%s7049 + $0x48] sm:$0xff] %vm225, %v7042
      %7060 = vst.msk [vmem:[%s7049 + $0x50] sm:$0xff] %vm225, %v7043
      %7061 = vst.msk [vmem:[%s7049 + $0x58] sm:$0xff] %vm225, %v7044
      %7062 = vst.msk [vmem:[%s7049 + $0x60] sm:$0xff] %vm225, %v7045
      %7063 = vst.msk [vmem:[%s7049 + $0x68] sm:$0xff] %vm225, %v7046
      %7064 = vst.msk [vmem:[%s7049 + $0x70] sm:$0xff] %vm225, %v7047
      %7065 = vst.msk [vmem:[%s7049 + $0x78] sm:$0xff] %vm225, %v7048
      %s7066 = scalar_lea.vmem [#allocation3], %s2604
      %v7067 = vld [vmem:[%s7066] sm:$0xff]
      %v7068 = vld [vmem:[%s7066 + $0x8] sm:$0xff]
      %v7069 = vld [vmem:[%s7066 + $0x10] sm:$0x3]
      %v7070 = vld [vmem:[%s7066 + $0x18] sm:$0xff]
      %v7071 = vld [vmem:[%s7066 + $0x20] sm:$0xff]
      %v7072 = vld [vmem:[%s7066 + $0x28] sm:$0x3]
      %v7073 = vld [vmem:[%s7066 + $0x30] sm:$0xff]
      %v7074 = vld [vmem:[%s7066 + $0x38] sm:$0xff]
      %v7075 = vld [vmem:[%s7066 + $0x40] sm:$0x3]
      %v7076 = vld [vmem:[%s7066 + $0x48] sm:$0xff]
      %v7077 = vld [vmem:[%s7066 + $0x50] sm:$0xff]
      %v7078 = vld [vmem:[%s7066 + $0x58] sm:$0x3]
      %v7079 = vld [vmem:[%s7066 + $0x60] sm:$0xff]
      %v7080 = vld [vmem:[%s7066 + $0x68] sm:$0xff]
      %v7081 = vld [vmem:[%s7066 + $0x70] sm:$0x3]
      %v7082 = vld [vmem:[%s7066 + $0x78] sm:$0xff]
      %v7083 = vld [vmem:[%s7066 + $0x80] sm:$0xff]
      %v7084 = vld [vmem:[%s7066 + $0x88] sm:$0x3]
      %v7085 = vld [vmem:[%s7066 + $0x90] sm:$0xff]
      %v7086 = vld [vmem:[%s7066 + $0x98] sm:$0xff]
      %v7087 = vld [vmem:[%s7066 + $0xa0] sm:$0x3]
      %v7088 = vld [vmem:[%s7066 + $0xa8] sm:$0xff]
      %v7089 = vld [vmem:[%s7066 + $0xb0] sm:$0xff]
      %v7090 = vld [vmem:[%s7066 + $0xb8] sm:$0x3]
      %v7115 = vrot.slane %v7067, 1
      %v7116 = vrot.slane %v7068, 1
      %v7117 = vsel %vm431, %v7115, %v7116
      %v7118 = vrot.slane %v7069, 1
      %v7119 = vsel %vm431, %v7116, %v7118
      %v7120 = vrot.slane %v7070, 1
      %v7121 = vrot.slane %v7071, 1
      %v7122 = vsel %vm431, %v7120, %v7121
      %v7123 = vrot.slane %v7072, 1
      %v7124 = vsel %vm431, %v7121, %v7123
      %v7125 = vrot.slane %v7073, 1
      %v7126 = vrot.slane %v7074, 1
      %v7127 = vsel %vm431, %v7125, %v7126
      %v7128 = vrot.slane %v7075, 1
      %v7129 = vsel %vm431, %v7126, %v7128
      %v7130 = vrot.slane %v7076, 1
      %v7131 = vrot.slane %v7077, 1
      %v7132 = vsel %vm431, %v7130, %v7131
      %v7133 = vrot.slane %v7078, 1
      %v7134 = vsel %vm431, %v7131, %v7133
      %v7135 = vrot.slane %v7079, 1
      %v7136 = vrot.slane %v7080, 1
      %v7137 = vsel %vm431, %v7135, %v7136
      %v7138 = vrot.slane %v7081, 1
      %v7139 = vsel %vm431, %v7136, %v7138
      %v7140 = vrot.slane %v7082, 1
      %v7141 = vrot.slane %v7083, 1
      %v7142 = vsel %vm431, %v7140, %v7141
      %v7143 = vrot.slane %v7084, 1
      %v7144 = vsel %vm431, %v7141, %v7143
      %v7145 = vrot.slane %v7085, 1
      %v7146 = vrot.slane %v7086, 1
      %v7147 = vsel %vm431, %v7145, %v7146
      %v7148 = vrot.slane %v7087, 1
      %v7149 = vsel %vm431, %v7146, %v7148
      %v7150 = vrot.slane %v7088, 1
      %v7151 = vrot.slane %v7089, 1
      %v7152 = vsel %vm431, %v7150, %v7151
      %v7153 = vrot.slane %v7090, 1
      %v7154 = vsel %vm431, %v7151, %v7153
      %v7155 = vrot.slane %v7067, 2
      %v7156 = vrot.slane %v7068, 2
      %v7157 = vsel %vm472, %v7155, %v7156
      %v7158 = vrot.slane %v7069, 2
      %v7159 = vsel %vm472, %v7156, %v7158
      %v7160 = vrot.slane %v7070, 2
      %v7161 = vrot.slane %v7071, 2
      %v7162 = vsel %vm472, %v7160, %v7161
      %v7163 = vrot.slane %v7072, 2
      %v7164 = vsel %vm472, %v7161, %v7163
      %v7165 = vrot.slane %v7073, 2
      %v7166 = vrot.slane %v7074, 2
      %v7167 = vsel %vm472, %v7165, %v7166
      %v7168 = vrot.slane %v7075, 2
      %v7169 = vsel %vm472, %v7166, %v7168
      %v7170 = vrot.slane %v7076, 2
      %v7171 = vrot.slane %v7077, 2
      %v7172 = vsel %vm472, %v7170, %v7171
      %v7173 = vrot.slane %v7078, 2
      %v7174 = vsel %vm472, %v7171, %v7173
      %v7175 = vrot.slane %v7079, 2
      %v7176 = vrot.slane %v7080, 2
      %v7177 = vsel %vm472, %v7175, %v7176
      %v7178 = vrot.slane %v7081, 2
      %v7179 = vsel %vm472, %v7176, %v7178
      %v7180 = vrot.slane %v7082, 2
      %v7181 = vrot.slane %v7083, 2
      %v7182 = vsel %vm472, %v7180, %v7181
      %v7183 = vrot.slane %v7084, 2
      %v7184 = vsel %vm472, %v7181, %v7183
      %v7185 = vrot.slane %v7085, 2
      %v7186 = vrot.slane %v7086, 2
      %v7187 = vsel %vm472, %v7185, %v7186
      %v7188 = vrot.slane %v7087, 2
      %v7189 = vsel %vm472, %v7186, %v7188
      %v7190 = vrot.slane %v7088, 2
      %v7191 = vrot.slane %v7089, 2
      %v7192 = vsel %vm472, %v7190, %v7191
      %v7193 = vrot.slane %v7090, 2
      %v7194 = vsel %vm472, %v7191, %v7193
      %v7195 = vld [vmem:[%s3] sm:$0xf]
      %v7196 = vld [vmem:[%s3 + $0x4] sm:$0xf]
      %v7197 = vsel %vm225, %v7117, 0
      %v7199 = vsel %vm225, %v7119, 0
      %v7201 = vsel %vm225, %v7122, 0
      %v7203 = vsel %vm225, %v7124, 0
      %v7205 = vsel %vm225, %v7127, 0
      %v7207 = vsel %vm225, %v7129, 0
      %v7209 = vsel %vm225, %v7132, 0
      %v7211 = vsel %vm225, %v7134, 0
      %v7213 = vsel %vm225, %v7137, 0
      %v7215 = vsel %vm225, %v7139, 0
      %v7217 = vsel %vm225, %v7142, 0
      %v7219 = vsel %vm225, %v7144, 0
      %v7221 = vsel %vm225, %v7147, 0
      %v7223 = vsel %vm225, %v7149, 0
      %v7225 = vsel %vm225, %v7152, 0
      %v7227 = vsel %vm225, %v7154, 0
      %v7230 = vsel %vm547, %v7196, 0
      %7232 = vmatprep.subr.mxu0 0.0
      %7233 = vmatpush1.msra.mxu0 %v7230
      %7234 = vmatprep.subr.mxu0 0.0
      %7235 = vmatpush1.msra.mxu0 0.0
      %7236 = vmatprep.subr.mxu0 0.0
      %7237 = vmatpush1.msra.mxu0 0.0
      %7238 = vmatprep.subr.mxu0 0.0
      %7239 = vmatpush1.msra.mxu0 0.0
      %7240 = vmatprep.subr.mxu0 0.0
      %7241 = vmatpush1.msra.mxu0 0.0
      %7242 = vmatprep.subr.mxu0 0.0
      %7243 = vmatpush1.msra.mxu0 0.0
      %7244 = vmatprep.subr.mxu0 0.0
      %7245 = vmatpush1.msra.mxu0 0.0
      %7246 = vmatprep.subr.mxu0 0.0
      %7247 = vmatpush1.msra.mxu0 0.0
      %7248 = vmatprep.subr.mxu0 0.0
      %7249 = vmatpush1.msra.mxu0 0.0
      %7250 = vmatprep.subr.mxu0 0.0
      %7251 = vmatpush1.msra.mxu0 0.0
      %7252 = vmatprep.subr.mxu0 0.0
      %7253 = vmatpush1.msra.mxu0 0.0
      %7254 = vmatprep.subr.mxu0 0.0
      %7255 = vmatpush1.msra.mxu0 0.0
      %7256 = vmatprep.subr.mxu0 0.0
      %7257 = vmatpush1.msra.mxu0 0.0
      %7258 = vmatprep.subr.mxu0 0.0
      %7259 = vmatpush1.msra.mxu0 0.0
      %7260 = vmatprep.subr.mxu0 0.0
      %7261 = vmatpush1.msra.mxu0 0.0
      %7262 = vmatprep.subr.mxu0 0.0
      %7263 = vmatpush1.msra.mxu0 0.0
      %7264 = vmatprep.subr.mxu0 0.0
      %7265 = vmatpush1.msra.mxu0 0.0
      %7266 = vmatprep.subr.mxu0 0.0
      %7267 = vmatpush1.msra.mxu0 0.0
      %7268 = vmatprep.subr.mxu0 0.0
      %7269 = vmatpush1.msra.mxu0 0.0
      %7270 = vmatprep.subr.mxu0 0.0
      %7271 = vmatpush1.msra.mxu0 0.0
      %7272 = vmatprep.subr.mxu0 0.0
      %7273 = vmatpush1.msra.mxu0 0.0
      %7274 = vmatprep.subr.mxu0 0.0
      %7275 = vmatpush1.msra.mxu0 0.0
      %7276 = vmatprep.subr.mxu0 0.0
      %7277 = vmatpush1.msra.mxu0 0.0
      %7278 = vmatprep.subr.mxu0 0.0
      %7279 = vmatpush1.msra.mxu0 0.0
      %7280 = vmatprep.subr.mxu0 0.0
      %7281 = vmatpush1.msra.mxu0 0.0
      %7282 = vmatprep.subr.mxu0 0.0
      %7283 = vmatpush1.msra.mxu0 0.0
      %7284 = vmatprep.subr.mxu0 0.0
      %7285 = vmatpush1.msra.mxu0 0.0
      %7286 = vmatprep.subr.mxu0 0.0
      %7287 = vmatpush1.msra.mxu0 0.0
      %7288 = vmatprep.subr.mxu0 0.0
      %7289 = vmatpush1.msra.mxu0 0.0
      %7290 = vmatprep.subr.mxu0 0.0
      %7291 = vmatpush1.msra.mxu0 0.0
      %7292 = vmatprep.subr.mxu0 0.0
      %7293 = vmatpush1.msra.mxu0 0.0
      %7294 = vmatprep.subr.mxu0 0.0
      %7295 = vmatpush1.msra.mxu0 0.0
      %7296 = vmatprep.mubr.f32.mxu0 0.0
      %7297 = vmatmul.mubr.f32.gmra.mrb[0].mxu0 %v7197
      %v7298 = vpop.f32.mrb[0].mxu0
      %v7299 = vadd.f32 0.0, %v7298
      %v7300 = vpop.f32.mrb[0].mxu0
      %7301 = vmatprep.mubr.f32.mxu0 0.0
      %7302 = vmatmul.mubr.f32.gmra.mrb[0].mxu0 %v7199
      %v7303 = vpop.f32.mrb[0].mxu0
      %v7304 = vadd.f32 0.0, %v7303
      %v7305 = vpop.f32.mrb[0].mxu0
      %7306 = vmatprep.mubr.f32.mxu0 0.0
      %7307 = vmatmul.mubr.f32.gmra.mrb[0].mxu0 %v7201
      %v7308 = vpop.f32.mrb[0].mxu0
      %v7309 = vadd.f32 0.0, %v7308
      %v7310 = vpop.f32.mrb[0].mxu0
      %7311 = vmatprep.mubr.f32.mxu0 0.0
      %7312 = vmatmul.mubr.f32.gmra.mrb[0].mxu0 %v7203
      %v7313 = vpop.f32.mrb[0].mxu0
      %v7314 = vadd.f32 0.0, %v7313
      %v7315 = vpop.f32.mrb[0].mxu0
      %7316 = vmatprep.mubr.f32.mxu0 0.0
      %7317 = vmatmul.mubr.f32.gmra.mrb[0].mxu0 %v7205
      %v7318 = vpop.f32.mrb[0].mxu0
      %v7319 = vadd.f32 0.0, %v7318
      %v7320 = vpop.f32.mrb[0].mxu0
      %7321 = vmatprep.mubr.f32.mxu0 0.0
      %7322 = vmatmul.mubr.f32.gmra.mrb[0].mxu0 %v7207
      %v7323 = vpop.f32.mrb[0].mxu0
      %v7324 = vadd.f32 0.0, %v7323
      %v7325 = vpop.f32.mrb[0].mxu0
      %7326 = vmatprep.mubr.f32.mxu0 0.0
      %7327 = vmatmul.mubr.f32.gmra.mrb[0].mxu0 %v7209
      %v7328 = vpop.f32.mrb[0].mxu0
      %v7329 = vadd.f32 0.0, %v7328
      %v7330 = vpop.f32.mrb[0].mxu0
      %7331 = vmatprep.mubr.f32.mxu0 0.0
      %7332 = vmatmul.mubr.f32.gmra.mrb[0].mxu0 %v7211
      %v7333 = vpop.f32.mrb[0].mxu0
      %v7334 = vadd.f32 0.0, %v7333
      %v7335 = vpop.f32.mrb[0].mxu0
      %7336 = vmatprep.mubr.f32.mxu0 0.0
      %7337 = vmatmul.mubr.f32.gmra.mrb[0].mxu0 %v7213
      %v7338 = vpop.f32.mrb[0].mxu0
      %v7339 = vadd.f32 0.0, %v7338
      %v7340 = vpop.f32.mrb[0].mxu0
      %7341 = vmatprep.mubr.f32.mxu0 0.0
      %7342 = vmatmul.mubr.f32.gmra.mrb[0].mxu0 %v7215
      %v7343 = vpop.f32.mrb[0].mxu0
      %v7344 = vadd.f32 0.0, %v7343
      %v7345 = vpop.f32.mrb[0].mxu0
      %7346 = vmatprep.mubr.f32.mxu0 0.0
      %7347 = vmatmul.mubr.f32.gmra.mrb[0].mxu0 %v7217
      %v7348 = vpop.f32.mrb[0].mxu0
      %v7349 = vadd.f32 0.0, %v7348
      %v7350 = vpop.f32.mrb[0].mxu0
      %7351 = vmatprep.mubr.f32.mxu0 0.0
      %7352 = vmatmul.mubr.f32.gmra.mrb[0].mxu0 %v7219
      %v7353 = vpop.f32.mrb[0].mxu0
      %v7354 = vadd.f32 0.0, %v7353
      %v7355 = vpop.f32.mrb[0].mxu0
      %7356 = vmatprep.mubr.f32.mxu0 0.0
      %7357 = vmatmul.mubr.f32.gmra.mrb[0].mxu0 %v7221
      %v7358 = vpop.f32.mrb[0].mxu0
      %v7359 = vadd.f32 0.0, %v7358
      %v7360 = vpop.f32.mrb[0].mxu0
      %7361 = vmatprep.mubr.f32.mxu0 0.0
      %7362 = vmatmul.mubr.f32.gmra.mrb[0].mxu0 %v7223
      %v7363 = vpop.f32.mrb[0].mxu0
      %v7364 = vadd.f32 0.0, %v7363
      %v7365 = vpop.f32.mrb[0].mxu0
      %7366 = vmatprep.mubr.f32.mxu0 0.0
      %7367 = vmatmul.mubr.f32.gmra.mrb[0].mxu0 %v7225
      %v7368 = vpop.f32.mrb[0].mxu0
      %v7369 = vadd.f32 0.0, %v7368
      %v7370 = vpop.f32.mrb[0].mxu0
      %7371 = vmatprep.mubr.f32.mxu0 0.0
      %7372 = vmatmul.mubr.f32.gmra.mrb[0].mxu0 %v7227
      %v7373 = vpop.f32.mrb[0].mxu0
      %v7374 = vadd.f32 0.0, %v7373
      %v7375 = vpop.f32.mrb[0].mxu0
      %7376 = vdwg.mxu0
      %v7377 = vsel %vm225, %v7067, 0
      %v7379 = vsel %vm225, %v7068, 0
      %v7381 = vsel %vm225, %v7070, 0
      %v7383 = vsel %vm225, %v7071, 0
      %v7385 = vsel %vm225, %v7073, 0
      %v7387 = vsel %vm225, %v7074, 0
      %v7389 = vsel %vm225, %v7076, 0
      %v7391 = vsel %vm225, %v7077, 0
      %v7393 = vsel %vm225, %v7079, 0
      %v7395 = vsel %vm225, %v7080, 0
      %v7397 = vsel %vm225, %v7082, 0
      %v7399 = vsel %vm225, %v7083, 0
      %v7401 = vsel %vm225, %v7085, 0
      %v7403 = vsel %vm225, %v7086, 0
      %v7405 = vsel %vm225, %v7088, 0
      %v7407 = vsel %vm225, %v7089, 0
      %v7410 = vsel %vm547, %v7195, 0
      %7412 = vmatprep.subr.mxu0 0.0
      %7413 = vmatpush1.msra.mxu0 %v7410
      %7414 = vmatprep.subr.mxu0 0.0
      %7415 = vmatpush1.msra.mxu0 0.0
      %7416 = vmatprep.subr.mxu0 0.0
      %7417 = vmatpush1.msra.mxu0 0.0
      %7418 = vmatprep.subr.mxu0 0.0
      %7419 = vmatpush1.msra.mxu0 0.0
      %7420 = vmatprep.subr.mxu0 0.0
      %7421 = vmatpush1.msra.mxu0 0.0
      %7422 = vmatprep.subr.mxu0 0.0
      %7423 = vmatpush1.msra.mxu0 0.0
      %7424 = vmatprep.subr.mxu0 0.0
      %7425 = vmatpush1.msra.mxu0 0.0
      %7426 = vmatprep.subr.mxu0 0.0
      %7427 = vmatpush1.msra.mxu0 0.0
      %7428 = vmatprep.subr.mxu0 0.0
      %7429 = vmatpush1.msra.mxu0 0.0
      %7430 = vmatprep.subr.mxu0 0.0
      %7431 = vmatpush1.msra.mxu0 0.0
      %7432 = vmatprep.subr.mxu0 0.0
      %7433 = vmatpush1.msra.mxu0 0.0
      %7434 = vmatprep.subr.mxu0 0.0
      %7435 = vmatpush1.msra.mxu0 0.0
      %7436 = vmatprep.subr.mxu0 0.0
      %7437 = vmatpush1.msra.mxu0 0.0
      %7438 = vmatprep.subr.mxu0 0.0
      %7439 = vmatpush1.msra.mxu0 0.0
      %7440 = vmatprep.subr.mxu0 0.0
      %7441 = vmatpush1.msra.mxu0 0.0
      %7442 = vmatprep.subr.mxu0 0.0
      %7443 = vmatpush1.msra.mxu0 0.0
      %7444 = vmatprep.subr.mxu0 0.0
      %7445 = vmatpush1.msra.mxu0 0.0
      %7446 = vmatprep.subr.mxu0 0.0
      %7447 = vmatpush1.msra.mxu0 0.0
      %7448 = vmatprep.subr.mxu0 0.0
      %7449 = vmatpush1.msra.mxu0 0.0
      %7450 = vmatprep.subr.mxu0 0.0
      %7451 = vmatpush1.msra.mxu0 0.0
      %7452 = vmatprep.subr.mxu0 0.0
      %7453 = vmatpush1.msra.mxu0 0.0
      %7454 = vmatprep.subr.mxu0 0.0
      %7455 = vmatpush1.msra.mxu0 0.0
      %7456 = vmatprep.subr.mxu0 0.0
      %7457 = vmatpush1.msra.mxu0 0.0
      %7458 = vmatprep.subr.mxu0 0.0
      %7459 = vmatpush1.msra.mxu0 0.0
      %7460 = vmatprep.subr.mxu0 0.0
      %7461 = vmatpush1.msra.mxu0 0.0
      %7462 = vmatprep.subr.mxu0 0.0
      %7463 = vmatpush1.msra.mxu0 0.0
      %7464 = vmatprep.subr.mxu0 0.0
      %7465 = vmatpush1.msra.mxu0 0.0
      %7466 = vmatprep.subr.mxu0 0.0
      %7467 = vmatpush1.msra.mxu0 0.0
      %7468 = vmatprep.subr.mxu0 0.0
      %7469 = vmatpush1.msra.mxu0 0.0
      %7470 = vmatprep.subr.mxu0 0.0
      %7471 = vmatpush1.msra.mxu0 0.0
      %7472 = vmatprep.subr.mxu0 0.0
      %7473 = vmatpush1.msra.mxu0 0.0
      %7474 = vmatprep.subr.mxu0 0.0
      %7475 = vmatpush1.msra.mxu0 0.0
      %7476 = vmatprep.mubr.f32.mxu0 0.0
      %7477 = vmatmul.mubr.f32.gmra.mrb[0].mxu0 %v7377
      %v7478 = vpop.f32.mrb[0].mxu0
      %v7479 = vadd.f32 %v7299, %v7478
      %v7480 = vpop.f32.mrb[0].mxu0
      %7481 = vmatprep.mubr.f32.mxu0 0.0
      %7482 = vmatmul.mubr.f32.gmra.mrb[0].mxu0 %v7379
      %v7483 = vpop.f32.mrb[0].mxu0
      %v7484 = vadd.f32 %v7304, %v7483
      %v7485 = vpop.f32.mrb[0].mxu0
      %7486 = vmatprep.mubr.f32.mxu0 0.0
      %7487 = vmatmul.mubr.f32.gmra.mrb[0].mxu0 %v7381
      %v7488 = vpop.f32.mrb[0].mxu0
      %v7489 = vadd.f32 %v7309, %v7488
      %v7490 = vpop.f32.mrb[0].mxu0
      %7491 = vmatprep.mubr.f32.mxu0 0.0
      %7492 = vmatmul.mubr.f32.gmra.mrb[0].mxu0 %v7383
      %v7493 = vpop.f32.mrb[0].mxu0
      %v7494 = vadd.f32 %v7314, %v7493
      %v7495 = vpop.f32.mrb[0].mxu0
      %7496 = vmatprep.mubr.f32.mxu0 0.0
      %7497 = vmatmul.mubr.f32.gmra.mrb[0].mxu0 %v7385
      %v7498 = vpop.f32.mrb[0].mxu0
      %v7499 = vadd.f32 %v7319, %v7498
      %v7500 = vpop.f32.mrb[0].mxu0
      %7501 = vmatprep.mubr.f32.mxu0 0.0
      %7502 = vmatmul.mubr.f32.gmra.mrb[0].mxu0 %v7387
      %v7503 = vpop.f32.mrb[0].mxu0
      %v7504 = vadd.f32 %v7324, %v7503
      %v7505 = vpop.f32.mrb[0].mxu0
      %7506 = vmatprep.mubr.f32.mxu0 0.0
      %7507 = vmatmul.mubr.f32.gmra.mrb[0].mxu0 %v7389
      %v7508 = vpop.f32.mrb[0].mxu0
      %v7509 = vadd.f32 %v7329, %v7508
      %v7510 = vpop.f32.mrb[0].mxu0
      %7511 = vmatprep.mubr.f32.mxu0 0.0
      %7512 = vmatmul.mubr.f32.gmra.mrb[0].mxu0 %v7391
      %v7513 = vpop.f32.mrb[0].mxu0
      %v7514 = vadd.f32 %v7334, %v7513
      %v7515 = vpop.f32.mrb[0].mxu0
      %7516 = vmatprep.mubr.f32.mxu0 0.0
      %7517 = vmatmul.mubr.f32.gmra.mrb[0].mxu0 %v7393
      %v7518 = vpop.f32.mrb[0].mxu0
      %v7519 = vadd.f32 %v7339, %v7518
      %v7520 = vpop.f32.mrb[0].mxu0
      %7521 = vmatprep.mubr.f32.mxu0 0.0
      %7522 = vmatmul.mubr.f32.gmra.mrb[0].mxu0 %v7395
      %v7523 = vpop.f32.mrb[0].mxu0
      %v7524 = vadd.f32 %v7344, %v7523
      %v7525 = vpop.f32.mrb[0].mxu0
      %7526 = vmatprep.mubr.f32.mxu0 0.0
      %7527 = vmatmul.mubr.f32.gmra.mrb[0].mxu0 %v7397
      %v7528 = vpop.f32.mrb[0].mxu0
      %v7529 = vadd.f32 %v7349, %v7528
      %v7530 = vpop.f32.mrb[0].mxu0
      %7531 = vmatprep.mubr.f32.mxu0 0.0
      %7532 = vmatmul.mubr.f32.gmra.mrb[0].mxu0 %v7399
      %v7533 = vpop.f32.mrb[0].mxu0
      %v7534 = vadd.f32 %v7354, %v7533
      %v7535 = vpop.f32.mrb[0].mxu0
      %7536 = vmatprep.mubr.f32.mxu0 0.0
      %7537 = vmatmul.mubr.f32.gmra.mrb[0].mxu0 %v7401
      %v7538 = vpop.f32.mrb[0].mxu0
      %v7539 = vadd.f32 %v7359, %v7538
      %v7540 = vpop.f32.mrb[0].mxu0
      %7541 = vmatprep.mubr.f32.mxu0 0.0
      %7542 = vmatmul.mubr.f32.gmra.mrb[0].mxu0 %v7403
      %v7543 = vpop.f32.mrb[0].mxu0
      %v7544 = vadd.f32 %v7364, %v7543
      %v7545 = vpop.f32.mrb[0].mxu0
      %7546 = vmatprep.mubr.f32.mxu0 0.0
      %7547 = vmatmul.mubr.f32.gmra.mrb[0].mxu0 %v7405
      %v7548 = vpop.f32.mrb[0].mxu0
      %v7549 = vadd.f32 %v7369, %v7548
      %v7550 = vpop.f32.mrb[0].mxu0
      %7551 = vmatprep.mubr.f32.mxu0 0.0
      %7552 = vmatmul.mubr.f32.gmra.mrb[0].mxu0 %v7407
      %v7553 = vpop.f32.mrb[0].mxu0
      %v7554 = vadd.f32 %v7374, %v7553
      %v7555 = vpop.f32.mrb[0].mxu0
      %7556 = vdwg.mxu0
      %v7557 = vld [vmem:[%s3 + $0x8] sm:$0xf]
      %v7558 = vsel %vm225, %v7157, 0
      %v7560 = vsel %vm225, %v7159, 0
      %v7562 = vsel %vm225, %v7162, 0
      %v7564 = vsel %vm225, %v7164, 0
      %v7566 = vsel %vm225, %v7167, 0
      %v7568 = vsel %vm225, %v7169, 0
      %v7570 = vsel %vm225, %v7172, 0
      %v7572 = vsel %vm225, %v7174, 0
      %v7574 = vsel %vm225, %v7177, 0
      %v7576 = vsel %vm225, %v7179, 0
      %v7578 = vsel %vm225, %v7182, 0
      %v7580 = vsel %vm225, %v7184, 0
      %v7582 = vsel %vm225, %v7187, 0
      %v7584 = vsel %vm225, %v7189, 0
      %v7586 = vsel %vm225, %v7192, 0
      %v7588 = vsel %vm225, %v7194, 0
      %v7591 = vsel %vm547, %v7557, 0
      %7593 = vmatprep.subr.mxu0 0.0
      %7594 = vmatpush1.msra.mxu0 %v7591
      %7595 = vmatprep.subr.mxu0 0.0
      %7596 = vmatpush1.msra.mxu0 0.0
      %7597 = vmatprep.subr.mxu0 0.0
      %7598 = vmatpush1.msra.mxu0 0.0
      %7599 = vmatprep.subr.mxu0 0.0
      %7600 = vmatpush1.msra.mxu0 0.0
      %7601 = vmatprep.subr.mxu0 0.0
      %7602 = vmatpush1.msra.mxu0 0.0
      %7603 = vmatprep.subr.mxu0 0.0
      %7604 = vmatpush1.msra.mxu0 0.0
      %7605 = vmatprep.subr.mxu0 0.0
      %7606 = vmatpush1.msra.mxu0 0.0
      %7607 = vmatprep.subr.mxu0 0.0
      %7608 = vmatpush1.msra.mxu0 0.0
      %7609 = vmatprep.subr.mxu0 0.0
      %7610 = vmatpush1.msra.mxu0 0.0
      %7611 = vmatprep.subr.mxu0 0.0
      %7612 = vmatpush1.msra.mxu0 0.0
      %7613 = vmatprep.subr.mxu0 0.0
      %7614 = vmatpush1.msra.mxu0 0.0
      %7615 = vmatprep.subr.mxu0 0.0
      %7616 = vmatpush1.msra.mxu0 0.0
      %7617 = vmatprep.subr.mxu0 0.0
      %7618 = vmatpush1.msra.mxu0 0.0
      %7619 = vmatprep.subr.mxu0 0.0
      %7620 = vmatpush1.msra.mxu0 0.0
      %7621 = vmatprep.subr.mxu0 0.0
      %7622 = vmatpush1.msra.mxu0 0.0
      %7623 = vmatprep.subr.mxu0 0.0
      %7624 = vmatpush1.msra.mxu0 0.0
      %7625 = vmatprep.subr.mxu0 0.0
      %7626 = vmatpush1.msra.mxu0 0.0
      %7627 = vmatprep.subr.mxu0 0.0
      %7628 = vmatpush1.msra.mxu0 0.0
      %7629 = vmatprep.subr.mxu0 0.0
      %7630 = vmatpush1.msra.mxu0 0.0
      %7631 = vmatprep.subr.mxu0 0.0
      %7632 = vmatpush1.msra.mxu0 0.0
      %7633 = vmatprep.subr.mxu0 0.0
      %7634 = vmatpush1.msra.mxu0 0.0
      %7635 = vmatprep.subr.mxu0 0.0
      %7636 = vmatpush1.msra.mxu0 0.0
      %7637 = vmatprep.subr.mxu0 0.0
      %7638 = vmatpush1.msra.mxu0 0.0
      %7639 = vmatprep.subr.mxu0 0.0
      %7640 = vmatpush1.msra.mxu0 0.0
      %7641 = vmatprep.subr.mxu0 0.0
      %7642 = vmatpush1.msra.mxu0 0.0
      %7643 = vmatprep.subr.mxu0 0.0
      %7644 = vmatpush1.msra.mxu0 0.0
      %7645 = vmatprep.subr.mxu0 0.0
      %7646 = vmatpush1.msra.mxu0 0.0
      %7647 = vmatprep.subr.mxu0 0.0
      %7648 = vmatpush1.msra.mxu0 0.0
      %7649 = vmatprep.subr.mxu0 0.0
      %7650 = vmatpush1.msra.mxu0 0.0
      %7651 = vmatprep.subr.mxu0 0.0
      %7652 = vmatpush1.msra.mxu0 0.0
      %7653 = vmatprep.subr.mxu0 0.0
      %7654 = vmatpush1.msra.mxu0 0.0
      %7655 = vmatprep.subr.mxu0 0.0
      %7656 = vmatpush1.msra.mxu0 0.0
      %7657 = vmatprep.mubr.f32.mxu0 0.0
      %7658 = vmatmul.mubr.f32.gmra.mrb[0].mxu0 %v7558
      %v7659 = vpop.f32.mrb[0].mxu0
      %v7660 = vadd.f32 0.0, %v7659
      %v7661 = vpop.f32.mrb[0].mxu0
      %7662 = vmatprep.mubr.f32.mxu0 0.0
      %7663 = vmatmul.mubr.f32.gmra.mrb[0].mxu0 %v7560
      %v7664 = vpop.f32.mrb[0].mxu0
      %v7665 = vadd.f32 0.0, %v7664
      %v7666 = vpop.f32.mrb[0].mxu0
      %7667 = vmatprep.mubr.f32.mxu0 0.0
      %7668 = vmatmul.mubr.f32.gmra.mrb[0].mxu0 %v7562
      %v7669 = vpop.f32.mrb[0].mxu0
      %v7670 = vadd.f32 0.0, %v7669
      %v7671 = vpop.f32.mrb[0].mxu0
      %7672 = vmatprep.mubr.f32.mxu0 0.0
      %7673 = vmatmul.mubr.f32.gmra.mrb[0].mxu0 %v7564
      %v7674 = vpop.f32.mrb[0].mxu0
      %v7675 = vadd.f32 0.0, %v7674
      %v7676 = vpop.f32.mrb[0].mxu0
      %7677 = vmatprep.mubr.f32.mxu0 0.0
      %7678 = vmatmul.mubr.f32.gmra.mrb[0].mxu0 %v7566
      %v7679 = vpop.f32.mrb[0].mxu0
      %v7680 = vadd.f32 0.0, %v7679
      %v7681 = vpop.f32.mrb[0].mxu0
      %7682 = vmatprep.mubr.f32.mxu0 0.0
      %7683 = vmatmul.mubr.f32.gmra.mrb[0].mxu0 %v7568
      %v7684 = vpop.f32.mrb[0].mxu0
      %v7685 = vadd.f32 0.0, %v7684
      %v7686 = vpop.f32.mrb[0].mxu0
      %7687 = vmatprep.mubr.f32.mxu0 0.0
      %7688 = vmatmul.mubr.f32.gmra.mrb[0].mxu0 %v7570
      %v7689 = vpop.f32.mrb[0].mxu0
      %v7690 = vadd.f32 0.0, %v7689
      %v7691 = vpop.f32.mrb[0].mxu0
      %7692 = vmatprep.mubr.f32.mxu0 0.0
      %7693 = vmatmul.mubr.f32.gmra.mrb[0].mxu0 %v7572
      %v7694 = vpop.f32.mrb[0].mxu0
      %v7695 = vadd.f32 0.0, %v7694
      %v7696 = vpop.f32.mrb[0].mxu0
      %7697 = vmatprep.mubr.f32.mxu0 0.0
      %7698 = vmatmul.mubr.f32.gmra.mrb[0].mxu0 %v7574
      %v7699 = vpop.f32.mrb[0].mxu0
      %v7700 = vadd.f32 0.0, %v7699
      %v7701 = vpop.f32.mrb[0].mxu0
      %7702 = vmatprep.mubr.f32.mxu0 0.0
      %7703 = vmatmul.mubr.f32.gmra.mrb[0].mxu0 %v7576
      %v7704 = vpop.f32.mrb[0].mxu0
      %v7705 = vadd.f32 0.0, %v7704
      %v7706 = vpop.f32.mrb[0].mxu0
      %7707 = vmatprep.mubr.f32.mxu0 0.0
      %7708 = vmatmul.mubr.f32.gmra.mrb[0].mxu0 %v7578
      %v7709 = vpop.f32.mrb[0].mxu0
      %v7710 = vadd.f32 0.0, %v7709
      %v7711 = vpop.f32.mrb[0].mxu0
      %7712 = vmatprep.mubr.f32.mxu0 0.0
      %7713 = vmatmul.mubr.f32.gmra.mrb[0].mxu0 %v7580
      %v7714 = vpop.f32.mrb[0].mxu0
      %v7715 = vadd.f32 0.0, %v7714
      %v7716 = vpop.f32.mrb[0].mxu0
      %7717 = vmatprep.mubr.f32.mxu0 0.0
      %7718 = vmatmul.mubr.f32.gmra.mrb[0].mxu0 %v7582
      %v7719 = vpop.f32.mrb[0].mxu0
      %v7720 = vadd.f32 0.0, %v7719
      %v7721 = vpop.f32.mrb[0].mxu0
      %7722 = vmatprep.mubr.f32.mxu0 0.0
      %7723 = vmatmul.mubr.f32.gmra.mrb[0].mxu0 %v7584
      %v7724 = vpop.f32.mrb[0].mxu0
      %v7725 = vadd.f32 0.0, %v7724
      %v7726 = vpop.f32.mrb[0].mxu0
      %7727 = vmatprep.mubr.f32.mxu0 0.0
      %7728 = vmatmul.mubr.f32.gmra.mrb[0].mxu0 %v7586
      %v7729 = vpop.f32.mrb[0].mxu0
      %v7730 = vadd.f32 0.0, %v7729
      %v7731 = vpop.f32.mrb[0].mxu0
      %7732 = vmatprep.mubr.f32.mxu0 0.0
      %7733 = vmatmul.mubr.f32.gmra.mrb[0].mxu0 %v7588
      %v7734 = vpop.f32.mrb[0].mxu0
      %v7735 = vadd.f32 0.0, %v7734
      %v7736 = vpop.f32.mrb[0].mxu0
      %7737 = vdwg.mxu0
      %v7738 = vadd.f32 %v7479, %v7660
      %v7739 = vadd.f32 %v7484, %v7665
      %v7740 = vadd.f32 %v7489, %v7670
      %v7741 = vadd.f32 %v7494, %v7675
      %v7742 = vadd.f32 %v7499, %v7680
      %v7743 = vadd.f32 %v7504, %v7685
      %v7744 = vadd.f32 %v7509, %v7690
      %v7745 = vadd.f32 %v7514, %v7695
      %v7746 = vadd.f32 %v7519, %v7700
      %v7747 = vadd.f32 %v7524, %v7705
      %v7748 = vadd.f32 %v7529, %v7710
      %v7749 = vadd.f32 %v7534, %v7715
      %v7750 = vadd.f32 %v7539, %v7720
      %v7751 = vadd.f32 %v7544, %v7725
      %v7752 = vadd.f32 %v7549, %v7730
      %v7753 = vadd.f32 %v7554, %v7735
      %v7754 = vld [vmem:[%s4801] sm:$0xff]
      %v7755 = vld [vmem:[%s4801 + $0x8] sm:$0xff]
      %v7756 = vld [vmem:[%s4801 + $0x10] sm:$0x3]
      %v7757 = vld [vmem:[%s4801 + $0x18] sm:$0xff]
      %v7758 = vld [vmem:[%s4801 + $0x20] sm:$0xff]
      %v7759 = vld [vmem:[%s4801 + $0x28] sm:$0x3]
      %v7760 = vld [vmem:[%s4801 + $0x30] sm:$0xff]
      %v7761 = vld [vmem:[%s4801 + $0x38] sm:$0xff]
      %v7762 = vld [vmem:[%s4801 + $0x40] sm:$0x3]
      %v7763 = vld [vmem:[%s4801 + $0x48] sm:$0xff]
      %v7764 = vld [vmem:[%s4801 + $0x50] sm:$0xff]
      %v7765 = vld [vmem:[%s4801 + $0x58] sm:$0x3]
      %v7766 = vld [vmem:[%s4801 + $0x60] sm:$0xff]
      %v7767 = vld [vmem:[%s4801 + $0x68] sm:$0xff]
      %v7768 = vld [vmem:[%s4801 + $0x70] sm:$0x3]
      %v7769 = vld [vmem:[%s4801 + $0x78] sm:$0xff]
      %v7770 = vld [vmem:[%s4801 + $0x80] sm:$0xff]
      %v7771 = vld [vmem:[%s4801 + $0x88] sm:$0x3]
      %v7772 = vld [vmem:[%s4801 + $0x90] sm:$0xff]
      %v7773 = vld [vmem:[%s4801 + $0x98] sm:$0xff]
      %v7774 = vld [vmem:[%s4801 + $0xa0] sm:$0x3]
      %v7775 = vld [vmem:[%s4801 + $0xa8] sm:$0xff]
      %v7776 = vld [vmem:[%s4801 + $0xb0] sm:$0xff]
      %v7777 = vld [vmem:[%s4801 + $0xb8] sm:$0x3]
      %v7802 = vrot.slane %v7754, 1
      %v7803 = vrot.slane %v7755, 1
      %v7804 = vsel %vm431, %v7802, %v7803
      %v7805 = vrot.slane %v7756, 1
      %v7806 = vsel %vm431, %v7803, %v7805
      %v7807 = vrot.slane %v7757, 1
      %v7808 = vrot.slane %v7758, 1
      %v7809 = vsel %vm431, %v7807, %v7808
      %v7810 = vrot.slane %v7759, 1
      %v7811 = vsel %vm431, %v7808, %v7810
      %v7812 = vrot.slane %v7760, 1
      %v7813 = vrot.slane %v7761, 1
      %v7814 = vsel %vm431, %v7812, %v7813
      %v7815 = vrot.slane %v7762, 1
      %v7816 = vsel %vm431, %v7813, %v7815
      %v7817 = vrot.slane %v7763, 1
      %v7818 = vrot.slane %v7764, 1
      %v7819 = vsel %vm431, %v7817, %v7818
      %v7820 = vrot.slane %v7765, 1
      %v7821 = vsel %vm431, %v7818, %v7820
      %v7822 = vrot.slane %v7766, 1
      %v7823 = vrot.slane %v7767, 1
      %v7824 = vsel %vm431, %v7822, %v7823
      %v7825 = vrot.slane %v7768, 1
      %v7826 = vsel %vm431, %v7823, %v7825
      %v7827 = vrot.slane %v7769, 1
      %v7828 = vrot.slane %v7770, 1
      %v7829 = vsel %vm431, %v7827, %v7828
      %v7830 = vrot.slane %v7771, 1
      %v7831 = vsel %vm431, %v7828, %v7830
      %v7832 = vrot.slane %v7772, 1
      %v7833 = vrot.slane %v7773, 1
      %v7834 = vsel %vm431, %v7832, %v7833
      %v7835 = vrot.slane %v7774, 1
      %v7836 = vsel %vm431, %v7833, %v7835
      %v7837 = vrot.slane %v7775, 1
      %v7838 = vrot.slane %v7776, 1
      %v7839 = vsel %vm431, %v7837, %v7838
      %v7840 = vrot.slane %v7777, 1
      %v7841 = vsel %vm431, %v7838, %v7840
      %v7842 = vrot.slane %v7754, 2
      %v7843 = vrot.slane %v7755, 2
      %v7844 = vsel %vm472, %v7842, %v7843
      %v7845 = vrot.slane %v7756, 2
      %v7846 = vsel %vm472, %v7843, %v7845
      %v7847 = vrot.slane %v7757, 2
      %v7848 = vrot.slane %v7758, 2
      %v7849 = vsel %vm472, %v7847, %v7848
      %v7850 = vrot.slane %v7759, 2
      %v7851 = vsel %vm472, %v7848, %v7850
      %v7852 = vrot.slane %v7760, 2
      %v7853 = vrot.slane %v7761, 2
      %v7854 = vsel %vm472, %v7852, %v7853
      %v7855 = vrot.slane %v7762, 2
      %v7856 = vsel %vm472, %v7853, %v7855
      %v7857 = vrot.slane %v7763, 2
      %v7858 = vrot.slane %v7764, 2
      %v7859 = vsel %vm472, %v7857, %v7858
      %v7860 = vrot.slane %v7765, 2
      %v7861 = vsel %vm472, %v7858, %v7860
      %v7862 = vrot.slane %v7766, 2
      %v7863 = vrot.slane %v7767, 2
      %v7864 = vsel %vm472, %v7862, %v7863
      %v7865 = vrot.slane %v7768, 2
      %v7866 = vsel %vm472, %v7863, %v7865
      %v7867 = vrot.slane %v7769, 2
      %v7868 = vrot.slane %v7770, 2
      %v7869 = vsel %vm472, %v7867, %v7868
      %v7870 = vrot.slane %v7771, 2
      %v7871 = vsel %vm472, %v7868, %v7870
      %v7872 = vrot.slane %v7772, 2
      %v7873 = vrot.slane %v7773, 2
      %v7874 = vsel %vm472, %v7872, %v7873
      %v7875 = vrot.slane %v7774, 2
      %v7876 = vsel %vm472, %v7873, %v7875
      %v7877 = vrot.slane %v7775, 2
      %v7878 = vrot.slane %v7776, 2
      %v7879 = vsel %vm472, %v7877, %v7878
      %v7880 = vrot.slane %v7777, 2
      %v7881 = vsel %vm472, %v7878, %v7880
      %v7882 = vld [vmem:[%s3 + $0xc] sm:$0xf]
      %v7883 = vsel %vm225, %v7754, 0
      %v7885 = vsel %vm225, %v7755, 0
      %v7887 = vsel %vm225, %v7757, 0
      %v7889 = vsel %vm225, %v7758, 0
      %v7891 = vsel %vm225, %v7760, 0
      %v7893 = vsel %vm225, %v7761, 0
      %v7895 = vsel %vm225, %v7763, 0
      %v7897 = vsel %vm225, %v7764, 0
      %v7899 = vsel %vm225, %v7766, 0
      %v7901 = vsel %vm225, %v7767, 0
      %v7903 = vsel %vm225, %v7769, 0
      %v7905 = vsel %vm225, %v7770, 0
      %v7907 = vsel %vm225, %v7772, 0
      %v7909 = vsel %vm225, %v7773, 0
      %v7911 = vsel %vm225, %v7775, 0
      %v7913 = vsel %vm225, %v7776, 0
      %v7916 = vsel %vm547, %v7882, 0
      %7918 = vmatprep.subr.mxu0 0.0
      %7919 = vmatpush1.msra.mxu0 %v7916
      %7920 = vmatprep.subr.mxu0 0.0
      %7921 = vmatpush1.msra.mxu0 0.0
      %7922 = vmatprep.subr.mxu0 0.0
      %7923 = vmatpush1.msra.mxu0 0.0
      %7924 = vmatprep.subr.mxu0 0.0
      %7925 = vmatpush1.msra.mxu0 0.0
      %7926 = vmatprep.subr.mxu0 0.0
      %7927 = vmatpush1.msra.mxu0 0.0
      %7928 = vmatprep.subr.mxu0 0.0
      %7929 = vmatpush1.msra.mxu0 0.0
      %7930 = vmatprep.subr.mxu0 0.0
      %7931 = vmatpush1.msra.mxu0 0.0
      %7932 = vmatprep.subr.mxu0 0.0
      %7933 = vmatpush1.msra.mxu0 0.0
      %7934 = vmatprep.subr.mxu0 0.0
      %7935 = vmatpush1.msra.mxu0 0.0
      %7936 = vmatprep.subr.mxu0 0.0
      %7937 = vmatpush1.msra.mxu0 0.0
      %7938 = vmatprep.subr.mxu0 0.0
      %7939 = vmatpush1.msra.mxu0 0.0
      %7940 = vmatprep.subr.mxu0 0.0
      %7941 = vmatpush1.msra.mxu0 0.0
      %7942 = vmatprep.subr.mxu0 0.0
      %7943 = vmatpush1.msra.mxu0 0.0
      %7944 = vmatprep.subr.mxu0 0.0
      %7945 = vmatpush1.msra.mxu0 0.0
      %7946 = vmatprep.subr.mxu0 0.0
      %7947 = vmatpush1.msra.mxu0 0.0
      %7948 = vmatprep.subr.mxu0 0.0
      %7949 = vmatpush1.msra.mxu0 0.0
      %7950 = vmatprep.subr.mxu0 0.0
      %7951 = vmatpush1.msra.mxu0 0.0
      %7952 = vmatprep.subr.mxu0 0.0
      %7953 = vmatpush1.msra.mxu0 0.0
      %7954 = vmatprep.subr.mxu0 0.0
      %7955 = vmatpush1.msra.mxu0 0.0
      %7956 = vmatprep.subr.mxu0 0.0
      %7957 = vmatpush1.msra.mxu0 0.0
      %7958 = vmatprep.subr.mxu0 0.0
      %7959 = vmatpush1.msra.mxu0 0.0
      %7960 = vmatprep.subr.mxu0 0.0
      %7961 = vmatpush1.msra.mxu0 0.0
      %7962 = vmatprep.subr.mxu0 0.0
      %7963 = vmatpush1.msra.mxu0 0.0
      %7964 = vmatprep.subr.mxu0 0.0
      %7965 = vmatpush1.msra.mxu0 0.0
      %7966 = vmatprep.subr.mxu0 0.0
      %7967 = vmatpush1.msra.mxu0 0.0
      %7968 = vmatprep.subr.mxu0 0.0
      %7969 = vmatpush1.msra.mxu0 0.0
      %7970 = vmatprep.subr.mxu0 0.0
      %7971 = vmatpush1.msra.mxu0 0.0
      %7972 = vmatprep.subr.mxu0 0.0
      %7973 = vmatpush1.msra.mxu0 0.0
      %7974 = vmatprep.subr.mxu0 0.0
      %7975 = vmatpush1.msra.mxu0 0.0
      %7976 = vmatprep.subr.mxu0 0.0
      %7977 = vmatpush1.msra.mxu0 0.0
      %7978 = vmatprep.subr.mxu0 0.0
      %7979 = vmatpush1.msra.mxu0 0.0
      %7980 = vmatprep.subr.mxu0 0.0
      %7981 = vmatpush1.msra.mxu0 0.0
      %7982 = vmatprep.mubr.f32.mxu0 0.0
      %7983 = vmatmul.mubr.f32.gmra.mrb[0].mxu0 %v7883
      %v7984 = vpop.f32.mrb[0].mxu0
      %v7985 = vadd.f32 0.0, %v7984
      %v7986 = vpop.f32.mrb[0].mxu0
      %7987 = vmatprep.mubr.f32.mxu0 0.0
      %7988 = vmatmul.mubr.f32.gmra.mrb[0].mxu0 %v7885
      %v7989 = vpop.f32.mrb[0].mxu0
      %v7990 = vadd.f32 0.0, %v7989
      %v7991 = vpop.f32.mrb[0].mxu0
      %7992 = vmatprep.mubr.f32.mxu0 0.0
      %7993 = vmatmul.mubr.f32.gmra.mrb[0].mxu0 %v7887
      %v7994 = vpop.f32.mrb[0].mxu0
      %v7995 = vadd.f32 0.0, %v7994
      %v7996 = vpop.f32.mrb[0].mxu0
      %7997 = vmatprep.mubr.f32.mxu0 0.0
      %7998 = vmatmul.mubr.f32.gmra.mrb[0].mxu0 %v7889
      %v7999 = vpop.f32.mrb[0].mxu0
      %v8000 = vadd.f32 0.0, %v7999
      %v8001 = vpop.f32.mrb[0].mxu0
      %8002 = vmatprep.mubr.f32.mxu0 0.0
      %8003 = vmatmul.mubr.f32.gmra.mrb[0].mxu0 %v7891
      %v8004 = vpop.f32.mrb[0].mxu0
      %v8005 = vadd.f32 0.0, %v8004
      %v8006 = vpop.f32.mrb[0].mxu0
      %8007 = vmatprep.mubr.f32.mxu0 0.0
      %8008 = vmatmul.mubr.f32.gmra.mrb[0].mxu0 %v7893
      %v8009 = vpop.f32.mrb[0].mxu0
      %v8010 = vadd.f32 0.0, %v8009
      %v8011 = vpop.f32.mrb[0].mxu0
      %8012 = vmatprep.mubr.f32.mxu0 0.0
      %8013 = vmatmul.mubr.f32.gmra.mrb[0].mxu0 %v7895
      %v8014 = vpop.f32.mrb[0].mxu0
      %v8015 = vadd.f32 0.0, %v8014
      %v8016 = vpop.f32.mrb[0].mxu0
      %8017 = vmatprep.mubr.f32.mxu0 0.0
      %8018 = vmatmul.mubr.f32.gmra.mrb[0].mxu0 %v7897
      %v8019 = vpop.f32.mrb[0].mxu0
      %v8020 = vadd.f32 0.0, %v8019
      %v8021 = vpop.f32.mrb[0].mxu0
      %8022 = vmatprep.mubr.f32.mxu0 0.0
      %8023 = vmatmul.mubr.f32.gmra.mrb[0].mxu0 %v7899
      %v8024 = vpop.f32.mrb[0].mxu0
      %v8025 = vadd.f32 0.0, %v8024
      %v8026 = vpop.f32.mrb[0].mxu0
      %8027 = vmatprep.mubr.f32.mxu0 0.0
      %8028 = vmatmul.mubr.f32.gmra.mrb[0].mxu0 %v7901
      %v8029 = vpop.f32.mrb[0].mxu0
      %v8030 = vadd.f32 0.0, %v8029
      %v8031 = vpop.f32.mrb[0].mxu0
      %8032 = vmatprep.mubr.f32.mxu0 0.0
      %8033 = vmatmul.mubr.f32.gmra.mrb[0].mxu0 %v7903
      %v8034 = vpop.f32.mrb[0].mxu0
      %v8035 = vadd.f32 0.0, %v8034
      %v8036 = vpop.f32.mrb[0].mxu0
      %8037 = vmatprep.mubr.f32.mxu0 0.0
      %8038 = vmatmul.mubr.f32.gmra.mrb[0].mxu0 %v7905
      %v8039 = vpop.f32.mrb[0].mxu0
      %v8040 = vadd.f32 0.0, %v8039
      %v8041 = vpop.f32.mrb[0].mxu0
      %8042 = vmatprep.mubr.f32.mxu0 0.0
      %8043 = vmatmul.mubr.f32.gmra.mrb[0].mxu0 %v7907
      %v8044 = vpop.f32.mrb[0].mxu0
      %v8045 = vadd.f32 0.0, %v8044
      %v8046 = vpop.f32.mrb[0].mxu0
      %8047 = vmatprep.mubr.f32.mxu0 0.0
      %8048 = vmatmul.mubr.f32.gmra.mrb[0].mxu0 %v7909
      %v8049 = vpop.f32.mrb[0].mxu0
      %v8050 = vadd.f32 0.0, %v8049
      %v8051 = vpop.f32.mrb[0].mxu0
      %8052 = vmatprep.mubr.f32.mxu0 0.0
      %8053 = vmatmul.mubr.f32.gmra.mrb[0].mxu0 %v7911
      %v8054 = vpop.f32.mrb[0].mxu0
      %v8055 = vadd.f32 0.0, %v8054
      %v8056 = vpop.f32.mrb[0].mxu0
      %8057 = vmatprep.mubr.f32.mxu0 0.0
      %8058 = vmatmul.mubr.f32.gmra.mrb[0].mxu0 %v7913
      %v8059 = vpop.f32.mrb[0].mxu0
      %v8060 = vadd.f32 0.0, %v8059
      %v8061 = vpop.f32.mrb[0].mxu0
      %8062 = vdwg.mxu0
      %v8063 = vadd.f32 %v7738, %v7985
      %v8064 = vadd.f32 %v7739, %v7990
      %v8065 = vadd.f32 %v7740, %v7995
      %v8066 = vadd.f32 %v7741, %v8000
      %v8067 = vadd.f32 %v7742, %v8005
      %v8068 = vadd.f32 %v7743, %v8010
      %v8069 = vadd.f32 %v7744, %v8015
      %v8070 = vadd.f32 %v7745, %v8020
      %v8071 = vadd.f32 %v7746, %v8025
      %v8072 = vadd.f32 %v7747, %v8030
      %v8073 = vadd.f32 %v7748, %v8035
      %v8074 = vadd.f32 %v7749, %v8040
      %v8075 = vadd.f32 %v7750, %v8045
      %v8076 = vadd.f32 %v7751, %v8050
      %v8077 = vadd.f32 %v7752, %v8055
      %v8078 = vadd.f32 %v7753, %v8060
      %v8079 = vld [vmem:[%s3 + $0x10] sm:$0xf]
      %v8080 = vsel %vm225, %v7804, 0
      %v8082 = vsel %vm225, %v7806, 0
      %v8084 = vsel %vm225, %v7809, 0
      %v8086 = vsel %vm225, %v7811, 0
      %v8088 = vsel %vm225, %v7814, 0
      %v8090 = vsel %vm225, %v7816, 0
      %v8092 = vsel %vm225, %v7819, 0
      %v8094 = vsel %vm225, %v7821, 0
      %v8096 = vsel %vm225, %v7824, 0
      %v8098 = vsel %vm225, %v7826, 0
      %v8100 = vsel %vm225, %v7829, 0
      %v8102 = vsel %vm225, %v7831, 0
      %v8104 = vsel %vm225, %v7834, 0
      %v8106 = vsel %vm225, %v7836, 0
      %v8108 = vsel %vm225, %v7839, 0
      %v8110 = vsel %vm225, %v7841, 0
      %v8113 = vsel %vm547, %v8079, 0
      %8115 = vmatprep.subr.mxu0 0.0
      %8116 = vmatpush1.msra.mxu0 %v8113
      %8117 = vmatprep.subr.mxu0 0.0
      %8118 = vmatpush1.msra.mxu0 0.0
      %8119 = vmatprep.subr.mxu0 0.0
      %8120 = vmatpush1.msra.mxu0 0.0
      %8121 = vmatprep.subr.mxu0 0.0
      %8122 = vmatpush1.msra.mxu0 0.0
      %8123 = vmatprep.subr.mxu0 0.0
      %8124 = vmatpush1.msra.mxu0 0.0
      %8125 = vmatprep.subr.mxu0 0.0
      %8126 = vmatpush1.msra.mxu0 0.0
      %8127 = vmatprep.subr.mxu0 0.0
      %8128 = vmatpush1.msra.mxu0 0.0
      %8129 = vmatprep.subr.mxu0 0.0
      %8130 = vmatpush1.msra.mxu0 0.0
      %8131 = vmatprep.subr.mxu0 0.0
      %8132 = vmatpush1.msra.mxu0 0.0
      %8133 = vmatprep.subr.mxu0 0.0
      %8134 = vmatpush1.msra.mxu0 0.0
      %8135 = vmatprep.subr.mxu0 0.0
      %8136 = vmatpush1.msra.mxu0 0.0
      %8137 = vmatprep.subr.mxu0 0.0
      %8138 = vmatpush1.msra.mxu0 0.0
      %8139 = vmatprep.subr.mxu0 0.0
      %8140 = vmatpush1.msra.mxu0 0.0
      %8141 = vmatprep.subr.mxu0 0.0
      %8142 = vmatpush1.msra.mxu0 0.0
      %8143 = vmatprep.subr.mxu0 0.0
      %8144 = vmatpush1.msra.mxu0 0.0
      %8145 = vmatprep.subr.mxu0 0.0
      %8146 = vmatpush1.msra.mxu0 0.0
      %8147 = vmatprep.subr.mxu0 0.0
      %8148 = vmatpush1.msra.mxu0 0.0
      %8149 = vmatprep.subr.mxu0 0.0
      %8150 = vmatpush1.msra.mxu0 0.0
      %8151 = vmatprep.subr.mxu0 0.0
      %8152 = vmatpush1.msra.mxu0 0.0
      %8153 = vmatprep.subr.mxu0 0.0
      %8154 = vmatpush1.msra.mxu0 0.0
      %8155 = vmatprep.subr.mxu0 0.0
      %8156 = vmatpush1.msra.mxu0 0.0
      %8157 = vmatprep.subr.mxu0 0.0
      %8158 = vmatpush1.msra.mxu0 0.0
      %8159 = vmatprep.subr.mxu0 0.0
      %8160 = vmatpush1.msra.mxu0 0.0
      %8161 = vmatprep.subr.mxu0 0.0
      %8162 = vmatpush1.msra.mxu0 0.0
      %8163 = vmatprep.subr.mxu0 0.0
      %8164 = vmatpush1.msra.mxu0 0.0
      %8165 = vmatprep.subr.mxu0 0.0
      %8166 = vmatpush1.msra.mxu0 0.0
      %8167 = vmatprep.subr.mxu0 0.0
      %8168 = vmatpush1.msra.mxu0 0.0
      %8169 = vmatprep.subr.mxu0 0.0
      %8170 = vmatpush1.msra.mxu0 0.0
      %8171 = vmatprep.subr.mxu0 0.0
      %8172 = vmatpush1.msra.mxu0 0.0
      %8173 = vmatprep.subr.mxu0 0.0
      %8174 = vmatpush1.msra.mxu0 0.0
      %8175 = vmatprep.subr.mxu0 0.0
      %8176 = vmatpush1.msra.mxu0 0.0
      %8177 = vmatprep.subr.mxu0 0.0
      %8178 = vmatpush1.msra.mxu0 0.0
      %8179 = vmatprep.mubr.f32.mxu0 0.0
      %8180 = vmatmul.mubr.f32.gmra.mrb[0].mxu0 %v8080
      %v8181 = vpop.f32.mrb[0].mxu0
      %v8182 = vadd.f32 0.0, %v8181
      %v8183 = vpop.f32.mrb[0].mxu0
      %8184 = vmatprep.mubr.f32.mxu0 0.0
      %8185 = vmatmul.mubr.f32.gmra.mrb[0].mxu0 %v8082
      %v8186 = vpop.f32.mrb[0].mxu0
      %v8187 = vadd.f32 0.0, %v8186
      %v8188 = vpop.f32.mrb[0].mxu0
      %8189 = vmatprep.mubr.f32.mxu0 0.0
      %8190 = vmatmul.mubr.f32.gmra.mrb[0].mxu0 %v8084
      %v8191 = vpop.f32.mrb[0].mxu0
      %v8192 = vadd.f32 0.0, %v8191
      %v8193 = vpop.f32.mrb[0].mxu0
      %8194 = vmatprep.mubr.f32.mxu0 0.0
      %8195 = vmatmul.mubr.f32.gmra.mrb[0].mxu0 %v8086
      %v8196 = vpop.f32.mrb[0].mxu0
      %v8197 = vadd.f32 0.0, %v8196
      %v8198 = vpop.f32.mrb[0].mxu0
      %8199 = vmatprep.mubr.f32.mxu0 0.0
      %8200 = vmatmul.mubr.f32.gmra.mrb[0].mxu0 %v8088
      %v8201 = vpop.f32.mrb[0].mxu0
      %v8202 = vadd.f32 0.0, %v8201
      %v8203 = vpop.f32.mrb[0].mxu0
      %8204 = vmatprep.mubr.f32.mxu0 0.0
      %8205 = vmatmul.mubr.f32.gmra.mrb[0].mxu0 %v8090
      %v8206 = vpop.f32.mrb[0].mxu0
      %v8207 = vadd.f32 0.0, %v8206
      %v8208 = vpop.f32.mrb[0].mxu0
      %8209 = vmatprep.mubr.f32.mxu0 0.0
      %8210 = vmatmul.mubr.f32.gmra.mrb[0].mxu0 %v8092
      %v8211 = vpop.f32.mrb[0].mxu0
      %v8212 = vadd.f32 0.0, %v8211
      %v8213 = vpop.f32.mrb[0].mxu0
      %8214 = vmatprep.mubr.f32.mxu0 0.0
      %8215 = vmatmul.mubr.f32.gmra.mrb[0].mxu0 %v8094
      %v8216 = vpop.f32.mrb[0].mxu0
      %v8217 = vadd.f32 0.0, %v8216
      %v8218 = vpop.f32.mrb[0].mxu0
      %8219 = vmatprep.mubr.f32.mxu0 0.0
      %8220 = vmatmul.mubr.f32.gmra.mrb[0].mxu0 %v8096
      %v8221 = vpop.f32.mrb[0].mxu0
      %v8222 = vadd.f32 0.0, %v8221
      %v8223 = vpop.f32.mrb[0].mxu0
      %8224 = vmatprep.mubr.f32.mxu0 0.0
      %8225 = vmatmul.mubr.f32.gmra.mrb[0].mxu0 %v8098
      %v8226 = vpop.f32.mrb[0].mxu0
      %v8227 = vadd.f32 0.0, %v8226
      %v8228 = vpop.f32.mrb[0].mxu0
      %8229 = vmatprep.mubr.f32.mxu0 0.0
      %8230 = vmatmul.mubr.f32.gmra.mrb[0].mxu0 %v8100
      %v8231 = vpop.f32.mrb[0].mxu0
      %v8232 = vadd.f32 0.0, %v8231
      %v8233 = vpop.f32.mrb[0].mxu0
      %8234 = vmatprep.mubr.f32.mxu0 0.0
      %8235 = vmatmul.mubr.f32.gmra.mrb[0].mxu0 %v8102
      %v8236 = vpop.f32.mrb[0].mxu0
      %v8237 = vadd.f32 0.0, %v8236
      %v8238 = vpop.f32.mrb[0].mxu0
      %8239 = vmatprep.mubr.f32.mxu0 0.0
      %8240 = vmatmul.mubr.f32.gmra.mrb[0].mxu0 %v8104
      %v8241 = vpop.f32.mrb[0].mxu0
      %v8242 = vadd.f32 0.0, %v8241
      %v8243 = vpop.f32.mrb[0].mxu0
      %8244 = vmatprep.mubr.f32.mxu0 0.0
      %8245 = vmatmul.mubr.f32.gmra.mrb[0].mxu0 %v8106
      %v8246 = vpop.f32.mrb[0].mxu0
      %v8247 = vadd.f32 0.0, %v8246
      %v8248 = vpop.f32.mrb[0].mxu0
      %8249 = vmatprep.mubr.f32.mxu0 0.0
      %8250 = vmatmul.mubr.f32.gmra.mrb[0].mxu0 %v8108
      %v8251 = vpop.f32.mrb[0].mxu0
      %v8252 = vadd.f32 0.0, %v8251
      %v8253 = vpop.f32.mrb[0].mxu0
      %8254 = vmatprep.mubr.f32.mxu0 0.0
      %8255 = vmatmul.mubr.f32.gmra.mrb[0].mxu0 %v8110
      %v8256 = vpop.f32.mrb[0].mxu0
      %v8257 = vadd.f32 0.0, %v8256
      %v8258 = vpop.f32.mrb[0].mxu0
      %8259 = vdwg.mxu0
      %v8260 = vadd.f32 %v8063, %v8182
      %v8261 = vadd.f32 %v8064, %v8187
      %v8262 = vadd.f32 %v8065, %v8192
      %v8263 = vadd.f32 %v8066, %v8197
      %v8264 = vadd.f32 %v8067, %v8202
      %v8265 = vadd.f32 %v8068, %v8207
      %v8266 = vadd.f32 %v8069, %v8212
      %v8267 = vadd.f32 %v8070, %v8217
      %v8268 = vadd.f32 %v8071, %v8222
      %v8269 = vadd.f32 %v8072, %v8227
      %v8270 = vadd.f32 %v8073, %v8232
      %v8271 = vadd.f32 %v8074, %v8237
      %v8272 = vadd.f32 %v8075, %v8242
      %v8273 = vadd.f32 %v8076, %v8247
      %v8274 = vadd.f32 %v8077, %v8252
      %v8275 = vadd.f32 %v8078, %v8257
      %v8276 = vld [vmem:[%s3 + $0x14] sm:$0xf]
      %v8277 = vsel %vm225, %v7844, 0
      %v8279 = vsel %vm225, %v7846, 0
      %v8281 = vsel %vm225, %v7849, 0
      %v8283 = vsel %vm225, %v7851, 0
      %v8285 = vsel %vm225, %v7854, 0
      %v8287 = vsel %vm225, %v7856, 0
      %v8289 = vsel %vm225, %v7859, 0
      %v8291 = vsel %vm225, %v7861, 0
      %v8293 = vsel %vm225, %v7864, 0
      %v8295 = vsel %vm225, %v7866, 0
      %v8297 = vsel %vm225, %v7869, 0
      %v8299 = vsel %vm225, %v7871, 0
      %v8301 = vsel %vm225, %v7874, 0
      %v8303 = vsel %vm225, %v7876, 0
      %v8305 = vsel %vm225, %v7879, 0
      %v8307 = vsel %vm225, %v7881, 0
      %v8310 = vsel %vm547, %v8276, 0
      %8312 = vmatprep.subr.mxu0 0.0
      %8313 = vmatpush1.msra.mxu0 %v8310
      %8314 = vmatprep.subr.mxu0 0.0
      %8315 = vmatpush1.msra.mxu0 0.0
      %8316 = vmatprep.subr.mxu0 0.0
      %8317 = vmatpush1.msra.mxu0 0.0
      %8318 = vmatprep.subr.mxu0 0.0
      %8319 = vmatpush1.msra.mxu0 0.0
      %8320 = vmatprep.subr.mxu0 0.0
      %8321 = vmatpush1.msra.mxu0 0.0
      %8322 = vmatprep.subr.mxu0 0.0
      %8323 = vmatpush1.msra.mxu0 0.0
      %8324 = vmatprep.subr.mxu0 0.0
      %8325 = vmatpush1.msra.mxu0 0.0
      %8326 = vmatprep.subr.mxu0 0.0
      %8327 = vmatpush1.msra.mxu0 0.0
      %8328 = vmatprep.subr.mxu0 0.0
      %8329 = vmatpush1.msra.mxu0 0.0
      %8330 = vmatprep.subr.mxu0 0.0
      %8331 = vmatpush1.msra.mxu0 0.0
      %8332 = vmatprep.subr.mxu0 0.0
      %8333 = vmatpush1.msra.mxu0 0.0
      %8334 = vmatprep.subr.mxu0 0.0
      %8335 = vmatpush1.msra.mxu0 0.0
      %8336 = vmatprep.subr.mxu0 0.0
      %8337 = vmatpush1.msra.mxu0 0.0
      %8338 = vmatprep.subr.mxu0 0.0
      %8339 = vmatpush1.msra.mxu0 0.0
      %8340 = vmatprep.subr.mxu0 0.0
      %8341 = vmatpush1.msra.mxu0 0.0
      %8342 = vmatprep.subr.mxu0 0.0
      %8343 = vmatpush1.msra.mxu0 0.0
      %8344 = vmatprep.subr.mxu0 0.0
      %8345 = vmatpush1.msra.mxu0 0.0
      %8346 = vmatprep.subr.mxu0 0.0
      %8347 = vmatpush1.msra.mxu0 0.0
      %8348 = vmatprep.subr.mxu0 0.0
      %8349 = vmatpush1.msra.mxu0 0.0
      %8350 = vmatprep.subr.mxu0 0.0
      %8351 = vmatpush1.msra.mxu0 0.0
      %8352 = vmatprep.subr.mxu0 0.0
      %8353 = vmatpush1.msra.mxu0 0.0
      %8354 = vmatprep.subr.mxu0 0.0
      %8355 = vmatpush1.msra.mxu0 0.0
      %8356 = vmatprep.subr.mxu0 0.0
      %8357 = vmatpush1.msra.mxu0 0.0
      %8358 = vmatprep.subr.mxu0 0.0
      %8359 = vmatpush1.msra.mxu0 0.0
      %8360 = vmatprep.subr.mxu0 0.0
      %8361 = vmatpush1.msra.mxu0 0.0
      %8362 = vmatprep.subr.mxu0 0.0
      %8363 = vmatpush1.msra.mxu0 0.0
      %8364 = vmatprep.subr.mxu0 0.0
      %8365 = vmatpush1.msra.mxu0 0.0
      %8366 = vmatprep.subr.mxu0 0.0
      %8367 = vmatpush1.msra.mxu0 0.0
      %8368 = vmatprep.subr.mxu0 0.0
      %8369 = vmatpush1.msra.mxu0 0.0
      %8370 = vmatprep.subr.mxu0 0.0
      %8371 = vmatpush1.msra.mxu0 0.0
      %8372 = vmatprep.subr.mxu0 0.0
      %8373 = vmatpush1.msra.mxu0 0.0
      %8374 = vmatprep.subr.mxu0 0.0
      %8375 = vmatpush1.msra.mxu0 0.0
      %8376 = vmatprep.mubr.f32.mxu0 0.0
      %8377 = vmatmul.mubr.f32.gmra.mrb[0].mxu0 %v8277
      %v8378 = vpop.f32.mrb[0].mxu0
      %v8379 = vadd.f32 0.0, %v8378
      %v8380 = vpop.f32.mrb[0].mxu0
      %8381 = vmatprep.mubr.f32.mxu0 0.0
      %8382 = vmatmul.mubr.f32.gmra.mrb[0].mxu0 %v8279
      %v8383 = vpop.f32.mrb[0].mxu0
      %v8384 = vadd.f32 0.0, %v8383
      %v8385 = vpop.f32.mrb[0].mxu0
      %8386 = vmatprep.mubr.f32.mxu0 0.0
      %8387 = vmatmul.mubr.f32.gmra.mrb[0].mxu0 %v8281
      %v8388 = vpop.f32.mrb[0].mxu0
      %v8389 = vadd.f32 0.0, %v8388
      %v8390 = vpop.f32.mrb[0].mxu0
      %8391 = vmatprep.mubr.f32.mxu0 0.0
      %8392 = vmatmul.mubr.f32.gmra.mrb[0].mxu0 %v8283
      %v8393 = vpop.f32.mrb[0].mxu0
      %v8394 = vadd.f32 0.0, %v8393
      %v8395 = vpop.f32.mrb[0].mxu0
      %8396 = vmatprep.mubr.f32.mxu0 0.0
      %8397 = vmatmul.mubr.f32.gmra.mrb[0].mxu0 %v8285
      %v8398 = vpop.f32.mrb[0].mxu0
      %v8399 = vadd.f32 0.0, %v8398
      %v8400 = vpop.f32.mrb[0].mxu0
      %8401 = vmatprep.mubr.f32.mxu0 0.0
      %8402 = vmatmul.mubr.f32.gmra.mrb[0].mxu0 %v8287
      %v8403 = vpop.f32.mrb[0].mxu0
      %v8404 = vadd.f32 0.0, %v8403
      %v8405 = vpop.f32.mrb[0].mxu0
      %8406 = vmatprep.mubr.f32.mxu0 0.0
      %8407 = vmatmul.mubr.f32.gmra.mrb[0].mxu0 %v8289
      %v8408 = vpop.f32.mrb[0].mxu0
      %v8409 = vadd.f32 0.0, %v8408
      %v8410 = vpop.f32.mrb[0].mxu0
      %8411 = vmatprep.mubr.f32.mxu0 0.0
      %8412 = vmatmul.mubr.f32.gmra.mrb[0].mxu0 %v8291
      %v8413 = vpop.f32.mrb[0].mxu0
      %v8414 = vadd.f32 0.0, %v8413
      %v8415 = vpop.f32.mrb[0].mxu0
      %8416 = vmatprep.mubr.f32.mxu0 0.0
      %8417 = vmatmul.mubr.f32.gmra.mrb[0].mxu0 %v8293
      %v8418 = vpop.f32.mrb[0].mxu0
      %v8419 = vadd.f32 0.0, %v8418
      %v8420 = vpop.f32.mrb[0].mxu0
      %8421 = vmatprep.mubr.f32.mxu0 0.0
      %8422 = vmatmul.mubr.f32.gmra.mrb[0].mxu0 %v8295
      %v8423 = vpop.f32.mrb[0].mxu0
      %v8424 = vadd.f32 0.0, %v8423
      %v8425 = vpop.f32.mrb[0].mxu0
      %8426 = vmatprep.mubr.f32.mxu0 0.0
      %8427 = vmatmul.mubr.f32.gmra.mrb[0].mxu0 %v8297
      %v8428 = vpop.f32.mrb[0].mxu0
      %v8429 = vadd.f32 0.0, %v8428
      %v8430 = vpop.f32.mrb[0].mxu0
      %8431 = vmatprep.mubr.f32.mxu0 0.0
      %8432 = vmatmul.mubr.f32.gmra.mrb[0].mxu0 %v8299
      %v8433 = vpop.f32.mrb[0].mxu0
      %v8434 = vadd.f32 0.0, %v8433
      %v8435 = vpop.f32.mrb[0].mxu0
      %8436 = vmatprep.mubr.f32.mxu0 0.0
      %8437 = vmatmul.mubr.f32.gmra.mrb[0].mxu0 %v8301
      %v8438 = vpop.f32.mrb[0].mxu0
      %v8439 = vadd.f32 0.0, %v8438
      %v8440 = vpop.f32.mrb[0].mxu0
      %8441 = vmatprep.mubr.f32.mxu0 0.0
      %8442 = vmatmul.mubr.f32.gmra.mrb[0].mxu0 %v8303
      %v8443 = vpop.f32.mrb[0].mxu0
      %v8444 = vadd.f32 0.0, %v8443
      %v8445 = vpop.f32.mrb[0].mxu0
      %8446 = vmatprep.mubr.f32.mxu0 0.0
      %8447 = vmatmul.mubr.f32.gmra.mrb[0].mxu0 %v8305
      %v8448 = vpop.f32.mrb[0].mxu0
      %v8449 = vadd.f32 0.0, %v8448
      %v8450 = vpop.f32.mrb[0].mxu0
      %8451 = vmatprep.mubr.f32.mxu0 0.0
      %8452 = vmatmul.mubr.f32.gmra.mrb[0].mxu0 %v8307
      %v8453 = vpop.f32.mrb[0].mxu0
      %v8454 = vadd.f32 0.0, %v8453
      %v8455 = vpop.f32.mrb[0].mxu0
      %8456 = vdwg.mxu0
      %v8457 = vadd.f32 %v8260, %v8379
      %v8458 = vadd.f32 %v8261, %v8384
      %v8459 = vadd.f32 %v8262, %v8389
      %v8460 = vadd.f32 %v8263, %v8394
      %v8461 = vadd.f32 %v8264, %v8399
      %v8462 = vadd.f32 %v8265, %v8404
      %v8463 = vadd.f32 %v8266, %v8409
      %v8464 = vadd.f32 %v8267, %v8414
      %v8465 = vadd.f32 %v8268, %v8419
      %v8466 = vadd.f32 %v8269, %v8424
      %v8467 = vadd.f32 %v8270, %v8429
      %v8468 = vadd.f32 %v8271, %v8434
      %v8469 = vadd.f32 %v8272, %v8439
      %v8470 = vadd.f32 %v8273, %v8444
      %v8471 = vadd.f32 %v8274, %v8449
      %v8472 = vadd.f32 %v8275, %v8454
      %s8473 = scalar_lea.vmem [#allocation3], %s4016
      %v8474 = vld [vmem:[%s8473] sm:$0xff]
      %v8475 = vld [vmem:[%s8473 + $0x8] sm:$0xff]
      %v8476 = vld [vmem:[%s8473 + $0x10] sm:$0x3]
      %v8477 = vld [vmem:[%s8473 + $0x18] sm:$0xff]
      %v8478 = vld [vmem:[%s8473 + $0x20] sm:$0xff]
      %v8479 = vld [vmem:[%s8473 + $0x28] sm:$0x3]
      %v8480 = vld [vmem:[%s8473 + $0x30] sm:$0xff]
      %v8481 = vld [vmem:[%s8473 + $0x38] sm:$0xff]
      %v8482 = vld [vmem:[%s8473 + $0x40] sm:$0x3]
      %v8483 = vld [vmem:[%s8473 + $0x48] sm:$0xff]
      %v8484 = vld [vmem:[%s8473 + $0x50] sm:$0xff]
      %v8485 = vld [vmem:[%s8473 + $0x58] sm:$0x3]
      %v8486 = vld [vmem:[%s8473 + $0x60] sm:$0xff]
      %v8487 = vld [vmem:[%s8473 + $0x68] sm:$0xff]
      %v8488 = vld [vmem:[%s8473 + $0x70] sm:$0x3]
      %v8489 = vld [vmem:[%s8473 + $0x78] sm:$0xff]
      %v8490 = vld [vmem:[%s8473 + $0x80] sm:$0xff]
      %v8491 = vld [vmem:[%s8473 + $0x88] sm:$0x3]
      %v8492 = vld [vmem:[%s8473 + $0x90] sm:$0xff]
      %v8493 = vld [vmem:[%s8473 + $0x98] sm:$0xff]
      %v8494 = vld [vmem:[%s8473 + $0xa0] sm:$0x3]
      %v8495 = vld [vmem:[%s8473 + $0xa8] sm:$0xff]
      %v8496 = vld [vmem:[%s8473 + $0xb0] sm:$0xff]
      %v8497 = vld [vmem:[%s8473 + $0xb8] sm:$0x3]
      %v8522 = vrot.slane %v8474, 1
      %v8523 = vrot.slane %v8475, 1
      %v8524 = vsel %vm431, %v8522, %v8523
      %v8525 = vrot.slane %v8476, 1
      %v8526 = vsel %vm431, %v8523, %v8525
      %v8527 = vrot.slane %v8477, 1
      %v8528 = vrot.slane %v8478, 1
      %v8529 = vsel %vm431, %v8527, %v8528
      %v8530 = vrot.slane %v8479, 1
      %v8531 = vsel %vm431, %v8528, %v8530
      %v8532 = vrot.slane %v8480, 1
      %v8533 = vrot.slane %v8481, 1
      %v8534 = vsel %vm431, %v8532, %v8533
      %v8535 = vrot.slane %v8482, 1
      %v8536 = vsel %vm431, %v8533, %v8535
      %v8537 = vrot.slane %v8483, 1
      %v8538 = vrot.slane %v8484, 1
      %v8539 = vsel %vm431, %v8537, %v8538
      %v8540 = vrot.slane %v8485, 1
      %v8541 = vsel %vm431, %v8538, %v8540
      %v8542 = vrot.slane %v8486, 1
      %v8543 = vrot.slane %v8487, 1
      %v8544 = vsel %vm431, %v8542, %v8543
      %v8545 = vrot.slane %v8488, 1
      %v8546 = vsel %vm431, %v8543, %v8545
      %v8547 = vrot.slane %v8489, 1
      %v8548 = vrot.slane %v8490, 1
      %v8549 = vsel %vm431, %v8547, %v8548
      %v8550 = vrot.slane %v8491, 1
      %v8551 = vsel %vm431, %v8548, %v8550
      %v8552 = vrot.slane %v8492, 1
      %v8553 = vrot.slane %v8493, 1
      %v8554 = vsel %vm431, %v8552, %v8553
      %v8555 = vrot.slane %v8494, 1
      %v8556 = vsel %vm431, %v8553, %v8555
      %v8557 = vrot.slane %v8495, 1
      %v8558 = vrot.slane %v8496, 1
      %v8559 = vsel %vm431, %v8557, %v8558
      %v8560 = vrot.slane %v8497, 1
      %v8561 = vsel %vm431, %v8558, %v8560
      %v8562 = vrot.slane %v8474, 2
      %v8563 = vrot.slane %v8475, 2
      %v8564 = vsel %vm472, %v8562, %v8563
      %v8565 = vrot.slane %v8476, 2
      %v8566 = vsel %vm472, %v8563, %v8565
      %v8567 = vrot.slane %v8477, 2
      %v8568 = vrot.slane %v8478, 2
      %v8569 = vsel %vm472, %v8567, %v8568
      %v8570 = vrot.slane %v8479, 2
      %v8571 = vsel %vm472, %v8568, %v8570
      %v8572 = vrot.slane %v8480, 2
      %v8573 = vrot.slane %v8481, 2
      %v8574 = vsel %vm472, %v8572, %v8573
      %v8575 = vrot.slane %v8482, 2
      %v8576 = vsel %vm472, %v8573, %v8575
      %v8577 = vrot.slane %v8483, 2
      %v8578 = vrot.slane %v8484, 2
      %v8579 = vsel %vm472, %v8577, %v8578
      %v8580 = vrot.slane %v8485, 2
      %v8581 = vsel %vm472, %v8578, %v8580
      %v8582 = vrot.slane %v8486, 2
      %v8583 = vrot.slane %v8487, 2
      %v8584 = vsel %vm472, %v8582, %v8583
      %v8585 = vrot.slane %v8488, 2
      %v8586 = vsel %vm472, %v8583, %v8585
      %v8587 = vrot.slane %v8489, 2
      %v8588 = vrot.slane %v8490, 2
      %v8589 = vsel %vm472, %v8587, %v8588
      %v8590 = vrot.slane %v8491, 2
      %v8591 = vsel %vm472, %v8588, %v8590
      %v8592 = vrot.slane %v8492, 2
      %v8593 = vrot.slane %v8493, 2
      %v8594 = vsel %vm472, %v8592, %v8593
      %v8595 = vrot.slane %v8494, 2
      %v8596 = vsel %vm472, %v8593, %v8595
      %v8597 = vrot.slane %v8495, 2
      %v8598 = vrot.slane %v8496, 2
      %v8599 = vsel %vm472, %v8597, %v8598
      %v8600 = vrot.slane %v8497, 2
      %v8601 = vsel %vm472, %v8598, %v8600
      %v8602 = vld [vmem:[%s3 + $0x18] sm:$0xf]
      %v8603 = vsel %vm225, %v8474, 0
      %v8605 = vsel %vm225, %v8475, 0
      %v8607 = vsel %vm225, %v8477, 0
      %v8609 = vsel %vm225, %v8478, 0
      %v8611 = vsel %vm225, %v8480, 0
      %v8613 = vsel %vm225, %v8481, 0
      %v8615 = vsel %vm225, %v8483, 0
      %v8617 = vsel %vm225, %v8484, 0
      %v8619 = vsel %vm225, %v8486, 0
      %v8621 = vsel %vm225, %v8487, 0
      %v8623 = vsel %vm225, %v8489, 0
      %v8625 = vsel %vm225, %v8490, 0
      %v8627 = vsel %vm225, %v8492, 0
      %v8629 = vsel %vm225, %v8493, 0
      %v8631 = vsel %vm225, %v8495, 0
      %v8633 = vsel %vm225, %v8496, 0
      %v8636 = vsel %vm547, %v8602, 0
      %8638 = vmatprep.subr.mxu0 0.0
      %8639 = vmatpush1.msra.mxu0 %v8636
      %8640 = vmatprep.subr.mxu0 0.0
      %8641 = vmatpush1.msra.mxu0 0.0
      %8642 = vmatprep.subr.mxu0 0.0
      %8643 = vmatpush1.msra.mxu0 0.0
      %8644 = vmatprep.subr.mxu0 0.0
      %8645 = vmatpush1.msra.mxu0 0.0
      %8646 = vmatprep.subr.mxu0 0.0
      %8647 = vmatpush1.msra.mxu0 0.0
      %8648 = vmatprep.subr.mxu0 0.0
      %8649 = vmatpush1.msra.mxu0 0.0
      %8650 = vmatprep.subr.mxu0 0.0
      %8651 = vmatpush1.msra.mxu0 0.0
      %8652 = vmatprep.subr.mxu0 0.0
      %8653 = vmatpush1.msra.mxu0 0.0
      %8654 = vmatprep.subr.mxu0 0.0
      %8655 = vmatpush1.msra.mxu0 0.0
      %8656 = vmatprep.subr.mxu0 0.0
      %8657 = vmatpush1.msra.mxu0 0.0
      %8658 = vmatprep.subr.mxu0 0.0
      %8659 = vmatpush1.msra.mxu0 0.0
      %8660 = vmatprep.subr.mxu0 0.0
      %8661 = vmatpush1.msra.mxu0 0.0
      %8662 = vmatprep.subr.mxu0 0.0
      %8663 = vmatpush1.msra.mxu0 0.0
      %8664 = vmatprep.subr.mxu0 0.0
      %8665 = vmatpush1.msra.mxu0 0.0
      %8666 = vmatprep.subr.mxu0 0.0
      %8667 = vmatpush1.msra.mxu0 0.0
      %8668 = vmatprep.subr.mxu0 0.0
      %8669 = vmatpush1.msra.mxu0 0.0
      %8670 = vmatprep.subr.mxu0 0.0
      %8671 = vmatpush1.msra.mxu0 0.0
      %8672 = vmatprep.subr.mxu0 0.0
      %8673 = vmatpush1.msra.mxu0 0.0
      %8674 = vmatprep.subr.mxu0 0.0
      %8675 = vmatpush1.msra.mxu0 0.0
      %8676 = vmatprep.subr.mxu0 0.0
      %8677 = vmatpush1.msra.mxu0 0.0
      %8678 = vmatprep.subr.mxu0 0.0
      %8679 = vmatpush1.msra.mxu0 0.0
      %8680 = vmatprep.subr.mxu0 0.0
      %8681 = vmatpush1.msra.mxu0 0.0
      %8682 = vmatprep.subr.mxu0 0.0
      %8683 = vmatpush1.msra.mxu0 0.0
      %8684 = vmatprep.subr.mxu0 0.0
      %8685 = vmatpush1.msra.mxu0 0.0
      %8686 = vmatprep.subr.mxu0 0.0
      %8687 = vmatpush1.msra.mxu0 0.0
      %8688 = vmatprep.subr.mxu0 0.0
      %8689 = vmatpush1.msra.mxu0 0.0
      %8690 = vmatprep.subr.mxu0 0.0
      %8691 = vmatpush1.msra.mxu0 0.0
      %8692 = vmatprep.subr.mxu0 0.0
      %8693 = vmatpush1.msra.mxu0 0.0
      %8694 = vmatprep.subr.mxu0 0.0
      %8695 = vmatpush1.msra.mxu0 0.0
      %8696 = vmatprep.subr.mxu0 0.0
      %8697 = vmatpush1.msra.mxu0 0.0
      %8698 = vmatprep.subr.mxu0 0.0
      %8699 = vmatpush1.msra.mxu0 0.0
      %8700 = vmatprep.subr.mxu0 0.0
      %8701 = vmatpush1.msra.mxu0 0.0
      %8702 = vmatprep.mubr.f32.mxu0 0.0
      %8703 = vmatmul.mubr.f32.gmra.mrb[0].mxu0 %v8603
      %v8704 = vpop.f32.mrb[0].mxu0
      %v8705 = vadd.f32 0.0, %v8704
      %v8706 = vpop.f32.mrb[0].mxu0
      %8707 = vmatprep.mubr.f32.mxu0 0.0
      %8708 = vmatmul.mubr.f32.gmra.mrb[0].mxu0 %v8605
      %v8709 = vpop.f32.mrb[0].mxu0
      %v8710 = vadd.f32 0.0, %v8709
      %v8711 = vpop.f32.mrb[0].mxu0
      %8712 = vmatprep.mubr.f32.mxu0 0.0
      %8713 = vmatmul.mubr.f32.gmra.mrb[0].mxu0 %v8607
      %v8714 = vpop.f32.mrb[0].mxu0
      %v8715 = vadd.f32 0.0, %v8714
      %v8716 = vpop.f32.mrb[0].mxu0
      %8717 = vmatprep.mubr.f32.mxu0 0.0
      %8718 = vmatmul.mubr.f32.gmra.mrb[0].mxu0 %v8609
      %v8719 = vpop.f32.mrb[0].mxu0
      %v8720 = vadd.f32 0.0, %v8719
      %v8721 = vpop.f32.mrb[0].mxu0
      %8722 = vmatprep.mubr.f32.mxu0 0.0
      %8723 = vmatmul.mubr.f32.gmra.mrb[0].mxu0 %v8611
      %v8724 = vpop.f32.mrb[0].mxu0
      %v8725 = vadd.f32 0.0, %v8724
      %v8726 = vpop.f32.mrb[0].mxu0
      %8727 = vmatprep.mubr.f32.mxu0 0.0
      %8728 = vmatmul.mubr.f32.gmra.mrb[0].mxu0 %v8613
      %v8729 = vpop.f32.mrb[0].mxu0
      %v8730 = vadd.f32 0.0, %v8729
      %v8731 = vpop.f32.mrb[0].mxu0
      %8732 = vmatprep.mubr.f32.mxu0 0.0
      %8733 = vmatmul.mubr.f32.gmra.mrb[0].mxu0 %v8615
      %v8734 = vpop.f32.mrb[0].mxu0
      %v8735 = vadd.f32 0.0, %v8734
      %v8736 = vpop.f32.mrb[0].mxu0
      %8737 = vmatprep.mubr.f32.mxu0 0.0
      %8738 = vmatmul.mubr.f32.gmra.mrb[0].mxu0 %v8617
      %v8739 = vpop.f32.mrb[0].mxu0
      %v8740 = vadd.f32 0.0, %v8739
      %v8741 = vpop.f32.mrb[0].mxu0
      %8742 = vmatprep.mubr.f32.mxu0 0.0
      %8743 = vmatmul.mubr.f32.gmra.mrb[0].mxu0 %v8619
      %v8744 = vpop.f32.mrb[0].mxu0
      %v8745 = vadd.f32 0.0, %v8744
      %v8746 = vpop.f32.mrb[0].mxu0
      %8747 = vmatprep.mubr.f32.mxu0 0.0
      %8748 = vmatmul.mubr.f32.gmra.mrb[0].mxu0 %v8621
      %v8749 = vpop.f32.mrb[0].mxu0
      %v8750 = vadd.f32 0.0, %v8749
      %v8751 = vpop.f32.mrb[0].mxu0
      %8752 = vmatprep.mubr.f32.mxu0 0.0
      %8753 = vmatmul.mubr.f32.gmra.mrb[0].mxu0 %v8623
      %v8754 = vpop.f32.mrb[0].mxu0
      %v8755 = vadd.f32 0.0, %v8754
      %v8756 = vpop.f32.mrb[0].mxu0
      %8757 = vmatprep.mubr.f32.mxu0 0.0
      %8758 = vmatmul.mubr.f32.gmra.mrb[0].mxu0 %v8625
      %v8759 = vpop.f32.mrb[0].mxu0
      %v8760 = vadd.f32 0.0, %v8759
      %v8761 = vpop.f32.mrb[0].mxu0
      %8762 = vmatprep.mubr.f32.mxu0 0.0
      %8763 = vmatmul.mubr.f32.gmra.mrb[0].mxu0 %v8627
      %v8764 = vpop.f32.mrb[0].mxu0
      %v8765 = vadd.f32 0.0, %v8764
      %v8766 = vpop.f32.mrb[0].mxu0
      %8767 = vmatprep.mubr.f32.mxu0 0.0
      %8768 = vmatmul.mubr.f32.gmra.mrb[0].mxu0 %v8629
      %v8769 = vpop.f32.mrb[0].mxu0
      %v8770 = vadd.f32 0.0, %v8769
      %v8771 = vpop.f32.mrb[0].mxu0
      %8772 = vmatprep.mubr.f32.mxu0 0.0
      %8773 = vmatmul.mubr.f32.gmra.mrb[0].mxu0 %v8631
      %v8774 = vpop.f32.mrb[0].mxu0
      %v8775 = vadd.f32 0.0, %v8774
      %v8776 = vpop.f32.mrb[0].mxu0
      %8777 = vmatprep.mubr.f32.mxu0 0.0
      %8778 = vmatmul.mubr.f32.gmra.mrb[0].mxu0 %v8633
      %v8779 = vpop.f32.mrb[0].mxu0
      %v8780 = vadd.f32 0.0, %v8779
      %v8781 = vpop.f32.mrb[0].mxu0
      %8782 = vdwg.mxu0
      %v8783 = vadd.f32 %v8457, %v8705
      %v8784 = vadd.f32 %v8458, %v8710
      %v8785 = vadd.f32 %v8459, %v8715
      %v8786 = vadd.f32 %v8460, %v8720
      %v8787 = vadd.f32 %v8461, %v8725
      %v8788 = vadd.f32 %v8462, %v8730
      %v8789 = vadd.f32 %v8463, %v8735
      %v8790 = vadd.f32 %v8464, %v8740
      %v8791 = vadd.f32 %v8465, %v8745
      %v8792 = vadd.f32 %v8466, %v8750
      %v8793 = vadd.f32 %v8467, %v8755
      %v8794 = vadd.f32 %v8468, %v8760
      %v8795 = vadd.f32 %v8469, %v8765
      %v8796 = vadd.f32 %v8470, %v8770
      %v8797 = vadd.f32 %v8471, %v8775
      %v8798 = vadd.f32 %v8472, %v8780
      %v8799 = vld [vmem:[%s3 + $0x1c] sm:$0xf]
      %v8800 = vsel %vm225, %v8524, 0
      %v8802 = vsel %vm225, %v8526, 0
      %v8804 = vsel %vm225, %v8529, 0
      %v8806 = vsel %vm225, %v8531, 0
      %v8808 = vsel %vm225, %v8534, 0
      %v8810 = vsel %vm225, %v8536, 0
      %v8812 = vsel %vm225, %v8539, 0
      %v8814 = vsel %vm225, %v8541, 0
      %v8816 = vsel %vm225, %v8544, 0
      %v8818 = vsel %vm225, %v8546, 0
      %v8820 = vsel %vm225, %v8549, 0
      %v8822 = vsel %vm225, %v8551, 0
      %v8824 = vsel %vm225, %v8554, 0
      %v8826 = vsel %vm225, %v8556, 0
      %v8828 = vsel %vm225, %v8559, 0
      %v8830 = vsel %vm225, %v8561, 0
      %v8833 = vsel %vm547, %v8799, 0
      %8835 = vmatprep.subr.mxu0 0.0
      %8836 = vmatpush1.msra.mxu0 %v8833
      %8837 = vmatprep.subr.mxu0 0.0
      %8838 = vmatpush1.msra.mxu0 0.0
      %8839 = vmatprep.subr.mxu0 0.0
      %8840 = vmatpush1.msra.mxu0 0.0
      %8841 = vmatprep.subr.mxu0 0.0
      %8842 = vmatpush1.msra.mxu0 0.0
      %8843 = vmatprep.subr.mxu0 0.0
      %8844 = vmatpush1.msra.mxu0 0.0
      %8845 = vmatprep.subr.mxu0 0.0
      %8846 = vmatpush1.msra.mxu0 0.0
      %8847 = vmatprep.subr.mxu0 0.0
      %8848 = vmatpush1.msra.mxu0 0.0
      %8849 = vmatprep.subr.mxu0 0.0
      %8850 = vmatpush1.msra.mxu0 0.0
      %8851 = vmatprep.subr.mxu0 0.0
      %8852 = vmatpush1.msra.mxu0 0.0
      %8853 = vmatprep.subr.mxu0 0.0
      %8854 = vmatpush1.msra.mxu0 0.0
      %8855 = vmatprep.subr.mxu0 0.0
      %8856 = vmatpush1.msra.mxu0 0.0
      %8857 = vmatprep.subr.mxu0 0.0
      %8858 = vmatpush1.msra.mxu0 0.0
      %8859 = vmatprep.subr.mxu0 0.0
      %8860 = vmatpush1.msra.mxu0 0.0
      %8861 = vmatprep.subr.mxu0 0.0
      %8862 = vmatpush1.msra.mxu0 0.0
      %8863 = vmatprep.subr.mxu0 0.0
      %8864 = vmatpush1.msra.mxu0 0.0
      %8865 = vmatprep.subr.mxu0 0.0
      %8866 = vmatpush1.msra.mxu0 0.0
      %8867 = vmatprep.subr.mxu0 0.0
      %8868 = vmatpush1.msra.mxu0 0.0
      %8869 = vmatprep.subr.mxu0 0.0
      %8870 = vmatpush1.msra.mxu0 0.0
      %8871 = vmatprep.subr.mxu0 0.0
      %8872 = vmatpush1.msra.mxu0 0.0
      %8873 = vmatprep.subr.mxu0 0.0
      %8874 = vmatpush1.msra.mxu0 0.0
      %8875 = vmatprep.subr.mxu0 0.0
      %8876 = vmatpush1.msra.mxu0 0.0
      %8877 = vmatprep.subr.mxu0 0.0
      %8878 = vmatpush1.msra.mxu0 0.0
      %8879 = vmatprep.subr.mxu0 0.0
      %8880 = vmatpush1.msra.mxu0 0.0
      %8881 = vmatprep.subr.mxu0 0.0
      %8882 = vmatpush1.msra.mxu0 0.0
      %8883 = vmatprep.subr.mxu0 0.0
      %8884 = vmatpush1.msra.mxu0 0.0
      %8885 = vmatprep.subr.mxu0 0.0
      %8886 = vmatpush1.msra.mxu0 0.0
      %8887 = vmatprep.subr.mxu0 0.0
      %8888 = vmatpush1.msra.mxu0 0.0
      %8889 = vmatprep.subr.mxu0 0.0
      %8890 = vmatpush1.msra.mxu0 0.0
      %8891 = vmatprep.subr.mxu0 0.0
      %8892 = vmatpush1.msra.mxu0 0.0
      %8893 = vmatprep.subr.mxu0 0.0
      %8894 = vmatpush1.msra.mxu0 0.0
      %8895 = vmatprep.subr.mxu0 0.0
      %8896 = vmatpush1.msra.mxu0 0.0
      %8897 = vmatprep.subr.mxu0 0.0
      %8898 = vmatpush1.msra.mxu0 0.0
      %8899 = vmatprep.mubr.f32.mxu0 0.0
      %8900 = vmatmul.mubr.f32.gmra.mrb[0].mxu0 %v8800
      %v8901 = vpop.f32.mrb[0].mxu0
      %v8902 = vadd.f32 0.0, %v8901
      %v8903 = vpop.f32.mrb[0].mxu0
      %8904 = vmatprep.mubr.f32.mxu0 0.0
      %8905 = vmatmul.mubr.f32.gmra.mrb[0].mxu0 %v8802
      %v8906 = vpop.f32.mrb[0].mxu0
      %v8907 = vadd.f32 0.0, %v8906
      %v8908 = vpop.f32.mrb[0].mxu0
      %8909 = vmatprep.mubr.f32.mxu0 0.0
      %8910 = vmatmul.mubr.f32.gmra.mrb[0].mxu0 %v8804
      %v8911 = vpop.f32.mrb[0].mxu0
      %v8912 = vadd.f32 0.0, %v8911
      %v8913 = vpop.f32.mrb[0].mxu0
      %8914 = vmatprep.mubr.f32.mxu0 0.0
      %8915 = vmatmul.mubr.f32.gmra.mrb[0].mxu0 %v8806
      %v8916 = vpop.f32.mrb[0].mxu0
      %v8917 = vadd.f32 0.0, %v8916
      %v8918 = vpop.f32.mrb[0].mxu0
      %8919 = vmatprep.mubr.f32.mxu0 0.0
      %8920 = vmatmul.mubr.f32.gmra.mrb[0].mxu0 %v8808
      %v8921 = vpop.f32.mrb[0].mxu0
      %v8922 = vadd.f32 0.0, %v8921
      %v8923 = vpop.f32.mrb[0].mxu0
      %8924 = vmatprep.mubr.f32.mxu0 0.0
      %8925 = vmatmul.mubr.f32.gmra.mrb[0].mxu0 %v8810
      %v8926 = vpop.f32.mrb[0].mxu0
      %v8927 = vadd.f32 0.0, %v8926
      %v8928 = vpop.f32.mrb[0].mxu0
      %8929 = vmatprep.mubr.f32.mxu0 0.0
      %8930 = vmatmul.mubr.f32.gmra.mrb[0].mxu0 %v8812
      %v8931 = vpop.f32.mrb[0].mxu0
      %v8932 = vadd.f32 0.0, %v8931
      %v8933 = vpop.f32.mrb[0].mxu0
      %8934 = vmatprep.mubr.f32.mxu0 0.0
      %8935 = vmatmul.mubr.f32.gmra.mrb[0].mxu0 %v8814
      %v8936 = vpop.f32.mrb[0].mxu0
      %v8937 = vadd.f32 0.0, %v8936
      %v8938 = vpop.f32.mrb[0].mxu0
      %8939 = vmatprep.mubr.f32.mxu0 0.0
      %8940 = vmatmul.mubr.f32.gmra.mrb[0].mxu0 %v8816
      %v8941 = vpop.f32.mrb[0].mxu0
      %v8942 = vadd.f32 0.0, %v8941
      %v8943 = vpop.f32.mrb[0].mxu0
      %8944 = vmatprep.mubr.f32.mxu0 0.0
      %8945 = vmatmul.mubr.f32.gmra.mrb[0].mxu0 %v8818
      %v8946 = vpop.f32.mrb[0].mxu0
      %v8947 = vadd.f32 0.0, %v8946
      %v8948 = vpop.f32.mrb[0].mxu0
      %8949 = vmatprep.mubr.f32.mxu0 0.0
      %8950 = vmatmul.mubr.f32.gmra.mrb[0].mxu0 %v8820
      %v8951 = vpop.f32.mrb[0].mxu0
      %v8952 = vadd.f32 0.0, %v8951
      %v8953 = vpop.f32.mrb[0].mxu0
      %8954 = vmatprep.mubr.f32.mxu0 0.0
      %8955 = vmatmul.mubr.f32.gmra.mrb[0].mxu0 %v8822
      %v8956 = vpop.f32.mrb[0].mxu0
      %v8957 = vadd.f32 0.0, %v8956
      %v8958 = vpop.f32.mrb[0].mxu0
      %8959 = vmatprep.mubr.f32.mxu0 0.0
      %8960 = vmatmul.mubr.f32.gmra.mrb[0].mxu0 %v8824
      %v8961 = vpop.f32.mrb[0].mxu0
      %v8962 = vadd.f32 0.0, %v8961
      %v8963 = vpop.f32.mrb[0].mxu0
      %8964 = vmatprep.mubr.f32.mxu0 0.0
      %8965 = vmatmul.mubr.f32.gmra.mrb[0].mxu0 %v8826
      %v8966 = vpop.f32.mrb[0].mxu0
      %v8967 = vadd.f32 0.0, %v8966
      %v8968 = vpop.f32.mrb[0].mxu0
      %8969 = vmatprep.mubr.f32.mxu0 0.0
      %8970 = vmatmul.mubr.f32.gmra.mrb[0].mxu0 %v8828
      %v8971 = vpop.f32.mrb[0].mxu0
      %v8972 = vadd.f32 0.0, %v8971
      %v8973 = vpop.f32.mrb[0].mxu0
      %8974 = vmatprep.mubr.f32.mxu0 0.0
      %8975 = vmatmul.mubr.f32.gmra.mrb[0].mxu0 %v8830
      %v8976 = vpop.f32.mrb[0].mxu0
      %v8977 = vadd.f32 0.0, %v8976
      %v8978 = vpop.f32.mrb[0].mxu0
      %8979 = vdwg.mxu0
      %v8980 = vadd.f32 %v8783, %v8902
      %v8981 = vadd.f32 %v8784, %v8907
      %v8982 = vadd.f32 %v8785, %v8912
      %v8983 = vadd.f32 %v8786, %v8917
      %v8984 = vadd.f32 %v8787, %v8922
      %v8985 = vadd.f32 %v8788, %v8927
      %v8986 = vadd.f32 %v8789, %v8932
      %v8987 = vadd.f32 %v8790, %v8937
      %v8988 = vadd.f32 %v8791, %v8942
      %v8989 = vadd.f32 %v8792, %v8947
      %v8990 = vadd.f32 %v8793, %v8952
      %v8991 = vadd.f32 %v8794, %v8957
      %v8992 = vadd.f32 %v8795, %v8962
      %v8993 = vadd.f32 %v8796, %v8967
      %v8994 = vadd.f32 %v8797, %v8972
      %v8995 = vadd.f32 %v8798, %v8977
      %v8996 = vld [vmem:[%s3 + $0x20] sm:$0xf]
      %v8997 = vsel %vm225, %v8564, 0
      %v8999 = vsel %vm225, %v8566, 0
      %v9001 = vsel %vm225, %v8569, 0
      %v9003 = vsel %vm225, %v8571, 0
      %v9005 = vsel %vm225, %v8574, 0
      %v9007 = vsel %vm225, %v8576, 0
      %v9009 = vsel %vm225, %v8579, 0
      %v9011 = vsel %vm225, %v8581, 0
      %v9013 = vsel %vm225, %v8584, 0
      %v9015 = vsel %vm225, %v8586, 0
      %v9017 = vsel %vm225, %v8589, 0
      %v9019 = vsel %vm225, %v8591, 0
      %v9021 = vsel %vm225, %v8594, 0
      %v9023 = vsel %vm225, %v8596, 0
      %v9025 = vsel %vm225, %v8599, 0
      %v9027 = vsel %vm225, %v8601, 0
      %v9030 = vsel %vm547, %v8996, 0
      %9032 = vmatprep.subr.mxu0 0.0
      %9033 = vmatpush1.msra.mxu0 %v9030
      %9034 = vmatprep.subr.mxu0 0.0
      %9035 = vmatpush1.msra.mxu0 0.0
      %9036 = vmatprep.subr.mxu0 0.0
      %9037 = vmatpush1.msra.mxu0 0.0
      %9038 = vmatprep.subr.mxu0 0.0
      %9039 = vmatpush1.msra.mxu0 0.0
      %9040 = vmatprep.subr.mxu0 0.0
      %9041 = vmatpush1.msra.mxu0 0.0
      %9042 = vmatprep.subr.mxu0 0.0
      %9043 = vmatpush1.msra.mxu0 0.0
      %9044 = vmatprep.subr.mxu0 0.0
      %9045 = vmatpush1.msra.mxu0 0.0
      %9046 = vmatprep.subr.mxu0 0.0
      %9047 = vmatpush1.msra.mxu0 0.0
      %9048 = vmatprep.subr.mxu0 0.0
      %9049 = vmatpush1.msra.mxu0 0.0
      %9050 = vmatprep.subr.mxu0 0.0
      %9051 = vmatpush1.msra.mxu0 0.0
      %9052 = vmatprep.subr.mxu0 0.0
      %9053 = vmatpush1.msra.mxu0 0.0
      %9054 = vmatprep.subr.mxu0 0.0
      %9055 = vmatpush1.msra.mxu0 0.0
      %9056 = vmatprep.subr.mxu0 0.0
      %9057 = vmatpush1.msra.mxu0 0.0
      %9058 = vmatprep.subr.mxu0 0.0
      %9059 = vmatpush1.msra.mxu0 0.0
      %9060 = vmatprep.subr.mxu0 0.0
      %9061 = vmatpush1.msra.mxu0 0.0
      %9062 = vmatprep.subr.mxu0 0.0
      %9063 = vmatpush1.msra.mxu0 0.0
      %9064 = vmatprep.subr.mxu0 0.0
      %9065 = vmatpush1.msra.mxu0 0.0
      %9066 = vmatprep.subr.mxu0 0.0
      %9067 = vmatpush1.msra.mxu0 0.0
      %9068 = vmatprep.subr.mxu0 0.0
      %9069 = vmatpush1.msra.mxu0 0.0
      %9070 = vmatprep.subr.mxu0 0.0
      %9071 = vmatpush1.msra.mxu0 0.0
      %9072 = vmatprep.subr.mxu0 0.0
      %9073 = vmatpush1.msra.mxu0 0.0
      %9074 = vmatprep.subr.mxu0 0.0
      %9075 = vmatpush1.msra.mxu0 0.0
      %9076 = vmatprep.subr.mxu0 0.0
      %9077 = vmatpush1.msra.mxu0 0.0
      %9078 = vmatprep.subr.mxu0 0.0
      %9079 = vmatpush1.msra.mxu0 0.0
      %9080 = vmatprep.subr.mxu0 0.0
      %9081 = vmatpush1.msra.mxu0 0.0
      %9082 = vmatprep.subr.mxu0 0.0
      %9083 = vmatpush1.msra.mxu0 0.0
      %9084 = vmatprep.subr.mxu0 0.0
      %9085 = vmatpush1.msra.mxu0 0.0
      %9086 = vmatprep.subr.mxu0 0.0
      %9087 = vmatpush1.msra.mxu0 0.0
      %9088 = vmatprep.subr.mxu0 0.0
      %9089 = vmatpush1.msra.mxu0 0.0
      %9090 = vmatprep.subr.mxu0 0.0
      %9091 = vmatpush1.msra.mxu0 0.0
      %9092 = vmatprep.subr.mxu0 0.0
      %9093 = vmatpush1.msra.mxu0 0.0
      %9094 = vmatprep.subr.mxu0 0.0
      %9095 = vmatpush1.msra.mxu0 0.0
      %9096 = vmatprep.mubr.f32.mxu0 0.0
      %9097 = vmatmul.mubr.f32.gmra.mrb[0].mxu0 %v8997
      %v9098 = vpop.f32.mrb[0].mxu0
      %v9099 = vadd.f32 0.0, %v9098
      %v9100 = vpop.f32.mrb[0].mxu0
      %9101 = vmatprep.mubr.f32.mxu0 0.0
      %9102 = vmatmul.mubr.f32.gmra.mrb[0].mxu0 %v8999
      %v9103 = vpop.f32.mrb[0].mxu0
      %v9104 = vadd.f32 0.0, %v9103
      %v9105 = vpop.f32.mrb[0].mxu0
      %9106 = vmatprep.mubr.f32.mxu0 0.0
      %9107 = vmatmul.mubr.f32.gmra.mrb[0].mxu0 %v9001
      %v9108 = vpop.f32.mrb[0].mxu0
      %v9109 = vadd.f32 0.0, %v9108
      %v9110 = vpop.f32.mrb[0].mxu0
      %9111 = vmatprep.mubr.f32.mxu0 0.0
      %9112 = vmatmul.mubr.f32.gmra.mrb[0].mxu0 %v9003
      %v9113 = vpop.f32.mrb[0].mxu0
      %v9114 = vadd.f32 0.0, %v9113
      %v9115 = vpop.f32.mrb[0].mxu0
      %9116 = vmatprep.mubr.f32.mxu0 0.0
      %9117 = vmatmul.mubr.f32.gmra.mrb[0].mxu0 %v9005
      %v9118 = vpop.f32.mrb[0].mxu0
      %v9119 = vadd.f32 0.0, %v9118
      %v9120 = vpop.f32.mrb[0].mxu0
      %9121 = vmatprep.mubr.f32.mxu0 0.0
      %9122 = vmatmul.mubr.f32.gmra.mrb[0].mxu0 %v9007
      %v9123 = vpop.f32.mrb[0].mxu0
      %v9124 = vadd.f32 0.0, %v9123
      %v9125 = vpop.f32.mrb[0].mxu0
      %9126 = vmatprep.mubr.f32.mxu0 0.0
      %9127 = vmatmul.mubr.f32.gmra.mrb[0].mxu0 %v9009
      %v9128 = vpop.f32.mrb[0].mxu0
      %v9129 = vadd.f32 0.0, %v9128
      %v9130 = vpop.f32.mrb[0].mxu0
      %9131 = vmatprep.mubr.f32.mxu0 0.0
      %9132 = vmatmul.mubr.f32.gmra.mrb[0].mxu0 %v9011
      %v9133 = vpop.f32.mrb[0].mxu0
      %v9134 = vadd.f32 0.0, %v9133
      %v9135 = vpop.f32.mrb[0].mxu0
      %9136 = vmatprep.mubr.f32.mxu0 0.0
      %9137 = vmatmul.mubr.f32.gmra.mrb[0].mxu0 %v9013
      %v9138 = vpop.f32.mrb[0].mxu0
      %v9139 = vadd.f32 0.0, %v9138
      %v9140 = vpop.f32.mrb[0].mxu0
      %9141 = vmatprep.mubr.f32.mxu0 0.0
      %9142 = vmatmul.mubr.f32.gmra.mrb[0].mxu0 %v9015
      %v9143 = vpop.f32.mrb[0].mxu0
      %v9144 = vadd.f32 0.0, %v9143
      %v9145 = vpop.f32.mrb[0].mxu0
      %9146 = vmatprep.mubr.f32.mxu0 0.0
      %9147 = vmatmul.mubr.f32.gmra.mrb[0].mxu0 %v9017
      %v9148 = vpop.f32.mrb[0].mxu0
      %v9149 = vadd.f32 0.0, %v9148
      %v9150 = vpop.f32.mrb[0].mxu0
      %9151 = vmatprep.mubr.f32.mxu0 0.0
      %9152 = vmatmul.mubr.f32.gmra.mrb[0].mxu0 %v9019
      %v9153 = vpop.f32.mrb[0].mxu0
      %v9154 = vadd.f32 0.0, %v9153
      %v9155 = vpop.f32.mrb[0].mxu0
      %9156 = vmatprep.mubr.f32.mxu0 0.0
      %9157 = vmatmul.mubr.f32.gmra.mrb[0].mxu0 %v9021
      %v9158 = vpop.f32.mrb[0].mxu0
      %v9159 = vadd.f32 0.0, %v9158
      %v9160 = vpop.f32.mrb[0].mxu0
      %9161 = vmatprep.mubr.f32.mxu0 0.0
      %9162 = vmatmul.mubr.f32.gmra.mrb[0].mxu0 %v9023
      %v9163 = vpop.f32.mrb[0].mxu0
      %v9164 = vadd.f32 0.0, %v9163
      %v9165 = vpop.f32.mrb[0].mxu0
      %9166 = vmatprep.mubr.f32.mxu0 0.0
      %9167 = vmatmul.mubr.f32.gmra.mrb[0].mxu0 %v9025
      %v9168 = vpop.f32.mrb[0].mxu0
      %v9169 = vadd.f32 0.0, %v9168
      %v9170 = vpop.f32.mrb[0].mxu0
      %9171 = vmatprep.mubr.f32.mxu0 0.0
      %9172 = vmatmul.mubr.f32.gmra.mrb[0].mxu0 %v9027
      %v9173 = vpop.f32.mrb[0].mxu0
      %v9174 = vadd.f32 0.0, %v9173
      %v9175 = vpop.f32.mrb[0].mxu0
      %9176 = vdwg.mxu0
      %v9177 = vadd.f32 %v8980, %v9099
      %v9178 = vadd.f32 %v8981, %v9104
      %v9179 = vadd.f32 %v8982, %v9109
      %v9180 = vadd.f32 %v8983, %v9114
      %v9181 = vadd.f32 %v8984, %v9119
      %v9182 = vadd.f32 %v8985, %v9124
      %v9183 = vadd.f32 %v8986, %v9129
      %v9184 = vadd.f32 %v8987, %v9134
      %v9185 = vadd.f32 %v8988, %v9139
      %v9186 = vadd.f32 %v8989, %v9144
      %v9187 = vadd.f32 %v8990, %v9149
      %v9188 = vadd.f32 %v8991, %v9154
      %v9189 = vadd.f32 %v8992, %v9159
      %v9190 = vadd.f32 %v8993, %v9164
      %v9191 = vadd.f32 %v8994, %v9169
      %v9192 = vadd.f32 %v8995, %v9174
      %v9193 = vadd.f32 %v9177, %v6949
      %v9194 = vadd.f32 %v9178, %v6949
      %v9195 = vadd.f32 %v9179, %v6949
      %v9196 = vadd.f32 %v9180, %v6949
      %v9197 = vadd.f32 %v9181, %v6949
      %v9198 = vadd.f32 %v9182, %v6949
      %v9199 = vadd.f32 %v9183, %v6949
      %v9200 = vadd.f32 %v9184, %v6949
      %v9201 = vadd.f32 %v9185, %v6949
      %v9202 = vadd.f32 %v9186, %v6949
      %v9203 = vadd.f32 %v9187, %v6949
      %v9204 = vadd.f32 %v9188, %v6949
      %v9205 = vadd.f32 %v9189, %v6949
      %v9206 = vadd.f32 %v9190, %v6949
      %v9207 = vadd.f32 %v9191, %v6949
      %v9208 = vadd.f32 %v9192, %v6949
      %s9209 = smul.u32 8, 16
      %s9210 = scalar_lea.vmem %s219, %s9209
      %v9211 = vld [vmem:[%s9210] sm:$0xff]
      %v9212 = vld [vmem:[%s9210 + $0x8] sm:$0xff]
      %v9213 = vld [vmem:[%s9210 + $0x10] sm:$0xff]
      %v9214 = vld [vmem:[%s9210 + $0x18] sm:$0xff]
      %v9215 = vld [vmem:[%s9210 + $0x20] sm:$0xff]
      %v9216 = vld [vmem:[%s9210 + $0x28] sm:$0xff]
      %v9217 = vld [vmem:[%s9210 + $0x30] sm:$0xff]
      %v9218 = vld [vmem:[%s9210 + $0x38] sm:$0xff]
      %v9219 = vld [vmem:[%s9210 + $0x40] sm:$0xff]
      %v9220 = vld [vmem:[%s9210 + $0x48] sm:$0xff]
      %v9221 = vld [vmem:[%s9210 + $0x50] sm:$0xff]
      %v9222 = vld [vmem:[%s9210 + $0x58] sm:$0xff]
      %v9223 = vld [vmem:[%s9210 + $0x60] sm:$0xff]
      %v9224 = vld [vmem:[%s9210 + $0x68] sm:$0xff]
      %v9225 = vld [vmem:[%s9210 + $0x70] sm:$0xff]
      %v9226 = vld [vmem:[%s9210 + $0x78] sm:$0xff]
      %v9227 = vadd.f32 %v9193, %v9211
      %v9228 = vadd.f32 %v9194, %v9212
      %v9229 = vadd.f32 %v9195, %v9213
      %v9230 = vadd.f32 %v9196, %v9214
      %v9231 = vadd.f32 %v9197, %v9215
      %v9232 = vadd.f32 %v9198, %v9216
      %v9233 = vadd.f32 %v9199, %v9217
      %v9234 = vadd.f32 %v9200, %v9218
      %v9235 = vadd.f32 %v9201, %v9219
      %v9236 = vadd.f32 %v9202, %v9220
      %v9237 = vadd.f32 %v9203, %v9221
      %v9238 = vadd.f32 %v9204, %v9222
      %v9239 = vadd.f32 %v9205, %v9223
      %v9240 = vadd.f32 %v9206, %v9224
      %v9241 = vadd.f32 %v9207, %v9225
      %v9242 = vadd.f32 %v9208, %v9226
      %vm9243 = vcmp.gt.f32.partialorder %v9227, 0.0
      %vm9244 = vcmp.gt.f32.partialorder %v9228, 0.0
      %vm9245 = vcmp.gt.f32.partialorder %v9229, 0.0
      %vm9246 = vcmp.gt.f32.partialorder %v9230, 0.0
      %vm9247 = vcmp.gt.f32.partialorder %v9231, 0.0
      %vm9248 = vcmp.gt.f32.partialorder %v9232, 0.0
      %vm9249 = vcmp.gt.f32.partialorder %v9233, 0.0
      %vm9250 = vcmp.gt.f32.partialorder %v9234, 0.0
      %vm9251 = vcmp.gt.f32.partialorder %v9235, 0.0
      %vm9252 = vcmp.gt.f32.partialorder %v9236, 0.0
      %vm9253 = vcmp.gt.f32.partialorder %v9237, 0.0
      %vm9254 = vcmp.gt.f32.partialorder %v9238, 0.0
      %vm9255 = vcmp.gt.f32.partialorder %v9239, 0.0
      %vm9256 = vcmp.gt.f32.partialorder %v9240, 0.0
      %vm9257 = vcmp.gt.f32.partialorder %v9241, 0.0
      %vm9258 = vcmp.gt.f32.partialorder %v9242, 0.0
      %v9259 = vmul.f32 %v9227, 0.2
      %v9260 = vmul.f32 %v9228, 0.2
      %v9261 = vmul.f32 %v9229, 0.2
      %v9262 = vmul.f32 %v9230, 0.2
      %v9263 = vmul.f32 %v9231, 0.2
      %v9264 = vmul.f32 %v9232, 0.2
      %v9265 = vmul.f32 %v9233, 0.2
      %v9266 = vmul.f32 %v9234, 0.2
      %v9267 = vmul.f32 %v9235, 0.2
      %v9268 = vmul.f32 %v9236, 0.2
      %v9269 = vmul.f32 %v9237, 0.2
      %v9270 = vmul.f32 %v9238, 0.2
      %v9271 = vmul.f32 %v9239, 0.2
      %v9272 = vmul.f32 %v9240, 0.2
      %v9273 = vmul.f32 %v9241, 0.2
      %v9274 = vmul.f32 %v9242, 0.2
      %v9275 = vsel %vm9243, %v9227, %v9259
      %v9276 = vsel %vm9244, %v9228, %v9260
      %v9277 = vsel %vm9245, %v9229, %v9261
      %v9278 = vsel %vm9246, %v9230, %v9262
      %v9279 = vsel %vm9247, %v9231, %v9263
      %v9280 = vsel %vm9248, %v9232, %v9264
      %v9281 = vsel %vm9249, %v9233, %v9265
      %v9282 = vsel %vm9250, %v9234, %v9266
      %v9283 = vsel %vm9251, %v9235, %v9267
      %v9284 = vsel %vm9252, %v9236, %v9268
      %v9285 = vsel %vm9253, %v9237, %v9269
      %v9286 = vsel %vm9254, %v9238, %v9270
      %v9287 = vsel %vm9255, %v9239, %v9271
      %v9288 = vsel %vm9256, %v9240, %v9272
      %v9289 = vsel %vm9257, %v9241, %v9273
      %v9290 = vsel %vm9258, %v9242, %v9274
      %s9291 = scalar_lea.vmem %s224, %s9209
      %9292 = vst.msk [vmem:[%s9291] sm:$0xff] %vm225, %v9275
      %9293 = vst.msk [vmem:[%s9291 + $0x8] sm:$0xff] %vm225, %v9276
      %9294 = vst.msk [vmem:[%s9291 + $0x10] sm:$0xff] %vm225, %v9277
      %9295 = vst.msk [vmem:[%s9291 + $0x18] sm:$0xff] %vm225, %v9278
      %9296 = vst.msk [vmem:[%s9291 + $0x20] sm:$0xff] %vm225, %v9279
      %9297 = vst.msk [vmem:[%s9291 + $0x28] sm:$0xff] %vm225, %v9280
      %9298 = vst.msk [vmem:[%s9291 + $0x30] sm:$0xff] %vm225, %v9281
      %9299 = vst.msk [vmem:[%s9291 + $0x38] sm:$0xff] %vm225, %v9282
      %9300 = vst.msk [vmem:[%s9291 + $0x40] sm:$0xff] %vm225, %v9283
      %9301 = vst.msk [vmem:[%s9291 + $0x48] sm:$0xff] %vm225, %v9284
      %9302 = vst.msk [vmem:[%s9291 + $0x50] sm:$0xff] %vm225, %v9285
      %9303 = vst.msk [vmem:[%s9291 + $0x58] sm:$0xff] %vm225, %v9286
      %9304 = vst.msk [vmem:[%s9291 + $0x60] sm:$0xff] %vm225, %v9287
      %9305 = vst.msk [vmem:[%s9291 + $0x68] sm:$0xff] %vm225, %v9288
      %9306 = vst.msk [vmem:[%s9291 + $0x70] sm:$0xff] %vm225, %v9289
      %9307 = vst.msk [vmem:[%s9291 + $0x78] sm:$0xff] %vm225, %v9290
      %p9308 = scmp.lt.s32.totalorder %s16, 1
      %s9309 = scalar_select %p9308, %s16, 1
      %s9310 = smul.addr %s9309, 32
      %s9311 = smul.addr %s9310, 8
      %s9312 = scalar_lea.vmem %s5, %s9311
      // Predicated region
      $region41: #{residual_block.1} parent=39 // pred_check
        %p9313 = pneg %p144
      $region42: #{residual_block.1} parent=39 // pred_check_branch
        %9315 = sbr.rel (%p9313) target = $region44
      $region43: #{residual_block.1} parent=39 // pred_region
        _
      $region44: #{residual_block.1} parent=39 // pred_fallthru
        _
    $region40: #{residual_block.1} parent=5 // pred_fallthru
      _
    %p9316 = scmp.le.s32.totalorder 2, %s11
    // Predicated region
    $region45: #{residual_block.1} parent=5 // pred_check
      %p9317 = pneg %p9316
    $region46: #{residual_block.1} parent=5 // pred_check_branch
      %9319 = sbr.rel (%p9317) target = $region48
    $region47: #{residual_block.1} parent=5 // pred_region
      %s9320 = ssub.s32 %s11, 2
      // Predicated region
      $region49: #{residual_block.1} parent=47 // pred_check
        %p9321 = pneg %p150
      $region50: #{residual_block.1} parent=47 // pred_check_branch
        %9323 = sbr.rel (%p9321) target = $region52
      $region51: #{residual_block.1} parent=47 // pred_region
        %p9324 = scmp.lt.s32.totalorder %s17, 1
        %s9325 = scalar_select %p9324, %s17, 1
        %s9326 = smul.addr %s9325, 32
        %s9327 = smul.addr %s9326, 8
        %s9328 = scalar_lea.vmem %s5, %s9327
      $region52: #{residual_block.1} parent=47 // pred_fallthru
        _
    $region48: #{residual_block.1} parent=5 // pred_fallthru
      _
  $region6: #{residual_block.1} parent=0 // loop_footer
    %s15 = sadd.s32 1, %s11
  $region7: #{residual_block.1} parent=0 // loop_footer_branch
    %10 = sbr.rel target = $region3
  $region8: #{residual_block.1} parent=0 // loop_exit
    _

</llo_original>
